<compile_context>
chip_gen: v7x
topology: tpu7x:2x2x1
jax: 0.10.0
libtpu: 0.0.40
codegen_flags: <defaults>
</compile_context>

<pallas_src>
import jax
import jax.numpy as jnp
from jax.experimental import pallas as pl
from jax.experimental.pallas import tpu as pltpu

EPS = 1e-5
DIMS = [2048, 1024, 512, 256, 128]   # layer input widths; final layer padded to 128 lanes
PAD_OUT = 128                        # lane-aligned padded width of the last Linear


def _bn_relu(h, gamma, beta):
    # BatchNorm1d training-mode semantics (batch mean, biased variance) + ReLU, in f32.
    mean = jnp.mean(h, axis=0, keepdims=True)
    var = jnp.mean(jnp.square(h - mean), axis=0, keepdims=True)
    hn = (h - mean) * jax.lax.rsqrt(var + EPS)          # rsqrt -> EUP (free slot)
    return jnp.maximum(hn * gamma + beta, 0.0)


def _linear(h_f32, w_ref, b_ref):
    # bf16 weights streamed from HBM; bf16 x bf16 MXU matmul with f32 accumulation.
    return jnp.dot(h_f32.astype(jnp.bfloat16), w_ref[...],
                   preferred_element_type=jnp.float32) + b_ref[...]


def disc_kernel(x_ref,
                w1, b1, g1, be1,
                w2, b2, g2, be2,
                w3, b3, g3, be3,
                w4, b4, g4, be4,
                w5, b5,
                o_ref):
    h = _bn_relu(_linear(x_ref[...], w1, b1), g1[...], be1[...])
    h = _bn_relu(_linear(h, w2, b2), g2[...], be2[...])
    h = _bn_relu(_linear(h, w3, b3), g3[...], be3[...])
    h = _bn_relu(_linear(h, w4, b4), g4[...], be4[...])
    o_ref[...] = _linear(h, w5, b5).astype(o_ref.dtype)


def resnet50_disc_forward(x, params, out_dim):
    B = x.shape[0]
    flat_inputs = [x] + list(params)
    vmem_spec = pl.BlockSpec(memory_space=pltpu.MemorySpace.VMEM)

    flops = 2 * B * (sum(DIMS[i] * DIMS[i + 1] for i in range(4)) + DIMS[4] * PAD_OUT)
    bytes_accessed = sum(int(a.size) * a.dtype.itemsize for a in flat_inputs) \
        + B * PAD_OUT * 4

    out_padded = pl.pallas_call(
        disc_kernel,
        out_shape=jax.ShapeDtypeStruct((B, PAD_OUT), jnp.float32),
        in_specs=[vmem_spec] * len(flat_inputs),
        out_specs=vmem_spec,
        compiler_params=pltpu.CompilerParams(vmem_limit_bytes=48 << 20),
        cost_estimate=pl.CostEstimate(flops=flops, transcendentals=0,
                                      bytes_accessed=bytes_accessed),
    )(*flat_inputs)
    return out_padded[:, :out_dim]


def ref_forward(x, params, out_dim):
    # pure-JAX reference with identical math (same bf16 weights, f32 accumulation).
    h = x
    idx = 0
    for _ in range(4):
        w, b, g, be = params[idx:idx + 4]
        idx += 4
        h = jnp.dot(h.astype(jnp.bfloat16), w, preferred_element_type=jnp.float32) + b
        m = h.mean(0, keepdims=True)
        v = jnp.square(h - m).mean(0, keepdims=True)
        h = jnp.maximum((h - m) * jax.lax.rsqrt(v + EPS) * g + be, 0.0)
    w, b = params[idx], params[idx + 1]
    out = jnp.dot(h.astype(jnp.bfloat16), w, preferred_element_type=jnp.float32) + b
    return out[:, :out_dim]


def make_params(key, out_dim):
    # PyTorch-style Linear init; weights stored transposed (in, out) and cast to bf16;
    # biases / BN affine params kept in f32.  Final layer zero-padded to 128 lanes.
    dims_full = DIMS + [out_dim]
    keys = jax.random.split(key, 11)
    ki = 0
    params = []
    for li in range(5):
        fan_in, fan_out = dims_full[li], dims_full[li + 1]
        bound = 1.0 / (fan_in ** 0.5)
        w = jax.random.uniform(keys[ki], (fan_in, fan_out), jnp.float32, -bound, bound)
        ki += 1
        b = jax.random.uniform(keys[ki], (1, fan_out), jnp.float32, -bound, bound)
        ki += 1
        if li == 4 and fan_out < PAD_OUT:
            w = jnp.pad(w, ((0, 0), (0, PAD_OUT - fan_out)))
            b = jnp.pad(b, ((0, 0), (0, PAD_OUT - fan_out)))
        params += [w.astype(jnp.bfloat16), b]
        if li < 4:  # BatchNorm1d affine params (gamma=1, beta=0 like PyTorch init)
            params += [jnp.ones((1, fan_out), jnp.float32),
                       jnp.zeros((1, fan_out), jnp.float32)]
    return params, keys[ki]


if __name__ == "__main__":
    B, out_dim = 16, 10   # B kept a multiple of 8 (sublane-aligned batch)
    params, xkey = make_params(jax.random.PRNGKey(0), out_dim)
    x = jax.random.normal(xkey, (B, 2048), jnp.float32)

    out = jax.block_until_ready(resnet50_disc_forward(x, params, out_dim))
    ref = jax.block_until_ready(ref_forward(x, params, out_dim))

    assert out.shape == (B, out_dim)
    assert jnp.allclose(out, ref, rtol=2e-2, atol=2e-2), "mismatch vs JAX reference"

    print("KERNEL_OK")
</pallas_src>

<mosaic_0001>
module attributes {stable_mosaic.version = 11 : i64} {
  func.func @disc_kernel(%arg0: memref<16x2048xf32, #tpu.memory_space<vmem>>, %arg1: memref<2048x1024xbf16, #tpu.memory_space<vmem>>, %arg2: memref<1x1024xf32, #tpu.memory_space<vmem>>, %arg3: memref<1x1024xf32, #tpu.memory_space<vmem>>, %arg4: memref<1x1024xf32, #tpu.memory_space<vmem>>, %arg5: memref<1024x512xbf16, #tpu.memory_space<vmem>>, %arg6: memref<1x512xf32, #tpu.memory_space<vmem>>, %arg7: memref<1x512xf32, #tpu.memory_space<vmem>>, %arg8: memref<1x512xf32, #tpu.memory_space<vmem>>, %arg9: memref<512x256xbf16, #tpu.memory_space<vmem>>, %arg10: memref<1x256xf32, #tpu.memory_space<vmem>>, %arg11: memref<1x256xf32, #tpu.memory_space<vmem>>, %arg12: memref<1x256xf32, #tpu.memory_space<vmem>>, %arg13: memref<256x128xbf16, #tpu.memory_space<vmem>>, %arg14: memref<1x128xf32, #tpu.memory_space<vmem>>, %arg15: memref<1x128xf32, #tpu.memory_space<vmem>>, %arg16: memref<1x128xf32, #tpu.memory_space<vmem>>, %arg17: memref<128x128xbf16, #tpu.memory_space<vmem>>, %arg18: memref<1x128xf32, #tpu.memory_space<vmem>>, %arg19: memref<16x128xf32, #tpu.memory_space<vmem>>) attributes {dimension_semantics = [], scalar_prefetch = 0 : i64, scratch_operands = 0 : i64, tpu.core_type = #tpu.core_type<tc>} {
    %c0 = arith.constant 0 : index
    %c0_0 = arith.constant 0 : index
    %0 = vector.load %arg0[%c0, %c0_0] : memref<16x2048xf32, #tpu.memory_space<vmem>>, vector<16x2048xf32>
    %1 = arith.truncf %0 : vector<16x2048xf32> to vector<16x2048xbf16>
    %c0_1 = arith.constant 0 : index
    %c0_2 = arith.constant 0 : index
    %2 = vector.load %arg1[%c0_1, %c0_2] : memref<2048x1024xbf16, #tpu.memory_space<vmem>>, vector<2048x1024xbf16>
    %cst = arith.constant dense<0.000000e+00> : vector<16x1024xf32>
    %3 = tpu.matmul %1, %2, %cst {dimension_numbers = #tpu.dot_dimension_numbers<[1], [0], [0], [1], [0, 0, 1, 1], [], []>} : vector<16x2048xbf16>, vector<2048x1024xbf16>, vector<16x1024xf32> -> vector<16x1024xf32>
    %c0_3 = arith.constant 0 : index
    %c0_4 = arith.constant 0 : index
    %4 = vector.load %arg2[%c0_3, %c0_4] : memref<1x1024xf32, #tpu.memory_space<vmem>>, vector<1x1024xf32>
    %5 = vector.broadcast %4 : vector<1x1024xf32> to vector<16x1024xf32>
    %6 = arith.addf %3, %5 : vector<16x1024xf32>
    %c0_5 = arith.constant 0 : index
    %c0_6 = arith.constant 0 : index
    %7 = vector.load %arg3[%c0_5, %c0_6] : memref<1x1024xf32, #tpu.memory_space<vmem>>, vector<1x1024xf32>
    %c0_7 = arith.constant 0 : index
    %c0_8 = arith.constant 0 : index
    %8 = vector.load %arg4[%c0_7, %c0_8] : memref<1x1024xf32, #tpu.memory_space<vmem>>, vector<1x1024xf32>
    %cst_9 = arith.constant dense<0.000000e+00> : vector<1024xf32>
    %9 = vector.multi_reduction <add>, %6, %cst_9 [0] : vector<16x1024xf32> to vector<1024xf32>
    %10 = vector.shape_cast %9 : vector<1024xf32> to vector<1x1024xf32>
    %cst_10 = arith.constant 1.600000e+01 : f32
    %11 = vector.broadcast %cst_10 : f32 to vector<1x1024xf32>
    %12 = arith.divf %10, %11 : vector<1x1024xf32>
    %13 = vector.broadcast %12 : vector<1x1024xf32> to vector<16x1024xf32>
    %14 = arith.subf %6, %13 : vector<16x1024xf32>
    %15 = arith.mulf %14, %14 : vector<16x1024xf32>
    %cst_11 = arith.constant dense<0.000000e+00> : vector<1024xf32>
    %16 = vector.multi_reduction <add>, %15, %cst_11 [0] : vector<16x1024xf32> to vector<1024xf32>
    %17 = vector.shape_cast %16 : vector<1024xf32> to vector<1x1024xf32>
    %cst_12 = arith.constant 1.600000e+01 : f32
    %18 = vector.broadcast %cst_12 : f32 to vector<1x1024xf32>
    %19 = arith.divf %17, %18 : vector<1x1024xf32>
    %20 = vector.broadcast %12 : vector<1x1024xf32> to vector<16x1024xf32>
    %21 = arith.subf %6, %20 : vector<16x1024xf32>
    %cst_13 = arith.constant 9.99999974E-6 : f32
    %22 = vector.broadcast %cst_13 : f32 to vector<1x1024xf32>
    %23 = arith.addf %19, %22 : vector<1x1024xf32>
    %24 = math.rsqrt %23 : vector<1x1024xf32>
    %25 = vector.broadcast %24 : vector<1x1024xf32> to vector<16x1024xf32>
    %26 = arith.mulf %21, %25 : vector<16x1024xf32>
    %27 = vector.broadcast %7 : vector<1x1024xf32> to vector<16x1024xf32>
    %28 = arith.mulf %26, %27 : vector<16x1024xf32>
    %29 = vector.broadcast %8 : vector<1x1024xf32> to vector<16x1024xf32>
    %30 = arith.addf %28, %29 : vector<16x1024xf32>
    %cst_14 = arith.constant 0.000000e+00 : f32
    %31 = vector.broadcast %cst_14 : f32 to vector<16x1024xf32>
    %32 = arith.maximumf %30, %31 : vector<16x1024xf32>
    %33 = arith.truncf %32 : vector<16x1024xf32> to vector<16x1024xbf16>
    %c0_15 = arith.constant 0 : index
    %c0_16 = arith.constant 0 : index
    %34 = vector.load %arg5[%c0_15, %c0_16] : memref<1024x512xbf16, #tpu.memory_space<vmem>>, vector<1024x512xbf16>
    %cst_17 = arith.constant dense<0.000000e+00> : vector<16x512xf32>
    %35 = tpu.matmul %33, %34, %cst_17 {dimension_numbers = #tpu.dot_dimension_numbers<[1], [0], [0], [1], [0, 0, 1, 1], [], []>} : vector<16x1024xbf16>, vector<1024x512xbf16>, vector<16x512xf32> -> vector<16x512xf32>
    %c0_18 = arith.constant 0 : index
    %c0_19 = arith.constant 0 : index
    %36 = vector.load %arg6[%c0_18, %c0_19] : memref<1x512xf32, #tpu.memory_space<vmem>>, vector<1x512xf32>
    %37 = vector.broadcast %36 : vector<1x512xf32> to vector<16x512xf32>
    %38 = arith.addf %35, %37 : vector<16x512xf32>
    %c0_20 = arith.constant 0 : index
    %c0_21 = arith.constant 0 : index
    %39 = vector.load %arg7[%c0_20, %c0_21] : memref<1x512xf32, #tpu.memory_space<vmem>>, vector<1x512xf32>
    %c0_22 = arith.constant 0 : index
    %c0_23 = arith.constant 0 : index
    %40 = vector.load %arg8[%c0_22, %c0_23] : memref<1x512xf32, #tpu.memory_space<vmem>>, vector<1x512xf32>
    %cst_24 = arith.constant dense<0.000000e+00> : vector<512xf32>
    %41 = vector.multi_reduction <add>, %38, %cst_24 [0] : vector<16x512xf32> to vector<512xf32>
    %42 = vector.shape_cast %41 : vector<512xf32> to vector<1x512xf32>
    %cst_25 = arith.constant 1.600000e+01 : f32
    %43 = vector.broadcast %cst_25 : f32 to vector<1x512xf32>
    %44 = arith.divf %42, %43 : vector<1x512xf32>
    %45 = vector.broadcast %44 : vector<1x512xf32> to vector<16x512xf32>
    %46 = arith.subf %38, %45 : vector<16x512xf32>
    %47 = arith.mulf %46, %46 : vector<16x512xf32>
    %cst_26 = arith.constant dense<0.000000e+00> : vector<512xf32>
    %48 = vector.multi_reduction <add>, %47, %cst_26 [0] : vector<16x512xf32> to vector<512xf32>
    %49 = vector.shape_cast %48 : vector<512xf32> to vector<1x512xf32>
    %cst_27 = arith.constant 1.600000e+01 : f32
    %50 = vector.broadcast %cst_27 : f32 to vector<1x512xf32>
    %51 = arith.divf %49, %50 : vector<1x512xf32>
    %52 = vector.broadcast %44 : vector<1x512xf32> to vector<16x512xf32>
    %53 = arith.subf %38, %52 : vector<16x512xf32>
    %cst_28 = arith.constant 9.99999974E-6 : f32
    %54 = vector.broadcast %cst_28 : f32 to vector<1x512xf32>
    %55 = arith.addf %51, %54 : vector<1x512xf32>
    %56 = math.rsqrt %55 : vector<1x512xf32>
    %57 = vector.broadcast %56 : vector<1x512xf32> to vector<16x512xf32>
    %58 = arith.mulf %53, %57 : vector<16x512xf32>
    %59 = vector.broadcast %39 : vector<1x512xf32> to vector<16x512xf32>
    %60 = arith.mulf %58, %59 : vector<16x512xf32>
    %61 = vector.broadcast %40 : vector<1x512xf32> to vector<16x512xf32>
    %62 = arith.addf %60, %61 : vector<16x512xf32>
    %cst_29 = arith.constant 0.000000e+00 : f32
    %63 = vector.broadcast %cst_29 : f32 to vector<16x512xf32>
    %64 = arith.maximumf %62, %63 : vector<16x512xf32>
    %65 = arith.truncf %64 : vector<16x512xf32> to vector<16x512xbf16>
    %c0_30 = arith.constant 0 : index
    %c0_31 = arith.constant 0 : index
    %66 = vector.load %arg9[%c0_30, %c0_31] : memref<512x256xbf16, #tpu.memory_space<vmem>>, vector<512x256xbf16>
    %cst_32 = arith.constant dense<0.000000e+00> : vector<16x256xf32>
    %67 = tpu.matmul %65, %66, %cst_32 {dimension_numbers = #tpu.dot_dimension_numbers<[1], [0], [0], [1], [0, 0, 1, 1], [], []>} : vector<16x512xbf16>, vector<512x256xbf16>, vector<16x256xf32> -> vector<16x256xf32>
    %c0_33 = arith.constant 0 : index
    %c0_34 = arith.constant 0 : index
    %68 = vector.load %arg10[%c0_33, %c0_34] : memref<1x256xf32, #tpu.memory_space<vmem>>, vector<1x256xf32>
    %69 = vector.broadcast %68 : vector<1x256xf32> to vector<16x256xf32>
    %70 = arith.addf %67, %69 : vector<16x256xf32>
    %c0_35 = arith.constant 0 : index
    %c0_36 = arith.constant 0 : index
    %71 = vector.load %arg11[%c0_35, %c0_36] : memref<1x256xf32, #tpu.memory_space<vmem>>, vector<1x256xf32>
    %c0_37 = arith.constant 0 : index
    %c0_38 = arith.constant 0 : index
    %72 = vector.load %arg12[%c0_37, %c0_38] : memref<1x256xf32, #tpu.memory_space<vmem>>, vector<1x256xf32>
    %cst_39 = arith.constant dense<0.000000e+00> : vector<256xf32>
    %73 = vector.multi_reduction <add>, %70, %cst_39 [0] : vector<16x256xf32> to vector<256xf32>
    %74 = vector.shape_cast %73 : vector<256xf32> to vector<1x256xf32>
    %cst_40 = arith.constant 1.600000e+01 : f32
    %75 = vector.broadcast %cst_40 : f32 to vector<1x256xf32>
    %76 = arith.divf %74, %75 : vector<1x256xf32>
    %77 = vector.broadcast %76 : vector<1x256xf32> to vector<16x256xf32>
    %78 = arith.subf %70, %77 : vector<16x256xf32>
    %79 = arith.mulf %78, %78 : vector<16x256xf32>
    %cst_41 = arith.constant dense<0.000000e+00> : vector<256xf32>
    %80 = vector.multi_reduction <add>, %79, %cst_41 [0] : vector<16x256xf32> to vector<256xf32>
    %81 = vector.shape_cast %80 : vector<256xf32> to vector<1x256xf32>
    %cst_42 = arith.constant 1.600000e+01 : f32
    %82 = vector.broadcast %cst_42 : f32 to vector<1x256xf32>
    %83 = arith.divf %81, %82 : vector<1x256xf32>
    %84 = vector.broadcast %76 : vector<1x256xf32> to vector<16x256xf32>
    %85 = arith.subf %70, %84 : vector<16x256xf32>
    %cst_43 = arith.constant 9.99999974E-6 : f32
    %86 = vector.broadcast %cst_43 : f32 to vector<1x256xf32>
    %87 = arith.addf %83, %86 : vector<1x256xf32>
    %88 = math.rsqrt %87 : vector<1x256xf32>
    %89 = vector.broadcast %88 : vector<1x256xf32> to vector<16x256xf32>
    %90 = arith.mulf %85, %89 : vector<16x256xf32>
    %91 = vector.broadcast %71 : vector<1x256xf32> to vector<16x256xf32>
    %92 = arith.mulf %90, %91 : vector<16x256xf32>
    %93 = vector.broadcast %72 : vector<1x256xf32> to vector<16x256xf32>
    %94 = arith.addf %92, %93 : vector<16x256xf32>
    %cst_44 = arith.constant 0.000000e+00 : f32
    %95 = vector.broadcast %cst_44 : f32 to vector<16x256xf32>
    %96 = arith.maximumf %94, %95 : vector<16x256xf32>
    %97 = arith.truncf %96 : vector<16x256xf32> to vector<16x256xbf16>
    %c0_45 = arith.constant 0 : index
    %c0_46 = arith.constant 0 : index
    %98 = vector.load %arg13[%c0_45, %c0_46] : memref<256x128xbf16, #tpu.memory_space<vmem>>, vector<256x128xbf16>
    %cst_47 = arith.constant dense<0.000000e+00> : vector<16x128xf32>
    %99 = tpu.matmul %97, %98, %cst_47 {dimension_numbers = #tpu.dot_dimension_numbers<[1], [0], [0], [1], [0, 0, 1, 1], [], []>} : vector<16x256xbf16>, vector<256x128xbf16>, vector<16x128xf32> -> vector<16x128xf32>
    %c0_48 = arith.constant 0 : index
    %c0_49 = arith.constant 0 : index
    %100 = vector.load %arg14[%c0_48, %c0_49] : memref<1x128xf32, #tpu.memory_space<vmem>>, vector<1x128xf32>
    %101 = vector.broadcast %100 : vector<1x128xf32> to vector<16x128xf32>
    %102 = arith.addf %99, %101 : vector<16x128xf32>
    %c0_50 = arith.constant 0 : index
    %c0_51 = arith.constant 0 : index
    %103 = vector.load %arg15[%c0_50, %c0_51] : memref<1x128xf32, #tpu.memory_space<vmem>>, vector<1x128xf32>
    %c0_52 = arith.constant 0 : index
    %c0_53 = arith.constant 0 : index
    %104 = vector.load %arg16[%c0_52, %c0_53] : memref<1x128xf32, #tpu.memory_space<vmem>>, vector<1x128xf32>
    %cst_54 = arith.constant dense<0.000000e+00> : vector<128xf32>
    %105 = vector.multi_reduction <add>, %102, %cst_54 [0] : vector<16x128xf32> to vector<128xf32>
    %106 = vector.shape_cast %105 : vector<128xf32> to vector<1x128xf32>
    %cst_55 = arith.constant 1.600000e+01 : f32
    %107 = vector.broadcast %cst_55 : f32 to vector<1x128xf32>
    %108 = arith.divf %106, %107 : vector<1x128xf32>
    %109 = vector.broadcast %108 : vector<1x128xf32> to vector<16x128xf32>
    %110 = arith.subf %102, %109 : vector<16x128xf32>
    %111 = arith.mulf %110, %110 : vector<16x128xf32>
    %cst_56 = arith.constant dense<0.000000e+00> : vector<128xf32>
    %112 = vector.multi_reduction <add>, %111, %cst_56 [0] : vector<16x128xf32> to vector<128xf32>
    %113 = vector.shape_cast %112 : vector<128xf32> to vector<1x128xf32>
    %cst_57 = arith.constant 1.600000e+01 : f32
    %114 = vector.broadcast %cst_57 : f32 to vector<1x128xf32>
    %115 = arith.divf %113, %114 : vector<1x128xf32>
    %116 = vector.broadcast %108 : vector<1x128xf32> to vector<16x128xf32>
    %117 = arith.subf %102, %116 : vector<16x128xf32>
    %cst_58 = arith.constant 9.99999974E-6 : f32
    %118 = vector.broadcast %cst_58 : f32 to vector<1x128xf32>
    %119 = arith.addf %115, %118 : vector<1x128xf32>
    %120 = math.rsqrt %119 : vector<1x128xf32>
    %121 = vector.broadcast %120 : vector<1x128xf32> to vector<16x128xf32>
    %122 = arith.mulf %117, %121 : vector<16x128xf32>
    %123 = vector.broadcast %103 : vector<1x128xf32> to vector<16x128xf32>
    %124 = arith.mulf %122, %123 : vector<16x128xf32>
    %125 = vector.broadcast %104 : vector<1x128xf32> to vector<16x128xf32>
    %126 = arith.addf %124, %125 : vector<16x128xf32>
    %cst_59 = arith.constant 0.000000e+00 : f32
    %127 = vector.broadcast %cst_59 : f32 to vector<16x128xf32>
    %128 = arith.maximumf %126, %127 : vector<16x128xf32>
    %129 = arith.truncf %128 : vector<16x128xf32> to vector<16x128xbf16>
    %c0_60 = arith.constant 0 : index
    %c0_61 = arith.constant 0 : index
    %130 = vector.load %arg17[%c0_60, %c0_61] : memref<128x128xbf16, #tpu.memory_space<vmem>>, vector<128x128xbf16>
    %cst_62 = arith.constant dense<0.000000e+00> : vector<16x128xf32>
    %131 = tpu.matmul %129, %130, %cst_62 {dimension_numbers = #tpu.dot_dimension_numbers<[1], [0], [0], [1], [0, 0, 1, 1], [], []>} : vector<16x128xbf16>, vector<128x128xbf16>, vector<16x128xf32> -> vector<16x128xf32>
    %c0_63 = arith.constant 0 : index
    %c0_64 = arith.constant 0 : index
    %132 = vector.load %arg18[%c0_63, %c0_64] : memref<1x128xf32, #tpu.memory_space<vmem>>, vector<1x128xf32>
    %133 = vector.broadcast %132 : vector<1x128xf32> to vector<16x128xf32>
    %134 = arith.addf %131, %133 : vector<16x128xf32>
    %c0_65 = arith.constant 0 : index
    %c0_66 = arith.constant 0 : index
    %135 = vector.load %arg19[%c0_65, %c0_66] : memref<16x128xf32, #tpu.memory_space<vmem>>, vector<16x128xf32>
    tpu.vector_store %arg19[%c0_65, %c0_66], %134 {strides = array<i32>} : memref<16x128xf32, #tpu.memory_space<vmem>>, vector<16x128xf32>,
    return
  }
}

</mosaic_0001>

<llo_original>
// kernel: tpu_custom_call.1
$region0: #{tpu_custom_call.1}
  #allocation0 [shape = 'u32[]', space=smem, size = 0x4, offset = 0x4, fixed_abs, tag = 'smem constant byte address 0x4 - core index']
  #allocation1 [shape = 'u32[144,128]{1,0:T(1,128)}', space=vmem, size = 0x12000, scoped, tag = 'internal scratch']
  %s0 = inlined_call_operand.hbm [shape: f32[16,2048], index: 0, kind: input, shape index: {}]
  %s1 = inlined_call_operand.hbm [shape: bf16[2048,1024], index: 1, kind: input, shape index: {}]
  %s2 = inlined_call_operand.hbm [shape: f32[1,1024], index: 2, kind: input, shape index: {}]
  %s3 = inlined_call_operand.hbm [shape: f32[1,1024], index: 3, kind: input, shape index: {}]
  %s4 = inlined_call_operand.hbm [shape: f32[1,1024], index: 4, kind: input, shape index: {}]
  %s5 = inlined_call_operand.hbm [shape: bf16[1024,512], index: 5, kind: input, shape index: {}]
  %s6 = inlined_call_operand.hbm [shape: f32[1,512], index: 6, kind: input, shape index: {}]
  %s7 = inlined_call_operand.hbm [shape: f32[1,512], index: 7, kind: input, shape index: {}]
  %s8 = inlined_call_operand.hbm [shape: f32[1,512], index: 8, kind: input, shape index: {}]
  %s9 = inlined_call_operand.hbm [shape: bf16[512,256], index: 9, kind: input, shape index: {}]
  %s10 = inlined_call_operand.hbm [shape: f32[1,256], index: 10, kind: input, shape index: {}]
  %s11 = inlined_call_operand.hbm [shape: f32[1,256], index: 11, kind: input, shape index: {}]
  %s12 = inlined_call_operand.hbm [shape: f32[1,256], index: 12, kind: input, shape index: {}]
  %s13 = inlined_call_operand.hbm [shape: bf16[256,128], index: 13, kind: input, shape index: {}]
  %s14 = inlined_call_operand.hbm [shape: f32[1,128], index: 14, kind: input, shape index: {}]
  %s15 = inlined_call_operand.hbm [shape: f32[1,128], index: 15, kind: input, shape index: {}]
  %s16 = inlined_call_operand.hbm [shape: f32[1,128], index: 16, kind: input, shape index: {}]
  %s17 = inlined_call_operand.hbm [shape: bf16[128,128], index: 17, kind: input, shape index: {}]
  %s18 = inlined_call_operand.hbm [shape: f32[1,128], index: 18, kind: input, shape index: {}]
  %s19 = inlined_call_operand.hbm [shape: f32[16,128], index: 19, kind: output, shape index: {}]
  %s20 = sld [smem:[#allocation0]]
  $region162: #{tpu_custom_call.1} parent=0
    _
  %s22 = ssub.s32 1, %s20
  %s23 = scalar_select 0, %s22, %s20
  $region1: #{tpu_custom_call.1} parent=0
    #allocation2 [shape = 'u8[131072]{0}', space=vmem, size = 0x20000, scoped, tag = 'input window, operand 0, single buffered']
    #allocation3 [shape = 's32[1]{0}', space=sflag, size = 0x4, scoped, tag = 'scoped memory for tpu_custom_call.1']
    #allocation4 [shape = 's32[1]{0}', space=sflag, size = 0x4, scoped, tag = 'scoped memory for tpu_custom_call.1']
    #allocation5 [shape = 'u8[4194304]{0}', space=vmem, size = 0x400000, scoped, tag = 'input window, operand 1, single buffered']
    #allocation6 [shape = 's32[1]{0}', space=sflag, size = 0x4, scoped, tag = 'scoped memory for tpu_custom_call.1']
    #allocation7 [shape = 'u8[4096]{0}', space=vmem, size = 0x1000, scoped, tag = 'input window, operand 2, single buffered']
    #allocation8 [shape = 'u8[4096]{0}', space=vmem, size = 0x1000, scoped, tag = 'input window, operand 3, single buffered']
    #allocation9 [shape = 's32[1]{0}', space=sflag, size = 0x4, scoped, tag = 'scoped memory for tpu_custom_call.1']
    #allocation10 [shape = 'u8[4096]{0}', space=vmem, size = 0x1000, scoped, tag = 'input window, operand 4, single buffered']
    #allocation11 [shape = 'u8[1048576]{0}', space=vmem, size = 0x100000, scoped, tag = 'input window, operand 5, single buffered']
    #allocation12 [shape = 's32[1]{0}', space=sflag, size = 0x4, scoped, tag = 'scoped memory for tpu_custom_call.1']
    #allocation13 [shape = 'u8[2048]{0}', space=vmem, size = 0x800, scoped, tag = 'input window, operand 6, single buffered']
    #allocation14 [shape = 'u8[2048]{0}', space=vmem, size = 0x800, scoped, tag = 'input window, operand 7, single buffered']
    #allocation15 [shape = 's32[1]{0}', space=sflag, size = 0x4, scoped, tag = 'scoped memory for tpu_custom_call.1']
    #allocation16 [shape = 'u8[2048]{0}', space=vmem, size = 0x800, scoped, tag = 'input window, operand 8, single buffered']
    #allocation17 [shape = 'u8[262144]{0}', space=vmem, size = 0x40000, scoped, tag = 'input window, operand 9, single buffered']
    #allocation18 [shape = 's32[1]{0}', space=sflag, size = 0x4, scoped, tag = 'scoped memory for tpu_custom_call.1']
    #allocation19 [shape = 'u8[1024]{0}', space=vmem, size = 0x400, scoped, tag = 'input window, operand 10, single buffered']
    #allocation20 [shape = 'u8[1024]{0}', space=vmem, size = 0x400, scoped, tag = 'input window, operand 11, single buffered']
    #allocation21 [shape = 's32[1]{0}', space=sflag, size = 0x4, scoped, tag = 'scoped memory for tpu_custom_call.1']
    #allocation22 [shape = 'u8[1024]{0}', space=vmem, size = 0x400, scoped, tag = 'input window, operand 12, single buffered']
    #allocation23 [shape = 'u8[65536]{0}', space=vmem, size = 0x10000, scoped, tag = 'input window, operand 13, single buffered']
    #allocation24 [shape = 's32[1]{0}', space=sflag, size = 0x4, scoped, tag = 'scoped memory for tpu_custom_call.1']
    #allocation25 [shape = 'u8[512]{0}', space=vmem, size = 0x400, scoped, tag = 'input window, operand 14, single buffered']
    #allocation26 [shape = 'u8[512]{0}', space=vmem, size = 0x400, scoped, tag = 'input window, operand 15, single buffered']
    #allocation27 [shape = 's32[1]{0}', space=sflag, size = 0x4, scoped, tag = 'scoped memory for tpu_custom_call.1']
    #allocation28 [shape = 'u8[512]{0}', space=vmem, size = 0x400, scoped, tag = 'input window, operand 16, single buffered']
    #allocation29 [shape = 'u8[32768]{0}', space=vmem, size = 0x8000, scoped, tag = 'input window, operand 17, single buffered']
    #allocation30 [shape = 's32[1]{0}', space=sflag, size = 0x4, scoped, tag = 'scoped memory for tpu_custom_call.1']
    #allocation31 [shape = 'u8[512]{0}', space=vmem, size = 0x400, scoped, tag = 'input window, operand 18, single buffered']
    #allocation32 [shape = 'u8[8192]{0}', space=vmem, size = 0x2000, scoped, tag = 'output window, operand 0, single buffered']
    %24 = vsyncpa [#allocation3], 0
    %25 = vsyncpa [#allocation6], 0
    %26 = vsyncpa [#allocation9], 0
    %27 = vsyncpa [#allocation12], 0
    %28 = vsyncpa [#allocation15], 0
    %29 = vsyncpa [#allocation18], 0
    %30 = vsyncpa [#allocation21], 0
    %31 = vsyncpa [#allocation24], 0
    %32 = vsyncpa [#allocation27], 0
    %33 = vsyncpa [#allocation30], 0
    %34 = vsyncpa [#allocation4], 0
    // Predicated region
    $region2: #{tpu_custom_call.1} parent=1 // pred_check
      _
    $region3: #{tpu_custom_call.1} parent=1 // pred_check_branch
      %36 = sbr.rel (0) target = $region5
    $region4: #{tpu_custom_call.1} parent=1 // pred_region
      %s38 = ssub.s32 4096, 4096
      %39 = vsyncadd [#allocation3], %s38
      %s40 = sshll.u32 [#allocation2], 4
      %s41 = int_to_ptr.vmem [resolvable:$true] %s40
      %46 = dma.hbm_to_vmem [thread:$0]  %s0, 4096, %s41, [#allocation3], 2048, 2048, 128
    $region5: #{tpu_custom_call.1} parent=1 // pred_fallthru
      _
    // Predicated region
    $region6: #{tpu_custom_call.1} parent=1 // pred_check
      _
    $region7: #{tpu_custom_call.1} parent=1 // pred_check_branch
      %48 = sbr.rel (0) target = $region9
    $region8: #{tpu_custom_call.1} parent=1 // pred_region
      %s50 = ssub.s32 131072, 131072
      %51 = vsyncadd [#allocation6], %s50
      %s52 = sshll.u32 [#allocation5], 4
      %s53 = int_to_ptr.vmem [resolvable:$true] %s52
      %58 = dma.hbm_to_vmem [thread:$0]  %s1, 131072, %s53, [#allocation6], 512, 512, 32
    $region9: #{tpu_custom_call.1} parent=1 // pred_fallthru
      _
    // Predicated region
    $region10: #{tpu_custom_call.1} parent=1 // pred_check
      _
    $region11: #{tpu_custom_call.1} parent=1 // pred_check_branch
      %60 = sbr.rel (0) target = $region13
    $region12: #{tpu_custom_call.1} parent=1 // pred_region
      %s62 = ssub.s32 128, 128
      %63 = vsyncadd [#allocation6], %s62
      %s65 = sshll.u32 [#allocation7], 4
      %s66 = int_to_ptr.vmem [resolvable:$true] %s65
      %68 = dma.hbm_to_vmem [thread:$0]  %s2, 128, %s66, [#allocation6]
    $region13: #{tpu_custom_call.1} parent=1 // pred_fallthru
      _
    // Predicated region
    $region14: #{tpu_custom_call.1} parent=1 // pred_check
      _
    $region15: #{tpu_custom_call.1} parent=1 // pred_check_branch
      %70 = sbr.rel (0) target = $region17
    $region16: #{tpu_custom_call.1} parent=1 // pred_region
      %s72 = ssub.s32 128, 128
      %73 = vsyncadd [#allocation9], %s72
      %s75 = sshll.u32 [#allocation8], 4
      %s76 = int_to_ptr.vmem [resolvable:$true] %s75
      %78 = dma.hbm_to_vmem [thread:$0]  %s3, 128, %s76, [#allocation9]
    $region17: #{tpu_custom_call.1} parent=1 // pred_fallthru
      _
    // Predicated region
    $region18: #{tpu_custom_call.1} parent=1 // pred_check
      _
    $region19: #{tpu_custom_call.1} parent=1 // pred_check_branch
      %80 = sbr.rel (0) target = $region21
    $region20: #{tpu_custom_call.1} parent=1 // pred_region
      %s82 = ssub.s32 128, 128
      %83 = vsyncadd [#allocation9], %s82
      %s85 = sshll.u32 [#allocation10], 4
      %s86 = int_to_ptr.vmem [resolvable:$true] %s85
      %88 = dma.hbm_to_vmem [thread:$0]  %s4, 128, %s86, [#allocation9]
    $region21: #{tpu_custom_call.1} parent=1 // pred_fallthru
      _
    // Predicated region
    $region22: #{tpu_custom_call.1} parent=1 // pred_check
      _
    $region23: #{tpu_custom_call.1} parent=1 // pred_check_branch
      %90 = sbr.rel (0) target = $region25
    $region24: #{tpu_custom_call.1} parent=1 // pred_region
      %s92 = ssub.s32 32768, 32768
      %93 = vsyncadd [#allocation12], %s92
      %s94 = sshll.u32 [#allocation11], 4
      %s95 = int_to_ptr.vmem [resolvable:$true] %s94
      %100 = dma.hbm_to_vmem [thread:$0]  %s5, 32768, %s95, [#allocation12], 256, 256, 16
    $region25: #{tpu_custom_call.1} parent=1 // pred_fallthru
      _
    // Predicated region
    $region26: #{tpu_custom_call.1} parent=1 // pred_check
      _
    $region27: #{tpu_custom_call.1} parent=1 // pred_check_branch
      %102 = sbr.rel (0) target = $region29
    $region28: #{tpu_custom_call.1} parent=1 // pred_region
      %s104 = ssub.s32 64, 64
      %105 = vsyncadd [#allocation12], %s104
      %s107 = sshll.u32 [#allocation13], 4
      %s108 = int_to_ptr.vmem [resolvable:$true] %s107
      %110 = dma.hbm_to_vmem [thread:$0]  %s6, 64, %s108, [#allocation12]
    $region29: #{tpu_custom_call.1} parent=1 // pred_fallthru
      _
    // Predicated region
    $region30: #{tpu_custom_call.1} parent=1 // pred_check
      _
    $region31: #{tpu_custom_call.1} parent=1 // pred_check_branch
      %112 = sbr.rel (0) target = $region33
    $region32: #{tpu_custom_call.1} parent=1 // pred_region
      %s114 = ssub.s32 64, 64
      %115 = vsyncadd [#allocation15], %s114
      %s117 = sshll.u32 [#allocation14], 4
      %s118 = int_to_ptr.vmem [resolvable:$true] %s117
      %120 = dma.hbm_to_vmem [thread:$0]  %s7, 64, %s118, [#allocation15]
    $region33: #{tpu_custom_call.1} parent=1 // pred_fallthru
      _
    // Predicated region
    $region34: #{tpu_custom_call.1} parent=1 // pred_check
      _
    $region35: #{tpu_custom_call.1} parent=1 // pred_check_branch
      %122 = sbr.rel (0) target = $region37
    $region36: #{tpu_custom_call.1} parent=1 // pred_region
      %s124 = ssub.s32 64, 64
      %125 = vsyncadd [#allocation15], %s124
      %s127 = sshll.u32 [#allocation16], 4
      %s128 = int_to_ptr.vmem [resolvable:$true] %s127
      %130 = dma.hbm_to_vmem [thread:$0]  %s8, 64, %s128, [#allocation15]
    $region37: #{tpu_custom_call.1} parent=1 // pred_fallthru
      _
    // Predicated region
    $region38: #{tpu_custom_call.1} parent=1 // pred_check
      _
    $region39: #{tpu_custom_call.1} parent=1 // pred_check_branch
      %132 = sbr.rel (0) target = $region41
    $region40: #{tpu_custom_call.1} parent=1 // pred_region
      %s134 = ssub.s32 8192, 8192
      %135 = vsyncadd [#allocation18], %s134
      %s136 = sshll.u32 [#allocation17], 4
      %s137 = int_to_ptr.vmem [resolvable:$true] %s136
      %142 = dma.hbm_to_vmem [thread:$0]  %s9, 8192, %s137, [#allocation18], 128, 128, 8
    $region41: #{tpu_custom_call.1} parent=1 // pred_fallthru
      _
    // Predicated region
    $region42: #{tpu_custom_call.1} parent=1 // pred_check
      _
    $region43: #{tpu_custom_call.1} parent=1 // pred_check_branch
      %144 = sbr.rel (0) target = $region45
    $region44: #{tpu_custom_call.1} parent=1 // pred_region
      %s146 = ssub.s32 32, 32
      %147 = vsyncadd [#allocation18], %s146
      %s149 = sshll.u32 [#allocation19], 4
      %s150 = int_to_ptr.vmem [resolvable:$true] %s149
      %152 = dma.hbm_to_vmem [thread:$0]  %s10, 32, %s150, [#allocation18]
    $region45: #{tpu_custom_call.1} parent=1 // pred_fallthru
      _
    // Predicated region
    $region46: #{tpu_custom_call.1} parent=1 // pred_check
      _
    $region47: #{tpu_custom_call.1} parent=1 // pred_check_branch
      %154 = sbr.rel (0) target = $region49
    $region48: #{tpu_custom_call.1} parent=1 // pred_region
      %s156 = ssub.s32 32, 32
      %157 = vsyncadd [#allocation21], %s156
      %s159 = sshll.u32 [#allocation20], 4
      %s160 = int_to_ptr.vmem [resolvable:$true] %s159
      %162 = dma.hbm_to_vmem [thread:$0]  %s11, 32, %s160, [#allocation21]
    $region49: #{tpu_custom_call.1} parent=1 // pred_fallthru
      _
    // Predicated region
    $region50: #{tpu_custom_call.1} parent=1 // pred_check
      _
    $region51: #{tpu_custom_call.1} parent=1 // pred_check_branch
      %164 = sbr.rel (0) target = $region53
    $region52: #{tpu_custom_call.1} parent=1 // pred_region
      %s166 = ssub.s32 32, 32
      %167 = vsyncadd [#allocation21], %s166
      %s169 = sshll.u32 [#allocation22], 4
      %s170 = int_to_ptr.vmem [resolvable:$true] %s169
      %172 = dma.hbm_to_vmem [thread:$0]  %s12, 32, %s170, [#allocation21]
    $region53: #{tpu_custom_call.1} parent=1 // pred_fallthru
      _
    // Predicated region
    $region54: #{tpu_custom_call.1} parent=1 // pred_check
      _
    $region55: #{tpu_custom_call.1} parent=1 // pred_check_branch
      %174 = sbr.rel (0) target = $region57
    $region56: #{tpu_custom_call.1} parent=1 // pred_region
      %s176 = ssub.s32 2048, 2048
      %177 = vsyncadd [#allocation24], %s176
      %s178 = sshll.u32 [#allocation23], 4
      %s179 = int_to_ptr.vmem [resolvable:$true] %s178
      %184 = dma.hbm_to_vmem [thread:$0]  %s13, 2048, %s179, [#allocation24], 64, 64, 4
    $region57: #{tpu_custom_call.1} parent=1 // pred_fallthru
      _
    // Predicated region
    $region58: #{tpu_custom_call.1} parent=1 // pred_check
      _
    $region59: #{tpu_custom_call.1} parent=1 // pred_check_branch
      %186 = sbr.rel (0) target = $region61
    $region60: #{tpu_custom_call.1} parent=1 // pred_region
      %s188 = ssub.s32 16, 16
      %189 = vsyncadd [#allocation24], %s188
      %s191 = sshll.u32 [#allocation25], 4
      %s192 = int_to_ptr.vmem [resolvable:$true] %s191
      %194 = dma.hbm_to_vmem [thread:$0]  %s14, 16, %s192, [#allocation24]
    $region61: #{tpu_custom_call.1} parent=1 // pred_fallthru
      _
    // Predicated region
    $region62: #{tpu_custom_call.1} parent=1 // pred_check
      _
    $region63: #{tpu_custom_call.1} parent=1 // pred_check_branch
      %196 = sbr.rel (0) target = $region65
    $region64: #{tpu_custom_call.1} parent=1 // pred_region
      %s198 = ssub.s32 16, 16
      %199 = vsyncadd [#allocation27], %s198
      %s201 = sshll.u32 [#allocation26], 4
      %s202 = int_to_ptr.vmem [resolvable:$true] %s201
      %204 = dma.hbm_to_vmem [thread:$0]  %s15, 16, %s202, [#allocation27]
    $region65: #{tpu_custom_call.1} parent=1 // pred_fallthru
      _
    // Predicated region
    $region66: #{tpu_custom_call.1} parent=1 // pred_check
      _
    $region67: #{tpu_custom_call.1} parent=1 // pred_check_branch
      %206 = sbr.rel (0) target = $region69
    $region68: #{tpu_custom_call.1} parent=1 // pred_region
      %s208 = ssub.s32 16, 16
      %209 = vsyncadd [#allocation27], %s208
      %s211 = sshll.u32 [#allocation28], 4
      %s212 = int_to_ptr.vmem [resolvable:$true] %s211
      %214 = dma.hbm_to_vmem [thread:$0]  %s16, 16, %s212, [#allocation27]
    $region69: #{tpu_custom_call.1} parent=1 // pred_fallthru
      _
    // Predicated region
    $region70: #{tpu_custom_call.1} parent=1 // pred_check
      _
    $region71: #{tpu_custom_call.1} parent=1 // pred_check_branch
      %216 = sbr.rel (0) target = $region73
    $region72: #{tpu_custom_call.1} parent=1 // pred_region
      %s218 = ssub.s32 1024, 1024
      %219 = vsyncadd [#allocation30], %s218
      %s220 = sshll.u32 [#allocation29], 4
      %s221 = int_to_ptr.vmem [resolvable:$true] %s220
      %226 = dma.hbm_to_vmem [thread:$0]  %s17, 1024, %s221, [#allocation30], 64, 64, 4
    $region73: #{tpu_custom_call.1} parent=1 // pred_fallthru
      _
    // Predicated region
    $region74: #{tpu_custom_call.1} parent=1 // pred_check
      _
    $region75: #{tpu_custom_call.1} parent=1 // pred_check_branch
      %228 = sbr.rel (0) target = $region77
    $region76: #{tpu_custom_call.1} parent=1 // pred_region
      %s230 = ssub.s32 16, 16
      %231 = vsyncadd [#allocation30], %s230
      %s233 = sshll.u32 [#allocation31], 4
      %s234 = int_to_ptr.vmem [resolvable:$true] %s233
      %236 = dma.hbm_to_vmem [thread:$0]  %s18, 16, %s234, [#allocation30]
    $region77: #{tpu_custom_call.1} parent=1 // pred_fallthru
      _
    // Predicated region
    $region78: #{tpu_custom_call.1} parent=1 // pred_check
      _
    $region79: #{tpu_custom_call.1} parent=1 // pred_check_branch
      %238 = sbr.rel (0) target = $region81
    $region80: #{tpu_custom_call.1} parent=1 // pred_region
      %239 = dma.done [#allocation3], 4096
    $region81: #{tpu_custom_call.1} parent=1 // pred_fallthru
      _
    // Predicated region
    $region82: #{tpu_custom_call.1} parent=1 // pred_check
      _
    $region83: #{tpu_custom_call.1} parent=1 // pred_check_branch
      %241 = sbr.rel (0) target = $region85
    $region84: #{tpu_custom_call.1} parent=1 // pred_region
      %242 = dma.done [#allocation6], 131072
    $region85: #{tpu_custom_call.1} parent=1 // pred_fallthru
      _
    // Predicated region
    $region86: #{tpu_custom_call.1} parent=1 // pred_check
      _
    $region87: #{tpu_custom_call.1} parent=1 // pred_check_branch
      %244 = sbr.rel (0) target = $region89
    $region88: #{tpu_custom_call.1} parent=1 // pred_region
      %245 = dma.done [#allocation6], 128
    $region89: #{tpu_custom_call.1} parent=1 // pred_fallthru
      _
    // Predicated region
    $region90: #{tpu_custom_call.1} parent=1 // pred_check
      _
    $region91: #{tpu_custom_call.1} parent=1 // pred_check_branch
      %247 = sbr.rel (0) target = $region93
    $region92: #{tpu_custom_call.1} parent=1 // pred_region
      %248 = dma.done [#allocation9], 128
    $region93: #{tpu_custom_call.1} parent=1 // pred_fallthru
      _
    // Predicated region
    $region94: #{tpu_custom_call.1} parent=1 // pred_check
      _
    $region95: #{tpu_custom_call.1} parent=1 // pred_check_branch
      %250 = sbr.rel (0) target = $region97
    $region96: #{tpu_custom_call.1} parent=1 // pred_region
      %251 = dma.done [#allocation9], 128
    $region97: #{tpu_custom_call.1} parent=1 // pred_fallthru
      _
    // Predicated region
    $region98: #{tpu_custom_call.1} parent=1 // pred_check
      _
    $region99: #{tpu_custom_call.1} parent=1 // pred_check_branch
      %253 = sbr.rel (0) target = $region101
    $region100: #{tpu_custom_call.1} parent=1 // pred_region
      %254 = dma.done [#allocation12], 32768
    $region101: #{tpu_custom_call.1} parent=1 // pred_fallthru
      _
    // Predicated region
    $region102: #{tpu_custom_call.1} parent=1 // pred_check
      _
    $region103: #{tpu_custom_call.1} parent=1 // pred_check_branch
      %256 = sbr.rel (0) target = $region105
    $region104: #{tpu_custom_call.1} parent=1 // pred_region
      %257 = dma.done [#allocation12], 64
    $region105: #{tpu_custom_call.1} parent=1 // pred_fallthru
      _
    // Predicated region
    $region106: #{tpu_custom_call.1} parent=1 // pred_check
      _
    $region107: #{tpu_custom_call.1} parent=1 // pred_check_branch
      %259 = sbr.rel (0) target = $region109
    $region108: #{tpu_custom_call.1} parent=1 // pred_region
      %260 = dma.done [#allocation15], 64
    $region109: #{tpu_custom_call.1} parent=1 // pred_fallthru
      _
    // Predicated region
    $region110: #{tpu_custom_call.1} parent=1 // pred_check
      _
    $region111: #{tpu_custom_call.1} parent=1 // pred_check_branch
      %262 = sbr.rel (0) target = $region113
    $region112: #{tpu_custom_call.1} parent=1 // pred_region
      %263 = dma.done [#allocation15], 64
    $region113: #{tpu_custom_call.1} parent=1 // pred_fallthru
      _
    // Predicated region
    $region114: #{tpu_custom_call.1} parent=1 // pred_check
      _
    $region115: #{tpu_custom_call.1} parent=1 // pred_check_branch
      %265 = sbr.rel (0) target = $region117
    $region116: #{tpu_custom_call.1} parent=1 // pred_region
      %266 = dma.done [#allocation18], 8192
    $region117: #{tpu_custom_call.1} parent=1 // pred_fallthru
      _
    // Predicated region
    $region118: #{tpu_custom_call.1} parent=1 // pred_check
      _
    $region119: #{tpu_custom_call.1} parent=1 // pred_check_branch
      %268 = sbr.rel (0) target = $region121
    $region120: #{tpu_custom_call.1} parent=1 // pred_region
      %269 = dma.done [#allocation18], 32
    $region121: #{tpu_custom_call.1} parent=1 // pred_fallthru
      _
    // Predicated region
    $region122: #{tpu_custom_call.1} parent=1 // pred_check
      _
    $region123: #{tpu_custom_call.1} parent=1 // pred_check_branch
      %271 = sbr.rel (0) target = $region125
    $region124: #{tpu_custom_call.1} parent=1 // pred_region
      %272 = dma.done [#allocation21], 32
    $region125: #{tpu_custom_call.1} parent=1 // pred_fallthru
      _
    // Predicated region
    $region126: #{tpu_custom_call.1} parent=1 // pred_check
      _
    $region127: #{tpu_custom_call.1} parent=1 // pred_check_branch
      %274 = sbr.rel (0) target = $region129
    $region128: #{tpu_custom_call.1} parent=1 // pred_region
      %275 = dma.done [#allocation21], 32
    $region129: #{tpu_custom_call.1} parent=1 // pred_fallthru
      _
    // Predicated region
    $region130: #{tpu_custom_call.1} parent=1 // pred_check
      _
    $region131: #{tpu_custom_call.1} parent=1 // pred_check_branch
      %277 = sbr.rel (0) target = $region133
    $region132: #{tpu_custom_call.1} parent=1 // pred_region
      %278 = dma.done [#allocation24], 2048
    $region133: #{tpu_custom_call.1} parent=1 // pred_fallthru
      _
    // Predicated region
    $region134: #{tpu_custom_call.1} parent=1 // pred_check
      _
    $region135: #{tpu_custom_call.1} parent=1 // pred_check_branch
      %280 = sbr.rel (0) target = $region137
    $region136: #{tpu_custom_call.1} parent=1 // pred_region
      %281 = dma.done [#allocation24], 16
    $region137: #{tpu_custom_call.1} parent=1 // pred_fallthru
      _
    // Predicated region
    $region138: #{tpu_custom_call.1} parent=1 // pred_check
      _
    $region139: #{tpu_custom_call.1} parent=1 // pred_check_branch
      %283 = sbr.rel (0) target = $region141
    $region140: #{tpu_custom_call.1} parent=1 // pred_region
      %284 = dma.done [#allocation27], 16
    $region141: #{tpu_custom_call.1} parent=1 // pred_fallthru
      _
    // Predicated region
    $region142: #{tpu_custom_call.1} parent=1 // pred_check
      _
    $region143: #{tpu_custom_call.1} parent=1 // pred_check_branch
      %286 = sbr.rel (0) target = $region145
    $region144: #{tpu_custom_call.1} parent=1 // pred_region
      %287 = dma.done [#allocation27], 16
    $region145: #{tpu_custom_call.1} parent=1 // pred_fallthru
      _
    // Predicated region
    $region146: #{tpu_custom_call.1} parent=1 // pred_check
      _
    $region147: #{tpu_custom_call.1} parent=1 // pred_check_branch
      %289 = sbr.rel (0) target = $region149
    $region148: #{tpu_custom_call.1} parent=1 // pred_region
      %290 = dma.done [#allocation30], 1024
    $region149: #{tpu_custom_call.1} parent=1 // pred_fallthru
      _
    // Predicated region
    $region150: #{tpu_custom_call.1} parent=1 // pred_check
      _
    $region151: #{tpu_custom_call.1} parent=1 // pred_check_branch
      %292 = sbr.rel (0) target = $region153
    $region152: #{tpu_custom_call.1} parent=1 // pred_region
      %293 = dma.done [#allocation30], 16
    $region153: #{tpu_custom_call.1} parent=1 // pred_fallthru
      _
    %v295 = vld [vmem:[#allocation2] sm:$0xff]
    %v296 = vld [vmem:[#allocation2 + $0x8] sm:$0xff]
    %v297 = vld [vmem:[#allocation2 + $0x10] sm:$0xff]
    %v298 = vld [vmem:[#allocation2 + $0x18] sm:$0xff]
    %v299 = vld [vmem:[#allocation2 + $0x20] sm:$0xff]
    %v300 = vld [vmem:[#allocation2 + $0x28] sm:$0xff]
    %v301 = vld [vmem:[#allocation2 + $0x30] sm:$0xff]
    %v302 = vld [vmem:[#allocation2 + $0x38] sm:$0xff]
    %v303 = vld [vmem:[#allocation2 + $0x40] sm:$0xff]
    %v304 = vld [vmem:[#allocation2 + $0x48] sm:$0xff]
    %v305 = vld [vmem:[#allocation2 + $0x50] sm:$0xff]
    %v306 = vld [vmem:[#allocation2 + $0x58] sm:$0xff]
    %v307 = vld [vmem:[#allocation2 + $0x60] sm:$0xff]
    %v308 = vld [vmem:[#allocation2 + $0x68] sm:$0xff]
    %v309 = vld [vmem:[#allocation2 + $0x70] sm:$0xff]
    %v310 = vld [vmem:[#allocation2 + $0x78] sm:$0xff]
    %v311 = vld [vmem:[#allocation2 + $0x80] sm:$0xff]
    %v312 = vld [vmem:[#allocation2 + $0x88] sm:$0xff]
    %v313 = vld [vmem:[#allocation2 + $0x90] sm:$0xff]
    %v314 = vld [vmem:[#allocation2 + $0x98] sm:$0xff]
    %v315 = vld [vmem:[#allocation2 + $0xa0] sm:$0xff]
    %v316 = vld [vmem:[#allocation2 + $0xa8] sm:$0xff]
    %v317 = vld [vmem:[#allocation2 + $0xb0] sm:$0xff]
    %v318 = vld [vmem:[#allocation2 + $0xb8] sm:$0xff]
    %v319 = vld [vmem:[#allocation2 + $0xc0] sm:$0xff]
    %v320 = vld [vmem:[#allocation2 + $0xc8] sm:$0xff]
    %v321 = vld [vmem:[#allocation2 + $0xd0] sm:$0xff]
    %v322 = vld [vmem:[#allocation2 + $0xd8] sm:$0xff]
    %v323 = vld [vmem:[#allocation2 + $0xe0] sm:$0xff]
    %v324 = vld [vmem:[#allocation2 + $0xe8] sm:$0xff]
    %v325 = vld [vmem:[#allocation2 + $0xf0] sm:$0xff]
    %v326 = vld [vmem:[#allocation2 + $0xf8] sm:$0xff]
    %v327 = vpack.c.bf16 %v311, %v295
    %v328 = vpack.c.bf16 %v312, %v296
    %v329 = vpack.c.bf16 %v313, %v297
    %v330 = vpack.c.bf16 %v314, %v298
    %v331 = vpack.c.bf16 %v315, %v299
    %v332 = vpack.c.bf16 %v316, %v300
    %v333 = vpack.c.bf16 %v317, %v301
    %v334 = vpack.c.bf16 %v318, %v302
    %v335 = vpack.c.bf16 %v319, %v303
    %v336 = vpack.c.bf16 %v320, %v304
    %v337 = vpack.c.bf16 %v321, %v305
    %v338 = vpack.c.bf16 %v322, %v306
    %v339 = vpack.c.bf16 %v323, %v307
    %v340 = vpack.c.bf16 %v324, %v308
    %v341 = vpack.c.bf16 %v325, %v309
    %v342 = vpack.c.bf16 %v326, %v310
    %v343 = vld [vmem:[#allocation5] sm:$0xff]
    %v344 = vld [vmem:[#allocation5 + $0x8] sm:$0xff]
    %v345 = vld [vmem:[#allocation5 + $0x10] sm:$0xff]
    %v346 = vld [vmem:[#allocation5 + $0x18] sm:$0xff]
    %v347 = vld [vmem:[#allocation5 + $0x20] sm:$0xff]
    %v348 = vld [vmem:[#allocation5 + $0x28] sm:$0xff]
    %v349 = vld [vmem:[#allocation5 + $0x30] sm:$0xff]
    %v350 = vld [vmem:[#allocation5 + $0x38] sm:$0xff]
    %v351 = vld [vmem:[#allocation5 + $0x40] sm:$0xff]
    %v352 = vld [vmem:[#allocation5 + $0x48] sm:$0xff]
    %v353 = vld [vmem:[#allocation5 + $0x50] sm:$0xff]
    %v354 = vld [vmem:[#allocation5 + $0x58] sm:$0xff]
    %v355 = vld [vmem:[#allocation5 + $0x60] sm:$0xff]
    %v356 = vld [vmem:[#allocation5 + $0x68] sm:$0xff]
    %v357 = vld [vmem:[#allocation5 + $0x70] sm:$0xff]
    %v358 = vld [vmem:[#allocation5 + $0x78] sm:$0xff]
    %v359 = vld [vmem:[#allocation5 + $0x80] sm:$0xff]
    %v360 = vld [vmem:[#allocation5 + $0x88] sm:$0xff]
    %v361 = vld [vmem:[#allocation5 + $0x90] sm:$0xff]
    %v362 = vld [vmem:[#allocation5 + $0x98] sm:$0xff]
    %v363 = vld [vmem:[#allocation5 + $0xa0] sm:$0xff]
    %v364 = vld [vmem:[#allocation5 + $0xa8] sm:$0xff]
    %v365 = vld [vmem:[#allocation5 + $0xb0] sm:$0xff]
    %v366 = vld [vmem:[#allocation5 + $0xb8] sm:$0xff]
    %v367 = vld [vmem:[#allocation5 + $0xc0] sm:$0xff]
    %v368 = vld [vmem:[#allocation5 + $0xc8] sm:$0xff]
    %v369 = vld [vmem:[#allocation5 + $0xd0] sm:$0xff]
    %v370 = vld [vmem:[#allocation5 + $0xd8] sm:$0xff]
    %v371 = vld [vmem:[#allocation5 + $0xe0] sm:$0xff]
    %v372 = vld [vmem:[#allocation5 + $0xe8] sm:$0xff]
    %v373 = vld [vmem:[#allocation5 + $0xf0] sm:$0xff]
    %v374 = vld [vmem:[#allocation5 + $0xf8] sm:$0xff]
    %v375 = vld [vmem:[#allocation5 + $0x100] sm:$0xff]
    %v376 = vld [vmem:[#allocation5 + $0x108] sm:$0xff]
    %v377 = vld [vmem:[#allocation5 + $0x110] sm:$0xff]
    %v378 = vld [vmem:[#allocation5 + $0x118] sm:$0xff]
    %v379 = vld [vmem:[#allocation5 + $0x120] sm:$0xff]
    %v380 = vld [vmem:[#allocation5 + $0x128] sm:$0xff]
    %v381 = vld [vmem:[#allocation5 + $0x130] sm:$0xff]
    %v382 = vld [vmem:[#allocation5 + $0x138] sm:$0xff]
    %v383 = vld [vmem:[#allocation5 + $0x140] sm:$0xff]
    %v384 = vld [vmem:[#allocation5 + $0x148] sm:$0xff]
    %v385 = vld [vmem:[#allocation5 + $0x150] sm:$0xff]
    %v386 = vld [vmem:[#allocation5 + $0x158] sm:$0xff]
    %v387 = vld [vmem:[#allocation5 + $0x160] sm:$0xff]
    %v388 = vld [vmem:[#allocation5 + $0x168] sm:$0xff]
    %v389 = vld [vmem:[#allocation5 + $0x170] sm:$0xff]
    %v390 = vld [vmem:[#allocation5 + $0x178] sm:$0xff]
    %v391 = vld [vmem:[#allocation5 + $0x180] sm:$0xff]
    %v392 = vld [vmem:[#allocation5 + $0x188] sm:$0xff]
    %v393 = vld [vmem:[#allocation5 + $0x190] sm:$0xff]
    %v394 = vld [vmem:[#allocation5 + $0x198] sm:$0xff]
    %v395 = vld [vmem:[#allocation5 + $0x1a0] sm:$0xff]
    %v396 = vld [vmem:[#allocation5 + $0x1a8] sm:$0xff]
    %v397 = vld [vmem:[#allocation5 + $0x1b0] sm:$0xff]
    %v398 = vld [vmem:[#allocation5 + $0x1b8] sm:$0xff]
    %v399 = vld [vmem:[#allocation5 + $0x1c0] sm:$0xff]
    %v400 = vld [vmem:[#allocation5 + $0x1c8] sm:$0xff]
    %v401 = vld [vmem:[#allocation5 + $0x1d0] sm:$0xff]
    %v402 = vld [vmem:[#allocation5 + $0x1d8] sm:$0xff]
    %v403 = vld [vmem:[#allocation5 + $0x1e0] sm:$0xff]
    %v404 = vld [vmem:[#allocation5 + $0x1e8] sm:$0xff]
    %v405 = vld [vmem:[#allocation5 + $0x1f0] sm:$0xff]
    %v406 = vld [vmem:[#allocation5 + $0x1f8] sm:$0xff]
    %v407 = vld [vmem:[#allocation5 + $0x200] sm:$0xff]
    %v408 = vld [vmem:[#allocation5 + $0x208] sm:$0xff]
    %v409 = vld [vmem:[#allocation5 + $0x210] sm:$0xff]
    %v410 = vld [vmem:[#allocation5 + $0x218] sm:$0xff]
    %v411 = vld [vmem:[#allocation5 + $0x220] sm:$0xff]
    %v412 = vld [vmem:[#allocation5 + $0x228] sm:$0xff]
    %v413 = vld [vmem:[#allocation5 + $0x230] sm:$0xff]
    %v414 = vld [vmem:[#allocation5 + $0x238] sm:$0xff]
    %v415 = vld [vmem:[#allocation5 + $0x240] sm:$0xff]
    %v416 = vld [vmem:[#allocation5 + $0x248] sm:$0xff]
    %v417 = vld [vmem:[#allocation5 + $0x250] sm:$0xff]
    %v418 = vld [vmem:[#allocation5 + $0x258] sm:$0xff]
    %v419 = vld [vmem:[#allocation5 + $0x260] sm:$0xff]
    %v420 = vld [vmem:[#allocation5 + $0x268] sm:$0xff]
    %v421 = vld [vmem:[#allocation5 + $0x270] sm:$0xff]
    %v422 = vld [vmem:[#allocation5 + $0x278] sm:$0xff]
    %v423 = vld [vmem:[#allocation5 + $0x280] sm:$0xff]
    %v424 = vld [vmem:[#allocation5 + $0x288] sm:$0xff]
    %v425 = vld [vmem:[#allocation5 + $0x290] sm:$0xff]
    %v426 = vld [vmem:[#allocation5 + $0x298] sm:$0xff]
    %v427 = vld [vmem:[#allocation5 + $0x2a0] sm:$0xff]
    %v428 = vld [vmem:[#allocation5 + $0x2a8] sm:$0xff]
    %v429 = vld [vmem:[#allocation5 + $0x2b0] sm:$0xff]
    %v430 = vld [vmem:[#allocation5 + $0x2b8] sm:$0xff]
    %v431 = vld [vmem:[#allocation5 + $0x2c0] sm:$0xff]
    %v432 = vld [vmem:[#allocation5 + $0x2c8] sm:$0xff]
    %v433 = vld [vmem:[#allocation5 + $0x2d0] sm:$0xff]
    %v434 = vld [vmem:[#allocation5 + $0x2d8] sm:$0xff]
    %v435 = vld [vmem:[#allocation5 + $0x2e0] sm:$0xff]
    %v436 = vld [vmem:[#allocation5 + $0x2e8] sm:$0xff]
    %v437 = vld [vmem:[#allocation5 + $0x2f0] sm:$0xff]
    %v438 = vld [vmem:[#allocation5 + $0x2f8] sm:$0xff]
    %v439 = vld [vmem:[#allocation5 + $0x300] sm:$0xff]
    %v440 = vld [vmem:[#allocation5 + $0x308] sm:$0xff]
    %v441 = vld [vmem:[#allocation5 + $0x310] sm:$0xff]
    %v442 = vld [vmem:[#allocation5 + $0x318] sm:$0xff]
    %v443 = vld [vmem:[#allocation5 + $0x320] sm:$0xff]
    %v444 = vld [vmem:[#allocation5 + $0x328] sm:$0xff]
    %v445 = vld [vmem:[#allocation5 + $0x330] sm:$0xff]
    %v446 = vld [vmem:[#allocation5 + $0x338] sm:$0xff]
    %v447 = vld [vmem:[#allocation5 + $0x340] sm:$0xff]
    %v448 = vld [vmem:[#allocation5 + $0x348] sm:$0xff]
    %v449 = vld [vmem:[#allocation5 + $0x350] sm:$0xff]
    %v450 = vld [vmem:[#allocation5 + $0x358] sm:$0xff]
    %v451 = vld [vmem:[#allocation5 + $0x360] sm:$0xff]
    %v452 = vld [vmem:[#allocation5 + $0x368] sm:$0xff]
    %v453 = vld [vmem:[#allocation5 + $0x370] sm:$0xff]
    %v454 = vld [vmem:[#allocation5 + $0x378] sm:$0xff]
    %v455 = vld [vmem:[#allocation5 + $0x380] sm:$0xff]
    %v456 = vld [vmem:[#allocation5 + $0x388] sm:$0xff]
    %v457 = vld [vmem:[#allocation5 + $0x390] sm:$0xff]
    %v458 = vld [vmem:[#allocation5 + $0x398] sm:$0xff]
    %v459 = vld [vmem:[#allocation5 + $0x3a0] sm:$0xff]
    %v460 = vld [vmem:[#allocation5 + $0x3a8] sm:$0xff]
    %v461 = vld [vmem:[#allocation5 + $0x3b0] sm:$0xff]
    %v462 = vld [vmem:[#allocation5 + $0x3b8] sm:$0xff]
    %v463 = vld [vmem:[#allocation5 + $0x3c0] sm:$0xff]
    %v464 = vld [vmem:[#allocation5 + $0x3c8] sm:$0xff]
    %v465 = vld [vmem:[#allocation5 + $0x3d0] sm:$0xff]
    %v466 = vld [vmem:[#allocation5 + $0x3d8] sm:$0xff]
    %v467 = vld [vmem:[#allocation5 + $0x3e0] sm:$0xff]
    %v468 = vld [vmem:[#allocation5 + $0x3e8] sm:$0xff]
    %v469 = vld [vmem:[#allocation5 + $0x3f0] sm:$0xff]
    %v470 = vld [vmem:[#allocation5 + $0x3f8] sm:$0xff]
    %v471 = vld [vmem:[#allocation5 + $0x400] sm:$0xff]
    %v472 = vld [vmem:[#allocation5 + $0x408] sm:$0xff]
    %v473 = vld [vmem:[#allocation5 + $0x410] sm:$0xff]
    %v474 = vld [vmem:[#allocation5 + $0x418] sm:$0xff]
    %v475 = vld [vmem:[#allocation5 + $0x420] sm:$0xff]
    %v476 = vld [vmem:[#allocation5 + $0x428] sm:$0xff]
    %v477 = vld [vmem:[#allocation5 + $0x430] sm:$0xff]
    %v478 = vld [vmem:[#allocation5 + $0x438] sm:$0xff]
    %v479 = vld [vmem:[#allocation5 + $0x440] sm:$0xff]
    %v480 = vld [vmem:[#allocation5 + $0x448] sm:$0xff]
    %v481 = vld [vmem:[#allocation5 + $0x450] sm:$0xff]
    %v482 = vld [vmem:[#allocation5 + $0x458] sm:$0xff]
    %v483 = vld [vmem:[#allocation5 + $0x460] sm:$0xff]
    %v484 = vld [vmem:[#allocation5 + $0x468] sm:$0xff]
    %v485 = vld [vmem:[#allocation5 + $0x470] sm:$0xff]
    %v486 = vld [vmem:[#allocation5 + $0x478] sm:$0xff]
    %v487 = vld [vmem:[#allocation5 + $0x480] sm:$0xff]
    %v488 = vld [vmem:[#allocation5 + $0x488] sm:$0xff]
    %v489 = vld [vmem:[#allocation5 + $0x490] sm:$0xff]
    %v490 = vld [vmem:[#allocation5 + $0x498] sm:$0xff]
    %v491 = vld [vmem:[#allocation5 + $0x4a0] sm:$0xff]
    %v492 = vld [vmem:[#allocation5 + $0x4a8] sm:$0xff]
    %v493 = vld [vmem:[#allocation5 + $0x4b0] sm:$0xff]
    %v494 = vld [vmem:[#allocation5 + $0x4b8] sm:$0xff]
    %v495 = vld [vmem:[#allocation5 + $0x4c0] sm:$0xff]
    %v496 = vld [vmem:[#allocation5 + $0x4c8] sm:$0xff]
    %v497 = vld [vmem:[#allocation5 + $0x4d0] sm:$0xff]
    %v498 = vld [vmem:[#allocation5 + $0x4d8] sm:$0xff]
    %v499 = vld [vmem:[#allocation5 + $0x4e0] sm:$0xff]
    %v500 = vld [vmem:[#allocation5 + $0x4e8] sm:$0xff]
    %v501 = vld [vmem:[#allocation5 + $0x4f0] sm:$0xff]
    %v502 = vld [vmem:[#allocation5 + $0x4f8] sm:$0xff]
    %v503 = vld [vmem:[#allocation5 + $0x500] sm:$0xff]
    %v504 = vld [vmem:[#allocation5 + $0x508] sm:$0xff]
    %v505 = vld [vmem:[#allocation5 + $0x510] sm:$0xff]
    %v506 = vld [vmem:[#allocation5 + $0x518] sm:$0xff]
    %v507 = vld [vmem:[#allocation5 + $0x520] sm:$0xff]
    %v508 = vld [vmem:[#allocation5 + $0x528] sm:$0xff]
    %v509 = vld [vmem:[#allocation5 + $0x530] sm:$0xff]
    %v510 = vld [vmem:[#allocation5 + $0x538] sm:$0xff]
    %v511 = vld [vmem:[#allocation5 + $0x540] sm:$0xff]
    %v512 = vld [vmem:[#allocation5 + $0x548] sm:$0xff]
    %v513 = vld [vmem:[#allocation5 + $0x550] sm:$0xff]
    %v514 = vld [vmem:[#allocation5 + $0x558] sm:$0xff]
    %v515 = vld [vmem:[#allocation5 + $0x560] sm:$0xff]
    %v516 = vld [vmem:[#allocation5 + $0x568] sm:$0xff]
    %v517 = vld [vmem:[#allocation5 + $0x570] sm:$0xff]
    %v518 = vld [vmem:[#allocation5 + $0x578] sm:$0xff]
    %v519 = vld [vmem:[#allocation5 + $0x580] sm:$0xff]
    %v520 = vld [vmem:[#allocation5 + $0x588] sm:$0xff]
    %v521 = vld [vmem:[#allocation5 + $0x590] sm:$0xff]
    %v522 = vld [vmem:[#allocation5 + $0x598] sm:$0xff]
    %v523 = vld [vmem:[#allocation5 + $0x5a0] sm:$0xff]
    %v524 = vld [vmem:[#allocation5 + $0x5a8] sm:$0xff]
    %v525 = vld [vmem:[#allocation5 + $0x5b0] sm:$0xff]
    %v526 = vld [vmem:[#allocation5 + $0x5b8] sm:$0xff]
    %v527 = vld [vmem:[#allocation5 + $0x5c0] sm:$0xff]
    %v528 = vld [vmem:[#allocation5 + $0x5c8] sm:$0xff]
    %v529 = vld [vmem:[#allocation5 + $0x5d0] sm:$0xff]
    %v530 = vld [vmem:[#allocation5 + $0x5d8] sm:$0xff]
    %v531 = vld [vmem:[#allocation5 + $0x5e0] sm:$0xff]
    %v532 = vld [vmem:[#allocation5 + $0x5e8] sm:$0xff]
    %v533 = vld [vmem:[#allocation5 + $0x5f0] sm:$0xff]
    %v534 = vld [vmem:[#allocation5 + $0x5f8] sm:$0xff]
    %v535 = vld [vmem:[#allocation5 + $0x600] sm:$0xff]
    %v536 = vld [vmem:[#allocation5 + $0x608] sm:$0xff]
    %v537 = vld [vmem:[#allocation5 + $0x610] sm:$0xff]
    %v538 = vld [vmem:[#allocation5 + $0x618] sm:$0xff]
    %v539 = vld [vmem:[#allocation5 + $0x620] sm:$0xff]
    %v540 = vld [vmem:[#allocation5 + $0x628] sm:$0xff]
    %v541 = vld [vmem:[#allocation5 + $0x630] sm:$0xff]
    %v542 = vld [vmem:[#allocation5 + $0x638] sm:$0xff]
    %v543 = vld [vmem:[#allocation5 + $0x640] sm:$0xff]
    %v544 = vld [vmem:[#allocation5 + $0x648] sm:$0xff]
    %v545 = vld [vmem:[#allocation5 + $0x650] sm:$0xff]
    %v546 = vld [vmem:[#allocation5 + $0x658] sm:$0xff]
    %v547 = vld [vmem:[#allocation5 + $0x660] sm:$0xff]
    %v548 = vld [vmem:[#allocation5 + $0x668] sm:$0xff]
    %v549 = vld [vmem:[#allocation5 + $0x670] sm:$0xff]
    %v550 = vld [vmem:[#allocation5 + $0x678] sm:$0xff]
    %v551 = vld [vmem:[#allocation5 + $0x680] sm:$0xff]
    %v552 = vld [vmem:[#allocation5 + $0x688] sm:$0xff]
    %v553 = vld [vmem:[#allocation5 + $0x690] sm:$0xff]
    %v554 = vld [vmem:[#allocation5 + $0x698] sm:$0xff]
    %v555 = vld [vmem:[#allocation5 + $0x6a0] sm:$0xff]
    %v556 = vld [vmem:[#allocation5 + $0x6a8] sm:$0xff]
    %v557 = vld [vmem:[#allocation5 + $0x6b0] sm:$0xff]
    %v558 = vld [vmem:[#allocation5 + $0x6b8] sm:$0xff]
    %v559 = vld [vmem:[#allocation5 + $0x6c0] sm:$0xff]
    %v560 = vld [vmem:[#allocation5 + $0x6c8] sm:$0xff]
    %v561 = vld [vmem:[#allocation5 + $0x6d0] sm:$0xff]
    %v562 = vld [vmem:[#allocation5 + $0x6d8] sm:$0xff]
    %v563 = vld [vmem:[#allocation5 + $0x6e0] sm:$0xff]
    %v564 = vld [vmem:[#allocation5 + $0x6e8] sm:$0xff]
    %v565 = vld [vmem:[#allocation5 + $0x6f0] sm:$0xff]
    %v566 = vld [vmem:[#allocation5 + $0x6f8] sm:$0xff]
    %v567 = vld [vmem:[#allocation5 + $0x700] sm:$0xff]
    %v568 = vld [vmem:[#allocation5 + $0x708] sm:$0xff]
    %v569 = vld [vmem:[#allocation5 + $0x710] sm:$0xff]
    %v570 = vld [vmem:[#allocation5 + $0x718] sm:$0xff]
    %v571 = vld [vmem:[#allocation5 + $0x720] sm:$0xff]
    %v572 = vld [vmem:[#allocation5 + $0x728] sm:$0xff]
    %v573 = vld [vmem:[#allocation5 + $0x730] sm:$0xff]
    %v574 = vld [vmem:[#allocation5 + $0x738] sm:$0xff]
    %v575 = vld [vmem:[#allocation5 + $0x740] sm:$0xff]
    %v576 = vld [vmem:[#allocation5 + $0x748] sm:$0xff]
    %v577 = vld [vmem:[#allocation5 + $0x750] sm:$0xff]
    %v578 = vld [vmem:[#allocation5 + $0x758] sm:$0xff]
    %v579 = vld [vmem:[#allocation5 + $0x760] sm:$0xff]
    %v580 = vld [vmem:[#allocation5 + $0x768] sm:$0xff]
    %v581 = vld [vmem:[#allocation5 + $0x770] sm:$0xff]
    %v582 = vld [vmem:[#allocation5 + $0x778] sm:$0xff]
    %v583 = vld [vmem:[#allocation5 + $0x780] sm:$0xff]
    %v584 = vld [vmem:[#allocation5 + $0x788] sm:$0xff]
    %v585 = vld [vmem:[#allocation5 + $0x790] sm:$0xff]
    %v586 = vld [vmem:[#allocation5 + $0x798] sm:$0xff]
    %v587 = vld [vmem:[#allocation5 + $0x7a0] sm:$0xff]
    %v588 = vld [vmem:[#allocation5 + $0x7a8] sm:$0xff]
    %v589 = vld [vmem:[#allocation5 + $0x7b0] sm:$0xff]
    %v590 = vld [vmem:[#allocation5 + $0x7b8] sm:$0xff]
    %v591 = vld [vmem:[#allocation5 + $0x7c0] sm:$0xff]
    %v592 = vld [vmem:[#allocation5 + $0x7c8] sm:$0xff]
    %v593 = vld [vmem:[#allocation5 + $0x7d0] sm:$0xff]
    %v594 = vld [vmem:[#allocation5 + $0x7d8] sm:$0xff]
    %v595 = vld [vmem:[#allocation5 + $0x7e0] sm:$0xff]
    %v596 = vld [vmem:[#allocation5 + $0x7e8] sm:$0xff]
    %v597 = vld [vmem:[#allocation5 + $0x7f0] sm:$0xff]
    %v598 = vld [vmem:[#allocation5 + $0x7f8] sm:$0xff]
    %v599 = vld [vmem:[#allocation5 + $0x800] sm:$0xff]
    %v600 = vld [vmem:[#allocation5 + $0x808] sm:$0xff]
    %v601 = vld [vmem:[#allocation5 + $0x810] sm:$0xff]
    %v602 = vld [vmem:[#allocation5 + $0x818] sm:$0xff]
    %v603 = vld [vmem:[#allocation5 + $0x820] sm:$0xff]
    %v604 = vld [vmem:[#allocation5 + $0x828] sm:$0xff]
    %v605 = vld [vmem:[#allocation5 + $0x830] sm:$0xff]
    %v606 = vld [vmem:[#allocation5 + $0x838] sm:$0xff]
    %v607 = vld [vmem:[#allocation5 + $0x840] sm:$0xff]
    %v608 = vld [vmem:[#allocation5 + $0x848] sm:$0xff]
    %v609 = vld [vmem:[#allocation5 + $0x850] sm:$0xff]
    %v610 = vld [vmem:[#allocation5 + $0x858] sm:$0xff]
    %v611 = vld [vmem:[#allocation5 + $0x860] sm:$0xff]
    %v612 = vld [vmem:[#allocation5 + $0x868] sm:$0xff]
    %v613 = vld [vmem:[#allocation5 + $0x870] sm:$0xff]
    %v614 = vld [vmem:[#allocation5 + $0x878] sm:$0xff]
    %v615 = vld [vmem:[#allocation5 + $0x880] sm:$0xff]
    %v616 = vld [vmem:[#allocation5 + $0x888] sm:$0xff]
    %v617 = vld [vmem:[#allocation5 + $0x890] sm:$0xff]
    %v618 = vld [vmem:[#allocation5 + $0x898] sm:$0xff]
    %v619 = vld [vmem:[#allocation5 + $0x8a0] sm:$0xff]
    %v620 = vld [vmem:[#allocation5 + $0x8a8] sm:$0xff]
    %v621 = vld [vmem:[#allocation5 + $0x8b0] sm:$0xff]
    %v622 = vld [vmem:[#allocation5 + $0x8b8] sm:$0xff]
    %v623 = vld [vmem:[#allocation5 + $0x8c0] sm:$0xff]
    %v624 = vld [vmem:[#allocation5 + $0x8c8] sm:$0xff]
    %v625 = vld [vmem:[#allocation5 + $0x8d0] sm:$0xff]
    %v626 = vld [vmem:[#allocation5 + $0x8d8] sm:$0xff]
    %v627 = vld [vmem:[#allocation5 + $0x8e0] sm:$0xff]
    %v628 = vld [vmem:[#allocation5 + $0x8e8] sm:$0xff]
    %v629 = vld [vmem:[#allocation5 + $0x8f0] sm:$0xff]
    %v630 = vld [vmem:[#allocation5 + $0x8f8] sm:$0xff]
    %v631 = vld [vmem:[#allocation5 + $0x900] sm:$0xff]
    %v632 = vld [vmem:[#allocation5 + $0x908] sm:$0xff]
    %v633 = vld [vmem:[#allocation5 + $0x910] sm:$0xff]
    %v634 = vld [vmem:[#allocation5 + $0x918] sm:$0xff]
    %v635 = vld [vmem:[#allocation5 + $0x920] sm:$0xff]
    %v636 = vld [vmem:[#allocation5 + $0x928] sm:$0xff]
    %v637 = vld [vmem:[#allocation5 + $0x930] sm:$0xff]
    %v638 = vld [vmem:[#allocation5 + $0x938] sm:$0xff]
    %v639 = vld [vmem:[#allocation5 + $0x940] sm:$0xff]
    %v640 = vld [vmem:[#allocation5 + $0x948] sm:$0xff]
    %v641 = vld [vmem:[#allocation5 + $0x950] sm:$0xff]
    %v642 = vld [vmem:[#allocation5 + $0x958] sm:$0xff]
    %v643 = vld [vmem:[#allocation5 + $0x960] sm:$0xff]
    %v644 = vld [vmem:[#allocation5 + $0x968] sm:$0xff]
    %v645 = vld [vmem:[#allocation5 + $0x970] sm:$0xff]
    %v646 = vld [vmem:[#allocation5 + $0x978] sm:$0xff]
    %v647 = vld [vmem:[#allocation5 + $0x980] sm:$0xff]
    %v648 = vld [vmem:[#allocation5 + $0x988] sm:$0xff]
    %v649 = vld [vmem:[#allocation5 + $0x990] sm:$0xff]
    %v650 = vld [vmem:[#allocation5 + $0x998] sm:$0xff]
    %v651 = vld [vmem:[#allocation5 + $0x9a0] sm:$0xff]
    %v652 = vld [vmem:[#allocation5 + $0x9a8] sm:$0xff]
    %v653 = vld [vmem:[#allocation5 + $0x9b0] sm:$0xff]
    %v654 = vld [vmem:[#allocation5 + $0x9b8] sm:$0xff]
    %v655 = vld [vmem:[#allocation5 + $0x9c0] sm:$0xff]
    %v656 = vld [vmem:[#allocation5 + $0x9c8] sm:$0xff]
    %v657 = vld [vmem:[#allocation5 + $0x9d0] sm:$0xff]
    %v658 = vld [vmem:[#allocation5 + $0x9d8] sm:$0xff]
    %v659 = vld [vmem:[#allocation5 + $0x9e0] sm:$0xff]
    %v660 = vld [vmem:[#allocation5 + $0x9e8] sm:$0xff]
    %v661 = vld [vmem:[#allocation5 + $0x9f0] sm:$0xff]
    %v662 = vld [vmem:[#allocation5 + $0x9f8] sm:$0xff]
    %v663 = vld [vmem:[#allocation5 + $0xa00] sm:$0xff]
    %v664 = vld [vmem:[#allocation5 + $0xa08] sm:$0xff]
    %v665 = vld [vmem:[#allocation5 + $0xa10] sm:$0xff]
    %v666 = vld [vmem:[#allocation5 + $0xa18] sm:$0xff]
    %v667 = vld [vmem:[#allocation5 + $0xa20] sm:$0xff]
    %v668 = vld [vmem:[#allocation5 + $0xa28] sm:$0xff]
    %v669 = vld [vmem:[#allocation5 + $0xa30] sm:$0xff]
    %v670 = vld [vmem:[#allocation5 + $0xa38] sm:$0xff]
    %v671 = vld [vmem:[#allocation5 + $0xa40] sm:$0xff]
    %v672 = vld [vmem:[#allocation5 + $0xa48] sm:$0xff]
    %v673 = vld [vmem:[#allocation5 + $0xa50] sm:$0xff]
    %v674 = vld [vmem:[#allocation5 + $0xa58] sm:$0xff]
    %v675 = vld [vmem:[#allocation5 + $0xa60] sm:$0xff]
    %v676 = vld [vmem:[#allocation5 + $0xa68] sm:$0xff]
    %v677 = vld [vmem:[#allocation5 + $0xa70] sm:$0xff]
    %v678 = vld [vmem:[#allocation5 + $0xa78] sm:$0xff]
    %v679 = vld [vmem:[#allocation5 + $0xa80] sm:$0xff]
    %v680 = vld [vmem:[#allocation5 + $0xa88] sm:$0xff]
    %v681 = vld [vmem:[#allocation5 + $0xa90] sm:$0xff]
    %v682 = vld [vmem:[#allocation5 + $0xa98] sm:$0xff]
    %v683 = vld [vmem:[#allocation5 + $0xaa0] sm:$0xff]
    %v684 = vld [vmem:[#allocation5 + $0xaa8] sm:$0xff]
    %v685 = vld [vmem:[#allocation5 + $0xab0] sm:$0xff]
    %v686 = vld [vmem:[#allocation5 + $0xab8] sm:$0xff]
    %v687 = vld [vmem:[#allocation5 + $0xac0] sm:$0xff]
    %v688 = vld [vmem:[#allocation5 + $0xac8] sm:$0xff]
    %v689 = vld [vmem:[#allocation5 + $0xad0] sm:$0xff]
    %v690 = vld [vmem:[#allocation5 + $0xad8] sm:$0xff]
    %v691 = vld [vmem:[#allocation5 + $0xae0] sm:$0xff]
    %v692 = vld [vmem:[#allocation5 + $0xae8] sm:$0xff]
    %v693 = vld [vmem:[#allocation5 + $0xaf0] sm:$0xff]
    %v694 = vld [vmem:[#allocation5 + $0xaf8] sm:$0xff]
    %v695 = vld [vmem:[#allocation5 + $0xb00] sm:$0xff]
    %v696 = vld [vmem:[#allocation5 + $0xb08] sm:$0xff]
    %v697 = vld [vmem:[#allocation5 + $0xb10] sm:$0xff]
    %v698 = vld [vmem:[#allocation5 + $0xb18] sm:$0xff]
    %v699 = vld [vmem:[#allocation5 + $0xb20] sm:$0xff]
    %v700 = vld [vmem:[#allocation5 + $0xb28] sm:$0xff]
    %v701 = vld [vmem:[#allocation5 + $0xb30] sm:$0xff]
    %v702 = vld [vmem:[#allocation5 + $0xb38] sm:$0xff]
    %v703 = vld [vmem:[#allocation5 + $0xb40] sm:$0xff]
    %v704 = vld [vmem:[#allocation5 + $0xb48] sm:$0xff]
    %v705 = vld [vmem:[#allocation5 + $0xb50] sm:$0xff]
    %v706 = vld [vmem:[#allocation5 + $0xb58] sm:$0xff]
    %v707 = vld [vmem:[#allocation5 + $0xb60] sm:$0xff]
    %v708 = vld [vmem:[#allocation5 + $0xb68] sm:$0xff]
    %v709 = vld [vmem:[#allocation5 + $0xb70] sm:$0xff]
    %v710 = vld [vmem:[#allocation5 + $0xb78] sm:$0xff]
    %v711 = vld [vmem:[#allocation5 + $0xb80] sm:$0xff]
    %v712 = vld [vmem:[#allocation5 + $0xb88] sm:$0xff]
    %v713 = vld [vmem:[#allocation5 + $0xb90] sm:$0xff]
    %v714 = vld [vmem:[#allocation5 + $0xb98] sm:$0xff]
    %v715 = vld [vmem:[#allocation5 + $0xba0] sm:$0xff]
    %v716 = vld [vmem:[#allocation5 + $0xba8] sm:$0xff]
    %v717 = vld [vmem:[#allocation5 + $0xbb0] sm:$0xff]
    %v718 = vld [vmem:[#allocation5 + $0xbb8] sm:$0xff]
    %v719 = vld [vmem:[#allocation5 + $0xbc0] sm:$0xff]
    %v720 = vld [vmem:[#allocation5 + $0xbc8] sm:$0xff]
    %v721 = vld [vmem:[#allocation5 + $0xbd0] sm:$0xff]
    %v722 = vld [vmem:[#allocation5 + $0xbd8] sm:$0xff]
    %v723 = vld [vmem:[#allocation5 + $0xbe0] sm:$0xff]
    %v724 = vld [vmem:[#allocation5 + $0xbe8] sm:$0xff]
    %v725 = vld [vmem:[#allocation5 + $0xbf0] sm:$0xff]
    %v726 = vld [vmem:[#allocation5 + $0xbf8] sm:$0xff]
    %v727 = vld [vmem:[#allocation5 + $0xc00] sm:$0xff]
    %v728 = vld [vmem:[#allocation5 + $0xc08] sm:$0xff]
    %v729 = vld [vmem:[#allocation5 + $0xc10] sm:$0xff]
    %v730 = vld [vmem:[#allocation5 + $0xc18] sm:$0xff]
    %v731 = vld [vmem:[#allocation5 + $0xc20] sm:$0xff]
    %v732 = vld [vmem:[#allocation5 + $0xc28] sm:$0xff]
    %v733 = vld [vmem:[#allocation5 + $0xc30] sm:$0xff]
    %v734 = vld [vmem:[#allocation5 + $0xc38] sm:$0xff]
    %v735 = vld [vmem:[#allocation5 + $0xc40] sm:$0xff]
    %v736 = vld [vmem:[#allocation5 + $0xc48] sm:$0xff]
    %v737 = vld [vmem:[#allocation5 + $0xc50] sm:$0xff]
    %v738 = vld [vmem:[#allocation5 + $0xc58] sm:$0xff]
    %v739 = vld [vmem:[#allocation5 + $0xc60] sm:$0xff]
    %v740 = vld [vmem:[#allocation5 + $0xc68] sm:$0xff]
    %v741 = vld [vmem:[#allocation5 + $0xc70] sm:$0xff]
    %v742 = vld [vmem:[#allocation5 + $0xc78] sm:$0xff]
    %v743 = vld [vmem:[#allocation5 + $0xc80] sm:$0xff]
    %v744 = vld [vmem:[#allocation5 + $0xc88] sm:$0xff]
    %v745 = vld [vmem:[#allocation5 + $0xc90] sm:$0xff]
    %v746 = vld [vmem:[#allocation5 + $0xc98] sm:$0xff]
    %v747 = vld [vmem:[#allocation5 + $0xca0] sm:$0xff]
    %v748 = vld [vmem:[#allocation5 + $0xca8] sm:$0xff]
    %v749 = vld [vmem:[#allocation5 + $0xcb0] sm:$0xff]
    %v750 = vld [vmem:[#allocation5 + $0xcb8] sm:$0xff]
    %v751 = vld [vmem:[#allocation5 + $0xcc0] sm:$0xff]
    %v752 = vld [vmem:[#allocation5 + $0xcc8] sm:$0xff]
    %v753 = vld [vmem:[#allocation5 + $0xcd0] sm:$0xff]
    %v754 = vld [vmem:[#allocation5 + $0xcd8] sm:$0xff]
    %v755 = vld [vmem:[#allocation5 + $0xce0] sm:$0xff]
    %v756 = vld [vmem:[#allocation5 + $0xce8] sm:$0xff]
    %v757 = vld [vmem:[#allocation5 + $0xcf0] sm:$0xff]
    %v758 = vld [vmem:[#allocation5 + $0xcf8] sm:$0xff]
    %v759 = vld [vmem:[#allocation5 + $0xd00] sm:$0xff]
    %v760 = vld [vmem:[#allocation5 + $0xd08] sm:$0xff]
    %v761 = vld [vmem:[#allocation5 + $0xd10] sm:$0xff]
    %v762 = vld [vmem:[#allocation5 + $0xd18] sm:$0xff]
    %v763 = vld [vmem:[#allocation5 + $0xd20] sm:$0xff]
    %v764 = vld [vmem:[#allocation5 + $0xd28] sm:$0xff]
    %v765 = vld [vmem:[#allocation5 + $0xd30] sm:$0xff]
    %v766 = vld [vmem:[#allocation5 + $0xd38] sm:$0xff]
    %v767 = vld [vmem:[#allocation5 + $0xd40] sm:$0xff]
    %v768 = vld [vmem:[#allocation5 + $0xd48] sm:$0xff]
    %v769 = vld [vmem:[#allocation5 + $0xd50] sm:$0xff]
    %v770 = vld [vmem:[#allocation5 + $0xd58] sm:$0xff]
    %v771 = vld [vmem:[#allocation5 + $0xd60] sm:$0xff]
    %v772 = vld [vmem:[#allocation5 + $0xd68] sm:$0xff]
    %v773 = vld [vmem:[#allocation5 + $0xd70] sm:$0xff]
    %v774 = vld [vmem:[#allocation5 + $0xd78] sm:$0xff]
    %v775 = vld [vmem:[#allocation5 + $0xd80] sm:$0xff]
    %v776 = vld [vmem:[#allocation5 + $0xd88] sm:$0xff]
    %v777 = vld [vmem:[#allocation5 + $0xd90] sm:$0xff]
    %v778 = vld [vmem:[#allocation5 + $0xd98] sm:$0xff]
    %v779 = vld [vmem:[#allocation5 + $0xda0] sm:$0xff]
    %v780 = vld [vmem:[#allocation5 + $0xda8] sm:$0xff]
    %v781 = vld [vmem:[#allocation5 + $0xdb0] sm:$0xff]
    %v782 = vld [vmem:[#allocation5 + $0xdb8] sm:$0xff]
    %v783 = vld [vmem:[#allocation5 + $0xdc0] sm:$0xff]
    %v784 = vld [vmem:[#allocation5 + $0xdc8] sm:$0xff]
    %v785 = vld [vmem:[#allocation5 + $0xdd0] sm:$0xff]
    %v786 = vld [vmem:[#allocation5 + $0xdd8] sm:$0xff]
    %v787 = vld [vmem:[#allocation5 + $0xde0] sm:$0xff]
    %v788 = vld [vmem:[#allocation5 + $0xde8] sm:$0xff]
    %v789 = vld [vmem:[#allocation5 + $0xdf0] sm:$0xff]
    %v790 = vld [vmem:[#allocation5 + $0xdf8] sm:$0xff]
    %v791 = vld [vmem:[#allocation5 + $0xe00] sm:$0xff]
    %v792 = vld [vmem:[#allocation5 + $0xe08] sm:$0xff]
    %v793 = vld [vmem:[#allocation5 + $0xe10] sm:$0xff]
    %v794 = vld [vmem:[#allocation5 + $0xe18] sm:$0xff]
    %v795 = vld [vmem:[#allocation5 + $0xe20] sm:$0xff]
    %v796 = vld [vmem:[#allocation5 + $0xe28] sm:$0xff]
    %v797 = vld [vmem:[#allocation5 + $0xe30] sm:$0xff]
    %v798 = vld [vmem:[#allocation5 + $0xe38] sm:$0xff]
    %v799 = vld [vmem:[#allocation5 + $0xe40] sm:$0xff]
    %v800 = vld [vmem:[#allocation5 + $0xe48] sm:$0xff]
    %v801 = vld [vmem:[#allocation5 + $0xe50] sm:$0xff]
    %v802 = vld [vmem:[#allocation5 + $0xe58] sm:$0xff]
    %v803 = vld [vmem:[#allocation5 + $0xe60] sm:$0xff]
    %v804 = vld [vmem:[#allocation5 + $0xe68] sm:$0xff]
    %v805 = vld [vmem:[#allocation5 + $0xe70] sm:$0xff]
    %v806 = vld [vmem:[#allocation5 + $0xe78] sm:$0xff]
    %v807 = vld [vmem:[#allocation5 + $0xe80] sm:$0xff]
    %v808 = vld [vmem:[#allocation5 + $0xe88] sm:$0xff]
    %v809 = vld [vmem:[#allocation5 + $0xe90] sm:$0xff]
    %v810 = vld [vmem:[#allocation5 + $0xe98] sm:$0xff]
    %v811 = vld [vmem:[#allocation5 + $0xea0] sm:$0xff]
    %v812 = vld [vmem:[#allocation5 + $0xea8] sm:$0xff]
    %v813 = vld [vmem:[#allocation5 + $0xeb0] sm:$0xff]
    %v814 = vld [vmem:[#allocation5 + $0xeb8] sm:$0xff]
    %v815 = vld [vmem:[#allocation5 + $0xec0] sm:$0xff]
    %v816 = vld [vmem:[#allocation5 + $0xec8] sm:$0xff]
    %v817 = vld [vmem:[#allocation5 + $0xed0] sm:$0xff]
    %v818 = vld [vmem:[#allocation5 + $0xed8] sm:$0xff]
    %v819 = vld [vmem:[#allocation5 + $0xee0] sm:$0xff]
    %v820 = vld [vmem:[#allocation5 + $0xee8] sm:$0xff]
    %v821 = vld [vmem:[#allocation5 + $0xef0] sm:$0xff]
    %v822 = vld [vmem:[#allocation5 + $0xef8] sm:$0xff]
    %v823 = vld [vmem:[#allocation5 + $0xf00] sm:$0xff]
    %v824 = vld [vmem:[#allocation5 + $0xf08] sm:$0xff]
    %v825 = vld [vmem:[#allocation5 + $0xf10] sm:$0xff]
    %v826 = vld [vmem:[#allocation5 + $0xf18] sm:$0xff]
    %v827 = vld [vmem:[#allocation5 + $0xf20] sm:$0xff]
    %v828 = vld [vmem:[#allocation5 + $0xf28] sm:$0xff]
    %v829 = vld [vmem:[#allocation5 + $0xf30] sm:$0xff]
    %v830 = vld [vmem:[#allocation5 + $0xf38] sm:$0xff]
    %v831 = vld [vmem:[#allocation5 + $0xf40] sm:$0xff]
    %v832 = vld [vmem:[#allocation5 + $0xf48] sm:$0xff]
    %v833 = vld [vmem:[#allocation5 + $0xf50] sm:$0xff]
    %v834 = vld [vmem:[#allocation5 + $0xf58] sm:$0xff]
    %v835 = vld [vmem:[#allocation5 + $0xf60] sm:$0xff]
    %v836 = vld [vmem:[#allocation5 + $0xf68] sm:$0xff]
    %v837 = vld [vmem:[#allocation5 + $0xf70] sm:$0xff]
    %v838 = vld [vmem:[#allocation5 + $0xf78] sm:$0xff]
    %v839 = vld [vmem:[#allocation5 + $0xf80] sm:$0xff]
    %v840 = vld [vmem:[#allocation5 + $0xf88] sm:$0xff]
    %v841 = vld [vmem:[#allocation5 + $0xf90] sm:$0xff]
    %v842 = vld [vmem:[#allocation5 + $0xf98] sm:$0xff]
    %v843 = vld [vmem:[#allocation5 + $0xfa0] sm:$0xff]
    %v844 = vld [vmem:[#allocation5 + $0xfa8] sm:$0xff]
    %v845 = vld [vmem:[#allocation5 + $0xfb0] sm:$0xff]
    %v846 = vld [vmem:[#allocation5 + $0xfb8] sm:$0xff]
    %v847 = vld [vmem:[#allocation5 + $0xfc0] sm:$0xff]
    %v848 = vld [vmem:[#allocation5 + $0xfc8] sm:$0xff]
    %v849 = vld [vmem:[#allocation5 + $0xfd0] sm:$0xff]
    %v850 = vld [vmem:[#allocation5 + $0xfd8] sm:$0xff]
    %v851 = vld [vmem:[#allocation5 + $0xfe0] sm:$0xff]
    %v852 = vld [vmem:[#allocation5 + $0xfe8] sm:$0xff]
    %v853 = vld [vmem:[#allocation5 + $0xff0] sm:$0xff]
    %v854 = vld [vmem:[#allocation5 + $0xff8] sm:$0xff]
    %v855 = vld [vmem:[#allocation5 + $0x1000] sm:$0xff]
    %v856 = vld [vmem:[#allocation5 + $0x1008] sm:$0xff]
    %v857 = vld [vmem:[#allocation5 + $0x1010] sm:$0xff]
    %v858 = vld [vmem:[#allocation5 + $0x1018] sm:$0xff]
    %v859 = vld [vmem:[#allocation5 + $0x1020] sm:$0xff]
    %v860 = vld [vmem:[#allocation5 + $0x1028] sm:$0xff]
    %v861 = vld [vmem:[#allocation5 + $0x1030] sm:$0xff]
    %v862 = vld [vmem:[#allocation5 + $0x1038] sm:$0xff]
    %v863 = vld [vmem:[#allocation5 + $0x1040] sm:$0xff]
    %v864 = vld [vmem:[#allocation5 + $0x1048] sm:$0xff]
    %v865 = vld [vmem:[#allocation5 + $0x1050] sm:$0xff]
    %v866 = vld [vmem:[#allocation5 + $0x1058] sm:$0xff]
    %v867 = vld [vmem:[#allocation5 + $0x1060] sm:$0xff]
    %v868 = vld [vmem:[#allocation5 + $0x1068] sm:$0xff]
    %v869 = vld [vmem:[#allocation5 + $0x1070] sm:$0xff]
    %v870 = vld [vmem:[#allocation5 + $0x1078] sm:$0xff]
    %v871 = vld [vmem:[#allocation5 + $0x1080] sm:$0xff]
    %v872 = vld [vmem:[#allocation5 + $0x1088] sm:$0xff]
    %v873 = vld [vmem:[#allocation5 + $0x1090] sm:$0xff]
    %v874 = vld [vmem:[#allocation5 + $0x1098] sm:$0xff]
    %v875 = vld [vmem:[#allocation5 + $0x10a0] sm:$0xff]
    %v876 = vld [vmem:[#allocation5 + $0x10a8] sm:$0xff]
    %v877 = vld [vmem:[#allocation5 + $0x10b0] sm:$0xff]
    %v878 = vld [vmem:[#allocation5 + $0x10b8] sm:$0xff]
    %v879 = vld [vmem:[#allocation5 + $0x10c0] sm:$0xff]
    %v880 = vld [vmem:[#allocation5 + $0x10c8] sm:$0xff]
    %v881 = vld [vmem:[#allocation5 + $0x10d0] sm:$0xff]
    %v882 = vld [vmem:[#allocation5 + $0x10d8] sm:$0xff]
    %v883 = vld [vmem:[#allocation5 + $0x10e0] sm:$0xff]
    %v884 = vld [vmem:[#allocation5 + $0x10e8] sm:$0xff]
    %v885 = vld [vmem:[#allocation5 + $0x10f0] sm:$0xff]
    %v886 = vld [vmem:[#allocation5 + $0x10f8] sm:$0xff]
    %v887 = vld [vmem:[#allocation5 + $0x1100] sm:$0xff]
    %v888 = vld [vmem:[#allocation5 + $0x1108] sm:$0xff]
    %v889 = vld [vmem:[#allocation5 + $0x1110] sm:$0xff]
    %v890 = vld [vmem:[#allocation5 + $0x1118] sm:$0xff]
    %v891 = vld [vmem:[#allocation5 + $0x1120] sm:$0xff]
    %v892 = vld [vmem:[#allocation5 + $0x1128] sm:$0xff]
    %v893 = vld [vmem:[#allocation5 + $0x1130] sm:$0xff]
    %v894 = vld [vmem:[#allocation5 + $0x1138] sm:$0xff]
    %v895 = vld [vmem:[#allocation5 + $0x1140] sm:$0xff]
    %v896 = vld [vmem:[#allocation5 + $0x1148] sm:$0xff]
    %v897 = vld [vmem:[#allocation5 + $0x1150] sm:$0xff]
    %v898 = vld [vmem:[#allocation5 + $0x1158] sm:$0xff]
    %v899 = vld [vmem:[#allocation5 + $0x1160] sm:$0xff]
    %v900 = vld [vmem:[#allocation5 + $0x1168] sm:$0xff]
    %v901 = vld [vmem:[#allocation5 + $0x1170] sm:$0xff]
    %v902 = vld [vmem:[#allocation5 + $0x1178] sm:$0xff]
    %v903 = vld [vmem:[#allocation5 + $0x1180] sm:$0xff]
    %v904 = vld [vmem:[#allocation5 + $0x1188] sm:$0xff]
    %v905 = vld [vmem:[#allocation5 + $0x1190] sm:$0xff]
    %v906 = vld [vmem:[#allocation5 + $0x1198] sm:$0xff]
    %v907 = vld [vmem:[#allocation5 + $0x11a0] sm:$0xff]
    %v908 = vld [vmem:[#allocation5 + $0x11a8] sm:$0xff]
    %v909 = vld [vmem:[#allocation5 + $0x11b0] sm:$0xff]
    %v910 = vld [vmem:[#allocation5 + $0x11b8] sm:$0xff]
    %v911 = vld [vmem:[#allocation5 + $0x11c0] sm:$0xff]
    %v912 = vld [vmem:[#allocation5 + $0x11c8] sm:$0xff]
    %v913 = vld [vmem:[#allocation5 + $0x11d0] sm:$0xff]
    %v914 = vld [vmem:[#allocation5 + $0x11d8] sm:$0xff]
    %v915 = vld [vmem:[#allocation5 + $0x11e0] sm:$0xff]
    %v916 = vld [vmem:[#allocation5 + $0x11e8] sm:$0xff]
    %v917 = vld [vmem:[#allocation5 + $0x11f0] sm:$0xff]
    %v918 = vld [vmem:[#allocation5 + $0x11f8] sm:$0xff]
    %v919 = vld [vmem:[#allocation5 + $0x1200] sm:$0xff]
    %v920 = vld [vmem:[#allocation5 + $0x1208] sm:$0xff]
    %v921 = vld [vmem:[#allocation5 + $0x1210] sm:$0xff]
    %v922 = vld [vmem:[#allocation5 + $0x1218] sm:$0xff]
    %v923 = vld [vmem:[#allocation5 + $0x1220] sm:$0xff]
    %v924 = vld [vmem:[#allocation5 + $0x1228] sm:$0xff]
    %v925 = vld [vmem:[#allocation5 + $0x1230] sm:$0xff]
    %v926 = vld [vmem:[#allocation5 + $0x1238] sm:$0xff]
    %v927 = vld [vmem:[#allocation5 + $0x1240] sm:$0xff]
    %v928 = vld [vmem:[#allocation5 + $0x1248] sm:$0xff]
    %v929 = vld [vmem:[#allocation5 + $0x1250] sm:$0xff]
    %v930 = vld [vmem:[#allocation5 + $0x1258] sm:$0xff]
    %v931 = vld [vmem:[#allocation5 + $0x1260] sm:$0xff]
    %v932 = vld [vmem:[#allocation5 + $0x1268] sm:$0xff]
    %v933 = vld [vmem:[#allocation5 + $0x1270] sm:$0xff]
    %v934 = vld [vmem:[#allocation5 + $0x1278] sm:$0xff]
    %v935 = vld [vmem:[#allocation5 + $0x1280] sm:$0xff]
    %v936 = vld [vmem:[#allocation5 + $0x1288] sm:$0xff]
    %v937 = vld [vmem:[#allocation5 + $0x1290] sm:$0xff]
    %v938 = vld [vmem:[#allocation5 + $0x1298] sm:$0xff]
    %v939 = vld [vmem:[#allocation5 + $0x12a0] sm:$0xff]
    %v940 = vld [vmem:[#allocation5 + $0x12a8] sm:$0xff]
    %v941 = vld [vmem:[#allocation5 + $0x12b0] sm:$0xff]
    %v942 = vld [vmem:[#allocation5 + $0x12b8] sm:$0xff]
    %v943 = vld [vmem:[#allocation5 + $0x12c0] sm:$0xff]
    %v944 = vld [vmem:[#allocation5 + $0x12c8] sm:$0xff]
    %v945 = vld [vmem:[#allocation5 + $0x12d0] sm:$0xff]
    %v946 = vld [vmem:[#allocation5 + $0x12d8] sm:$0xff]
    %v947 = vld [vmem:[#allocation5 + $0x12e0] sm:$0xff]
    %v948 = vld [vmem:[#allocation5 + $0x12e8] sm:$0xff]
    %v949 = vld [vmem:[#allocation5 + $0x12f0] sm:$0xff]
    %v950 = vld [vmem:[#allocation5 + $0x12f8] sm:$0xff]
    %v951 = vld [vmem:[#allocation5 + $0x1300] sm:$0xff]
    %v952 = vld [vmem:[#allocation5 + $0x1308] sm:$0xff]
    %v953 = vld [vmem:[#allocation5 + $0x1310] sm:$0xff]
    %v954 = vld [vmem:[#allocation5 + $0x1318] sm:$0xff]
    %v955 = vld [vmem:[#allocation5 + $0x1320] sm:$0xff]
    %v956 = vld [vmem:[#allocation5 + $0x1328] sm:$0xff]
    %v957 = vld [vmem:[#allocation5 + $0x1330] sm:$0xff]
    %v958 = vld [vmem:[#allocation5 + $0x1338] sm:$0xff]
    %v959 = vld [vmem:[#allocation5 + $0x1340] sm:$0xff]
    %v960 = vld [vmem:[#allocation5 + $0x1348] sm:$0xff]
    %v961 = vld [vmem:[#allocation5 + $0x1350] sm:$0xff]
    %v962 = vld [vmem:[#allocation5 + $0x1358] sm:$0xff]
    %v963 = vld [vmem:[#allocation5 + $0x1360] sm:$0xff]
    %v964 = vld [vmem:[#allocation5 + $0x1368] sm:$0xff]
    %v965 = vld [vmem:[#allocation5 + $0x1370] sm:$0xff]
    %v966 = vld [vmem:[#allocation5 + $0x1378] sm:$0xff]
    %v967 = vld [vmem:[#allocation5 + $0x1380] sm:$0xff]
    %v968 = vld [vmem:[#allocation5 + $0x1388] sm:$0xff]
    %v969 = vld [vmem:[#allocation5 + $0x1390] sm:$0xff]
    %v970 = vld [vmem:[#allocation5 + $0x1398] sm:$0xff]
    %v971 = vld [vmem:[#allocation5 + $0x13a0] sm:$0xff]
    %v972 = vld [vmem:[#allocation5 + $0x13a8] sm:$0xff]
    %v973 = vld [vmem:[#allocation5 + $0x13b0] sm:$0xff]
    %v974 = vld [vmem:[#allocation5 + $0x13b8] sm:$0xff]
    %v975 = vld [vmem:[#allocation5 + $0x13c0] sm:$0xff]
    %v976 = vld [vmem:[#allocation5 + $0x13c8] sm:$0xff]
    %v977 = vld [vmem:[#allocation5 + $0x13d0] sm:$0xff]
    %v978 = vld [vmem:[#allocation5 + $0x13d8] sm:$0xff]
    %v979 = vld [vmem:[#allocation5 + $0x13e0] sm:$0xff]
    %v980 = vld [vmem:[#allocation5 + $0x13e8] sm:$0xff]
    %v981 = vld [vmem:[#allocation5 + $0x13f0] sm:$0xff]
    %v982 = vld [vmem:[#allocation5 + $0x13f8] sm:$0xff]
    %v983 = vld [vmem:[#allocation5 + $0x1400] sm:$0xff]
    %v984 = vld [vmem:[#allocation5 + $0x1408] sm:$0xff]
    %v985 = vld [vmem:[#allocation5 + $0x1410] sm:$0xff]
    %v986 = vld [vmem:[#allocation5 + $0x1418] sm:$0xff]
    %v987 = vld [vmem:[#allocation5 + $0x1420] sm:$0xff]
    %v988 = vld [vmem:[#allocation5 + $0x1428] sm:$0xff]
    %v989 = vld [vmem:[#allocation5 + $0x1430] sm:$0xff]
    %v990 = vld [vmem:[#allocation5 + $0x1438] sm:$0xff]
    %v991 = vld [vmem:[#allocation5 + $0x1440] sm:$0xff]
    %v992 = vld [vmem:[#allocation5 + $0x1448] sm:$0xff]
    %v993 = vld [vmem:[#allocation5 + $0x1450] sm:$0xff]
    %v994 = vld [vmem:[#allocation5 + $0x1458] sm:$0xff]
    %v995 = vld [vmem:[#allocation5 + $0x1460] sm:$0xff]
    %v996 = vld [vmem:[#allocation5 + $0x1468] sm:$0xff]
    %v997 = vld [vmem:[#allocation5 + $0x1470] sm:$0xff]
    %v998 = vld [vmem:[#allocation5 + $0x1478] sm:$0xff]
    %v999 = vld [vmem:[#allocation5 + $0x1480] sm:$0xff]
    %v1000 = vld [vmem:[#allocation5 + $0x1488] sm:$0xff]
    %v1001 = vld [vmem:[#allocation5 + $0x1490] sm:$0xff]
    %v1002 = vld [vmem:[#allocation5 + $0x1498] sm:$0xff]
    %v1003 = vld [vmem:[#allocation5 + $0x14a0] sm:$0xff]
    %v1004 = vld [vmem:[#allocation5 + $0x14a8] sm:$0xff]
    %v1005 = vld [vmem:[#allocation5 + $0x14b0] sm:$0xff]
    %v1006 = vld [vmem:[#allocation5 + $0x14b8] sm:$0xff]
    %v1007 = vld [vmem:[#allocation5 + $0x14c0] sm:$0xff]
    %v1008 = vld [vmem:[#allocation5 + $0x14c8] sm:$0xff]
    %v1009 = vld [vmem:[#allocation5 + $0x14d0] sm:$0xff]
    %v1010 = vld [vmem:[#allocation5 + $0x14d8] sm:$0xff]
    %v1011 = vld [vmem:[#allocation5 + $0x14e0] sm:$0xff]
    %v1012 = vld [vmem:[#allocation5 + $0x14e8] sm:$0xff]
    %v1013 = vld [vmem:[#allocation5 + $0x14f0] sm:$0xff]
    %v1014 = vld [vmem:[#allocation5 + $0x14f8] sm:$0xff]
    %v1015 = vld [vmem:[#allocation5 + $0x1500] sm:$0xff]
    %v1016 = vld [vmem:[#allocation5 + $0x1508] sm:$0xff]
    %v1017 = vld [vmem:[#allocation5 + $0x1510] sm:$0xff]
    %v1018 = vld [vmem:[#allocation5 + $0x1518] sm:$0xff]
    %v1019 = vld [vmem:[#allocation5 + $0x1520] sm:$0xff]
    %v1020 = vld [vmem:[#allocation5 + $0x1528] sm:$0xff]
    %v1021 = vld [vmem:[#allocation5 + $0x1530] sm:$0xff]
    %v1022 = vld [vmem:[#allocation5 + $0x1538] sm:$0xff]
    %v1023 = vld [vmem:[#allocation5 + $0x1540] sm:$0xff]
    %v1024 = vld [vmem:[#allocation5 + $0x1548] sm:$0xff]
    %v1025 = vld [vmem:[#allocation5 + $0x1550] sm:$0xff]
    %v1026 = vld [vmem:[#allocation5 + $0x1558] sm:$0xff]
    %v1027 = vld [vmem:[#allocation5 + $0x1560] sm:$0xff]
    %v1028 = vld [vmem:[#allocation5 + $0x1568] sm:$0xff]
    %v1029 = vld [vmem:[#allocation5 + $0x1570] sm:$0xff]
    %v1030 = vld [vmem:[#allocation5 + $0x1578] sm:$0xff]
    %v1031 = vld [vmem:[#allocation5 + $0x1580] sm:$0xff]
    %v1032 = vld [vmem:[#allocation5 + $0x1588] sm:$0xff]
    %v1033 = vld [vmem:[#allocation5 + $0x1590] sm:$0xff]
    %v1034 = vld [vmem:[#allocation5 + $0x1598] sm:$0xff]
    %v1035 = vld [vmem:[#allocation5 + $0x15a0] sm:$0xff]
    %v1036 = vld [vmem:[#allocation5 + $0x15a8] sm:$0xff]
    %v1037 = vld [vmem:[#allocation5 + $0x15b0] sm:$0xff]
    %v1038 = vld [vmem:[#allocation5 + $0x15b8] sm:$0xff]
    %v1039 = vld [vmem:[#allocation5 + $0x15c0] sm:$0xff]
    %v1040 = vld [vmem:[#allocation5 + $0x15c8] sm:$0xff]
    %v1041 = vld [vmem:[#allocation5 + $0x15d0] sm:$0xff]
    %v1042 = vld [vmem:[#allocation5 + $0x15d8] sm:$0xff]
    %v1043 = vld [vmem:[#allocation5 + $0x15e0] sm:$0xff]
    %v1044 = vld [vmem:[#allocation5 + $0x15e8] sm:$0xff]
    %v1045 = vld [vmem:[#allocation5 + $0x15f0] sm:$0xff]
    %v1046 = vld [vmem:[#allocation5 + $0x15f8] sm:$0xff]
    %v1047 = vld [vmem:[#allocation5 + $0x1600] sm:$0xff]
    %v1048 = vld [vmem:[#allocation5 + $0x1608] sm:$0xff]
    %v1049 = vld [vmem:[#allocation5 + $0x1610] sm:$0xff]
    %v1050 = vld [vmem:[#allocation5 + $0x1618] sm:$0xff]
    %v1051 = vld [vmem:[#allocation5 + $0x1620] sm:$0xff]
    %v1052 = vld [vmem:[#allocation5 + $0x1628] sm:$0xff]
    %v1053 = vld [vmem:[#allocation5 + $0x1630] sm:$0xff]
    %v1054 = vld [vmem:[#allocation5 + $0x1638] sm:$0xff]
    %v1055 = vld [vmem:[#allocation5 + $0x1640] sm:$0xff]
    %v1056 = vld [vmem:[#allocation5 + $0x1648] sm:$0xff]
    %v1057 = vld [vmem:[#allocation5 + $0x1650] sm:$0xff]
    %v1058 = vld [vmem:[#allocation5 + $0x1658] sm:$0xff]
    %v1059 = vld [vmem:[#allocation5 + $0x1660] sm:$0xff]
    %v1060 = vld [vmem:[#allocation5 + $0x1668] sm:$0xff]
    %v1061 = vld [vmem:[#allocation5 + $0x1670] sm:$0xff]
    %v1062 = vld [vmem:[#allocation5 + $0x1678] sm:$0xff]
    %v1063 = vld [vmem:[#allocation5 + $0x1680] sm:$0xff]
    %v1064 = vld [vmem:[#allocation5 + $0x1688] sm:$0xff]
    %v1065 = vld [vmem:[#allocation5 + $0x1690] sm:$0xff]
    %v1066 = vld [vmem:[#allocation5 + $0x1698] sm:$0xff]
    %v1067 = vld [vmem:[#allocation5 + $0x16a0] sm:$0xff]
    %v1068 = vld [vmem:[#allocation5 + $0x16a8] sm:$0xff]
    %v1069 = vld [vmem:[#allocation5 + $0x16b0] sm:$0xff]
    %v1070 = vld [vmem:[#allocation5 + $0x16b8] sm:$0xff]
    %v1071 = vld [vmem:[#allocation5 + $0x16c0] sm:$0xff]
    %v1072 = vld [vmem:[#allocation5 + $0x16c8] sm:$0xff]
    %v1073 = vld [vmem:[#allocation5 + $0x16d0] sm:$0xff]
    %v1074 = vld [vmem:[#allocation5 + $0x16d8] sm:$0xff]
    %v1075 = vld [vmem:[#allocation5 + $0x16e0] sm:$0xff]
    %v1076 = vld [vmem:[#allocation5 + $0x16e8] sm:$0xff]
    %v1077 = vld [vmem:[#allocation5 + $0x16f0] sm:$0xff]
    %v1078 = vld [vmem:[#allocation5 + $0x16f8] sm:$0xff]
    %v1079 = vld [vmem:[#allocation5 + $0x1700] sm:$0xff]
    %v1080 = vld [vmem:[#allocation5 + $0x1708] sm:$0xff]
    %v1081 = vld [vmem:[#allocation5 + $0x1710] sm:$0xff]
    %v1082 = vld [vmem:[#allocation5 + $0x1718] sm:$0xff]
    %v1083 = vld [vmem:[#allocation5 + $0x1720] sm:$0xff]
    %v1084 = vld [vmem:[#allocation5 + $0x1728] sm:$0xff]
    %v1085 = vld [vmem:[#allocation5 + $0x1730] sm:$0xff]
    %v1086 = vld [vmem:[#allocation5 + $0x1738] sm:$0xff]
    %v1087 = vld [vmem:[#allocation5 + $0x1740] sm:$0xff]
    %v1088 = vld [vmem:[#allocation5 + $0x1748] sm:$0xff]
    %v1089 = vld [vmem:[#allocation5 + $0x1750] sm:$0xff]
    %v1090 = vld [vmem:[#allocation5 + $0x1758] sm:$0xff]
    %v1091 = vld [vmem:[#allocation5 + $0x1760] sm:$0xff]
    %v1092 = vld [vmem:[#allocation5 + $0x1768] sm:$0xff]
    %v1093 = vld [vmem:[#allocation5 + $0x1770] sm:$0xff]
    %v1094 = vld [vmem:[#allocation5 + $0x1778] sm:$0xff]
    %v1095 = vld [vmem:[#allocation5 + $0x1780] sm:$0xff]
    %v1096 = vld [vmem:[#allocation5 + $0x1788] sm:$0xff]
    %v1097 = vld [vmem:[#allocation5 + $0x1790] sm:$0xff]
    %v1098 = vld [vmem:[#allocation5 + $0x1798] sm:$0xff]
    %v1099 = vld [vmem:[#allocation5 + $0x17a0] sm:$0xff]
    %v1100 = vld [vmem:[#allocation5 + $0x17a8] sm:$0xff]
    %v1101 = vld [vmem:[#allocation5 + $0x17b0] sm:$0xff]
    %v1102 = vld [vmem:[#allocation5 + $0x17b8] sm:$0xff]
    %v1103 = vld [vmem:[#allocation5 + $0x17c0] sm:$0xff]
    %v1104 = vld [vmem:[#allocation5 + $0x17c8] sm:$0xff]
    %v1105 = vld [vmem:[#allocation5 + $0x17d0] sm:$0xff]
    %v1106 = vld [vmem:[#allocation5 + $0x17d8] sm:$0xff]
    %v1107 = vld [vmem:[#allocation5 + $0x17e0] sm:$0xff]
    %v1108 = vld [vmem:[#allocation5 + $0x17e8] sm:$0xff]
    %v1109 = vld [vmem:[#allocation5 + $0x17f0] sm:$0xff]
    %v1110 = vld [vmem:[#allocation5 + $0x17f8] sm:$0xff]
    %v1111 = vld [vmem:[#allocation5 + $0x1800] sm:$0xff]
    %v1112 = vld [vmem:[#allocation5 + $0x1808] sm:$0xff]
    %v1113 = vld [vmem:[#allocation5 + $0x1810] sm:$0xff]
    %v1114 = vld [vmem:[#allocation5 + $0x1818] sm:$0xff]
    %v1115 = vld [vmem:[#allocation5 + $0x1820] sm:$0xff]
    %v1116 = vld [vmem:[#allocation5 + $0x1828] sm:$0xff]
    %v1117 = vld [vmem:[#allocation5 + $0x1830] sm:$0xff]
    %v1118 = vld [vmem:[#allocation5 + $0x1838] sm:$0xff]
    %v1119 = vld [vmem:[#allocation5 + $0x1840] sm:$0xff]
    %v1120 = vld [vmem:[#allocation5 + $0x1848] sm:$0xff]
    %v1121 = vld [vmem:[#allocation5 + $0x1850] sm:$0xff]
    %v1122 = vld [vmem:[#allocation5 + $0x1858] sm:$0xff]
    %v1123 = vld [vmem:[#allocation5 + $0x1860] sm:$0xff]
    %v1124 = vld [vmem:[#allocation5 + $0x1868] sm:$0xff]
    %v1125 = vld [vmem:[#allocation5 + $0x1870] sm:$0xff]
    %v1126 = vld [vmem:[#allocation5 + $0x1878] sm:$0xff]
    %v1127 = vld [vmem:[#allocation5 + $0x1880] sm:$0xff]
    %v1128 = vld [vmem:[#allocation5 + $0x1888] sm:$0xff]
    %v1129 = vld [vmem:[#allocation5 + $0x1890] sm:$0xff]
    %v1130 = vld [vmem:[#allocation5 + $0x1898] sm:$0xff]
    %v1131 = vld [vmem:[#allocation5 + $0x18a0] sm:$0xff]
    %v1132 = vld [vmem:[#allocation5 + $0x18a8] sm:$0xff]
    %v1133 = vld [vmem:[#allocation5 + $0x18b0] sm:$0xff]
    %v1134 = vld [vmem:[#allocation5 + $0x18b8] sm:$0xff]
    %v1135 = vld [vmem:[#allocation5 + $0x18c0] sm:$0xff]
    %v1136 = vld [vmem:[#allocation5 + $0x18c8] sm:$0xff]
    %v1137 = vld [vmem:[#allocation5 + $0x18d0] sm:$0xff]
    %v1138 = vld [vmem:[#allocation5 + $0x18d8] sm:$0xff]
    %v1139 = vld [vmem:[#allocation5 + $0x18e0] sm:$0xff]
    %v1140 = vld [vmem:[#allocation5 + $0x18e8] sm:$0xff]
    %v1141 = vld [vmem:[#allocation5 + $0x18f0] sm:$0xff]
    %v1142 = vld [vmem:[#allocation5 + $0x18f8] sm:$0xff]
    %v1143 = vld [vmem:[#allocation5 + $0x1900] sm:$0xff]
    %v1144 = vld [vmem:[#allocation5 + $0x1908] sm:$0xff]
    %v1145 = vld [vmem:[#allocation5 + $0x1910] sm:$0xff]
    %v1146 = vld [vmem:[#allocation5 + $0x1918] sm:$0xff]
    %v1147 = vld [vmem:[#allocation5 + $0x1920] sm:$0xff]
    %v1148 = vld [vmem:[#allocation5 + $0x1928] sm:$0xff]
    %v1149 = vld [vmem:[#allocation5 + $0x1930] sm:$0xff]
    %v1150 = vld [vmem:[#allocation5 + $0x1938] sm:$0xff]
    %v1151 = vld [vmem:[#allocation5 + $0x1940] sm:$0xff]
    %v1152 = vld [vmem:[#allocation5 + $0x1948] sm:$0xff]
    %v1153 = vld [vmem:[#allocation5 + $0x1950] sm:$0xff]
    %v1154 = vld [vmem:[#allocation5 + $0x1958] sm:$0xff]
    %v1155 = vld [vmem:[#allocation5 + $0x1960] sm:$0xff]
    %v1156 = vld [vmem:[#allocation5 + $0x1968] sm:$0xff]
    %v1157 = vld [vmem:[#allocation5 + $0x1970] sm:$0xff]
    %v1158 = vld [vmem:[#allocation5 + $0x1978] sm:$0xff]
    %v1159 = vld [vmem:[#allocation5 + $0x1980] sm:$0xff]
    %v1160 = vld [vmem:[#allocation5 + $0x1988] sm:$0xff]
    %v1161 = vld [vmem:[#allocation5 + $0x1990] sm:$0xff]
    %v1162 = vld [vmem:[#allocation5 + $0x1998] sm:$0xff]
    %v1163 = vld [vmem:[#allocation5 + $0x19a0] sm:$0xff]
    %v1164 = vld [vmem:[#allocation5 + $0x19a8] sm:$0xff]
    %v1165 = vld [vmem:[#allocation5 + $0x19b0] sm:$0xff]
    %v1166 = vld [vmem:[#allocation5 + $0x19b8] sm:$0xff]
    %v1167 = vld [vmem:[#allocation5 + $0x19c0] sm:$0xff]
    %v1168 = vld [vmem:[#allocation5 + $0x19c8] sm:$0xff]
    %v1169 = vld [vmem:[#allocation5 + $0x19d0] sm:$0xff]
    %v1170 = vld [vmem:[#allocation5 + $0x19d8] sm:$0xff]
    %v1171 = vld [vmem:[#allocation5 + $0x19e0] sm:$0xff]
    %v1172 = vld [vmem:[#allocation5 + $0x19e8] sm:$0xff]
    %v1173 = vld [vmem:[#allocation5 + $0x19f0] sm:$0xff]
    %v1174 = vld [vmem:[#allocation5 + $0x19f8] sm:$0xff]
    %v1175 = vld [vmem:[#allocation5 + $0x1a00] sm:$0xff]
    %v1176 = vld [vmem:[#allocation5 + $0x1a08] sm:$0xff]
    %v1177 = vld [vmem:[#allocation5 + $0x1a10] sm:$0xff]
    %v1178 = vld [vmem:[#allocation5 + $0x1a18] sm:$0xff]
    %v1179 = vld [vmem:[#allocation5 + $0x1a20] sm:$0xff]
    %v1180 = vld [vmem:[#allocation5 + $0x1a28] sm:$0xff]
    %v1181 = vld [vmem:[#allocation5 + $0x1a30] sm:$0xff]
    %v1182 = vld [vmem:[#allocation5 + $0x1a38] sm:$0xff]
    %v1183 = vld [vmem:[#allocation5 + $0x1a40] sm:$0xff]
    %v1184 = vld [vmem:[#allocation5 + $0x1a48] sm:$0xff]
    %v1185 = vld [vmem:[#allocation5 + $0x1a50] sm:$0xff]
    %v1186 = vld [vmem:[#allocation5 + $0x1a58] sm:$0xff]
    %v1187 = vld [vmem:[#allocation5 + $0x1a60] sm:$0xff]
    %v1188 = vld [vmem:[#allocation5 + $0x1a68] sm:$0xff]
    %v1189 = vld [vmem:[#allocation5 + $0x1a70] sm:$0xff]
    %v1190 = vld [vmem:[#allocation5 + $0x1a78] sm:$0xff]
    %v1191 = vld [vmem:[#allocation5 + $0x1a80] sm:$0xff]
    %v1192 = vld [vmem:[#allocation5 + $0x1a88] sm:$0xff]
    %v1193 = vld [vmem:[#allocation5 + $0x1a90] sm:$0xff]
    %v1194 = vld [vmem:[#allocation5 + $0x1a98] sm:$0xff]
    %v1195 = vld [vmem:[#allocation5 + $0x1aa0] sm:$0xff]
    %v1196 = vld [vmem:[#allocation5 + $0x1aa8] sm:$0xff]
    %v1197 = vld [vmem:[#allocation5 + $0x1ab0] sm:$0xff]
    %v1198 = vld [vmem:[#allocation5 + $0x1ab8] sm:$0xff]
    %v1199 = vld [vmem:[#allocation5 + $0x1ac0] sm:$0xff]
    %v1200 = vld [vmem:[#allocation5 + $0x1ac8] sm:$0xff]
    %v1201 = vld [vmem:[#allocation5 + $0x1ad0] sm:$0xff]
    %v1202 = vld [vmem:[#allocation5 + $0x1ad8] sm:$0xff]
    %v1203 = vld [vmem:[#allocation5 + $0x1ae0] sm:$0xff]
    %v1204 = vld [vmem:[#allocation5 + $0x1ae8] sm:$0xff]
    %v1205 = vld [vmem:[#allocation5 + $0x1af0] sm:$0xff]
    %v1206 = vld [vmem:[#allocation5 + $0x1af8] sm:$0xff]
    %v1207 = vld [vmem:[#allocation5 + $0x1b00] sm:$0xff]
    %v1208 = vld [vmem:[#allocation5 + $0x1b08] sm:$0xff]
    %v1209 = vld [vmem:[#allocation5 + $0x1b10] sm:$0xff]
    %v1210 = vld [vmem:[#allocation5 + $0x1b18] sm:$0xff]
    %v1211 = vld [vmem:[#allocation5 + $0x1b20] sm:$0xff]
    %v1212 = vld [vmem:[#allocation5 + $0x1b28] sm:$0xff]
    %v1213 = vld [vmem:[#allocation5 + $0x1b30] sm:$0xff]
    %v1214 = vld [vmem:[#allocation5 + $0x1b38] sm:$0xff]
    %v1215 = vld [vmem:[#allocation5 + $0x1b40] sm:$0xff]
    %v1216 = vld [vmem:[#allocation5 + $0x1b48] sm:$0xff]
    %v1217 = vld [vmem:[#allocation5 + $0x1b50] sm:$0xff]
    %v1218 = vld [vmem:[#allocation5 + $0x1b58] sm:$0xff]
    %v1219 = vld [vmem:[#allocation5 + $0x1b60] sm:$0xff]
    %v1220 = vld [vmem:[#allocation5 + $0x1b68] sm:$0xff]
    %v1221 = vld [vmem:[#allocation5 + $0x1b70] sm:$0xff]
    %v1222 = vld [vmem:[#allocation5 + $0x1b78] sm:$0xff]
    %v1223 = vld [vmem:[#allocation5 + $0x1b80] sm:$0xff]
    %v1224 = vld [vmem:[#allocation5 + $0x1b88] sm:$0xff]
    %v1225 = vld [vmem:[#allocation5 + $0x1b90] sm:$0xff]
    %v1226 = vld [vmem:[#allocation5 + $0x1b98] sm:$0xff]
    %v1227 = vld [vmem:[#allocation5 + $0x1ba0] sm:$0xff]
    %v1228 = vld [vmem:[#allocation5 + $0x1ba8] sm:$0xff]
    %v1229 = vld [vmem:[#allocation5 + $0x1bb0] sm:$0xff]
    %v1230 = vld [vmem:[#allocation5 + $0x1bb8] sm:$0xff]
    %v1231 = vld [vmem:[#allocation5 + $0x1bc0] sm:$0xff]
    %v1232 = vld [vmem:[#allocation5 + $0x1bc8] sm:$0xff]
    %v1233 = vld [vmem:[#allocation5 + $0x1bd0] sm:$0xff]
    %v1234 = vld [vmem:[#allocation5 + $0x1bd8] sm:$0xff]
    %v1235 = vld [vmem:[#allocation5 + $0x1be0] sm:$0xff]
    %v1236 = vld [vmem:[#allocation5 + $0x1be8] sm:$0xff]
    %v1237 = vld [vmem:[#allocation5 + $0x1bf0] sm:$0xff]
    %v1238 = vld [vmem:[#allocation5 + $0x1bf8] sm:$0xff]
    %v1239 = vld [vmem:[#allocation5 + $0x1c00] sm:$0xff]
    %v1240 = vld [vmem:[#allocation5 + $0x1c08] sm:$0xff]
    %v1241 = vld [vmem:[#allocation5 + $0x1c10] sm:$0xff]
    %v1242 = vld [vmem:[#allocation5 + $0x1c18] sm:$0xff]
    %v1243 = vld [vmem:[#allocation5 + $0x1c20] sm:$0xff]
    %v1244 = vld [vmem:[#allocation5 + $0x1c28] sm:$0xff]
    %v1245 = vld [vmem:[#allocation5 + $0x1c30] sm:$0xff]
    %v1246 = vld [vmem:[#allocation5 + $0x1c38] sm:$0xff]
    %v1247 = vld [vmem:[#allocation5 + $0x1c40] sm:$0xff]
    %v1248 = vld [vmem:[#allocation5 + $0x1c48] sm:$0xff]
    %v1249 = vld [vmem:[#allocation5 + $0x1c50] sm:$0xff]
    %v1250 = vld [vmem:[#allocation5 + $0x1c58] sm:$0xff]
    %v1251 = vld [vmem:[#allocation5 + $0x1c60] sm:$0xff]
    %v1252 = vld [vmem:[#allocation5 + $0x1c68] sm:$0xff]
    %v1253 = vld [vmem:[#allocation5 + $0x1c70] sm:$0xff]
    %v1254 = vld [vmem:[#allocation5 + $0x1c78] sm:$0xff]
    %v1255 = vld [vmem:[#allocation5 + $0x1c80] sm:$0xff]
    %v1256 = vld [vmem:[#allocation5 + $0x1c88] sm:$0xff]
    %v1257 = vld [vmem:[#allocation5 + $0x1c90] sm:$0xff]
    %v1258 = vld [vmem:[#allocation5 + $0x1c98] sm:$0xff]
    %v1259 = vld [vmem:[#allocation5 + $0x1ca0] sm:$0xff]
    %v1260 = vld [vmem:[#allocation5 + $0x1ca8] sm:$0xff]
    %v1261 = vld [vmem:[#allocation5 + $0x1cb0] sm:$0xff]
    %v1262 = vld [vmem:[#allocation5 + $0x1cb8] sm:$0xff]
    %v1263 = vld [vmem:[#allocation5 + $0x1cc0] sm:$0xff]
    %v1264 = vld [vmem:[#allocation5 + $0x1cc8] sm:$0xff]
    %v1265 = vld [vmem:[#allocation5 + $0x1cd0] sm:$0xff]
    %v1266 = vld [vmem:[#allocation5 + $0x1cd8] sm:$0xff]
    %v1267 = vld [vmem:[#allocation5 + $0x1ce0] sm:$0xff]
    %v1268 = vld [vmem:[#allocation5 + $0x1ce8] sm:$0xff]
    %v1269 = vld [vmem:[#allocation5 + $0x1cf0] sm:$0xff]
    %v1270 = vld [vmem:[#allocation5 + $0x1cf8] sm:$0xff]
    %v1271 = vld [vmem:[#allocation5 + $0x1d00] sm:$0xff]
    %v1272 = vld [vmem:[#allocation5 + $0x1d08] sm:$0xff]
    %v1273 = vld [vmem:[#allocation5 + $0x1d10] sm:$0xff]
    %v1274 = vld [vmem:[#allocation5 + $0x1d18] sm:$0xff]
    %v1275 = vld [vmem:[#allocation5 + $0x1d20] sm:$0xff]
    %v1276 = vld [vmem:[#allocation5 + $0x1d28] sm:$0xff]
    %v1277 = vld [vmem:[#allocation5 + $0x1d30] sm:$0xff]
    %v1278 = vld [vmem:[#allocation5 + $0x1d38] sm:$0xff]
    %v1279 = vld [vmem:[#allocation5 + $0x1d40] sm:$0xff]
    %v1280 = vld [vmem:[#allocation5 + $0x1d48] sm:$0xff]
    %v1281 = vld [vmem:[#allocation5 + $0x1d50] sm:$0xff]
    %v1282 = vld [vmem:[#allocation5 + $0x1d58] sm:$0xff]
    %v1283 = vld [vmem:[#allocation5 + $0x1d60] sm:$0xff]
    %v1284 = vld [vmem:[#allocation5 + $0x1d68] sm:$0xff]
    %v1285 = vld [vmem:[#allocation5 + $0x1d70] sm:$0xff]
    %v1286 = vld [vmem:[#allocation5 + $0x1d78] sm:$0xff]
    %v1287 = vld [vmem:[#allocation5 + $0x1d80] sm:$0xff]
    %v1288 = vld [vmem:[#allocation5 + $0x1d88] sm:$0xff]
    %v1289 = vld [vmem:[#allocation5 + $0x1d90] sm:$0xff]
    %v1290 = vld [vmem:[#allocation5 + $0x1d98] sm:$0xff]
    %v1291 = vld [vmem:[#allocation5 + $0x1da0] sm:$0xff]
    %v1292 = vld [vmem:[#allocation5 + $0x1da8] sm:$0xff]
    %v1293 = vld [vmem:[#allocation5 + $0x1db0] sm:$0xff]
    %v1294 = vld [vmem:[#allocation5 + $0x1db8] sm:$0xff]
    %v1295 = vld [vmem:[#allocation5 + $0x1dc0] sm:$0xff]
    %v1296 = vld [vmem:[#allocation5 + $0x1dc8] sm:$0xff]
    %v1297 = vld [vmem:[#allocation5 + $0x1dd0] sm:$0xff]
    %v1298 = vld [vmem:[#allocation5 + $0x1dd8] sm:$0xff]
    %v1299 = vld [vmem:[#allocation5 + $0x1de0] sm:$0xff]
    %v1300 = vld [vmem:[#allocation5 + $0x1de8] sm:$0xff]
    %v1301 = vld [vmem:[#allocation5 + $0x1df0] sm:$0xff]
    %v1302 = vld [vmem:[#allocation5 + $0x1df8] sm:$0xff]
    %v1303 = vld [vmem:[#allocation5 + $0x1e00] sm:$0xff]
    %v1304 = vld [vmem:[#allocation5 + $0x1e08] sm:$0xff]
    %v1305 = vld [vmem:[#allocation5 + $0x1e10] sm:$0xff]
    %v1306 = vld [vmem:[#allocation5 + $0x1e18] sm:$0xff]
    %v1307 = vld [vmem:[#allocation5 + $0x1e20] sm:$0xff]
    %v1308 = vld [vmem:[#allocation5 + $0x1e28] sm:$0xff]
    %v1309 = vld [vmem:[#allocation5 + $0x1e30] sm:$0xff]
    %v1310 = vld [vmem:[#allocation5 + $0x1e38] sm:$0xff]
    %v1311 = vld [vmem:[#allocation5 + $0x1e40] sm:$0xff]
    %v1312 = vld [vmem:[#allocation5 + $0x1e48] sm:$0xff]
    %v1313 = vld [vmem:[#allocation5 + $0x1e50] sm:$0xff]
    %v1314 = vld [vmem:[#allocation5 + $0x1e58] sm:$0xff]
    %v1315 = vld [vmem:[#allocation5 + $0x1e60] sm:$0xff]
    %v1316 = vld [vmem:[#allocation5 + $0x1e68] sm:$0xff]
    %v1317 = vld [vmem:[#allocation5 + $0x1e70] sm:$0xff]
    %v1318 = vld [vmem:[#allocation5 + $0x1e78] sm:$0xff]
    %v1319 = vld [vmem:[#allocation5 + $0x1e80] sm:$0xff]
    %v1320 = vld [vmem:[#allocation5 + $0x1e88] sm:$0xff]
    %v1321 = vld [vmem:[#allocation5 + $0x1e90] sm:$0xff]
    %v1322 = vld [vmem:[#allocation5 + $0x1e98] sm:$0xff]
    %v1323 = vld [vmem:[#allocation5 + $0x1ea0] sm:$0xff]
    %v1324 = vld [vmem:[#allocation5 + $0x1ea8] sm:$0xff]
    %v1325 = vld [vmem:[#allocation5 + $0x1eb0] sm:$0xff]
    %v1326 = vld [vmem:[#allocation5 + $0x1eb8] sm:$0xff]
    %v1327 = vld [vmem:[#allocation5 + $0x1ec0] sm:$0xff]
    %v1328 = vld [vmem:[#allocation5 + $0x1ec8] sm:$0xff]
    %v1329 = vld [vmem:[#allocation5 + $0x1ed0] sm:$0xff]
    %v1330 = vld [vmem:[#allocation5 + $0x1ed8] sm:$0xff]
    %v1331 = vld [vmem:[#allocation5 + $0x1ee0] sm:$0xff]
    %v1332 = vld [vmem:[#allocation5 + $0x1ee8] sm:$0xff]
    %v1333 = vld [vmem:[#allocation5 + $0x1ef0] sm:$0xff]
    %v1334 = vld [vmem:[#allocation5 + $0x1ef8] sm:$0xff]
    %v1335 = vld [vmem:[#allocation5 + $0x1f00] sm:$0xff]
    %v1336 = vld [vmem:[#allocation5 + $0x1f08] sm:$0xff]
    %v1337 = vld [vmem:[#allocation5 + $0x1f10] sm:$0xff]
    %v1338 = vld [vmem:[#allocation5 + $0x1f18] sm:$0xff]
    %v1339 = vld [vmem:[#allocation5 + $0x1f20] sm:$0xff]
    %v1340 = vld [vmem:[#allocation5 + $0x1f28] sm:$0xff]
    %v1341 = vld [vmem:[#allocation5 + $0x1f30] sm:$0xff]
    %v1342 = vld [vmem:[#allocation5 + $0x1f38] sm:$0xff]
    %v1343 = vld [vmem:[#allocation5 + $0x1f40] sm:$0xff]
    %v1344 = vld [vmem:[#allocation5 + $0x1f48] sm:$0xff]
    %v1345 = vld [vmem:[#allocation5 + $0x1f50] sm:$0xff]
    %v1346 = vld [vmem:[#allocation5 + $0x1f58] sm:$0xff]
    %v1347 = vld [vmem:[#allocation5 + $0x1f60] sm:$0xff]
    %v1348 = vld [vmem:[#allocation5 + $0x1f68] sm:$0xff]
    %v1349 = vld [vmem:[#allocation5 + $0x1f70] sm:$0xff]
    %v1350 = vld [vmem:[#allocation5 + $0x1f78] sm:$0xff]
    %v1351 = vld [vmem:[#allocation5 + $0x1f80] sm:$0xff]
    %v1352 = vld [vmem:[#allocation5 + $0x1f88] sm:$0xff]
    %v1353 = vld [vmem:[#allocation5 + $0x1f90] sm:$0xff]
    %v1354 = vld [vmem:[#allocation5 + $0x1f98] sm:$0xff]
    %v1355 = vld [vmem:[#allocation5 + $0x1fa0] sm:$0xff]
    %v1356 = vld [vmem:[#allocation5 + $0x1fa8] sm:$0xff]
    %v1357 = vld [vmem:[#allocation5 + $0x1fb0] sm:$0xff]
    %v1358 = vld [vmem:[#allocation5 + $0x1fb8] sm:$0xff]
    %v1359 = vld [vmem:[#allocation5 + $0x1fc0] sm:$0xff]
    %v1360 = vld [vmem:[#allocation5 + $0x1fc8] sm:$0xff]
    %v1361 = vld [vmem:[#allocation5 + $0x1fd0] sm:$0xff]
    %v1362 = vld [vmem:[#allocation5 + $0x1fd8] sm:$0xff]
    %v1363 = vld [vmem:[#allocation5 + $0x1fe0] sm:$0xff]
    %v1364 = vld [vmem:[#allocation5 + $0x1fe8] sm:$0xff]
    %v1365 = vld [vmem:[#allocation5 + $0x1ff0] sm:$0xff]
    %v1366 = vld [vmem:[#allocation5 + $0x1ff8] sm:$0xff]
    %v1367 = vld [vmem:[#allocation7] sm:$0xff]
    %v1369 = vlaneseq
    %v1370 = vshrl.u32 %v1369, 7
    %v1371 = vsub.s32 0, %v1370
    %v1372 = vrot.slane %v1367, %v1371
    %v1373 = vlaneseq
    %v1374 = vshrl.u32 %v1373, 7
    %v1375 = vsub.s32 1, %v1374
    %v1376 = vrot.slane %v1367, %v1375
    %v1377 = vlaneseq
    %v1378 = vshrl.u32 %v1377, 7
    %v1379 = vsub.s32 2, %v1378
    %v1380 = vrot.slane %v1367, %v1379
    %v1381 = vlaneseq
    %v1382 = vshrl.u32 %v1381, 7
    %v1383 = vsub.s32 3, %v1382
    %v1384 = vrot.slane %v1367, %v1383
    %v1385 = vlaneseq
    %v1386 = vshrl.u32 %v1385, 7
    %v1387 = vsub.s32 4, %v1386
    %v1388 = vrot.slane %v1367, %v1387
    %v1389 = vlaneseq
    %v1390 = vshrl.u32 %v1389, 7
    %v1391 = vsub.s32 5, %v1390
    %v1392 = vrot.slane %v1367, %v1391
    %v1393 = vlaneseq
    %v1394 = vshrl.u32 %v1393, 7
    %v1395 = vsub.s32 6, %v1394
    %v1396 = vrot.slane %v1367, %v1395
    %v1397 = vlaneseq
    %v1398 = vshrl.u32 %v1397, 7
    %v1399 = vsub.s32 7, %v1398
    %v1400 = vrot.slane %v1367, %v1399
    %v2433 = vunpack.c.l.b16 %v343
    %v2434 = vunpack.c.h.b16 %v343
    %v2435 = vunpack.c.l.b16 %v344
    %v2436 = vunpack.c.h.b16 %v344
    %v2437 = vunpack.c.l.b16 %v345
    %v2438 = vunpack.c.h.b16 %v345
    %v2439 = vunpack.c.l.b16 %v346
    %v2440 = vunpack.c.h.b16 %v346
    %v2441 = vunpack.c.l.b16 %v347
    %v2442 = vunpack.c.h.b16 %v347
    %v2443 = vunpack.c.l.b16 %v348
    %v2444 = vunpack.c.h.b16 %v348
    %v2445 = vunpack.c.l.b16 %v349
    %v2446 = vunpack.c.h.b16 %v349
    %v2447 = vunpack.c.l.b16 %v350
    %v2448 = vunpack.c.h.b16 %v350
    %v2449 = vunpack.c.l.b16 %v351
    %v2450 = vunpack.c.h.b16 %v351
    %v2451 = vunpack.c.l.b16 %v352
    %v2452 = vunpack.c.h.b16 %v352
    %v2453 = vunpack.c.l.b16 %v353
    %v2454 = vunpack.c.h.b16 %v353
    %v2455 = vunpack.c.l.b16 %v354
    %v2456 = vunpack.c.h.b16 %v354
    %v2457 = vunpack.c.l.b16 %v355
    %v2458 = vunpack.c.h.b16 %v355
    %v2459 = vunpack.c.l.b16 %v356
    %v2460 = vunpack.c.h.b16 %v356
    %v2461 = vunpack.c.l.b16 %v357
    %v2462 = vunpack.c.h.b16 %v357
    %v2463 = vunpack.c.l.b16 %v358
    %v2464 = vunpack.c.h.b16 %v358
    %v2465 = vunpack.c.l.b16 %v359
    %v2466 = vunpack.c.h.b16 %v359
    %v2467 = vunpack.c.l.b16 %v360
    %v2468 = vunpack.c.h.b16 %v360
    %v2469 = vunpack.c.l.b16 %v361
    %v2470 = vunpack.c.h.b16 %v361
    %v2471 = vunpack.c.l.b16 %v362
    %v2472 = vunpack.c.h.b16 %v362
    %v2473 = vunpack.c.l.b16 %v363
    %v2474 = vunpack.c.h.b16 %v363
    %v2475 = vunpack.c.l.b16 %v364
    %v2476 = vunpack.c.h.b16 %v364
    %v2477 = vunpack.c.l.b16 %v365
    %v2478 = vunpack.c.h.b16 %v365
    %v2479 = vunpack.c.l.b16 %v366
    %v2480 = vunpack.c.h.b16 %v366
    %v2481 = vunpack.c.l.b16 %v367
    %v2482 = vunpack.c.h.b16 %v367
    %v2483 = vunpack.c.l.b16 %v368
    %v2484 = vunpack.c.h.b16 %v368
    %v2485 = vunpack.c.l.b16 %v369
    %v2486 = vunpack.c.h.b16 %v369
    %v2487 = vunpack.c.l.b16 %v370
    %v2488 = vunpack.c.h.b16 %v370
    %v2489 = vunpack.c.l.b16 %v371
    %v2490 = vunpack.c.h.b16 %v371
    %v2491 = vunpack.c.l.b16 %v372
    %v2492 = vunpack.c.h.b16 %v372
    %v2493 = vunpack.c.l.b16 %v373
    %v2494 = vunpack.c.h.b16 %v373
    %v2495 = vunpack.c.l.b16 %v374
    %v2496 = vunpack.c.h.b16 %v374
    %v2497 = vunpack.c.l.b16 %v375
    %v2498 = vunpack.c.h.b16 %v375
    %v2499 = vunpack.c.l.b16 %v376
    %v2500 = vunpack.c.h.b16 %v376
    %v2501 = vunpack.c.l.b16 %v377
    %v2502 = vunpack.c.h.b16 %v377
    %v2503 = vunpack.c.l.b16 %v378
    %v2504 = vunpack.c.h.b16 %v378
    %v2505 = vunpack.c.l.b16 %v379
    %v2506 = vunpack.c.h.b16 %v379
    %v2507 = vunpack.c.l.b16 %v380
    %v2508 = vunpack.c.h.b16 %v380
    %v2509 = vunpack.c.l.b16 %v381
    %v2510 = vunpack.c.h.b16 %v381
    %v2511 = vunpack.c.l.b16 %v382
    %v2512 = vunpack.c.h.b16 %v382
    %v2513 = vunpack.c.l.b16 %v383
    %v2514 = vunpack.c.h.b16 %v383
    %v2515 = vunpack.c.l.b16 %v384
    %v2516 = vunpack.c.h.b16 %v384
    %v2517 = vunpack.c.l.b16 %v385
    %v2518 = vunpack.c.h.b16 %v385
    %v2519 = vunpack.c.l.b16 %v386
    %v2520 = vunpack.c.h.b16 %v386
    %v2521 = vunpack.c.l.b16 %v387
    %v2522 = vunpack.c.h.b16 %v387
    %v2523 = vunpack.c.l.b16 %v388
    %v2524 = vunpack.c.h.b16 %v388
    %v2525 = vunpack.c.l.b16 %v389
    %v2526 = vunpack.c.h.b16 %v389
    %v2527 = vunpack.c.l.b16 %v390
    %v2528 = vunpack.c.h.b16 %v390
    %v2529 = vunpack.c.l.b16 %v391
    %v2530 = vunpack.c.h.b16 %v391
    %v2531 = vunpack.c.l.b16 %v392
    %v2532 = vunpack.c.h.b16 %v392
    %v2533 = vunpack.c.l.b16 %v393
    %v2534 = vunpack.c.h.b16 %v393
    %v2535 = vunpack.c.l.b16 %v394
    %v2536 = vunpack.c.h.b16 %v394
    %v2537 = vunpack.c.l.b16 %v395
    %v2538 = vunpack.c.h.b16 %v395
    %v2539 = vunpack.c.l.b16 %v396
    %v2540 = vunpack.c.h.b16 %v396
    %v2541 = vunpack.c.l.b16 %v397
    %v2542 = vunpack.c.h.b16 %v397
    %v2543 = vunpack.c.l.b16 %v398
    %v2544 = vunpack.c.h.b16 %v398
    %v2545 = vunpack.c.l.b16 %v399
    %v2546 = vunpack.c.h.b16 %v399
    %v2547 = vunpack.c.l.b16 %v400
    %v2548 = vunpack.c.h.b16 %v400
    %v2549 = vunpack.c.l.b16 %v401
    %v2550 = vunpack.c.h.b16 %v401
    %v2551 = vunpack.c.l.b16 %v402
    %v2552 = vunpack.c.h.b16 %v402
    %v2553 = vunpack.c.l.b16 %v403
    %v2554 = vunpack.c.h.b16 %v403
    %v2555 = vunpack.c.l.b16 %v404
    %v2556 = vunpack.c.h.b16 %v404
    %v2557 = vunpack.c.l.b16 %v405
    %v2558 = vunpack.c.h.b16 %v405
    %v2559 = vunpack.c.l.b16 %v406
    %v2560 = vunpack.c.h.b16 %v406
    %v2561 = vunpack.c.l.b16 %v407
    %v2562 = vunpack.c.h.b16 %v407
    %v2563 = vunpack.c.l.b16 %v408
    %v2564 = vunpack.c.h.b16 %v408
    %v2565 = vunpack.c.l.b16 %v409
    %v2566 = vunpack.c.h.b16 %v409
    %v2567 = vunpack.c.l.b16 %v410
    %v2568 = vunpack.c.h.b16 %v410
    %v2569 = vunpack.c.l.b16 %v411
    %v2570 = vunpack.c.h.b16 %v411
    %v2571 = vunpack.c.l.b16 %v412
    %v2572 = vunpack.c.h.b16 %v412
    %v2573 = vunpack.c.l.b16 %v413
    %v2574 = vunpack.c.h.b16 %v413
    %v2575 = vunpack.c.l.b16 %v414
    %v2576 = vunpack.c.h.b16 %v414
    %v2577 = vunpack.c.l.b16 %v415
    %v2578 = vunpack.c.h.b16 %v415
    %v2579 = vunpack.c.l.b16 %v416
    %v2580 = vunpack.c.h.b16 %v416
    %v2581 = vunpack.c.l.b16 %v417
    %v2582 = vunpack.c.h.b16 %v417
    %v2583 = vunpack.c.l.b16 %v418
    %v2584 = vunpack.c.h.b16 %v418
    %v2585 = vunpack.c.l.b16 %v419
    %v2586 = vunpack.c.h.b16 %v419
    %v2587 = vunpack.c.l.b16 %v420
    %v2588 = vunpack.c.h.b16 %v420
    %v2589 = vunpack.c.l.b16 %v421
    %v2590 = vunpack.c.h.b16 %v421
    %v2591 = vunpack.c.l.b16 %v422
    %v2592 = vunpack.c.h.b16 %v422
    %v2593 = vunpack.c.l.b16 %v423
    %v2594 = vunpack.c.h.b16 %v423
    %v2595 = vunpack.c.l.b16 %v424
    %v2596 = vunpack.c.h.b16 %v424
    %v2597 = vunpack.c.l.b16 %v425
    %v2598 = vunpack.c.h.b16 %v425
    %v2599 = vunpack.c.l.b16 %v426
    %v2600 = vunpack.c.h.b16 %v426
    %v2601 = vunpack.c.l.b16 %v427
    %v2602 = vunpack.c.h.b16 %v427
    %v2603 = vunpack.c.l.b16 %v428
    %v2604 = vunpack.c.h.b16 %v428
    %v2605 = vunpack.c.l.b16 %v429
    %v2606 = vunpack.c.h.b16 %v429
    %v2607 = vunpack.c.l.b16 %v430
    %v2608 = vunpack.c.h.b16 %v430
    %v2609 = vunpack.c.l.b16 %v431
    %v2610 = vunpack.c.h.b16 %v431
    %v2611 = vunpack.c.l.b16 %v432
    %v2612 = vunpack.c.h.b16 %v432
    %v2613 = vunpack.c.l.b16 %v433
    %v2614 = vunpack.c.h.b16 %v433
    %v2615 = vunpack.c.l.b16 %v434
    %v2616 = vunpack.c.h.b16 %v434
    %v2617 = vunpack.c.l.b16 %v435
    %v2618 = vunpack.c.h.b16 %v435
    %v2619 = vunpack.c.l.b16 %v436
    %v2620 = vunpack.c.h.b16 %v436
    %v2621 = vunpack.c.l.b16 %v437
    %v2622 = vunpack.c.h.b16 %v437
    %v2623 = vunpack.c.l.b16 %v438
    %v2624 = vunpack.c.h.b16 %v438
    %v2625 = vunpack.c.l.b16 %v439
    %v2626 = vunpack.c.h.b16 %v439
    %v2627 = vunpack.c.l.b16 %v440
    %v2628 = vunpack.c.h.b16 %v440
    %v2629 = vunpack.c.l.b16 %v441
    %v2630 = vunpack.c.h.b16 %v441
    %v2631 = vunpack.c.l.b16 %v442
    %v2632 = vunpack.c.h.b16 %v442
    %v2633 = vunpack.c.l.b16 %v443
    %v2634 = vunpack.c.h.b16 %v443
    %v2635 = vunpack.c.l.b16 %v444
    %v2636 = vunpack.c.h.b16 %v444
    %v2637 = vunpack.c.l.b16 %v445
    %v2638 = vunpack.c.h.b16 %v445
    %v2639 = vunpack.c.l.b16 %v446
    %v2640 = vunpack.c.h.b16 %v446
    %v2641 = vunpack.c.l.b16 %v447
    %v2642 = vunpack.c.h.b16 %v447
    %v2643 = vunpack.c.l.b16 %v448
    %v2644 = vunpack.c.h.b16 %v448
    %v2645 = vunpack.c.l.b16 %v449
    %v2646 = vunpack.c.h.b16 %v449
    %v2647 = vunpack.c.l.b16 %v450
    %v2648 = vunpack.c.h.b16 %v450
    %v2649 = vunpack.c.l.b16 %v451
    %v2650 = vunpack.c.h.b16 %v451
    %v2651 = vunpack.c.l.b16 %v452
    %v2652 = vunpack.c.h.b16 %v452
    %v2653 = vunpack.c.l.b16 %v453
    %v2654 = vunpack.c.h.b16 %v453
    %v2655 = vunpack.c.l.b16 %v454
    %v2656 = vunpack.c.h.b16 %v454
    %v2657 = vunpack.c.l.b16 %v455
    %v2658 = vunpack.c.h.b16 %v455
    %v2659 = vunpack.c.l.b16 %v456
    %v2660 = vunpack.c.h.b16 %v456
    %v2661 = vunpack.c.l.b16 %v457
    %v2662 = vunpack.c.h.b16 %v457
    %v2663 = vunpack.c.l.b16 %v458
    %v2664 = vunpack.c.h.b16 %v458
    %v2665 = vunpack.c.l.b16 %v459
    %v2666 = vunpack.c.h.b16 %v459
    %v2667 = vunpack.c.l.b16 %v460
    %v2668 = vunpack.c.h.b16 %v460
    %v2669 = vunpack.c.l.b16 %v461
    %v2670 = vunpack.c.h.b16 %v461
    %v2671 = vunpack.c.l.b16 %v462
    %v2672 = vunpack.c.h.b16 %v462
    %v2673 = vunpack.c.l.b16 %v463
    %v2674 = vunpack.c.h.b16 %v463
    %v2675 = vunpack.c.l.b16 %v464
    %v2676 = vunpack.c.h.b16 %v464
    %v2677 = vunpack.c.l.b16 %v465
    %v2678 = vunpack.c.h.b16 %v465
    %v2679 = vunpack.c.l.b16 %v466
    %v2680 = vunpack.c.h.b16 %v466
    %v2681 = vunpack.c.l.b16 %v467
    %v2682 = vunpack.c.h.b16 %v467
    %v2683 = vunpack.c.l.b16 %v468
    %v2684 = vunpack.c.h.b16 %v468
    %v2685 = vunpack.c.l.b16 %v469
    %v2686 = vunpack.c.h.b16 %v469
    %v2687 = vunpack.c.l.b16 %v470
    %v2688 = vunpack.c.h.b16 %v470
    %v2689 = vunpack.c.l.b16 %v471
    %v2690 = vunpack.c.h.b16 %v471
    %v2691 = vunpack.c.l.b16 %v472
    %v2692 = vunpack.c.h.b16 %v472
    %v2693 = vunpack.c.l.b16 %v473
    %v2694 = vunpack.c.h.b16 %v473
    %v2695 = vunpack.c.l.b16 %v474
    %v2696 = vunpack.c.h.b16 %v474
    %v2697 = vunpack.c.l.b16 %v475
    %v2698 = vunpack.c.h.b16 %v475
    %v2699 = vunpack.c.l.b16 %v476
    %v2700 = vunpack.c.h.b16 %v476
    %v2701 = vunpack.c.l.b16 %v477
    %v2702 = vunpack.c.h.b16 %v477
    %v2703 = vunpack.c.l.b16 %v478
    %v2704 = vunpack.c.h.b16 %v478
    %v2705 = vunpack.c.l.b16 %v479
    %v2706 = vunpack.c.h.b16 %v479
    %v2707 = vunpack.c.l.b16 %v480
    %v2708 = vunpack.c.h.b16 %v480
    %v2709 = vunpack.c.l.b16 %v481
    %v2710 = vunpack.c.h.b16 %v481
    %v2711 = vunpack.c.l.b16 %v482
    %v2712 = vunpack.c.h.b16 %v482
    %v2713 = vunpack.c.l.b16 %v483
    %v2714 = vunpack.c.h.b16 %v483
    %v2715 = vunpack.c.l.b16 %v484
    %v2716 = vunpack.c.h.b16 %v484
    %v2717 = vunpack.c.l.b16 %v485
    %v2718 = vunpack.c.h.b16 %v485
    %v2719 = vunpack.c.l.b16 %v486
    %v2720 = vunpack.c.h.b16 %v486
    %v2721 = vunpack.c.l.b16 %v487
    %v2722 = vunpack.c.h.b16 %v487
    %v2723 = vunpack.c.l.b16 %v488
    %v2724 = vunpack.c.h.b16 %v488
    %v2725 = vunpack.c.l.b16 %v489
    %v2726 = vunpack.c.h.b16 %v489
    %v2727 = vunpack.c.l.b16 %v490
    %v2728 = vunpack.c.h.b16 %v490
    %v2729 = vunpack.c.l.b16 %v491
    %v2730 = vunpack.c.h.b16 %v491
    %v2731 = vunpack.c.l.b16 %v492
    %v2732 = vunpack.c.h.b16 %v492
    %v2733 = vunpack.c.l.b16 %v493
    %v2734 = vunpack.c.h.b16 %v493
    %v2735 = vunpack.c.l.b16 %v494
    %v2736 = vunpack.c.h.b16 %v494
    %v2737 = vunpack.c.l.b16 %v495
    %v2738 = vunpack.c.h.b16 %v495
    %v2739 = vunpack.c.l.b16 %v496
    %v2740 = vunpack.c.h.b16 %v496
    %v2741 = vunpack.c.l.b16 %v497
    %v2742 = vunpack.c.h.b16 %v497
    %v2743 = vunpack.c.l.b16 %v498
    %v2744 = vunpack.c.h.b16 %v498
    %v2745 = vunpack.c.l.b16 %v499
    %v2746 = vunpack.c.h.b16 %v499
    %v2747 = vunpack.c.l.b16 %v500
    %v2748 = vunpack.c.h.b16 %v500
    %v2749 = vunpack.c.l.b16 %v501
    %v2750 = vunpack.c.h.b16 %v501
    %v2751 = vunpack.c.l.b16 %v502
    %v2752 = vunpack.c.h.b16 %v502
    %v2753 = vunpack.c.l.b16 %v503
    %v2754 = vunpack.c.h.b16 %v503
    %v2755 = vunpack.c.l.b16 %v504
    %v2756 = vunpack.c.h.b16 %v504
    %v2757 = vunpack.c.l.b16 %v505
    %v2758 = vunpack.c.h.b16 %v505
    %v2759 = vunpack.c.l.b16 %v506
    %v2760 = vunpack.c.h.b16 %v506
    %v2761 = vunpack.c.l.b16 %v507
    %v2762 = vunpack.c.h.b16 %v507
    %v2763 = vunpack.c.l.b16 %v508
    %v2764 = vunpack.c.h.b16 %v508
    %v2765 = vunpack.c.l.b16 %v509
    %v2766 = vunpack.c.h.b16 %v509
    %v2767 = vunpack.c.l.b16 %v510
    %v2768 = vunpack.c.h.b16 %v510
    %v2769 = vunpack.c.l.b16 %v511
    %v2770 = vunpack.c.h.b16 %v511
    %v2771 = vunpack.c.l.b16 %v512
    %v2772 = vunpack.c.h.b16 %v512
    %v2773 = vunpack.c.l.b16 %v513
    %v2774 = vunpack.c.h.b16 %v513
    %v2775 = vunpack.c.l.b16 %v514
    %v2776 = vunpack.c.h.b16 %v514
    %v2777 = vunpack.c.l.b16 %v515
    %v2778 = vunpack.c.h.b16 %v515
    %v2779 = vunpack.c.l.b16 %v516
    %v2780 = vunpack.c.h.b16 %v516
    %v2781 = vunpack.c.l.b16 %v517
    %v2782 = vunpack.c.h.b16 %v517
    %v2783 = vunpack.c.l.b16 %v518
    %v2784 = vunpack.c.h.b16 %v518
    %v2785 = vunpack.c.l.b16 %v519
    %v2786 = vunpack.c.h.b16 %v519
    %v2787 = vunpack.c.l.b16 %v520
    %v2788 = vunpack.c.h.b16 %v520
    %v2789 = vunpack.c.l.b16 %v521
    %v2790 = vunpack.c.h.b16 %v521
    %v2791 = vunpack.c.l.b16 %v522
    %v2792 = vunpack.c.h.b16 %v522
    %v2793 = vunpack.c.l.b16 %v523
    %v2794 = vunpack.c.h.b16 %v523
    %v2795 = vunpack.c.l.b16 %v524
    %v2796 = vunpack.c.h.b16 %v524
    %v2797 = vunpack.c.l.b16 %v525
    %v2798 = vunpack.c.h.b16 %v525
    %v2799 = vunpack.c.l.b16 %v526
    %v2800 = vunpack.c.h.b16 %v526
    %v2801 = vunpack.c.l.b16 %v527
    %v2802 = vunpack.c.h.b16 %v527
    %v2803 = vunpack.c.l.b16 %v528
    %v2804 = vunpack.c.h.b16 %v528
    %v2805 = vunpack.c.l.b16 %v529
    %v2806 = vunpack.c.h.b16 %v529
    %v2807 = vunpack.c.l.b16 %v530
    %v2808 = vunpack.c.h.b16 %v530
    %v2809 = vunpack.c.l.b16 %v531
    %v2810 = vunpack.c.h.b16 %v531
    %v2811 = vunpack.c.l.b16 %v532
    %v2812 = vunpack.c.h.b16 %v532
    %v2813 = vunpack.c.l.b16 %v533
    %v2814 = vunpack.c.h.b16 %v533
    %v2815 = vunpack.c.l.b16 %v534
    %v2816 = vunpack.c.h.b16 %v534
    %v2817 = vunpack.c.l.b16 %v535
    %v2818 = vunpack.c.h.b16 %v535
    %v2819 = vunpack.c.l.b16 %v536
    %v2820 = vunpack.c.h.b16 %v536
    %v2821 = vunpack.c.l.b16 %v537
    %v2822 = vunpack.c.h.b16 %v537
    %v2823 = vunpack.c.l.b16 %v538
    %v2824 = vunpack.c.h.b16 %v538
    %v2825 = vunpack.c.l.b16 %v539
    %v2826 = vunpack.c.h.b16 %v539
    %v2827 = vunpack.c.l.b16 %v540
    %v2828 = vunpack.c.h.b16 %v540
    %v2829 = vunpack.c.l.b16 %v541
    %v2830 = vunpack.c.h.b16 %v541
    %v2831 = vunpack.c.l.b16 %v542
    %v2832 = vunpack.c.h.b16 %v542
    %v2833 = vunpack.c.l.b16 %v543
    %v2834 = vunpack.c.h.b16 %v543
    %v2835 = vunpack.c.l.b16 %v544
    %v2836 = vunpack.c.h.b16 %v544
    %v2837 = vunpack.c.l.b16 %v545
    %v2838 = vunpack.c.h.b16 %v545
    %v2839 = vunpack.c.l.b16 %v546
    %v2840 = vunpack.c.h.b16 %v546
    %v2841 = vunpack.c.l.b16 %v547
    %v2842 = vunpack.c.h.b16 %v547
    %v2843 = vunpack.c.l.b16 %v548
    %v2844 = vunpack.c.h.b16 %v548
    %v2845 = vunpack.c.l.b16 %v549
    %v2846 = vunpack.c.h.b16 %v549
    %v2847 = vunpack.c.l.b16 %v550
    %v2848 = vunpack.c.h.b16 %v550
    %v2849 = vunpack.c.l.b16 %v551
    %v2850 = vunpack.c.h.b16 %v551
    %v2851 = vunpack.c.l.b16 %v552
    %v2852 = vunpack.c.h.b16 %v552
    %v2853 = vunpack.c.l.b16 %v553
    %v2854 = vunpack.c.h.b16 %v553
    %v2855 = vunpack.c.l.b16 %v554
    %v2856 = vunpack.c.h.b16 %v554
    %v2857 = vunpack.c.l.b16 %v555
    %v2858 = vunpack.c.h.b16 %v555
    %v2859 = vunpack.c.l.b16 %v556
    %v2860 = vunpack.c.h.b16 %v556
    %v2861 = vunpack.c.l.b16 %v557
    %v2862 = vunpack.c.h.b16 %v557
    %v2863 = vunpack.c.l.b16 %v558
    %v2864 = vunpack.c.h.b16 %v558
    %v2865 = vunpack.c.l.b16 %v559
    %v2866 = vunpack.c.h.b16 %v559
    %v2867 = vunpack.c.l.b16 %v560
    %v2868 = vunpack.c.h.b16 %v560
    %v2869 = vunpack.c.l.b16 %v561
    %v2870 = vunpack.c.h.b16 %v561
    %v2871 = vunpack.c.l.b16 %v562
    %v2872 = vunpack.c.h.b16 %v562
    %v2873 = vunpack.c.l.b16 %v563
    %v2874 = vunpack.c.h.b16 %v563
    %v2875 = vunpack.c.l.b16 %v564
    %v2876 = vunpack.c.h.b16 %v564
    %v2877 = vunpack.c.l.b16 %v565
    %v2878 = vunpack.c.h.b16 %v565
    %v2879 = vunpack.c.l.b16 %v566
    %v2880 = vunpack.c.h.b16 %v566
    %v2881 = vunpack.c.l.b16 %v567
    %v2882 = vunpack.c.h.b16 %v567
    %v2883 = vunpack.c.l.b16 %v568
    %v2884 = vunpack.c.h.b16 %v568
    %v2885 = vunpack.c.l.b16 %v569
    %v2886 = vunpack.c.h.b16 %v569
    %v2887 = vunpack.c.l.b16 %v570
    %v2888 = vunpack.c.h.b16 %v570
    %v2889 = vunpack.c.l.b16 %v571
    %v2890 = vunpack.c.h.b16 %v571
    %v2891 = vunpack.c.l.b16 %v572
    %v2892 = vunpack.c.h.b16 %v572
    %v2893 = vunpack.c.l.b16 %v573
    %v2894 = vunpack.c.h.b16 %v573
    %v2895 = vunpack.c.l.b16 %v574
    %v2896 = vunpack.c.h.b16 %v574
    %v2897 = vunpack.c.l.b16 %v575
    %v2898 = vunpack.c.h.b16 %v575
    %v2899 = vunpack.c.l.b16 %v576
    %v2900 = vunpack.c.h.b16 %v576
    %v2901 = vunpack.c.l.b16 %v577
    %v2902 = vunpack.c.h.b16 %v577
    %v2903 = vunpack.c.l.b16 %v578
    %v2904 = vunpack.c.h.b16 %v578
    %v2905 = vunpack.c.l.b16 %v579
    %v2906 = vunpack.c.h.b16 %v579
    %v2907 = vunpack.c.l.b16 %v580
    %v2908 = vunpack.c.h.b16 %v580
    %v2909 = vunpack.c.l.b16 %v581
    %v2910 = vunpack.c.h.b16 %v581
    %v2911 = vunpack.c.l.b16 %v582
    %v2912 = vunpack.c.h.b16 %v582
    %v2913 = vunpack.c.l.b16 %v583
    %v2914 = vunpack.c.h.b16 %v583
    %v2915 = vunpack.c.l.b16 %v584
    %v2916 = vunpack.c.h.b16 %v584
    %v2917 = vunpack.c.l.b16 %v585
    %v2918 = vunpack.c.h.b16 %v585
    %v2919 = vunpack.c.l.b16 %v586
    %v2920 = vunpack.c.h.b16 %v586
    %v2921 = vunpack.c.l.b16 %v587
    %v2922 = vunpack.c.h.b16 %v587
    %v2923 = vunpack.c.l.b16 %v588
    %v2924 = vunpack.c.h.b16 %v588
    %v2925 = vunpack.c.l.b16 %v589
    %v2926 = vunpack.c.h.b16 %v589
    %v2927 = vunpack.c.l.b16 %v590
    %v2928 = vunpack.c.h.b16 %v590
    %v2929 = vunpack.c.l.b16 %v591
    %v2930 = vunpack.c.h.b16 %v591
    %v2931 = vunpack.c.l.b16 %v592
    %v2932 = vunpack.c.h.b16 %v592
    %v2933 = vunpack.c.l.b16 %v593
    %v2934 = vunpack.c.h.b16 %v593
    %v2935 = vunpack.c.l.b16 %v594
    %v2936 = vunpack.c.h.b16 %v594
    %v2937 = vunpack.c.l.b16 %v595
    %v2938 = vunpack.c.h.b16 %v595
    %v2939 = vunpack.c.l.b16 %v596
    %v2940 = vunpack.c.h.b16 %v596
    %v2941 = vunpack.c.l.b16 %v597
    %v2942 = vunpack.c.h.b16 %v597
    %v2943 = vunpack.c.l.b16 %v598
    %v2944 = vunpack.c.h.b16 %v598
    %v2945 = vunpack.c.l.b16 %v599
    %v2946 = vunpack.c.h.b16 %v599
    %v2947 = vunpack.c.l.b16 %v600
    %v2948 = vunpack.c.h.b16 %v600
    %v2949 = vunpack.c.l.b16 %v601
    %v2950 = vunpack.c.h.b16 %v601
    %v2951 = vunpack.c.l.b16 %v602
    %v2952 = vunpack.c.h.b16 %v602
    %v2953 = vunpack.c.l.b16 %v603
    %v2954 = vunpack.c.h.b16 %v603
    %v2955 = vunpack.c.l.b16 %v604
    %v2956 = vunpack.c.h.b16 %v604
    %v2957 = vunpack.c.l.b16 %v605
    %v2958 = vunpack.c.h.b16 %v605
    %v2959 = vunpack.c.l.b16 %v606
    %v2960 = vunpack.c.h.b16 %v606
    %v2961 = vunpack.c.l.b16 %v607
    %v2962 = vunpack.c.h.b16 %v607
    %v2963 = vunpack.c.l.b16 %v608
    %v2964 = vunpack.c.h.b16 %v608
    %v2965 = vunpack.c.l.b16 %v609
    %v2966 = vunpack.c.h.b16 %v609
    %v2967 = vunpack.c.l.b16 %v610
    %v2968 = vunpack.c.h.b16 %v610
    %v2969 = vunpack.c.l.b16 %v611
    %v2970 = vunpack.c.h.b16 %v611
    %v2971 = vunpack.c.l.b16 %v612
    %v2972 = vunpack.c.h.b16 %v612
    %v2973 = vunpack.c.l.b16 %v613
    %v2974 = vunpack.c.h.b16 %v613
    %v2975 = vunpack.c.l.b16 %v614
    %v2976 = vunpack.c.h.b16 %v614
    %v2977 = vunpack.c.l.b16 %v615
    %v2978 = vunpack.c.h.b16 %v615
    %v2979 = vunpack.c.l.b16 %v616
    %v2980 = vunpack.c.h.b16 %v616
    %v2981 = vunpack.c.l.b16 %v617
    %v2982 = vunpack.c.h.b16 %v617
    %v2983 = vunpack.c.l.b16 %v618
    %v2984 = vunpack.c.h.b16 %v618
    %v2985 = vunpack.c.l.b16 %v619
    %v2986 = vunpack.c.h.b16 %v619
    %v2987 = vunpack.c.l.b16 %v620
    %v2988 = vunpack.c.h.b16 %v620
    %v2989 = vunpack.c.l.b16 %v621
    %v2990 = vunpack.c.h.b16 %v621
    %v2991 = vunpack.c.l.b16 %v622
    %v2992 = vunpack.c.h.b16 %v622
    %v2993 = vunpack.c.l.b16 %v623
    %v2994 = vunpack.c.h.b16 %v623
    %v2995 = vunpack.c.l.b16 %v624
    %v2996 = vunpack.c.h.b16 %v624
    %v2997 = vunpack.c.l.b16 %v625
    %v2998 = vunpack.c.h.b16 %v625
    %v2999 = vunpack.c.l.b16 %v626
    %v3000 = vunpack.c.h.b16 %v626
    %v3001 = vunpack.c.l.b16 %v627
    %v3002 = vunpack.c.h.b16 %v627
    %v3003 = vunpack.c.l.b16 %v628
    %v3004 = vunpack.c.h.b16 %v628
    %v3005 = vunpack.c.l.b16 %v629
    %v3006 = vunpack.c.h.b16 %v629
    %v3007 = vunpack.c.l.b16 %v630
    %v3008 = vunpack.c.h.b16 %v630
    %v3009 = vunpack.c.l.b16 %v631
    %v3010 = vunpack.c.h.b16 %v631
    %v3011 = vunpack.c.l.b16 %v632
    %v3012 = vunpack.c.h.b16 %v632
    %v3013 = vunpack.c.l.b16 %v633
    %v3014 = vunpack.c.h.b16 %v633
    %v3015 = vunpack.c.l.b16 %v634
    %v3016 = vunpack.c.h.b16 %v634
    %v3017 = vunpack.c.l.b16 %v635
    %v3018 = vunpack.c.h.b16 %v635
    %v3019 = vunpack.c.l.b16 %v636
    %v3020 = vunpack.c.h.b16 %v636
    %v3021 = vunpack.c.l.b16 %v637
    %v3022 = vunpack.c.h.b16 %v637
    %v3023 = vunpack.c.l.b16 %v638
    %v3024 = vunpack.c.h.b16 %v638
    %v3025 = vunpack.c.l.b16 %v639
    %v3026 = vunpack.c.h.b16 %v639
    %v3027 = vunpack.c.l.b16 %v640
    %v3028 = vunpack.c.h.b16 %v640
    %v3029 = vunpack.c.l.b16 %v641
    %v3030 = vunpack.c.h.b16 %v641
    %v3031 = vunpack.c.l.b16 %v642
    %v3032 = vunpack.c.h.b16 %v642
    %v3033 = vunpack.c.l.b16 %v643
    %v3034 = vunpack.c.h.b16 %v643
    %v3035 = vunpack.c.l.b16 %v644
    %v3036 = vunpack.c.h.b16 %v644
    %v3037 = vunpack.c.l.b16 %v645
    %v3038 = vunpack.c.h.b16 %v645
    %v3039 = vunpack.c.l.b16 %v646
    %v3040 = vunpack.c.h.b16 %v646
    %v3041 = vunpack.c.l.b16 %v647
    %v3042 = vunpack.c.h.b16 %v647
    %v3043 = vunpack.c.l.b16 %v648
    %v3044 = vunpack.c.h.b16 %v648
    %v3045 = vunpack.c.l.b16 %v649
    %v3046 = vunpack.c.h.b16 %v649
    %v3047 = vunpack.c.l.b16 %v650
    %v3048 = vunpack.c.h.b16 %v650
    %v3049 = vunpack.c.l.b16 %v651
    %v3050 = vunpack.c.h.b16 %v651
    %v3051 = vunpack.c.l.b16 %v652
    %v3052 = vunpack.c.h.b16 %v652
    %v3053 = vunpack.c.l.b16 %v653
    %v3054 = vunpack.c.h.b16 %v653
    %v3055 = vunpack.c.l.b16 %v654
    %v3056 = vunpack.c.h.b16 %v654
    %v3057 = vunpack.c.l.b16 %v655
    %v3058 = vunpack.c.h.b16 %v655
    %v3059 = vunpack.c.l.b16 %v656
    %v3060 = vunpack.c.h.b16 %v656
    %v3061 = vunpack.c.l.b16 %v657
    %v3062 = vunpack.c.h.b16 %v657
    %v3063 = vunpack.c.l.b16 %v658
    %v3064 = vunpack.c.h.b16 %v658
    %v3065 = vunpack.c.l.b16 %v659
    %v3066 = vunpack.c.h.b16 %v659
    %v3067 = vunpack.c.l.b16 %v660
    %v3068 = vunpack.c.h.b16 %v660
    %v3069 = vunpack.c.l.b16 %v661
    %v3070 = vunpack.c.h.b16 %v661
    %v3071 = vunpack.c.l.b16 %v662
    %v3072 = vunpack.c.h.b16 %v662
    %v3073 = vunpack.c.l.b16 %v663
    %v3074 = vunpack.c.h.b16 %v663
    %v3075 = vunpack.c.l.b16 %v664
    %v3076 = vunpack.c.h.b16 %v664
    %v3077 = vunpack.c.l.b16 %v665
    %v3078 = vunpack.c.h.b16 %v665
    %v3079 = vunpack.c.l.b16 %v666
    %v3080 = vunpack.c.h.b16 %v666
    %v3081 = vunpack.c.l.b16 %v667
    %v3082 = vunpack.c.h.b16 %v667
    %v3083 = vunpack.c.l.b16 %v668
    %v3084 = vunpack.c.h.b16 %v668
    %v3085 = vunpack.c.l.b16 %v669
    %v3086 = vunpack.c.h.b16 %v669
    %v3087 = vunpack.c.l.b16 %v670
    %v3088 = vunpack.c.h.b16 %v670
    %v3089 = vunpack.c.l.b16 %v671
    %v3090 = vunpack.c.h.b16 %v671
    %v3091 = vunpack.c.l.b16 %v672
    %v3092 = vunpack.c.h.b16 %v672
    %v3093 = vunpack.c.l.b16 %v673
    %v3094 = vunpack.c.h.b16 %v673
    %v3095 = vunpack.c.l.b16 %v674
    %v3096 = vunpack.c.h.b16 %v674
    %v3097 = vunpack.c.l.b16 %v675
    %v3098 = vunpack.c.h.b16 %v675
    %v3099 = vunpack.c.l.b16 %v676
    %v3100 = vunpack.c.h.b16 %v676
    %v3101 = vunpack.c.l.b16 %v677
    %v3102 = vunpack.c.h.b16 %v677
    %v3103 = vunpack.c.l.b16 %v678
    %v3104 = vunpack.c.h.b16 %v678
    %v3105 = vunpack.c.l.b16 %v679
    %v3106 = vunpack.c.h.b16 %v679
    %v3107 = vunpack.c.l.b16 %v680
    %v3108 = vunpack.c.h.b16 %v680
    %v3109 = vunpack.c.l.b16 %v681
    %v3110 = vunpack.c.h.b16 %v681
    %v3111 = vunpack.c.l.b16 %v682
    %v3112 = vunpack.c.h.b16 %v682
    %v3113 = vunpack.c.l.b16 %v683
    %v3114 = vunpack.c.h.b16 %v683
    %v3115 = vunpack.c.l.b16 %v684
    %v3116 = vunpack.c.h.b16 %v684
    %v3117 = vunpack.c.l.b16 %v685
    %v3118 = vunpack.c.h.b16 %v685
    %v3119 = vunpack.c.l.b16 %v686
    %v3120 = vunpack.c.h.b16 %v686
    %v3121 = vunpack.c.l.b16 %v687
    %v3122 = vunpack.c.h.b16 %v687
    %v3123 = vunpack.c.l.b16 %v688
    %v3124 = vunpack.c.h.b16 %v688
    %v3125 = vunpack.c.l.b16 %v689
    %v3126 = vunpack.c.h.b16 %v689
    %v3127 = vunpack.c.l.b16 %v690
    %v3128 = vunpack.c.h.b16 %v690
    %v3129 = vunpack.c.l.b16 %v691
    %v3130 = vunpack.c.h.b16 %v691
    %v3131 = vunpack.c.l.b16 %v692
    %v3132 = vunpack.c.h.b16 %v692
    %v3133 = vunpack.c.l.b16 %v693
    %v3134 = vunpack.c.h.b16 %v693
    %v3135 = vunpack.c.l.b16 %v694
    %v3136 = vunpack.c.h.b16 %v694
    %v3137 = vunpack.c.l.b16 %v695
    %v3138 = vunpack.c.h.b16 %v695
    %v3139 = vunpack.c.l.b16 %v696
    %v3140 = vunpack.c.h.b16 %v696
    %v3141 = vunpack.c.l.b16 %v697
    %v3142 = vunpack.c.h.b16 %v697
    %v3143 = vunpack.c.l.b16 %v698
    %v3144 = vunpack.c.h.b16 %v698
    %v3145 = vunpack.c.l.b16 %v699
    %v3146 = vunpack.c.h.b16 %v699
    %v3147 = vunpack.c.l.b16 %v700
    %v3148 = vunpack.c.h.b16 %v700
    %v3149 = vunpack.c.l.b16 %v701
    %v3150 = vunpack.c.h.b16 %v701
    %v3151 = vunpack.c.l.b16 %v702
    %v3152 = vunpack.c.h.b16 %v702
    %v3153 = vunpack.c.l.b16 %v703
    %v3154 = vunpack.c.h.b16 %v703
    %v3155 = vunpack.c.l.b16 %v704
    %v3156 = vunpack.c.h.b16 %v704
    %v3157 = vunpack.c.l.b16 %v705
    %v3158 = vunpack.c.h.b16 %v705
    %v3159 = vunpack.c.l.b16 %v706
    %v3160 = vunpack.c.h.b16 %v706
    %v3161 = vunpack.c.l.b16 %v707
    %v3162 = vunpack.c.h.b16 %v707
    %v3163 = vunpack.c.l.b16 %v708
    %v3164 = vunpack.c.h.b16 %v708
    %v3165 = vunpack.c.l.b16 %v709
    %v3166 = vunpack.c.h.b16 %v709
    %v3167 = vunpack.c.l.b16 %v710
    %v3168 = vunpack.c.h.b16 %v710
    %v3169 = vunpack.c.l.b16 %v711
    %v3170 = vunpack.c.h.b16 %v711
    %v3171 = vunpack.c.l.b16 %v712
    %v3172 = vunpack.c.h.b16 %v712
    %v3173 = vunpack.c.l.b16 %v713
    %v3174 = vunpack.c.h.b16 %v713
    %v3175 = vunpack.c.l.b16 %v714
    %v3176 = vunpack.c.h.b16 %v714
    %v3177 = vunpack.c.l.b16 %v715
    %v3178 = vunpack.c.h.b16 %v715
    %v3179 = vunpack.c.l.b16 %v716
    %v3180 = vunpack.c.h.b16 %v716
    %v3181 = vunpack.c.l.b16 %v717
    %v3182 = vunpack.c.h.b16 %v717
    %v3183 = vunpack.c.l.b16 %v718
    %v3184 = vunpack.c.h.b16 %v718
    %v3185 = vunpack.c.l.b16 %v719
    %v3186 = vunpack.c.h.b16 %v719
    %v3187 = vunpack.c.l.b16 %v720
    %v3188 = vunpack.c.h.b16 %v720
    %v3189 = vunpack.c.l.b16 %v721
    %v3190 = vunpack.c.h.b16 %v721
    %v3191 = vunpack.c.l.b16 %v722
    %v3192 = vunpack.c.h.b16 %v722
    %v3193 = vunpack.c.l.b16 %v723
    %v3194 = vunpack.c.h.b16 %v723
    %v3195 = vunpack.c.l.b16 %v724
    %v3196 = vunpack.c.h.b16 %v724
    %v3197 = vunpack.c.l.b16 %v725
    %v3198 = vunpack.c.h.b16 %v725
    %v3199 = vunpack.c.l.b16 %v726
    %v3200 = vunpack.c.h.b16 %v726
    %v3201 = vunpack.c.l.b16 %v727
    %v3202 = vunpack.c.h.b16 %v727
    %v3203 = vunpack.c.l.b16 %v728
    %v3204 = vunpack.c.h.b16 %v728
    %v3205 = vunpack.c.l.b16 %v729
    %v3206 = vunpack.c.h.b16 %v729
    %v3207 = vunpack.c.l.b16 %v730
    %v3208 = vunpack.c.h.b16 %v730
    %v3209 = vunpack.c.l.b16 %v731
    %v3210 = vunpack.c.h.b16 %v731
    %v3211 = vunpack.c.l.b16 %v732
    %v3212 = vunpack.c.h.b16 %v732
    %v3213 = vunpack.c.l.b16 %v733
    %v3214 = vunpack.c.h.b16 %v733
    %v3215 = vunpack.c.l.b16 %v734
    %v3216 = vunpack.c.h.b16 %v734
    %v3217 = vunpack.c.l.b16 %v735
    %v3218 = vunpack.c.h.b16 %v735
    %v3219 = vunpack.c.l.b16 %v736
    %v3220 = vunpack.c.h.b16 %v736
    %v3221 = vunpack.c.l.b16 %v737
    %v3222 = vunpack.c.h.b16 %v737
    %v3223 = vunpack.c.l.b16 %v738
    %v3224 = vunpack.c.h.b16 %v738
    %v3225 = vunpack.c.l.b16 %v739
    %v3226 = vunpack.c.h.b16 %v739
    %v3227 = vunpack.c.l.b16 %v740
    %v3228 = vunpack.c.h.b16 %v740
    %v3229 = vunpack.c.l.b16 %v741
    %v3230 = vunpack.c.h.b16 %v741
    %v3231 = vunpack.c.l.b16 %v742
    %v3232 = vunpack.c.h.b16 %v742
    %v3233 = vunpack.c.l.b16 %v743
    %v3234 = vunpack.c.h.b16 %v743
    %v3235 = vunpack.c.l.b16 %v744
    %v3236 = vunpack.c.h.b16 %v744
    %v3237 = vunpack.c.l.b16 %v745
    %v3238 = vunpack.c.h.b16 %v745
    %v3239 = vunpack.c.l.b16 %v746
    %v3240 = vunpack.c.h.b16 %v746
    %v3241 = vunpack.c.l.b16 %v747
    %v3242 = vunpack.c.h.b16 %v747
    %v3243 = vunpack.c.l.b16 %v748
    %v3244 = vunpack.c.h.b16 %v748
    %v3245 = vunpack.c.l.b16 %v749
    %v3246 = vunpack.c.h.b16 %v749
    %v3247 = vunpack.c.l.b16 %v750
    %v3248 = vunpack.c.h.b16 %v750
    %v3249 = vunpack.c.l.b16 %v751
    %v3250 = vunpack.c.h.b16 %v751
    %v3251 = vunpack.c.l.b16 %v752
    %v3252 = vunpack.c.h.b16 %v752
    %v3253 = vunpack.c.l.b16 %v753
    %v3254 = vunpack.c.h.b16 %v753
    %v3255 = vunpack.c.l.b16 %v754
    %v3256 = vunpack.c.h.b16 %v754
    %v3257 = vunpack.c.l.b16 %v755
    %v3258 = vunpack.c.h.b16 %v755
    %v3259 = vunpack.c.l.b16 %v756
    %v3260 = vunpack.c.h.b16 %v756
    %v3261 = vunpack.c.l.b16 %v757
    %v3262 = vunpack.c.h.b16 %v757
    %v3263 = vunpack.c.l.b16 %v758
    %v3264 = vunpack.c.h.b16 %v758
    %v3265 = vunpack.c.l.b16 %v759
    %v3266 = vunpack.c.h.b16 %v759
    %v3267 = vunpack.c.l.b16 %v760
    %v3268 = vunpack.c.h.b16 %v760
    %v3269 = vunpack.c.l.b16 %v761
    %v3270 = vunpack.c.h.b16 %v761
    %v3271 = vunpack.c.l.b16 %v762
    %v3272 = vunpack.c.h.b16 %v762
    %v3273 = vunpack.c.l.b16 %v763
    %v3274 = vunpack.c.h.b16 %v763
    %v3275 = vunpack.c.l.b16 %v764
    %v3276 = vunpack.c.h.b16 %v764
    %v3277 = vunpack.c.l.b16 %v765
    %v3278 = vunpack.c.h.b16 %v765
    %v3279 = vunpack.c.l.b16 %v766
    %v3280 = vunpack.c.h.b16 %v766
    %v3281 = vunpack.c.l.b16 %v767
    %v3282 = vunpack.c.h.b16 %v767
    %v3283 = vunpack.c.l.b16 %v768
    %v3284 = vunpack.c.h.b16 %v768
    %v3285 = vunpack.c.l.b16 %v769
    %v3286 = vunpack.c.h.b16 %v769
    %v3287 = vunpack.c.l.b16 %v770
    %v3288 = vunpack.c.h.b16 %v770
    %v3289 = vunpack.c.l.b16 %v771
    %v3290 = vunpack.c.h.b16 %v771
    %v3291 = vunpack.c.l.b16 %v772
    %v3292 = vunpack.c.h.b16 %v772
    %v3293 = vunpack.c.l.b16 %v773
    %v3294 = vunpack.c.h.b16 %v773
    %v3295 = vunpack.c.l.b16 %v774
    %v3296 = vunpack.c.h.b16 %v774
    %v3297 = vunpack.c.l.b16 %v775
    %v3298 = vunpack.c.h.b16 %v775
    %v3299 = vunpack.c.l.b16 %v776
    %v3300 = vunpack.c.h.b16 %v776
    %v3301 = vunpack.c.l.b16 %v777
    %v3302 = vunpack.c.h.b16 %v777
    %v3303 = vunpack.c.l.b16 %v778
    %v3304 = vunpack.c.h.b16 %v778
    %v3305 = vunpack.c.l.b16 %v779
    %v3306 = vunpack.c.h.b16 %v779
    %v3307 = vunpack.c.l.b16 %v780
    %v3308 = vunpack.c.h.b16 %v780
    %v3309 = vunpack.c.l.b16 %v781
    %v3310 = vunpack.c.h.b16 %v781
    %v3311 = vunpack.c.l.b16 %v782
    %v3312 = vunpack.c.h.b16 %v782
    %v3313 = vunpack.c.l.b16 %v783
    %v3314 = vunpack.c.h.b16 %v783
    %v3315 = vunpack.c.l.b16 %v784
    %v3316 = vunpack.c.h.b16 %v784
    %v3317 = vunpack.c.l.b16 %v785
    %v3318 = vunpack.c.h.b16 %v785
    %v3319 = vunpack.c.l.b16 %v786
    %v3320 = vunpack.c.h.b16 %v786
    %v3321 = vunpack.c.l.b16 %v787
    %v3322 = vunpack.c.h.b16 %v787
    %v3323 = vunpack.c.l.b16 %v788
    %v3324 = vunpack.c.h.b16 %v788
    %v3325 = vunpack.c.l.b16 %v789
    %v3326 = vunpack.c.h.b16 %v789
    %v3327 = vunpack.c.l.b16 %v790
    %v3328 = vunpack.c.h.b16 %v790
    %v3329 = vunpack.c.l.b16 %v791
    %v3330 = vunpack.c.h.b16 %v791
    %v3331 = vunpack.c.l.b16 %v792
    %v3332 = vunpack.c.h.b16 %v792
    %v3333 = vunpack.c.l.b16 %v793
    %v3334 = vunpack.c.h.b16 %v793
    %v3335 = vunpack.c.l.b16 %v794
    %v3336 = vunpack.c.h.b16 %v794
    %v3337 = vunpack.c.l.b16 %v795
    %v3338 = vunpack.c.h.b16 %v795
    %v3339 = vunpack.c.l.b16 %v796
    %v3340 = vunpack.c.h.b16 %v796
    %v3341 = vunpack.c.l.b16 %v797
    %v3342 = vunpack.c.h.b16 %v797
    %v3343 = vunpack.c.l.b16 %v798
    %v3344 = vunpack.c.h.b16 %v798
    %v3345 = vunpack.c.l.b16 %v799
    %v3346 = vunpack.c.h.b16 %v799
    %v3347 = vunpack.c.l.b16 %v800
    %v3348 = vunpack.c.h.b16 %v800
    %v3349 = vunpack.c.l.b16 %v801
    %v3350 = vunpack.c.h.b16 %v801
    %v3351 = vunpack.c.l.b16 %v802
    %v3352 = vunpack.c.h.b16 %v802
    %v3353 = vunpack.c.l.b16 %v803
    %v3354 = vunpack.c.h.b16 %v803
    %v3355 = vunpack.c.l.b16 %v804
    %v3356 = vunpack.c.h.b16 %v804
    %v3357 = vunpack.c.l.b16 %v805
    %v3358 = vunpack.c.h.b16 %v805
    %v3359 = vunpack.c.l.b16 %v806
    %v3360 = vunpack.c.h.b16 %v806
    %v3361 = vunpack.c.l.b16 %v807
    %v3362 = vunpack.c.h.b16 %v807
    %v3363 = vunpack.c.l.b16 %v808
    %v3364 = vunpack.c.h.b16 %v808
    %v3365 = vunpack.c.l.b16 %v809
    %v3366 = vunpack.c.h.b16 %v809
    %v3367 = vunpack.c.l.b16 %v810
    %v3368 = vunpack.c.h.b16 %v810
    %v3369 = vunpack.c.l.b16 %v811
    %v3370 = vunpack.c.h.b16 %v811
    %v3371 = vunpack.c.l.b16 %v812
    %v3372 = vunpack.c.h.b16 %v812
    %v3373 = vunpack.c.l.b16 %v813
    %v3374 = vunpack.c.h.b16 %v813
    %v3375 = vunpack.c.l.b16 %v814
    %v3376 = vunpack.c.h.b16 %v814
    %v3377 = vunpack.c.l.b16 %v815
    %v3378 = vunpack.c.h.b16 %v815
    %v3379 = vunpack.c.l.b16 %v816
    %v3380 = vunpack.c.h.b16 %v816
    %v3381 = vunpack.c.l.b16 %v817
    %v3382 = vunpack.c.h.b16 %v817
    %v3383 = vunpack.c.l.b16 %v818
    %v3384 = vunpack.c.h.b16 %v818
    %v3385 = vunpack.c.l.b16 %v819
    %v3386 = vunpack.c.h.b16 %v819
    %v3387 = vunpack.c.l.b16 %v820
    %v3388 = vunpack.c.h.b16 %v820
    %v3389 = vunpack.c.l.b16 %v821
    %v3390 = vunpack.c.h.b16 %v821
    %v3391 = vunpack.c.l.b16 %v822
    %v3392 = vunpack.c.h.b16 %v822
    %v3393 = vunpack.c.l.b16 %v823
    %v3394 = vunpack.c.h.b16 %v823
    %v3395 = vunpack.c.l.b16 %v824
    %v3396 = vunpack.c.h.b16 %v824
    %v3397 = vunpack.c.l.b16 %v825
    %v3398 = vunpack.c.h.b16 %v825
    %v3399 = vunpack.c.l.b16 %v826
    %v3400 = vunpack.c.h.b16 %v826
    %v3401 = vunpack.c.l.b16 %v827
    %v3402 = vunpack.c.h.b16 %v827
    %v3403 = vunpack.c.l.b16 %v828
    %v3404 = vunpack.c.h.b16 %v828
    %v3405 = vunpack.c.l.b16 %v829
    %v3406 = vunpack.c.h.b16 %v829
    %v3407 = vunpack.c.l.b16 %v830
    %v3408 = vunpack.c.h.b16 %v830
    %v3409 = vunpack.c.l.b16 %v831
    %v3410 = vunpack.c.h.b16 %v831
    %v3411 = vunpack.c.l.b16 %v832
    %v3412 = vunpack.c.h.b16 %v832
    %v3413 = vunpack.c.l.b16 %v833
    %v3414 = vunpack.c.h.b16 %v833
    %v3415 = vunpack.c.l.b16 %v834
    %v3416 = vunpack.c.h.b16 %v834
    %v3417 = vunpack.c.l.b16 %v835
    %v3418 = vunpack.c.h.b16 %v835
    %v3419 = vunpack.c.l.b16 %v836
    %v3420 = vunpack.c.h.b16 %v836
    %v3421 = vunpack.c.l.b16 %v837
    %v3422 = vunpack.c.h.b16 %v837
    %v3423 = vunpack.c.l.b16 %v838
    %v3424 = vunpack.c.h.b16 %v838
    %v3425 = vunpack.c.l.b16 %v839
    %v3426 = vunpack.c.h.b16 %v839
    %v3427 = vunpack.c.l.b16 %v840
    %v3428 = vunpack.c.h.b16 %v840
    %v3429 = vunpack.c.l.b16 %v841
    %v3430 = vunpack.c.h.b16 %v841
    %v3431 = vunpack.c.l.b16 %v842
    %v3432 = vunpack.c.h.b16 %v842
    %v3433 = vunpack.c.l.b16 %v843
    %v3434 = vunpack.c.h.b16 %v843
    %v3435 = vunpack.c.l.b16 %v844
    %v3436 = vunpack.c.h.b16 %v844
    %v3437 = vunpack.c.l.b16 %v845
    %v3438 = vunpack.c.h.b16 %v845
    %v3439 = vunpack.c.l.b16 %v846
    %v3440 = vunpack.c.h.b16 %v846
    %v3441 = vunpack.c.l.b16 %v847
    %v3442 = vunpack.c.h.b16 %v847
    %v3443 = vunpack.c.l.b16 %v848
    %v3444 = vunpack.c.h.b16 %v848
    %v3445 = vunpack.c.l.b16 %v849
    %v3446 = vunpack.c.h.b16 %v849
    %v3447 = vunpack.c.l.b16 %v850
    %v3448 = vunpack.c.h.b16 %v850
    %v3449 = vunpack.c.l.b16 %v851
    %v3450 = vunpack.c.h.b16 %v851
    %v3451 = vunpack.c.l.b16 %v852
    %v3452 = vunpack.c.h.b16 %v852
    %v3453 = vunpack.c.l.b16 %v853
    %v3454 = vunpack.c.h.b16 %v853
    %v3455 = vunpack.c.l.b16 %v854
    %v3456 = vunpack.c.h.b16 %v854
    %v3457 = vunpack.c.l.b16 %v855
    %v3458 = vunpack.c.h.b16 %v855
    %v3459 = vunpack.c.l.b16 %v856
    %v3460 = vunpack.c.h.b16 %v856
    %v3461 = vunpack.c.l.b16 %v857
    %v3462 = vunpack.c.h.b16 %v857
    %v3463 = vunpack.c.l.b16 %v858
    %v3464 = vunpack.c.h.b16 %v858
    %v3465 = vunpack.c.l.b16 %v859
    %v3466 = vunpack.c.h.b16 %v859
    %v3467 = vunpack.c.l.b16 %v860
    %v3468 = vunpack.c.h.b16 %v860
    %v3469 = vunpack.c.l.b16 %v861
    %v3470 = vunpack.c.h.b16 %v861
    %v3471 = vunpack.c.l.b16 %v862
    %v3472 = vunpack.c.h.b16 %v862
    %v3473 = vunpack.c.l.b16 %v863
    %v3474 = vunpack.c.h.b16 %v863
    %v3475 = vunpack.c.l.b16 %v864
    %v3476 = vunpack.c.h.b16 %v864
    %v3477 = vunpack.c.l.b16 %v865
    %v3478 = vunpack.c.h.b16 %v865
    %v3479 = vunpack.c.l.b16 %v866
    %v3480 = vunpack.c.h.b16 %v866
    %v3481 = vunpack.c.l.b16 %v867
    %v3482 = vunpack.c.h.b16 %v867
    %v3483 = vunpack.c.l.b16 %v868
    %v3484 = vunpack.c.h.b16 %v868
    %v3485 = vunpack.c.l.b16 %v869
    %v3486 = vunpack.c.h.b16 %v869
    %v3487 = vunpack.c.l.b16 %v870
    %v3488 = vunpack.c.h.b16 %v870
    %v3489 = vunpack.c.l.b16 %v871
    %v3490 = vunpack.c.h.b16 %v871
    %v3491 = vunpack.c.l.b16 %v872
    %v3492 = vunpack.c.h.b16 %v872
    %v3493 = vunpack.c.l.b16 %v873
    %v3494 = vunpack.c.h.b16 %v873
    %v3495 = vunpack.c.l.b16 %v874
    %v3496 = vunpack.c.h.b16 %v874
    %v3497 = vunpack.c.l.b16 %v875
    %v3498 = vunpack.c.h.b16 %v875
    %v3499 = vunpack.c.l.b16 %v876
    %v3500 = vunpack.c.h.b16 %v876
    %v3501 = vunpack.c.l.b16 %v877
    %v3502 = vunpack.c.h.b16 %v877
    %v3503 = vunpack.c.l.b16 %v878
    %v3504 = vunpack.c.h.b16 %v878
    %v3505 = vunpack.c.l.b16 %v879
    %v3506 = vunpack.c.h.b16 %v879
    %v3507 = vunpack.c.l.b16 %v880
    %v3508 = vunpack.c.h.b16 %v880
    %v3509 = vunpack.c.l.b16 %v881
    %v3510 = vunpack.c.h.b16 %v881
    %v3511 = vunpack.c.l.b16 %v882
    %v3512 = vunpack.c.h.b16 %v882
    %v3513 = vunpack.c.l.b16 %v883
    %v3514 = vunpack.c.h.b16 %v883
    %v3515 = vunpack.c.l.b16 %v884
    %v3516 = vunpack.c.h.b16 %v884
    %v3517 = vunpack.c.l.b16 %v885
    %v3518 = vunpack.c.h.b16 %v885
    %v3519 = vunpack.c.l.b16 %v886
    %v3520 = vunpack.c.h.b16 %v886
    %v3521 = vunpack.c.l.b16 %v887
    %v3522 = vunpack.c.h.b16 %v887
    %v3523 = vunpack.c.l.b16 %v888
    %v3524 = vunpack.c.h.b16 %v888
    %v3525 = vunpack.c.l.b16 %v889
    %v3526 = vunpack.c.h.b16 %v889
    %v3527 = vunpack.c.l.b16 %v890
    %v3528 = vunpack.c.h.b16 %v890
    %v3529 = vunpack.c.l.b16 %v891
    %v3530 = vunpack.c.h.b16 %v891
    %v3531 = vunpack.c.l.b16 %v892
    %v3532 = vunpack.c.h.b16 %v892
    %v3533 = vunpack.c.l.b16 %v893
    %v3534 = vunpack.c.h.b16 %v893
    %v3535 = vunpack.c.l.b16 %v894
    %v3536 = vunpack.c.h.b16 %v894
    %v3537 = vunpack.c.l.b16 %v895
    %v3538 = vunpack.c.h.b16 %v895
    %v3539 = vunpack.c.l.b16 %v896
    %v3540 = vunpack.c.h.b16 %v896
    %v3541 = vunpack.c.l.b16 %v897
    %v3542 = vunpack.c.h.b16 %v897
    %v3543 = vunpack.c.l.b16 %v898
    %v3544 = vunpack.c.h.b16 %v898
    %v3545 = vunpack.c.l.b16 %v899
    %v3546 = vunpack.c.h.b16 %v899
    %v3547 = vunpack.c.l.b16 %v900
    %v3548 = vunpack.c.h.b16 %v900
    %v3549 = vunpack.c.l.b16 %v901
    %v3550 = vunpack.c.h.b16 %v901
    %v3551 = vunpack.c.l.b16 %v902
    %v3552 = vunpack.c.h.b16 %v902
    %v3553 = vunpack.c.l.b16 %v903
    %v3554 = vunpack.c.h.b16 %v903
    %v3555 = vunpack.c.l.b16 %v904
    %v3556 = vunpack.c.h.b16 %v904
    %v3557 = vunpack.c.l.b16 %v905
    %v3558 = vunpack.c.h.b16 %v905
    %v3559 = vunpack.c.l.b16 %v906
    %v3560 = vunpack.c.h.b16 %v906
    %v3561 = vunpack.c.l.b16 %v907
    %v3562 = vunpack.c.h.b16 %v907
    %v3563 = vunpack.c.l.b16 %v908
    %v3564 = vunpack.c.h.b16 %v908
    %v3565 = vunpack.c.l.b16 %v909
    %v3566 = vunpack.c.h.b16 %v909
    %v3567 = vunpack.c.l.b16 %v910
    %v3568 = vunpack.c.h.b16 %v910
    %v3569 = vunpack.c.l.b16 %v911
    %v3570 = vunpack.c.h.b16 %v911
    %v3571 = vunpack.c.l.b16 %v912
    %v3572 = vunpack.c.h.b16 %v912
    %v3573 = vunpack.c.l.b16 %v913
    %v3574 = vunpack.c.h.b16 %v913
    %v3575 = vunpack.c.l.b16 %v914
    %v3576 = vunpack.c.h.b16 %v914
    %v3577 = vunpack.c.l.b16 %v915
    %v3578 = vunpack.c.h.b16 %v915
    %v3579 = vunpack.c.l.b16 %v916
    %v3580 = vunpack.c.h.b16 %v916
    %v3581 = vunpack.c.l.b16 %v917
    %v3582 = vunpack.c.h.b16 %v917
    %v3583 = vunpack.c.l.b16 %v918
    %v3584 = vunpack.c.h.b16 %v918
    %v3585 = vunpack.c.l.b16 %v919
    %v3586 = vunpack.c.h.b16 %v919
    %v3587 = vunpack.c.l.b16 %v920
    %v3588 = vunpack.c.h.b16 %v920
    %v3589 = vunpack.c.l.b16 %v921
    %v3590 = vunpack.c.h.b16 %v921
    %v3591 = vunpack.c.l.b16 %v922
    %v3592 = vunpack.c.h.b16 %v922
    %v3593 = vunpack.c.l.b16 %v923
    %v3594 = vunpack.c.h.b16 %v923
    %v3595 = vunpack.c.l.b16 %v924
    %v3596 = vunpack.c.h.b16 %v924
    %v3597 = vunpack.c.l.b16 %v925
    %v3598 = vunpack.c.h.b16 %v925
    %v3599 = vunpack.c.l.b16 %v926
    %v3600 = vunpack.c.h.b16 %v926
    %v3601 = vunpack.c.l.b16 %v927
    %v3602 = vunpack.c.h.b16 %v927
    %v3603 = vunpack.c.l.b16 %v928
    %v3604 = vunpack.c.h.b16 %v928
    %v3605 = vunpack.c.l.b16 %v929
    %v3606 = vunpack.c.h.b16 %v929
    %v3607 = vunpack.c.l.b16 %v930
    %v3608 = vunpack.c.h.b16 %v930
    %v3609 = vunpack.c.l.b16 %v931
    %v3610 = vunpack.c.h.b16 %v931
    %v3611 = vunpack.c.l.b16 %v932
    %v3612 = vunpack.c.h.b16 %v932
    %v3613 = vunpack.c.l.b16 %v933
    %v3614 = vunpack.c.h.b16 %v933
    %v3615 = vunpack.c.l.b16 %v934
    %v3616 = vunpack.c.h.b16 %v934
    %v3617 = vunpack.c.l.b16 %v935
    %v3618 = vunpack.c.h.b16 %v935
    %v3619 = vunpack.c.l.b16 %v936
    %v3620 = vunpack.c.h.b16 %v936
    %v3621 = vunpack.c.l.b16 %v937
    %v3622 = vunpack.c.h.b16 %v937
    %v3623 = vunpack.c.l.b16 %v938
    %v3624 = vunpack.c.h.b16 %v938
    %v3625 = vunpack.c.l.b16 %v939
    %v3626 = vunpack.c.h.b16 %v939
    %v3627 = vunpack.c.l.b16 %v940
    %v3628 = vunpack.c.h.b16 %v940
    %v3629 = vunpack.c.l.b16 %v941
    %v3630 = vunpack.c.h.b16 %v941
    %v3631 = vunpack.c.l.b16 %v942
    %v3632 = vunpack.c.h.b16 %v942
    %v3633 = vunpack.c.l.b16 %v943
    %v3634 = vunpack.c.h.b16 %v943
    %v3635 = vunpack.c.l.b16 %v944
    %v3636 = vunpack.c.h.b16 %v944
    %v3637 = vunpack.c.l.b16 %v945
    %v3638 = vunpack.c.h.b16 %v945
    %v3639 = vunpack.c.l.b16 %v946
    %v3640 = vunpack.c.h.b16 %v946
    %v3641 = vunpack.c.l.b16 %v947
    %v3642 = vunpack.c.h.b16 %v947
    %v3643 = vunpack.c.l.b16 %v948
    %v3644 = vunpack.c.h.b16 %v948
    %v3645 = vunpack.c.l.b16 %v949
    %v3646 = vunpack.c.h.b16 %v949
    %v3647 = vunpack.c.l.b16 %v950
    %v3648 = vunpack.c.h.b16 %v950
    %v3649 = vunpack.c.l.b16 %v951
    %v3650 = vunpack.c.h.b16 %v951
    %v3651 = vunpack.c.l.b16 %v952
    %v3652 = vunpack.c.h.b16 %v952
    %v3653 = vunpack.c.l.b16 %v953
    %v3654 = vunpack.c.h.b16 %v953
    %v3655 = vunpack.c.l.b16 %v954
    %v3656 = vunpack.c.h.b16 %v954
    %v3657 = vunpack.c.l.b16 %v955
    %v3658 = vunpack.c.h.b16 %v955
    %v3659 = vunpack.c.l.b16 %v956
    %v3660 = vunpack.c.h.b16 %v956
    %v3661 = vunpack.c.l.b16 %v957
    %v3662 = vunpack.c.h.b16 %v957
    %v3663 = vunpack.c.l.b16 %v958
    %v3664 = vunpack.c.h.b16 %v958
    %v3665 = vunpack.c.l.b16 %v959
    %v3666 = vunpack.c.h.b16 %v959
    %v3667 = vunpack.c.l.b16 %v960
    %v3668 = vunpack.c.h.b16 %v960
    %v3669 = vunpack.c.l.b16 %v961
    %v3670 = vunpack.c.h.b16 %v961
    %v3671 = vunpack.c.l.b16 %v962
    %v3672 = vunpack.c.h.b16 %v962
    %v3673 = vunpack.c.l.b16 %v963
    %v3674 = vunpack.c.h.b16 %v963
    %v3675 = vunpack.c.l.b16 %v964
    %v3676 = vunpack.c.h.b16 %v964
    %v3677 = vunpack.c.l.b16 %v965
    %v3678 = vunpack.c.h.b16 %v965
    %v3679 = vunpack.c.l.b16 %v966
    %v3680 = vunpack.c.h.b16 %v966
    %v3681 = vunpack.c.l.b16 %v967
    %v3682 = vunpack.c.h.b16 %v967
    %v3683 = vunpack.c.l.b16 %v968
    %v3684 = vunpack.c.h.b16 %v968
    %v3685 = vunpack.c.l.b16 %v969
    %v3686 = vunpack.c.h.b16 %v969
    %v3687 = vunpack.c.l.b16 %v970
    %v3688 = vunpack.c.h.b16 %v970
    %v3689 = vunpack.c.l.b16 %v971
    %v3690 = vunpack.c.h.b16 %v971
    %v3691 = vunpack.c.l.b16 %v972
    %v3692 = vunpack.c.h.b16 %v972
    %v3693 = vunpack.c.l.b16 %v973
    %v3694 = vunpack.c.h.b16 %v973
    %v3695 = vunpack.c.l.b16 %v974
    %v3696 = vunpack.c.h.b16 %v974
    %v3697 = vunpack.c.l.b16 %v975
    %v3698 = vunpack.c.h.b16 %v975
    %v3699 = vunpack.c.l.b16 %v976
    %v3700 = vunpack.c.h.b16 %v976
    %v3701 = vunpack.c.l.b16 %v977
    %v3702 = vunpack.c.h.b16 %v977
    %v3703 = vunpack.c.l.b16 %v978
    %v3704 = vunpack.c.h.b16 %v978
    %v3705 = vunpack.c.l.b16 %v979
    %v3706 = vunpack.c.h.b16 %v979
    %v3707 = vunpack.c.l.b16 %v980
    %v3708 = vunpack.c.h.b16 %v980
    %v3709 = vunpack.c.l.b16 %v981
    %v3710 = vunpack.c.h.b16 %v981
    %v3711 = vunpack.c.l.b16 %v982
    %v3712 = vunpack.c.h.b16 %v982
    %v3713 = vunpack.c.l.b16 %v983
    %v3714 = vunpack.c.h.b16 %v983
    %v3715 = vunpack.c.l.b16 %v984
    %v3716 = vunpack.c.h.b16 %v984
    %v3717 = vunpack.c.l.b16 %v985
    %v3718 = vunpack.c.h.b16 %v985
    %v3719 = vunpack.c.l.b16 %v986
    %v3720 = vunpack.c.h.b16 %v986
    %v3721 = vunpack.c.l.b16 %v987
    %v3722 = vunpack.c.h.b16 %v987
    %v3723 = vunpack.c.l.b16 %v988
    %v3724 = vunpack.c.h.b16 %v988
    %v3725 = vunpack.c.l.b16 %v989
    %v3726 = vunpack.c.h.b16 %v989
    %v3727 = vunpack.c.l.b16 %v990
    %v3728 = vunpack.c.h.b16 %v990
    %v3729 = vunpack.c.l.b16 %v991
    %v3730 = vunpack.c.h.b16 %v991
    %v3731 = vunpack.c.l.b16 %v992
    %v3732 = vunpack.c.h.b16 %v992
    %v3733 = vunpack.c.l.b16 %v993
    %v3734 = vunpack.c.h.b16 %v993
    %v3735 = vunpack.c.l.b16 %v994
    %v3736 = vunpack.c.h.b16 %v994
    %v3737 = vunpack.c.l.b16 %v995
    %v3738 = vunpack.c.h.b16 %v995
    %v3739 = vunpack.c.l.b16 %v996
    %v3740 = vunpack.c.h.b16 %v996
    %v3741 = vunpack.c.l.b16 %v997
    %v3742 = vunpack.c.h.b16 %v997
    %v3743 = vunpack.c.l.b16 %v998
    %v3744 = vunpack.c.h.b16 %v998
    %v3745 = vunpack.c.l.b16 %v999
    %v3746 = vunpack.c.h.b16 %v999
    %v3747 = vunpack.c.l.b16 %v1000
    %v3748 = vunpack.c.h.b16 %v1000
    %v3749 = vunpack.c.l.b16 %v1001
    %v3750 = vunpack.c.h.b16 %v1001
    %v3751 = vunpack.c.l.b16 %v1002
    %v3752 = vunpack.c.h.b16 %v1002
    %v3753 = vunpack.c.l.b16 %v1003
    %v3754 = vunpack.c.h.b16 %v1003
    %v3755 = vunpack.c.l.b16 %v1004
    %v3756 = vunpack.c.h.b16 %v1004
    %v3757 = vunpack.c.l.b16 %v1005
    %v3758 = vunpack.c.h.b16 %v1005
    %v3759 = vunpack.c.l.b16 %v1006
    %v3760 = vunpack.c.h.b16 %v1006
    %v3761 = vunpack.c.l.b16 %v1007
    %v3762 = vunpack.c.h.b16 %v1007
    %v3763 = vunpack.c.l.b16 %v1008
    %v3764 = vunpack.c.h.b16 %v1008
    %v3765 = vunpack.c.l.b16 %v1009
    %v3766 = vunpack.c.h.b16 %v1009
    %v3767 = vunpack.c.l.b16 %v1010
    %v3768 = vunpack.c.h.b16 %v1010
    %v3769 = vunpack.c.l.b16 %v1011
    %v3770 = vunpack.c.h.b16 %v1011
    %v3771 = vunpack.c.l.b16 %v1012
    %v3772 = vunpack.c.h.b16 %v1012
    %v3773 = vunpack.c.l.b16 %v1013
    %v3774 = vunpack.c.h.b16 %v1013
    %v3775 = vunpack.c.l.b16 %v1014
    %v3776 = vunpack.c.h.b16 %v1014
    %v3777 = vunpack.c.l.b16 %v1015
    %v3778 = vunpack.c.h.b16 %v1015
    %v3779 = vunpack.c.l.b16 %v1016
    %v3780 = vunpack.c.h.b16 %v1016
    %v3781 = vunpack.c.l.b16 %v1017
    %v3782 = vunpack.c.h.b16 %v1017
    %v3783 = vunpack.c.l.b16 %v1018
    %v3784 = vunpack.c.h.b16 %v1018
    %v3785 = vunpack.c.l.b16 %v1019
    %v3786 = vunpack.c.h.b16 %v1019
    %v3787 = vunpack.c.l.b16 %v1020
    %v3788 = vunpack.c.h.b16 %v1020
    %v3789 = vunpack.c.l.b16 %v1021
    %v3790 = vunpack.c.h.b16 %v1021
    %v3791 = vunpack.c.l.b16 %v1022
    %v3792 = vunpack.c.h.b16 %v1022
    %v3793 = vunpack.c.l.b16 %v1023
    %v3794 = vunpack.c.h.b16 %v1023
    %v3795 = vunpack.c.l.b16 %v1024
    %v3796 = vunpack.c.h.b16 %v1024
    %v3797 = vunpack.c.l.b16 %v1025
    %v3798 = vunpack.c.h.b16 %v1025
    %v3799 = vunpack.c.l.b16 %v1026
    %v3800 = vunpack.c.h.b16 %v1026
    %v3801 = vunpack.c.l.b16 %v1027
    %v3802 = vunpack.c.h.b16 %v1027
    %v3803 = vunpack.c.l.b16 %v1028
    %v3804 = vunpack.c.h.b16 %v1028
    %v3805 = vunpack.c.l.b16 %v1029
    %v3806 = vunpack.c.h.b16 %v1029
    %v3807 = vunpack.c.l.b16 %v1030
    %v3808 = vunpack.c.h.b16 %v1030
    %v3809 = vunpack.c.l.b16 %v1031
    %v3810 = vunpack.c.h.b16 %v1031
    %v3811 = vunpack.c.l.b16 %v1032
    %v3812 = vunpack.c.h.b16 %v1032
    %v3813 = vunpack.c.l.b16 %v1033
    %v3814 = vunpack.c.h.b16 %v1033
    %v3815 = vunpack.c.l.b16 %v1034
    %v3816 = vunpack.c.h.b16 %v1034
    %v3817 = vunpack.c.l.b16 %v1035
    %v3818 = vunpack.c.h.b16 %v1035
    %v3819 = vunpack.c.l.b16 %v1036
    %v3820 = vunpack.c.h.b16 %v1036
    %v3821 = vunpack.c.l.b16 %v1037
    %v3822 = vunpack.c.h.b16 %v1037
    %v3823 = vunpack.c.l.b16 %v1038
    %v3824 = vunpack.c.h.b16 %v1038
    %v3825 = vunpack.c.l.b16 %v1039
    %v3826 = vunpack.c.h.b16 %v1039
    %v3827 = vunpack.c.l.b16 %v1040
    %v3828 = vunpack.c.h.b16 %v1040
    %v3829 = vunpack.c.l.b16 %v1041
    %v3830 = vunpack.c.h.b16 %v1041
    %v3831 = vunpack.c.l.b16 %v1042
    %v3832 = vunpack.c.h.b16 %v1042
    %v3833 = vunpack.c.l.b16 %v1043
    %v3834 = vunpack.c.h.b16 %v1043
    %v3835 = vunpack.c.l.b16 %v1044
    %v3836 = vunpack.c.h.b16 %v1044
    %v3837 = vunpack.c.l.b16 %v1045
    %v3838 = vunpack.c.h.b16 %v1045
    %v3839 = vunpack.c.l.b16 %v1046
    %v3840 = vunpack.c.h.b16 %v1046
    %v3841 = vunpack.c.l.b16 %v1047
    %v3842 = vunpack.c.h.b16 %v1047
    %v3843 = vunpack.c.l.b16 %v1048
    %v3844 = vunpack.c.h.b16 %v1048
    %v3845 = vunpack.c.l.b16 %v1049
    %v3846 = vunpack.c.h.b16 %v1049
    %v3847 = vunpack.c.l.b16 %v1050
    %v3848 = vunpack.c.h.b16 %v1050
    %v3849 = vunpack.c.l.b16 %v1051
    %v3850 = vunpack.c.h.b16 %v1051
    %v3851 = vunpack.c.l.b16 %v1052
    %v3852 = vunpack.c.h.b16 %v1052
    %v3853 = vunpack.c.l.b16 %v1053
    %v3854 = vunpack.c.h.b16 %v1053
    %v3855 = vunpack.c.l.b16 %v1054
    %v3856 = vunpack.c.h.b16 %v1054
    %v3857 = vunpack.c.l.b16 %v1055
    %v3858 = vunpack.c.h.b16 %v1055
    %v3859 = vunpack.c.l.b16 %v1056
    %v3860 = vunpack.c.h.b16 %v1056
    %v3861 = vunpack.c.l.b16 %v1057
    %v3862 = vunpack.c.h.b16 %v1057
    %v3863 = vunpack.c.l.b16 %v1058
    %v3864 = vunpack.c.h.b16 %v1058
    %v3865 = vunpack.c.l.b16 %v1059
    %v3866 = vunpack.c.h.b16 %v1059
    %v3867 = vunpack.c.l.b16 %v1060
    %v3868 = vunpack.c.h.b16 %v1060
    %v3869 = vunpack.c.l.b16 %v1061
    %v3870 = vunpack.c.h.b16 %v1061
    %v3871 = vunpack.c.l.b16 %v1062
    %v3872 = vunpack.c.h.b16 %v1062
    %v3873 = vunpack.c.l.b16 %v1063
    %v3874 = vunpack.c.h.b16 %v1063
    %v3875 = vunpack.c.l.b16 %v1064
    %v3876 = vunpack.c.h.b16 %v1064
    %v3877 = vunpack.c.l.b16 %v1065
    %v3878 = vunpack.c.h.b16 %v1065
    %v3879 = vunpack.c.l.b16 %v1066
    %v3880 = vunpack.c.h.b16 %v1066
    %v3881 = vunpack.c.l.b16 %v1067
    %v3882 = vunpack.c.h.b16 %v1067
    %v3883 = vunpack.c.l.b16 %v1068
    %v3884 = vunpack.c.h.b16 %v1068
    %v3885 = vunpack.c.l.b16 %v1069
    %v3886 = vunpack.c.h.b16 %v1069
    %v3887 = vunpack.c.l.b16 %v1070
    %v3888 = vunpack.c.h.b16 %v1070
    %v3889 = vunpack.c.l.b16 %v1071
    %v3890 = vunpack.c.h.b16 %v1071
    %v3891 = vunpack.c.l.b16 %v1072
    %v3892 = vunpack.c.h.b16 %v1072
    %v3893 = vunpack.c.l.b16 %v1073
    %v3894 = vunpack.c.h.b16 %v1073
    %v3895 = vunpack.c.l.b16 %v1074
    %v3896 = vunpack.c.h.b16 %v1074
    %v3897 = vunpack.c.l.b16 %v1075
    %v3898 = vunpack.c.h.b16 %v1075
    %v3899 = vunpack.c.l.b16 %v1076
    %v3900 = vunpack.c.h.b16 %v1076
    %v3901 = vunpack.c.l.b16 %v1077
    %v3902 = vunpack.c.h.b16 %v1077
    %v3903 = vunpack.c.l.b16 %v1078
    %v3904 = vunpack.c.h.b16 %v1078
    %v3905 = vunpack.c.l.b16 %v1079
    %v3906 = vunpack.c.h.b16 %v1079
    %v3907 = vunpack.c.l.b16 %v1080
    %v3908 = vunpack.c.h.b16 %v1080
    %v3909 = vunpack.c.l.b16 %v1081
    %v3910 = vunpack.c.h.b16 %v1081
    %v3911 = vunpack.c.l.b16 %v1082
    %v3912 = vunpack.c.h.b16 %v1082
    %v3913 = vunpack.c.l.b16 %v1083
    %v3914 = vunpack.c.h.b16 %v1083
    %v3915 = vunpack.c.l.b16 %v1084
    %v3916 = vunpack.c.h.b16 %v1084
    %v3917 = vunpack.c.l.b16 %v1085
    %v3918 = vunpack.c.h.b16 %v1085
    %v3919 = vunpack.c.l.b16 %v1086
    %v3920 = vunpack.c.h.b16 %v1086
    %v3921 = vunpack.c.l.b16 %v1087
    %v3922 = vunpack.c.h.b16 %v1087
    %v3923 = vunpack.c.l.b16 %v1088
    %v3924 = vunpack.c.h.b16 %v1088
    %v3925 = vunpack.c.l.b16 %v1089
    %v3926 = vunpack.c.h.b16 %v1089
    %v3927 = vunpack.c.l.b16 %v1090
    %v3928 = vunpack.c.h.b16 %v1090
    %v3929 = vunpack.c.l.b16 %v1091
    %v3930 = vunpack.c.h.b16 %v1091
    %v3931 = vunpack.c.l.b16 %v1092
    %v3932 = vunpack.c.h.b16 %v1092
    %v3933 = vunpack.c.l.b16 %v1093
    %v3934 = vunpack.c.h.b16 %v1093
    %v3935 = vunpack.c.l.b16 %v1094
    %v3936 = vunpack.c.h.b16 %v1094
    %v3937 = vunpack.c.l.b16 %v1095
    %v3938 = vunpack.c.h.b16 %v1095
    %v3939 = vunpack.c.l.b16 %v1096
    %v3940 = vunpack.c.h.b16 %v1096
    %v3941 = vunpack.c.l.b16 %v1097
    %v3942 = vunpack.c.h.b16 %v1097
    %v3943 = vunpack.c.l.b16 %v1098
    %v3944 = vunpack.c.h.b16 %v1098
    %v3945 = vunpack.c.l.b16 %v1099
    %v3946 = vunpack.c.h.b16 %v1099
    %v3947 = vunpack.c.l.b16 %v1100
    %v3948 = vunpack.c.h.b16 %v1100
    %v3949 = vunpack.c.l.b16 %v1101
    %v3950 = vunpack.c.h.b16 %v1101
    %v3951 = vunpack.c.l.b16 %v1102
    %v3952 = vunpack.c.h.b16 %v1102
    %v3953 = vunpack.c.l.b16 %v1103
    %v3954 = vunpack.c.h.b16 %v1103
    %v3955 = vunpack.c.l.b16 %v1104
    %v3956 = vunpack.c.h.b16 %v1104
    %v3957 = vunpack.c.l.b16 %v1105
    %v3958 = vunpack.c.h.b16 %v1105
    %v3959 = vunpack.c.l.b16 %v1106
    %v3960 = vunpack.c.h.b16 %v1106
    %v3961 = vunpack.c.l.b16 %v1107
    %v3962 = vunpack.c.h.b16 %v1107
    %v3963 = vunpack.c.l.b16 %v1108
    %v3964 = vunpack.c.h.b16 %v1108
    %v3965 = vunpack.c.l.b16 %v1109
    %v3966 = vunpack.c.h.b16 %v1109
    %v3967 = vunpack.c.l.b16 %v1110
    %v3968 = vunpack.c.h.b16 %v1110
    %v3969 = vunpack.c.l.b16 %v1111
    %v3970 = vunpack.c.h.b16 %v1111
    %v3971 = vunpack.c.l.b16 %v1112
    %v3972 = vunpack.c.h.b16 %v1112
    %v3973 = vunpack.c.l.b16 %v1113
    %v3974 = vunpack.c.h.b16 %v1113
    %v3975 = vunpack.c.l.b16 %v1114
    %v3976 = vunpack.c.h.b16 %v1114
    %v3977 = vunpack.c.l.b16 %v1115
    %v3978 = vunpack.c.h.b16 %v1115
    %v3979 = vunpack.c.l.b16 %v1116
    %v3980 = vunpack.c.h.b16 %v1116
    %v3981 = vunpack.c.l.b16 %v1117
    %v3982 = vunpack.c.h.b16 %v1117
    %v3983 = vunpack.c.l.b16 %v1118
    %v3984 = vunpack.c.h.b16 %v1118
    %v3985 = vunpack.c.l.b16 %v1119
    %v3986 = vunpack.c.h.b16 %v1119
    %v3987 = vunpack.c.l.b16 %v1120
    %v3988 = vunpack.c.h.b16 %v1120
    %v3989 = vunpack.c.l.b16 %v1121
    %v3990 = vunpack.c.h.b16 %v1121
    %v3991 = vunpack.c.l.b16 %v1122
    %v3992 = vunpack.c.h.b16 %v1122
    %v3993 = vunpack.c.l.b16 %v1123
    %v3994 = vunpack.c.h.b16 %v1123
    %v3995 = vunpack.c.l.b16 %v1124
    %v3996 = vunpack.c.h.b16 %v1124
    %v3997 = vunpack.c.l.b16 %v1125
    %v3998 = vunpack.c.h.b16 %v1125
    %v3999 = vunpack.c.l.b16 %v1126
    %v4000 = vunpack.c.h.b16 %v1126
    %v4001 = vunpack.c.l.b16 %v1127
    %v4002 = vunpack.c.h.b16 %v1127
    %v4003 = vunpack.c.l.b16 %v1128
    %v4004 = vunpack.c.h.b16 %v1128
    %v4005 = vunpack.c.l.b16 %v1129
    %v4006 = vunpack.c.h.b16 %v1129
    %v4007 = vunpack.c.l.b16 %v1130
    %v4008 = vunpack.c.h.b16 %v1130
    %v4009 = vunpack.c.l.b16 %v1131
    %v4010 = vunpack.c.h.b16 %v1131
    %v4011 = vunpack.c.l.b16 %v1132
    %v4012 = vunpack.c.h.b16 %v1132
    %v4013 = vunpack.c.l.b16 %v1133
    %v4014 = vunpack.c.h.b16 %v1133
    %v4015 = vunpack.c.l.b16 %v1134
    %v4016 = vunpack.c.h.b16 %v1134
    %v4017 = vunpack.c.l.b16 %v1135
    %v4018 = vunpack.c.h.b16 %v1135
    %v4019 = vunpack.c.l.b16 %v1136
    %v4020 = vunpack.c.h.b16 %v1136
    %v4021 = vunpack.c.l.b16 %v1137
    %v4022 = vunpack.c.h.b16 %v1137
    %v4023 = vunpack.c.l.b16 %v1138
    %v4024 = vunpack.c.h.b16 %v1138
    %v4025 = vunpack.c.l.b16 %v1139
    %v4026 = vunpack.c.h.b16 %v1139
    %v4027 = vunpack.c.l.b16 %v1140
    %v4028 = vunpack.c.h.b16 %v1140
    %v4029 = vunpack.c.l.b16 %v1141
    %v4030 = vunpack.c.h.b16 %v1141
    %v4031 = vunpack.c.l.b16 %v1142
    %v4032 = vunpack.c.h.b16 %v1142
    %v4033 = vunpack.c.l.b16 %v1143
    %v4034 = vunpack.c.h.b16 %v1143
    %v4035 = vunpack.c.l.b16 %v1144
    %v4036 = vunpack.c.h.b16 %v1144
    %v4037 = vunpack.c.l.b16 %v1145
    %v4038 = vunpack.c.h.b16 %v1145
    %v4039 = vunpack.c.l.b16 %v1146
    %v4040 = vunpack.c.h.b16 %v1146
    %v4041 = vunpack.c.l.b16 %v1147
    %v4042 = vunpack.c.h.b16 %v1147
    %v4043 = vunpack.c.l.b16 %v1148
    %v4044 = vunpack.c.h.b16 %v1148
    %v4045 = vunpack.c.l.b16 %v1149
    %v4046 = vunpack.c.h.b16 %v1149
    %v4047 = vunpack.c.l.b16 %v1150
    %v4048 = vunpack.c.h.b16 %v1150
    %v4049 = vunpack.c.l.b16 %v1151
    %v4050 = vunpack.c.h.b16 %v1151
    %v4051 = vunpack.c.l.b16 %v1152
    %v4052 = vunpack.c.h.b16 %v1152
    %v4053 = vunpack.c.l.b16 %v1153
    %v4054 = vunpack.c.h.b16 %v1153
    %v4055 = vunpack.c.l.b16 %v1154
    %v4056 = vunpack.c.h.b16 %v1154
    %v4057 = vunpack.c.l.b16 %v1155
    %v4058 = vunpack.c.h.b16 %v1155
    %v4059 = vunpack.c.l.b16 %v1156
    %v4060 = vunpack.c.h.b16 %v1156
    %v4061 = vunpack.c.l.b16 %v1157
    %v4062 = vunpack.c.h.b16 %v1157
    %v4063 = vunpack.c.l.b16 %v1158
    %v4064 = vunpack.c.h.b16 %v1158
    %v4065 = vunpack.c.l.b16 %v1159
    %v4066 = vunpack.c.h.b16 %v1159
    %v4067 = vunpack.c.l.b16 %v1160
    %v4068 = vunpack.c.h.b16 %v1160
    %v4069 = vunpack.c.l.b16 %v1161
    %v4070 = vunpack.c.h.b16 %v1161
    %v4071 = vunpack.c.l.b16 %v1162
    %v4072 = vunpack.c.h.b16 %v1162
    %v4073 = vunpack.c.l.b16 %v1163
    %v4074 = vunpack.c.h.b16 %v1163
    %v4075 = vunpack.c.l.b16 %v1164
    %v4076 = vunpack.c.h.b16 %v1164
    %v4077 = vunpack.c.l.b16 %v1165
    %v4078 = vunpack.c.h.b16 %v1165
    %v4079 = vunpack.c.l.b16 %v1166
    %v4080 = vunpack.c.h.b16 %v1166
    %v4081 = vunpack.c.l.b16 %v1167
    %v4082 = vunpack.c.h.b16 %v1167
    %v4083 = vunpack.c.l.b16 %v1168
    %v4084 = vunpack.c.h.b16 %v1168
    %v4085 = vunpack.c.l.b16 %v1169
    %v4086 = vunpack.c.h.b16 %v1169
    %v4087 = vunpack.c.l.b16 %v1170
    %v4088 = vunpack.c.h.b16 %v1170
    %v4089 = vunpack.c.l.b16 %v1171
    %v4090 = vunpack.c.h.b16 %v1171
    %v4091 = vunpack.c.l.b16 %v1172
    %v4092 = vunpack.c.h.b16 %v1172
    %v4093 = vunpack.c.l.b16 %v1173
    %v4094 = vunpack.c.h.b16 %v1173
    %v4095 = vunpack.c.l.b16 %v1174
    %v4096 = vunpack.c.h.b16 %v1174
    %v4097 = vunpack.c.l.b16 %v1175
    %v4098 = vunpack.c.h.b16 %v1175
    %v4099 = vunpack.c.l.b16 %v1176
    %v4100 = vunpack.c.h.b16 %v1176
    %v4101 = vunpack.c.l.b16 %v1177
    %v4102 = vunpack.c.h.b16 %v1177
    %v4103 = vunpack.c.l.b16 %v1178
    %v4104 = vunpack.c.h.b16 %v1178
    %v4105 = vunpack.c.l.b16 %v1179
    %v4106 = vunpack.c.h.b16 %v1179
    %v4107 = vunpack.c.l.b16 %v1180
    %v4108 = vunpack.c.h.b16 %v1180
    %v4109 = vunpack.c.l.b16 %v1181
    %v4110 = vunpack.c.h.b16 %v1181
    %v4111 = vunpack.c.l.b16 %v1182
    %v4112 = vunpack.c.h.b16 %v1182
    %v4113 = vunpack.c.l.b16 %v1183
    %v4114 = vunpack.c.h.b16 %v1183
    %v4115 = vunpack.c.l.b16 %v1184
    %v4116 = vunpack.c.h.b16 %v1184
    %v4117 = vunpack.c.l.b16 %v1185
    %v4118 = vunpack.c.h.b16 %v1185
    %v4119 = vunpack.c.l.b16 %v1186
    %v4120 = vunpack.c.h.b16 %v1186
    %v4121 = vunpack.c.l.b16 %v1187
    %v4122 = vunpack.c.h.b16 %v1187
    %v4123 = vunpack.c.l.b16 %v1188
    %v4124 = vunpack.c.h.b16 %v1188
    %v4125 = vunpack.c.l.b16 %v1189
    %v4126 = vunpack.c.h.b16 %v1189
    %v4127 = vunpack.c.l.b16 %v1190
    %v4128 = vunpack.c.h.b16 %v1190
    %v4129 = vunpack.c.l.b16 %v1191
    %v4130 = vunpack.c.h.b16 %v1191
    %v4131 = vunpack.c.l.b16 %v1192
    %v4132 = vunpack.c.h.b16 %v1192
    %v4133 = vunpack.c.l.b16 %v1193
    %v4134 = vunpack.c.h.b16 %v1193
    %v4135 = vunpack.c.l.b16 %v1194
    %v4136 = vunpack.c.h.b16 %v1194
    %v4137 = vunpack.c.l.b16 %v1195
    %v4138 = vunpack.c.h.b16 %v1195
    %v4139 = vunpack.c.l.b16 %v1196
    %v4140 = vunpack.c.h.b16 %v1196
    %v4141 = vunpack.c.l.b16 %v1197
    %v4142 = vunpack.c.h.b16 %v1197
    %v4143 = vunpack.c.l.b16 %v1198
    %v4144 = vunpack.c.h.b16 %v1198
    %v4145 = vunpack.c.l.b16 %v1199
    %v4146 = vunpack.c.h.b16 %v1199
    %v4147 = vunpack.c.l.b16 %v1200
    %v4148 = vunpack.c.h.b16 %v1200
    %v4149 = vunpack.c.l.b16 %v1201
    %v4150 = vunpack.c.h.b16 %v1201
    %v4151 = vunpack.c.l.b16 %v1202
    %v4152 = vunpack.c.h.b16 %v1202
    %v4153 = vunpack.c.l.b16 %v1203
    %v4154 = vunpack.c.h.b16 %v1203
    %v4155 = vunpack.c.l.b16 %v1204
    %v4156 = vunpack.c.h.b16 %v1204
    %v4157 = vunpack.c.l.b16 %v1205
    %v4158 = vunpack.c.h.b16 %v1205
    %v4159 = vunpack.c.l.b16 %v1206
    %v4160 = vunpack.c.h.b16 %v1206
    %v4161 = vunpack.c.l.b16 %v1207
    %v4162 = vunpack.c.h.b16 %v1207
    %v4163 = vunpack.c.l.b16 %v1208
    %v4164 = vunpack.c.h.b16 %v1208
    %v4165 = vunpack.c.l.b16 %v1209
    %v4166 = vunpack.c.h.b16 %v1209
    %v4167 = vunpack.c.l.b16 %v1210
    %v4168 = vunpack.c.h.b16 %v1210
    %v4169 = vunpack.c.l.b16 %v1211
    %v4170 = vunpack.c.h.b16 %v1211
    %v4171 = vunpack.c.l.b16 %v1212
    %v4172 = vunpack.c.h.b16 %v1212
    %v4173 = vunpack.c.l.b16 %v1213
    %v4174 = vunpack.c.h.b16 %v1213
    %v4175 = vunpack.c.l.b16 %v1214
    %v4176 = vunpack.c.h.b16 %v1214
    %v4177 = vunpack.c.l.b16 %v1215
    %v4178 = vunpack.c.h.b16 %v1215
    %v4179 = vunpack.c.l.b16 %v1216
    %v4180 = vunpack.c.h.b16 %v1216
    %v4181 = vunpack.c.l.b16 %v1217
    %v4182 = vunpack.c.h.b16 %v1217
    %v4183 = vunpack.c.l.b16 %v1218
    %v4184 = vunpack.c.h.b16 %v1218
    %v4185 = vunpack.c.l.b16 %v1219
    %v4186 = vunpack.c.h.b16 %v1219
    %v4187 = vunpack.c.l.b16 %v1220
    %v4188 = vunpack.c.h.b16 %v1220
    %v4189 = vunpack.c.l.b16 %v1221
    %v4190 = vunpack.c.h.b16 %v1221
    %v4191 = vunpack.c.l.b16 %v1222
    %v4192 = vunpack.c.h.b16 %v1222
    %v4193 = vunpack.c.l.b16 %v1223
    %v4194 = vunpack.c.h.b16 %v1223
    %v4195 = vunpack.c.l.b16 %v1224
    %v4196 = vunpack.c.h.b16 %v1224
    %v4197 = vunpack.c.l.b16 %v1225
    %v4198 = vunpack.c.h.b16 %v1225
    %v4199 = vunpack.c.l.b16 %v1226
    %v4200 = vunpack.c.h.b16 %v1226
    %v4201 = vunpack.c.l.b16 %v1227
    %v4202 = vunpack.c.h.b16 %v1227
    %v4203 = vunpack.c.l.b16 %v1228
    %v4204 = vunpack.c.h.b16 %v1228
    %v4205 = vunpack.c.l.b16 %v1229
    %v4206 = vunpack.c.h.b16 %v1229
    %v4207 = vunpack.c.l.b16 %v1230
    %v4208 = vunpack.c.h.b16 %v1230
    %v4209 = vunpack.c.l.b16 %v1231
    %v4210 = vunpack.c.h.b16 %v1231
    %v4211 = vunpack.c.l.b16 %v1232
    %v4212 = vunpack.c.h.b16 %v1232
    %v4213 = vunpack.c.l.b16 %v1233
    %v4214 = vunpack.c.h.b16 %v1233
    %v4215 = vunpack.c.l.b16 %v1234
    %v4216 = vunpack.c.h.b16 %v1234
    %v4217 = vunpack.c.l.b16 %v1235
    %v4218 = vunpack.c.h.b16 %v1235
    %v4219 = vunpack.c.l.b16 %v1236
    %v4220 = vunpack.c.h.b16 %v1236
    %v4221 = vunpack.c.l.b16 %v1237
    %v4222 = vunpack.c.h.b16 %v1237
    %v4223 = vunpack.c.l.b16 %v1238
    %v4224 = vunpack.c.h.b16 %v1238
    %v4225 = vunpack.c.l.b16 %v1239
    %v4226 = vunpack.c.h.b16 %v1239
    %v4227 = vunpack.c.l.b16 %v1240
    %v4228 = vunpack.c.h.b16 %v1240
    %v4229 = vunpack.c.l.b16 %v1241
    %v4230 = vunpack.c.h.b16 %v1241
    %v4231 = vunpack.c.l.b16 %v1242
    %v4232 = vunpack.c.h.b16 %v1242
    %v4233 = vunpack.c.l.b16 %v1243
    %v4234 = vunpack.c.h.b16 %v1243
    %v4235 = vunpack.c.l.b16 %v1244
    %v4236 = vunpack.c.h.b16 %v1244
    %v4237 = vunpack.c.l.b16 %v1245
    %v4238 = vunpack.c.h.b16 %v1245
    %v4239 = vunpack.c.l.b16 %v1246
    %v4240 = vunpack.c.h.b16 %v1246
    %v4241 = vunpack.c.l.b16 %v1247
    %v4242 = vunpack.c.h.b16 %v1247
    %v4243 = vunpack.c.l.b16 %v1248
    %v4244 = vunpack.c.h.b16 %v1248
    %v4245 = vunpack.c.l.b16 %v1249
    %v4246 = vunpack.c.h.b16 %v1249
    %v4247 = vunpack.c.l.b16 %v1250
    %v4248 = vunpack.c.h.b16 %v1250
    %v4249 = vunpack.c.l.b16 %v1251
    %v4250 = vunpack.c.h.b16 %v1251
    %v4251 = vunpack.c.l.b16 %v1252
    %v4252 = vunpack.c.h.b16 %v1252
    %v4253 = vunpack.c.l.b16 %v1253
    %v4254 = vunpack.c.h.b16 %v1253
    %v4255 = vunpack.c.l.b16 %v1254
    %v4256 = vunpack.c.h.b16 %v1254
    %v4257 = vunpack.c.l.b16 %v1255
    %v4258 = vunpack.c.h.b16 %v1255
    %v4259 = vunpack.c.l.b16 %v1256
    %v4260 = vunpack.c.h.b16 %v1256
    %v4261 = vunpack.c.l.b16 %v1257
    %v4262 = vunpack.c.h.b16 %v1257
    %v4263 = vunpack.c.l.b16 %v1258
    %v4264 = vunpack.c.h.b16 %v1258
    %v4265 = vunpack.c.l.b16 %v1259
    %v4266 = vunpack.c.h.b16 %v1259
    %v4267 = vunpack.c.l.b16 %v1260
    %v4268 = vunpack.c.h.b16 %v1260
    %v4269 = vunpack.c.l.b16 %v1261
    %v4270 = vunpack.c.h.b16 %v1261
    %v4271 = vunpack.c.l.b16 %v1262
    %v4272 = vunpack.c.h.b16 %v1262
    %v4273 = vunpack.c.l.b16 %v1263
    %v4274 = vunpack.c.h.b16 %v1263
    %v4275 = vunpack.c.l.b16 %v1264
    %v4276 = vunpack.c.h.b16 %v1264
    %v4277 = vunpack.c.l.b16 %v1265
    %v4278 = vunpack.c.h.b16 %v1265
    %v4279 = vunpack.c.l.b16 %v1266
    %v4280 = vunpack.c.h.b16 %v1266
    %v4281 = vunpack.c.l.b16 %v1267
    %v4282 = vunpack.c.h.b16 %v1267
    %v4283 = vunpack.c.l.b16 %v1268
    %v4284 = vunpack.c.h.b16 %v1268
    %v4285 = vunpack.c.l.b16 %v1269
    %v4286 = vunpack.c.h.b16 %v1269
    %v4287 = vunpack.c.l.b16 %v1270
    %v4288 = vunpack.c.h.b16 %v1270
    %v4289 = vunpack.c.l.b16 %v1271
    %v4290 = vunpack.c.h.b16 %v1271
    %v4291 = vunpack.c.l.b16 %v1272
    %v4292 = vunpack.c.h.b16 %v1272
    %v4293 = vunpack.c.l.b16 %v1273
    %v4294 = vunpack.c.h.b16 %v1273
    %v4295 = vunpack.c.l.b16 %v1274
    %v4296 = vunpack.c.h.b16 %v1274
    %v4297 = vunpack.c.l.b16 %v1275
    %v4298 = vunpack.c.h.b16 %v1275
    %v4299 = vunpack.c.l.b16 %v1276
    %v4300 = vunpack.c.h.b16 %v1276
    %v4301 = vunpack.c.l.b16 %v1277
    %v4302 = vunpack.c.h.b16 %v1277
    %v4303 = vunpack.c.l.b16 %v1278
    %v4304 = vunpack.c.h.b16 %v1278
    %v4305 = vunpack.c.l.b16 %v1279
    %v4306 = vunpack.c.h.b16 %v1279
    %v4307 = vunpack.c.l.b16 %v1280
    %v4308 = vunpack.c.h.b16 %v1280
    %v4309 = vunpack.c.l.b16 %v1281
    %v4310 = vunpack.c.h.b16 %v1281
    %v4311 = vunpack.c.l.b16 %v1282
    %v4312 = vunpack.c.h.b16 %v1282
    %v4313 = vunpack.c.l.b16 %v1283
    %v4314 = vunpack.c.h.b16 %v1283
    %v4315 = vunpack.c.l.b16 %v1284
    %v4316 = vunpack.c.h.b16 %v1284
    %v4317 = vunpack.c.l.b16 %v1285
    %v4318 = vunpack.c.h.b16 %v1285
    %v4319 = vunpack.c.l.b16 %v1286
    %v4320 = vunpack.c.h.b16 %v1286
    %v4321 = vunpack.c.l.b16 %v1287
    %v4322 = vunpack.c.h.b16 %v1287
    %v4323 = vunpack.c.l.b16 %v1288
    %v4324 = vunpack.c.h.b16 %v1288
    %v4325 = vunpack.c.l.b16 %v1289
    %v4326 = vunpack.c.h.b16 %v1289
    %v4327 = vunpack.c.l.b16 %v1290
    %v4328 = vunpack.c.h.b16 %v1290
    %v4329 = vunpack.c.l.b16 %v1291
    %v4330 = vunpack.c.h.b16 %v1291
    %v4331 = vunpack.c.l.b16 %v1292
    %v4332 = vunpack.c.h.b16 %v1292
    %v4333 = vunpack.c.l.b16 %v1293
    %v4334 = vunpack.c.h.b16 %v1293
    %v4335 = vunpack.c.l.b16 %v1294
    %v4336 = vunpack.c.h.b16 %v1294
    %v4337 = vunpack.c.l.b16 %v1295
    %v4338 = vunpack.c.h.b16 %v1295
    %v4339 = vunpack.c.l.b16 %v1296
    %v4340 = vunpack.c.h.b16 %v1296
    %v4341 = vunpack.c.l.b16 %v1297
    %v4342 = vunpack.c.h.b16 %v1297
    %v4343 = vunpack.c.l.b16 %v1298
    %v4344 = vunpack.c.h.b16 %v1298
    %v4345 = vunpack.c.l.b16 %v1299
    %v4346 = vunpack.c.h.b16 %v1299
    %v4347 = vunpack.c.l.b16 %v1300
    %v4348 = vunpack.c.h.b16 %v1300
    %v4349 = vunpack.c.l.b16 %v1301
    %v4350 = vunpack.c.h.b16 %v1301
    %v4351 = vunpack.c.l.b16 %v1302
    %v4352 = vunpack.c.h.b16 %v1302
    %v4353 = vunpack.c.l.b16 %v1303
    %v4354 = vunpack.c.h.b16 %v1303
    %v4355 = vunpack.c.l.b16 %v1304
    %v4356 = vunpack.c.h.b16 %v1304
    %v4357 = vunpack.c.l.b16 %v1305
    %v4358 = vunpack.c.h.b16 %v1305
    %v4359 = vunpack.c.l.b16 %v1306
    %v4360 = vunpack.c.h.b16 %v1306
    %v4361 = vunpack.c.l.b16 %v1307
    %v4362 = vunpack.c.h.b16 %v1307
    %v4363 = vunpack.c.l.b16 %v1308
    %v4364 = vunpack.c.h.b16 %v1308
    %v4365 = vunpack.c.l.b16 %v1309
    %v4366 = vunpack.c.h.b16 %v1309
    %v4367 = vunpack.c.l.b16 %v1310
    %v4368 = vunpack.c.h.b16 %v1310
    %v4369 = vunpack.c.l.b16 %v1311
    %v4370 = vunpack.c.h.b16 %v1311
    %v4371 = vunpack.c.l.b16 %v1312
    %v4372 = vunpack.c.h.b16 %v1312
    %v4373 = vunpack.c.l.b16 %v1313
    %v4374 = vunpack.c.h.b16 %v1313
    %v4375 = vunpack.c.l.b16 %v1314
    %v4376 = vunpack.c.h.b16 %v1314
    %v4377 = vunpack.c.l.b16 %v1315
    %v4378 = vunpack.c.h.b16 %v1315
    %v4379 = vunpack.c.l.b16 %v1316
    %v4380 = vunpack.c.h.b16 %v1316
    %v4381 = vunpack.c.l.b16 %v1317
    %v4382 = vunpack.c.h.b16 %v1317
    %v4383 = vunpack.c.l.b16 %v1318
    %v4384 = vunpack.c.h.b16 %v1318
    %v4385 = vunpack.c.l.b16 %v1319
    %v4386 = vunpack.c.h.b16 %v1319
    %v4387 = vunpack.c.l.b16 %v1320
    %v4388 = vunpack.c.h.b16 %v1320
    %v4389 = vunpack.c.l.b16 %v1321
    %v4390 = vunpack.c.h.b16 %v1321
    %v4391 = vunpack.c.l.b16 %v1322
    %v4392 = vunpack.c.h.b16 %v1322
    %v4393 = vunpack.c.l.b16 %v1323
    %v4394 = vunpack.c.h.b16 %v1323
    %v4395 = vunpack.c.l.b16 %v1324
    %v4396 = vunpack.c.h.b16 %v1324
    %v4397 = vunpack.c.l.b16 %v1325
    %v4398 = vunpack.c.h.b16 %v1325
    %v4399 = vunpack.c.l.b16 %v1326
    %v4400 = vunpack.c.h.b16 %v1326
    %v4401 = vunpack.c.l.b16 %v1327
    %v4402 = vunpack.c.h.b16 %v1327
    %v4403 = vunpack.c.l.b16 %v1328
    %v4404 = vunpack.c.h.b16 %v1328
    %v4405 = vunpack.c.l.b16 %v1329
    %v4406 = vunpack.c.h.b16 %v1329
    %v4407 = vunpack.c.l.b16 %v1330
    %v4408 = vunpack.c.h.b16 %v1330
    %v4409 = vunpack.c.l.b16 %v1331
    %v4410 = vunpack.c.h.b16 %v1331
    %v4411 = vunpack.c.l.b16 %v1332
    %v4412 = vunpack.c.h.b16 %v1332
    %v4413 = vunpack.c.l.b16 %v1333
    %v4414 = vunpack.c.h.b16 %v1333
    %v4415 = vunpack.c.l.b16 %v1334
    %v4416 = vunpack.c.h.b16 %v1334
    %v4417 = vunpack.c.l.b16 %v1335
    %v4418 = vunpack.c.h.b16 %v1335
    %v4419 = vunpack.c.l.b16 %v1336
    %v4420 = vunpack.c.h.b16 %v1336
    %v4421 = vunpack.c.l.b16 %v1337
    %v4422 = vunpack.c.h.b16 %v1337
    %v4423 = vunpack.c.l.b16 %v1338
    %v4424 = vunpack.c.h.b16 %v1338
    %v4425 = vunpack.c.l.b16 %v1339
    %v4426 = vunpack.c.h.b16 %v1339
    %v4427 = vunpack.c.l.b16 %v1340
    %v4428 = vunpack.c.h.b16 %v1340
    %v4429 = vunpack.c.l.b16 %v1341
    %v4430 = vunpack.c.h.b16 %v1341
    %v4431 = vunpack.c.l.b16 %v1342
    %v4432 = vunpack.c.h.b16 %v1342
    %v4433 = vunpack.c.l.b16 %v1343
    %v4434 = vunpack.c.h.b16 %v1343
    %v4435 = vunpack.c.l.b16 %v1344
    %v4436 = vunpack.c.h.b16 %v1344
    %v4437 = vunpack.c.l.b16 %v1345
    %v4438 = vunpack.c.h.b16 %v1345
    %v4439 = vunpack.c.l.b16 %v1346
    %v4440 = vunpack.c.h.b16 %v1346
    %v4441 = vunpack.c.l.b16 %v1347
    %v4442 = vunpack.c.h.b16 %v1347
    %v4443 = vunpack.c.l.b16 %v1348
    %v4444 = vunpack.c.h.b16 %v1348
    %v4445 = vunpack.c.l.b16 %v1349
    %v4446 = vunpack.c.h.b16 %v1349
    %v4447 = vunpack.c.l.b16 %v1350
    %v4448 = vunpack.c.h.b16 %v1350
    %v4449 = vunpack.c.l.b16 %v1351
    %v4450 = vunpack.c.h.b16 %v1351
    %v4451 = vunpack.c.l.b16 %v1352
    %v4452 = vunpack.c.h.b16 %v1352
    %v4453 = vunpack.c.l.b16 %v1353
    %v4454 = vunpack.c.h.b16 %v1353
    %v4455 = vunpack.c.l.b16 %v1354
    %v4456 = vunpack.c.h.b16 %v1354
    %v4457 = vunpack.c.l.b16 %v1355
    %v4458 = vunpack.c.h.b16 %v1355
    %v4459 = vunpack.c.l.b16 %v1356
    %v4460 = vunpack.c.h.b16 %v1356
    %v4461 = vunpack.c.l.b16 %v1357
    %v4462 = vunpack.c.h.b16 %v1357
    %v4463 = vunpack.c.l.b16 %v1358
    %v4464 = vunpack.c.h.b16 %v1358
    %v4465 = vunpack.c.l.b16 %v1359
    %v4466 = vunpack.c.h.b16 %v1359
    %v4467 = vunpack.c.l.b16 %v1360
    %v4468 = vunpack.c.h.b16 %v1360
    %v4469 = vunpack.c.l.b16 %v1361
    %v4470 = vunpack.c.h.b16 %v1361
    %v4471 = vunpack.c.l.b16 %v1362
    %v4472 = vunpack.c.h.b16 %v1362
    %v4473 = vunpack.c.l.b16 %v1363
    %v4474 = vunpack.c.h.b16 %v1363
    %v4475 = vunpack.c.l.b16 %v1364
    %v4476 = vunpack.c.h.b16 %v1364
    %v4477 = vunpack.c.l.b16 %v1365
    %v4478 = vunpack.c.h.b16 %v1365
    %v4479 = vunpack.c.l.b16 %v1366
    %v4480 = vunpack.c.h.b16 %v1366
    %v4481 = vpack.c.b16 %v2441, %v2433
    %v4482 = vpack.c.b16 %v2442, %v2434
    %v4483 = vpack.c.b16 %v2443, %v2435
    %v4484 = vpack.c.b16 %v2444, %v2436
    %v4485 = vpack.c.b16 %v2445, %v2437
    %v4486 = vpack.c.b16 %v2446, %v2438
    %v4487 = vpack.c.b16 %v2447, %v2439
    %v4488 = vpack.c.b16 %v2448, %v2440
    %v4489 = vpack.c.b16 %v2457, %v2449
    %v4490 = vpack.c.b16 %v2458, %v2450
    %v4491 = vpack.c.b16 %v2459, %v2451
    %v4492 = vpack.c.b16 %v2460, %v2452
    %v4493 = vpack.c.b16 %v2461, %v2453
    %v4494 = vpack.c.b16 %v2462, %v2454
    %v4495 = vpack.c.b16 %v2463, %v2455
    %v4496 = vpack.c.b16 %v2464, %v2456
    %v4497 = vpack.c.b16 %v2473, %v2465
    %v4498 = vpack.c.b16 %v2474, %v2466
    %v4499 = vpack.c.b16 %v2475, %v2467
    %v4500 = vpack.c.b16 %v2476, %v2468
    %v4501 = vpack.c.b16 %v2477, %v2469
    %v4502 = vpack.c.b16 %v2478, %v2470
    %v4503 = vpack.c.b16 %v2479, %v2471
    %v4504 = vpack.c.b16 %v2480, %v2472
    %v4505 = vpack.c.b16 %v2489, %v2481
    %v4506 = vpack.c.b16 %v2490, %v2482
    %v4507 = vpack.c.b16 %v2491, %v2483
    %v4508 = vpack.c.b16 %v2492, %v2484
    %v4509 = vpack.c.b16 %v2493, %v2485
    %v4510 = vpack.c.b16 %v2494, %v2486
    %v4511 = vpack.c.b16 %v2495, %v2487
    %v4512 = vpack.c.b16 %v2496, %v2488
    %v4513 = vpack.c.b16 %v2505, %v2497
    %v4514 = vpack.c.b16 %v2506, %v2498
    %v4515 = vpack.c.b16 %v2507, %v2499
    %v4516 = vpack.c.b16 %v2508, %v2500
    %v4517 = vpack.c.b16 %v2509, %v2501
    %v4518 = vpack.c.b16 %v2510, %v2502
    %v4519 = vpack.c.b16 %v2511, %v2503
    %v4520 = vpack.c.b16 %v2512, %v2504
    %v4521 = vpack.c.b16 %v2521, %v2513
    %v4522 = vpack.c.b16 %v2522, %v2514
    %v4523 = vpack.c.b16 %v2523, %v2515
    %v4524 = vpack.c.b16 %v2524, %v2516
    %v4525 = vpack.c.b16 %v2525, %v2517
    %v4526 = vpack.c.b16 %v2526, %v2518
    %v4527 = vpack.c.b16 %v2527, %v2519
    %v4528 = vpack.c.b16 %v2528, %v2520
    %v4529 = vpack.c.b16 %v2537, %v2529
    %v4530 = vpack.c.b16 %v2538, %v2530
    %v4531 = vpack.c.b16 %v2539, %v2531
    %v4532 = vpack.c.b16 %v2540, %v2532
    %v4533 = vpack.c.b16 %v2541, %v2533
    %v4534 = vpack.c.b16 %v2542, %v2534
    %v4535 = vpack.c.b16 %v2543, %v2535
    %v4536 = vpack.c.b16 %v2544, %v2536
    %v4537 = vpack.c.b16 %v2553, %v2545
    %v4538 = vpack.c.b16 %v2554, %v2546
    %v4539 = vpack.c.b16 %v2555, %v2547
    %v4540 = vpack.c.b16 %v2556, %v2548
    %v4541 = vpack.c.b16 %v2557, %v2549
    %v4542 = vpack.c.b16 %v2558, %v2550
    %v4543 = vpack.c.b16 %v2559, %v2551
    %v4544 = vpack.c.b16 %v2560, %v2552
    %v4545 = vpack.c.b16 %v2569, %v2561
    %v4546 = vpack.c.b16 %v2570, %v2562
    %v4547 = vpack.c.b16 %v2571, %v2563
    %v4548 = vpack.c.b16 %v2572, %v2564
    %v4549 = vpack.c.b16 %v2573, %v2565
    %v4550 = vpack.c.b16 %v2574, %v2566
    %v4551 = vpack.c.b16 %v2575, %v2567
    %v4552 = vpack.c.b16 %v2576, %v2568
    %v4553 = vpack.c.b16 %v2585, %v2577
    %v4554 = vpack.c.b16 %v2586, %v2578
    %v4555 = vpack.c.b16 %v2587, %v2579
    %v4556 = vpack.c.b16 %v2588, %v2580
    %v4557 = vpack.c.b16 %v2589, %v2581
    %v4558 = vpack.c.b16 %v2590, %v2582
    %v4559 = vpack.c.b16 %v2591, %v2583
    %v4560 = vpack.c.b16 %v2592, %v2584
    %v4561 = vpack.c.b16 %v2601, %v2593
    %v4562 = vpack.c.b16 %v2602, %v2594
    %v4563 = vpack.c.b16 %v2603, %v2595
    %v4564 = vpack.c.b16 %v2604, %v2596
    %v4565 = vpack.c.b16 %v2605, %v2597
    %v4566 = vpack.c.b16 %v2606, %v2598
    %v4567 = vpack.c.b16 %v2607, %v2599
    %v4568 = vpack.c.b16 %v2608, %v2600
    %v4569 = vpack.c.b16 %v2617, %v2609
    %v4570 = vpack.c.b16 %v2618, %v2610
    %v4571 = vpack.c.b16 %v2619, %v2611
    %v4572 = vpack.c.b16 %v2620, %v2612
    %v4573 = vpack.c.b16 %v2621, %v2613
    %v4574 = vpack.c.b16 %v2622, %v2614
    %v4575 = vpack.c.b16 %v2623, %v2615
    %v4576 = vpack.c.b16 %v2624, %v2616
    %v4577 = vpack.c.b16 %v2633, %v2625
    %v4578 = vpack.c.b16 %v2634, %v2626
    %v4579 = vpack.c.b16 %v2635, %v2627
    %v4580 = vpack.c.b16 %v2636, %v2628
    %v4581 = vpack.c.b16 %v2637, %v2629
    %v4582 = vpack.c.b16 %v2638, %v2630
    %v4583 = vpack.c.b16 %v2639, %v2631
    %v4584 = vpack.c.b16 %v2640, %v2632
    %v4585 = vpack.c.b16 %v2649, %v2641
    %v4586 = vpack.c.b16 %v2650, %v2642
    %v4587 = vpack.c.b16 %v2651, %v2643
    %v4588 = vpack.c.b16 %v2652, %v2644
    %v4589 = vpack.c.b16 %v2653, %v2645
    %v4590 = vpack.c.b16 %v2654, %v2646
    %v4591 = vpack.c.b16 %v2655, %v2647
    %v4592 = vpack.c.b16 %v2656, %v2648
    %v4593 = vpack.c.b16 %v2665, %v2657
    %v4594 = vpack.c.b16 %v2666, %v2658
    %v4595 = vpack.c.b16 %v2667, %v2659
    %v4596 = vpack.c.b16 %v2668, %v2660
    %v4597 = vpack.c.b16 %v2669, %v2661
    %v4598 = vpack.c.b16 %v2670, %v2662
    %v4599 = vpack.c.b16 %v2671, %v2663
    %v4600 = vpack.c.b16 %v2672, %v2664
    %v4601 = vpack.c.b16 %v2681, %v2673
    %v4602 = vpack.c.b16 %v2682, %v2674
    %v4603 = vpack.c.b16 %v2683, %v2675
    %v4604 = vpack.c.b16 %v2684, %v2676
    %v4605 = vpack.c.b16 %v2685, %v2677
    %v4606 = vpack.c.b16 %v2686, %v2678
    %v4607 = vpack.c.b16 %v2687, %v2679
    %v4608 = vpack.c.b16 %v2688, %v2680
    %v4609 = vpack.c.b16 %v2697, %v2689
    %v4610 = vpack.c.b16 %v2698, %v2690
    %v4611 = vpack.c.b16 %v2699, %v2691
    %v4612 = vpack.c.b16 %v2700, %v2692
    %v4613 = vpack.c.b16 %v2701, %v2693
    %v4614 = vpack.c.b16 %v2702, %v2694
    %v4615 = vpack.c.b16 %v2703, %v2695
    %v4616 = vpack.c.b16 %v2704, %v2696
    %v4617 = vpack.c.b16 %v2713, %v2705
    %v4618 = vpack.c.b16 %v2714, %v2706
    %v4619 = vpack.c.b16 %v2715, %v2707
    %v4620 = vpack.c.b16 %v2716, %v2708
    %v4621 = vpack.c.b16 %v2717, %v2709
    %v4622 = vpack.c.b16 %v2718, %v2710
    %v4623 = vpack.c.b16 %v2719, %v2711
    %v4624 = vpack.c.b16 %v2720, %v2712
    %v4625 = vpack.c.b16 %v2729, %v2721
    %v4626 = vpack.c.b16 %v2730, %v2722
    %v4627 = vpack.c.b16 %v2731, %v2723
    %v4628 = vpack.c.b16 %v2732, %v2724
    %v4629 = vpack.c.b16 %v2733, %v2725
    %v4630 = vpack.c.b16 %v2734, %v2726
    %v4631 = vpack.c.b16 %v2735, %v2727
    %v4632 = vpack.c.b16 %v2736, %v2728
    %v4633 = vpack.c.b16 %v2745, %v2737
    %v4634 = vpack.c.b16 %v2746, %v2738
    %v4635 = vpack.c.b16 %v2747, %v2739
    %v4636 = vpack.c.b16 %v2748, %v2740
    %v4637 = vpack.c.b16 %v2749, %v2741
    %v4638 = vpack.c.b16 %v2750, %v2742
    %v4639 = vpack.c.b16 %v2751, %v2743
    %v4640 = vpack.c.b16 %v2752, %v2744
    %v4641 = vpack.c.b16 %v2761, %v2753
    %v4642 = vpack.c.b16 %v2762, %v2754
    %v4643 = vpack.c.b16 %v2763, %v2755
    %v4644 = vpack.c.b16 %v2764, %v2756
    %v4645 = vpack.c.b16 %v2765, %v2757
    %v4646 = vpack.c.b16 %v2766, %v2758
    %v4647 = vpack.c.b16 %v2767, %v2759
    %v4648 = vpack.c.b16 %v2768, %v2760
    %v4649 = vpack.c.b16 %v2777, %v2769
    %v4650 = vpack.c.b16 %v2778, %v2770
    %v4651 = vpack.c.b16 %v2779, %v2771
    %v4652 = vpack.c.b16 %v2780, %v2772
    %v4653 = vpack.c.b16 %v2781, %v2773
    %v4654 = vpack.c.b16 %v2782, %v2774
    %v4655 = vpack.c.b16 %v2783, %v2775
    %v4656 = vpack.c.b16 %v2784, %v2776
    %v4657 = vpack.c.b16 %v2793, %v2785
    %v4658 = vpack.c.b16 %v2794, %v2786
    %v4659 = vpack.c.b16 %v2795, %v2787
    %v4660 = vpack.c.b16 %v2796, %v2788
    %v4661 = vpack.c.b16 %v2797, %v2789
    %v4662 = vpack.c.b16 %v2798, %v2790
    %v4663 = vpack.c.b16 %v2799, %v2791
    %v4664 = vpack.c.b16 %v2800, %v2792
    %v4665 = vpack.c.b16 %v2809, %v2801
    %v4666 = vpack.c.b16 %v2810, %v2802
    %v4667 = vpack.c.b16 %v2811, %v2803
    %v4668 = vpack.c.b16 %v2812, %v2804
    %v4669 = vpack.c.b16 %v2813, %v2805
    %v4670 = vpack.c.b16 %v2814, %v2806
    %v4671 = vpack.c.b16 %v2815, %v2807
    %v4672 = vpack.c.b16 %v2816, %v2808
    %v4673 = vpack.c.b16 %v2825, %v2817
    %v4674 = vpack.c.b16 %v2826, %v2818
    %v4675 = vpack.c.b16 %v2827, %v2819
    %v4676 = vpack.c.b16 %v2828, %v2820
    %v4677 = vpack.c.b16 %v2829, %v2821
    %v4678 = vpack.c.b16 %v2830, %v2822
    %v4679 = vpack.c.b16 %v2831, %v2823
    %v4680 = vpack.c.b16 %v2832, %v2824
    %v4681 = vpack.c.b16 %v2841, %v2833
    %v4682 = vpack.c.b16 %v2842, %v2834
    %v4683 = vpack.c.b16 %v2843, %v2835
    %v4684 = vpack.c.b16 %v2844, %v2836
    %v4685 = vpack.c.b16 %v2845, %v2837
    %v4686 = vpack.c.b16 %v2846, %v2838
    %v4687 = vpack.c.b16 %v2847, %v2839
    %v4688 = vpack.c.b16 %v2848, %v2840
    %v4689 = vpack.c.b16 %v2857, %v2849
    %v4690 = vpack.c.b16 %v2858, %v2850
    %v4691 = vpack.c.b16 %v2859, %v2851
    %v4692 = vpack.c.b16 %v2860, %v2852
    %v4693 = vpack.c.b16 %v2861, %v2853
    %v4694 = vpack.c.b16 %v2862, %v2854
    %v4695 = vpack.c.b16 %v2863, %v2855
    %v4696 = vpack.c.b16 %v2864, %v2856
    %v4697 = vpack.c.b16 %v2873, %v2865
    %v4698 = vpack.c.b16 %v2874, %v2866
    %v4699 = vpack.c.b16 %v2875, %v2867
    %v4700 = vpack.c.b16 %v2876, %v2868
    %v4701 = vpack.c.b16 %v2877, %v2869
    %v4702 = vpack.c.b16 %v2878, %v2870
    %v4703 = vpack.c.b16 %v2879, %v2871
    %v4704 = vpack.c.b16 %v2880, %v2872
    %v4705 = vpack.c.b16 %v2889, %v2881
    %v4706 = vpack.c.b16 %v2890, %v2882
    %v4707 = vpack.c.b16 %v2891, %v2883
    %v4708 = vpack.c.b16 %v2892, %v2884
    %v4709 = vpack.c.b16 %v2893, %v2885
    %v4710 = vpack.c.b16 %v2894, %v2886
    %v4711 = vpack.c.b16 %v2895, %v2887
    %v4712 = vpack.c.b16 %v2896, %v2888
    %v4713 = vpack.c.b16 %v2905, %v2897
    %v4714 = vpack.c.b16 %v2906, %v2898
    %v4715 = vpack.c.b16 %v2907, %v2899
    %v4716 = vpack.c.b16 %v2908, %v2900
    %v4717 = vpack.c.b16 %v2909, %v2901
    %v4718 = vpack.c.b16 %v2910, %v2902
    %v4719 = vpack.c.b16 %v2911, %v2903
    %v4720 = vpack.c.b16 %v2912, %v2904
    %v4721 = vpack.c.b16 %v2921, %v2913
    %v4722 = vpack.c.b16 %v2922, %v2914
    %v4723 = vpack.c.b16 %v2923, %v2915
    %v4724 = vpack.c.b16 %v2924, %v2916
    %v4725 = vpack.c.b16 %v2925, %v2917
    %v4726 = vpack.c.b16 %v2926, %v2918
    %v4727 = vpack.c.b16 %v2927, %v2919
    %v4728 = vpack.c.b16 %v2928, %v2920
    %v4729 = vpack.c.b16 %v2937, %v2929
    %v4730 = vpack.c.b16 %v2938, %v2930
    %v4731 = vpack.c.b16 %v2939, %v2931
    %v4732 = vpack.c.b16 %v2940, %v2932
    %v4733 = vpack.c.b16 %v2941, %v2933
    %v4734 = vpack.c.b16 %v2942, %v2934
    %v4735 = vpack.c.b16 %v2943, %v2935
    %v4736 = vpack.c.b16 %v2944, %v2936
    %v4737 = vpack.c.b16 %v2953, %v2945
    %v4738 = vpack.c.b16 %v2954, %v2946
    %v4739 = vpack.c.b16 %v2955, %v2947
    %v4740 = vpack.c.b16 %v2956, %v2948
    %v4741 = vpack.c.b16 %v2957, %v2949
    %v4742 = vpack.c.b16 %v2958, %v2950
    %v4743 = vpack.c.b16 %v2959, %v2951
    %v4744 = vpack.c.b16 %v2960, %v2952
    %v4745 = vpack.c.b16 %v2969, %v2961
    %v4746 = vpack.c.b16 %v2970, %v2962
    %v4747 = vpack.c.b16 %v2971, %v2963
    %v4748 = vpack.c.b16 %v2972, %v2964
    %v4749 = vpack.c.b16 %v2973, %v2965
    %v4750 = vpack.c.b16 %v2974, %v2966
    %v4751 = vpack.c.b16 %v2975, %v2967
    %v4752 = vpack.c.b16 %v2976, %v2968
    %v4753 = vpack.c.b16 %v2985, %v2977
    %v4754 = vpack.c.b16 %v2986, %v2978
    %v4755 = vpack.c.b16 %v2987, %v2979
    %v4756 = vpack.c.b16 %v2988, %v2980
    %v4757 = vpack.c.b16 %v2989, %v2981
    %v4758 = vpack.c.b16 %v2990, %v2982
    %v4759 = vpack.c.b16 %v2991, %v2983
    %v4760 = vpack.c.b16 %v2992, %v2984
    %v4761 = vpack.c.b16 %v3001, %v2993
    %v4762 = vpack.c.b16 %v3002, %v2994
    %v4763 = vpack.c.b16 %v3003, %v2995
    %v4764 = vpack.c.b16 %v3004, %v2996
    %v4765 = vpack.c.b16 %v3005, %v2997
    %v4766 = vpack.c.b16 %v3006, %v2998
    %v4767 = vpack.c.b16 %v3007, %v2999
    %v4768 = vpack.c.b16 %v3008, %v3000
    %v4769 = vpack.c.b16 %v3017, %v3009
    %v4770 = vpack.c.b16 %v3018, %v3010
    %v4771 = vpack.c.b16 %v3019, %v3011
    %v4772 = vpack.c.b16 %v3020, %v3012
    %v4773 = vpack.c.b16 %v3021, %v3013
    %v4774 = vpack.c.b16 %v3022, %v3014
    %v4775 = vpack.c.b16 %v3023, %v3015
    %v4776 = vpack.c.b16 %v3024, %v3016
    %v4777 = vpack.c.b16 %v3033, %v3025
    %v4778 = vpack.c.b16 %v3034, %v3026
    %v4779 = vpack.c.b16 %v3035, %v3027
    %v4780 = vpack.c.b16 %v3036, %v3028
    %v4781 = vpack.c.b16 %v3037, %v3029
    %v4782 = vpack.c.b16 %v3038, %v3030
    %v4783 = vpack.c.b16 %v3039, %v3031
    %v4784 = vpack.c.b16 %v3040, %v3032
    %v4785 = vpack.c.b16 %v3049, %v3041
    %v4786 = vpack.c.b16 %v3050, %v3042
    %v4787 = vpack.c.b16 %v3051, %v3043
    %v4788 = vpack.c.b16 %v3052, %v3044
    %v4789 = vpack.c.b16 %v3053, %v3045
    %v4790 = vpack.c.b16 %v3054, %v3046
    %v4791 = vpack.c.b16 %v3055, %v3047
    %v4792 = vpack.c.b16 %v3056, %v3048
    %v4793 = vpack.c.b16 %v3065, %v3057
    %v4794 = vpack.c.b16 %v3066, %v3058
    %v4795 = vpack.c.b16 %v3067, %v3059
    %v4796 = vpack.c.b16 %v3068, %v3060
    %v4797 = vpack.c.b16 %v3069, %v3061
    %v4798 = vpack.c.b16 %v3070, %v3062
    %v4799 = vpack.c.b16 %v3071, %v3063
    %v4800 = vpack.c.b16 %v3072, %v3064
    %v4801 = vpack.c.b16 %v3081, %v3073
    %v4802 = vpack.c.b16 %v3082, %v3074
    %v4803 = vpack.c.b16 %v3083, %v3075
    %v4804 = vpack.c.b16 %v3084, %v3076
    %v4805 = vpack.c.b16 %v3085, %v3077
    %v4806 = vpack.c.b16 %v3086, %v3078
    %v4807 = vpack.c.b16 %v3087, %v3079
    %v4808 = vpack.c.b16 %v3088, %v3080
    %v4809 = vpack.c.b16 %v3097, %v3089
    %v4810 = vpack.c.b16 %v3098, %v3090
    %v4811 = vpack.c.b16 %v3099, %v3091
    %v4812 = vpack.c.b16 %v3100, %v3092
    %v4813 = vpack.c.b16 %v3101, %v3093
    %v4814 = vpack.c.b16 %v3102, %v3094
    %v4815 = vpack.c.b16 %v3103, %v3095
    %v4816 = vpack.c.b16 %v3104, %v3096
    %v4817 = vpack.c.b16 %v3113, %v3105
    %v4818 = vpack.c.b16 %v3114, %v3106
    %v4819 = vpack.c.b16 %v3115, %v3107
    %v4820 = vpack.c.b16 %v3116, %v3108
    %v4821 = vpack.c.b16 %v3117, %v3109
    %v4822 = vpack.c.b16 %v3118, %v3110
    %v4823 = vpack.c.b16 %v3119, %v3111
    %v4824 = vpack.c.b16 %v3120, %v3112
    %v4825 = vpack.c.b16 %v3129, %v3121
    %v4826 = vpack.c.b16 %v3130, %v3122
    %v4827 = vpack.c.b16 %v3131, %v3123
    %v4828 = vpack.c.b16 %v3132, %v3124
    %v4829 = vpack.c.b16 %v3133, %v3125
    %v4830 = vpack.c.b16 %v3134, %v3126
    %v4831 = vpack.c.b16 %v3135, %v3127
    %v4832 = vpack.c.b16 %v3136, %v3128
    %v4833 = vpack.c.b16 %v3145, %v3137
    %v4834 = vpack.c.b16 %v3146, %v3138
    %v4835 = vpack.c.b16 %v3147, %v3139
    %v4836 = vpack.c.b16 %v3148, %v3140
    %v4837 = vpack.c.b16 %v3149, %v3141
    %v4838 = vpack.c.b16 %v3150, %v3142
    %v4839 = vpack.c.b16 %v3151, %v3143
    %v4840 = vpack.c.b16 %v3152, %v3144
    %v4841 = vpack.c.b16 %v3161, %v3153
    %v4842 = vpack.c.b16 %v3162, %v3154
    %v4843 = vpack.c.b16 %v3163, %v3155
    %v4844 = vpack.c.b16 %v3164, %v3156
    %v4845 = vpack.c.b16 %v3165, %v3157
    %v4846 = vpack.c.b16 %v3166, %v3158
    %v4847 = vpack.c.b16 %v3167, %v3159
    %v4848 = vpack.c.b16 %v3168, %v3160
    %v4849 = vpack.c.b16 %v3177, %v3169
    %v4850 = vpack.c.b16 %v3178, %v3170
    %v4851 = vpack.c.b16 %v3179, %v3171
    %v4852 = vpack.c.b16 %v3180, %v3172
    %v4853 = vpack.c.b16 %v3181, %v3173
    %v4854 = vpack.c.b16 %v3182, %v3174
    %v4855 = vpack.c.b16 %v3183, %v3175
    %v4856 = vpack.c.b16 %v3184, %v3176
    %v4857 = vpack.c.b16 %v3193, %v3185
    %v4858 = vpack.c.b16 %v3194, %v3186
    %v4859 = vpack.c.b16 %v3195, %v3187
    %v4860 = vpack.c.b16 %v3196, %v3188
    %v4861 = vpack.c.b16 %v3197, %v3189
    %v4862 = vpack.c.b16 %v3198, %v3190
    %v4863 = vpack.c.b16 %v3199, %v3191
    %v4864 = vpack.c.b16 %v3200, %v3192
    %v4865 = vpack.c.b16 %v3209, %v3201
    %v4866 = vpack.c.b16 %v3210, %v3202
    %v4867 = vpack.c.b16 %v3211, %v3203
    %v4868 = vpack.c.b16 %v3212, %v3204
    %v4869 = vpack.c.b16 %v3213, %v3205
    %v4870 = vpack.c.b16 %v3214, %v3206
    %v4871 = vpack.c.b16 %v3215, %v3207
    %v4872 = vpack.c.b16 %v3216, %v3208
    %v4873 = vpack.c.b16 %v3225, %v3217
    %v4874 = vpack.c.b16 %v3226, %v3218
    %v4875 = vpack.c.b16 %v3227, %v3219
    %v4876 = vpack.c.b16 %v3228, %v3220
    %v4877 = vpack.c.b16 %v3229, %v3221
    %v4878 = vpack.c.b16 %v3230, %v3222
    %v4879 = vpack.c.b16 %v3231, %v3223
    %v4880 = vpack.c.b16 %v3232, %v3224
    %v4881 = vpack.c.b16 %v3241, %v3233
    %v4882 = vpack.c.b16 %v3242, %v3234
    %v4883 = vpack.c.b16 %v3243, %v3235
    %v4884 = vpack.c.b16 %v3244, %v3236
    %v4885 = vpack.c.b16 %v3245, %v3237
    %v4886 = vpack.c.b16 %v3246, %v3238
    %v4887 = vpack.c.b16 %v3247, %v3239
    %v4888 = vpack.c.b16 %v3248, %v3240
    %v4889 = vpack.c.b16 %v3257, %v3249
    %v4890 = vpack.c.b16 %v3258, %v3250
    %v4891 = vpack.c.b16 %v3259, %v3251
    %v4892 = vpack.c.b16 %v3260, %v3252
    %v4893 = vpack.c.b16 %v3261, %v3253
    %v4894 = vpack.c.b16 %v3262, %v3254
    %v4895 = vpack.c.b16 %v3263, %v3255
    %v4896 = vpack.c.b16 %v3264, %v3256
    %v4897 = vpack.c.b16 %v3273, %v3265
    %v4898 = vpack.c.b16 %v3274, %v3266
    %v4899 = vpack.c.b16 %v3275, %v3267
    %v4900 = vpack.c.b16 %v3276, %v3268
    %v4901 = vpack.c.b16 %v3277, %v3269
    %v4902 = vpack.c.b16 %v3278, %v3270
    %v4903 = vpack.c.b16 %v3279, %v3271
    %v4904 = vpack.c.b16 %v3280, %v3272
    %v4905 = vpack.c.b16 %v3289, %v3281
    %v4906 = vpack.c.b16 %v3290, %v3282
    %v4907 = vpack.c.b16 %v3291, %v3283
    %v4908 = vpack.c.b16 %v3292, %v3284
    %v4909 = vpack.c.b16 %v3293, %v3285
    %v4910 = vpack.c.b16 %v3294, %v3286
    %v4911 = vpack.c.b16 %v3295, %v3287
    %v4912 = vpack.c.b16 %v3296, %v3288
    %v4913 = vpack.c.b16 %v3305, %v3297
    %v4914 = vpack.c.b16 %v3306, %v3298
    %v4915 = vpack.c.b16 %v3307, %v3299
    %v4916 = vpack.c.b16 %v3308, %v3300
    %v4917 = vpack.c.b16 %v3309, %v3301
    %v4918 = vpack.c.b16 %v3310, %v3302
    %v4919 = vpack.c.b16 %v3311, %v3303
    %v4920 = vpack.c.b16 %v3312, %v3304
    %v4921 = vpack.c.b16 %v3321, %v3313
    %v4922 = vpack.c.b16 %v3322, %v3314
    %v4923 = vpack.c.b16 %v3323, %v3315
    %v4924 = vpack.c.b16 %v3324, %v3316
    %v4925 = vpack.c.b16 %v3325, %v3317
    %v4926 = vpack.c.b16 %v3326, %v3318
    %v4927 = vpack.c.b16 %v3327, %v3319
    %v4928 = vpack.c.b16 %v3328, %v3320
    %v4929 = vpack.c.b16 %v3337, %v3329
    %v4930 = vpack.c.b16 %v3338, %v3330
    %v4931 = vpack.c.b16 %v3339, %v3331
    %v4932 = vpack.c.b16 %v3340, %v3332
    %v4933 = vpack.c.b16 %v3341, %v3333
    %v4934 = vpack.c.b16 %v3342, %v3334
    %v4935 = vpack.c.b16 %v3343, %v3335
    %v4936 = vpack.c.b16 %v3344, %v3336
    %v4937 = vpack.c.b16 %v3353, %v3345
    %v4938 = vpack.c.b16 %v3354, %v3346
    %v4939 = vpack.c.b16 %v3355, %v3347
    %v4940 = vpack.c.b16 %v3356, %v3348
    %v4941 = vpack.c.b16 %v3357, %v3349
    %v4942 = vpack.c.b16 %v3358, %v3350
    %v4943 = vpack.c.b16 %v3359, %v3351
    %v4944 = vpack.c.b16 %v3360, %v3352
    %v4945 = vpack.c.b16 %v3369, %v3361
    %v4946 = vpack.c.b16 %v3370, %v3362
    %v4947 = vpack.c.b16 %v3371, %v3363
    %v4948 = vpack.c.b16 %v3372, %v3364
    %v4949 = vpack.c.b16 %v3373, %v3365
    %v4950 = vpack.c.b16 %v3374, %v3366
    %v4951 = vpack.c.b16 %v3375, %v3367
    %v4952 = vpack.c.b16 %v3376, %v3368
    %v4953 = vpack.c.b16 %v3385, %v3377
    %v4954 = vpack.c.b16 %v3386, %v3378
    %v4955 = vpack.c.b16 %v3387, %v3379
    %v4956 = vpack.c.b16 %v3388, %v3380
    %v4957 = vpack.c.b16 %v3389, %v3381
    %v4958 = vpack.c.b16 %v3390, %v3382
    %v4959 = vpack.c.b16 %v3391, %v3383
    %v4960 = vpack.c.b16 %v3392, %v3384
    %v4961 = vpack.c.b16 %v3401, %v3393
    %v4962 = vpack.c.b16 %v3402, %v3394
    %v4963 = vpack.c.b16 %v3403, %v3395
    %v4964 = vpack.c.b16 %v3404, %v3396
    %v4965 = vpack.c.b16 %v3405, %v3397
    %v4966 = vpack.c.b16 %v3406, %v3398
    %v4967 = vpack.c.b16 %v3407, %v3399
    %v4968 = vpack.c.b16 %v3408, %v3400
    %v4969 = vpack.c.b16 %v3417, %v3409
    %v4970 = vpack.c.b16 %v3418, %v3410
    %v4971 = vpack.c.b16 %v3419, %v3411
    %v4972 = vpack.c.b16 %v3420, %v3412
    %v4973 = vpack.c.b16 %v3421, %v3413
    %v4974 = vpack.c.b16 %v3422, %v3414
    %v4975 = vpack.c.b16 %v3423, %v3415
    %v4976 = vpack.c.b16 %v3424, %v3416
    %v4977 = vpack.c.b16 %v3433, %v3425
    %v4978 = vpack.c.b16 %v3434, %v3426
    %v4979 = vpack.c.b16 %v3435, %v3427
    %v4980 = vpack.c.b16 %v3436, %v3428
    %v4981 = vpack.c.b16 %v3437, %v3429
    %v4982 = vpack.c.b16 %v3438, %v3430
    %v4983 = vpack.c.b16 %v3439, %v3431
    %v4984 = vpack.c.b16 %v3440, %v3432
    %v4985 = vpack.c.b16 %v3449, %v3441
    %v4986 = vpack.c.b16 %v3450, %v3442
    %v4987 = vpack.c.b16 %v3451, %v3443
    %v4988 = vpack.c.b16 %v3452, %v3444
    %v4989 = vpack.c.b16 %v3453, %v3445
    %v4990 = vpack.c.b16 %v3454, %v3446
    %v4991 = vpack.c.b16 %v3455, %v3447
    %v4992 = vpack.c.b16 %v3456, %v3448
    %v4993 = vpack.c.b16 %v3465, %v3457
    %v4994 = vpack.c.b16 %v3466, %v3458
    %v4995 = vpack.c.b16 %v3467, %v3459
    %v4996 = vpack.c.b16 %v3468, %v3460
    %v4997 = vpack.c.b16 %v3469, %v3461
    %v4998 = vpack.c.b16 %v3470, %v3462
    %v4999 = vpack.c.b16 %v3471, %v3463
    %v5000 = vpack.c.b16 %v3472, %v3464
    %v5001 = vpack.c.b16 %v3481, %v3473
    %v5002 = vpack.c.b16 %v3482, %v3474
    %v5003 = vpack.c.b16 %v3483, %v3475
    %v5004 = vpack.c.b16 %v3484, %v3476
    %v5005 = vpack.c.b16 %v3485, %v3477
    %v5006 = vpack.c.b16 %v3486, %v3478
    %v5007 = vpack.c.b16 %v3487, %v3479
    %v5008 = vpack.c.b16 %v3488, %v3480
    %v5009 = vpack.c.b16 %v3497, %v3489
    %v5010 = vpack.c.b16 %v3498, %v3490
    %v5011 = vpack.c.b16 %v3499, %v3491
    %v5012 = vpack.c.b16 %v3500, %v3492
    %v5013 = vpack.c.b16 %v3501, %v3493
    %v5014 = vpack.c.b16 %v3502, %v3494
    %v5015 = vpack.c.b16 %v3503, %v3495
    %v5016 = vpack.c.b16 %v3504, %v3496
    %v5017 = vpack.c.b16 %v3513, %v3505
    %v5018 = vpack.c.b16 %v3514, %v3506
    %v5019 = vpack.c.b16 %v3515, %v3507
    %v5020 = vpack.c.b16 %v3516, %v3508
    %v5021 = vpack.c.b16 %v3517, %v3509
    %v5022 = vpack.c.b16 %v3518, %v3510
    %v5023 = vpack.c.b16 %v3519, %v3511
    %v5024 = vpack.c.b16 %v3520, %v3512
    %v5025 = vpack.c.b16 %v3529, %v3521
    %v5026 = vpack.c.b16 %v3530, %v3522
    %v5027 = vpack.c.b16 %v3531, %v3523
    %v5028 = vpack.c.b16 %v3532, %v3524
    %v5029 = vpack.c.b16 %v3533, %v3525
    %v5030 = vpack.c.b16 %v3534, %v3526
    %v5031 = vpack.c.b16 %v3535, %v3527
    %v5032 = vpack.c.b16 %v3536, %v3528
    %v5033 = vpack.c.b16 %v3545, %v3537
    %v5034 = vpack.c.b16 %v3546, %v3538
    %v5035 = vpack.c.b16 %v3547, %v3539
    %v5036 = vpack.c.b16 %v3548, %v3540
    %v5037 = vpack.c.b16 %v3549, %v3541
    %v5038 = vpack.c.b16 %v3550, %v3542
    %v5039 = vpack.c.b16 %v3551, %v3543
    %v5040 = vpack.c.b16 %v3552, %v3544
    %v5041 = vpack.c.b16 %v3561, %v3553
    %v5042 = vpack.c.b16 %v3562, %v3554
    %v5043 = vpack.c.b16 %v3563, %v3555
    %v5044 = vpack.c.b16 %v3564, %v3556
    %v5045 = vpack.c.b16 %v3565, %v3557
    %v5046 = vpack.c.b16 %v3566, %v3558
    %v5047 = vpack.c.b16 %v3567, %v3559
    %v5048 = vpack.c.b16 %v3568, %v3560
    %v5049 = vpack.c.b16 %v3577, %v3569
    %v5050 = vpack.c.b16 %v3578, %v3570
    %v5051 = vpack.c.b16 %v3579, %v3571
    %v5052 = vpack.c.b16 %v3580, %v3572
    %v5053 = vpack.c.b16 %v3581, %v3573
    %v5054 = vpack.c.b16 %v3582, %v3574
    %v5055 = vpack.c.b16 %v3583, %v3575
    %v5056 = vpack.c.b16 %v3584, %v3576
    %v5057 = vpack.c.b16 %v3593, %v3585
    %v5058 = vpack.c.b16 %v3594, %v3586
    %v5059 = vpack.c.b16 %v3595, %v3587
    %v5060 = vpack.c.b16 %v3596, %v3588
    %v5061 = vpack.c.b16 %v3597, %v3589
    %v5062 = vpack.c.b16 %v3598, %v3590
    %v5063 = vpack.c.b16 %v3599, %v3591
    %v5064 = vpack.c.b16 %v3600, %v3592
    %v5065 = vpack.c.b16 %v3609, %v3601
    %v5066 = vpack.c.b16 %v3610, %v3602
    %v5067 = vpack.c.b16 %v3611, %v3603
    %v5068 = vpack.c.b16 %v3612, %v3604
    %v5069 = vpack.c.b16 %v3613, %v3605
    %v5070 = vpack.c.b16 %v3614, %v3606
    %v5071 = vpack.c.b16 %v3615, %v3607
    %v5072 = vpack.c.b16 %v3616, %v3608
    %v5073 = vpack.c.b16 %v3625, %v3617
    %v5074 = vpack.c.b16 %v3626, %v3618
    %v5075 = vpack.c.b16 %v3627, %v3619
    %v5076 = vpack.c.b16 %v3628, %v3620
    %v5077 = vpack.c.b16 %v3629, %v3621
    %v5078 = vpack.c.b16 %v3630, %v3622
    %v5079 = vpack.c.b16 %v3631, %v3623
    %v5080 = vpack.c.b16 %v3632, %v3624
    %v5081 = vpack.c.b16 %v3641, %v3633
    %v5082 = vpack.c.b16 %v3642, %v3634
    %v5083 = vpack.c.b16 %v3643, %v3635
    %v5084 = vpack.c.b16 %v3644, %v3636
    %v5085 = vpack.c.b16 %v3645, %v3637
    %v5086 = vpack.c.b16 %v3646, %v3638
    %v5087 = vpack.c.b16 %v3647, %v3639
    %v5088 = vpack.c.b16 %v3648, %v3640
    %v5089 = vpack.c.b16 %v3657, %v3649
    %v5090 = vpack.c.b16 %v3658, %v3650
    %v5091 = vpack.c.b16 %v3659, %v3651
    %v5092 = vpack.c.b16 %v3660, %v3652
    %v5093 = vpack.c.b16 %v3661, %v3653
    %v5094 = vpack.c.b16 %v3662, %v3654
    %v5095 = vpack.c.b16 %v3663, %v3655
    %v5096 = vpack.c.b16 %v3664, %v3656
    %v5097 = vpack.c.b16 %v3673, %v3665
    %v5098 = vpack.c.b16 %v3674, %v3666
    %v5099 = vpack.c.b16 %v3675, %v3667
    %v5100 = vpack.c.b16 %v3676, %v3668
    %v5101 = vpack.c.b16 %v3677, %v3669
    %v5102 = vpack.c.b16 %v3678, %v3670
    %v5103 = vpack.c.b16 %v3679, %v3671
    %v5104 = vpack.c.b16 %v3680, %v3672
    %v5105 = vpack.c.b16 %v3689, %v3681
    %v5106 = vpack.c.b16 %v3690, %v3682
    %v5107 = vpack.c.b16 %v3691, %v3683
    %v5108 = vpack.c.b16 %v3692, %v3684
    %v5109 = vpack.c.b16 %v3693, %v3685
    %v5110 = vpack.c.b16 %v3694, %v3686
    %v5111 = vpack.c.b16 %v3695, %v3687
    %v5112 = vpack.c.b16 %v3696, %v3688
    %v5113 = vpack.c.b16 %v3705, %v3697
    %v5114 = vpack.c.b16 %v3706, %v3698
    %v5115 = vpack.c.b16 %v3707, %v3699
    %v5116 = vpack.c.b16 %v3708, %v3700
    %v5117 = vpack.c.b16 %v3709, %v3701
    %v5118 = vpack.c.b16 %v3710, %v3702
    %v5119 = vpack.c.b16 %v3711, %v3703
    %v5120 = vpack.c.b16 %v3712, %v3704
    %v5121 = vpack.c.b16 %v3721, %v3713
    %v5122 = vpack.c.b16 %v3722, %v3714
    %v5123 = vpack.c.b16 %v3723, %v3715
    %v5124 = vpack.c.b16 %v3724, %v3716
    %v5125 = vpack.c.b16 %v3725, %v3717
    %v5126 = vpack.c.b16 %v3726, %v3718
    %v5127 = vpack.c.b16 %v3727, %v3719
    %v5128 = vpack.c.b16 %v3728, %v3720
    %v5129 = vpack.c.b16 %v3737, %v3729
    %v5130 = vpack.c.b16 %v3738, %v3730
    %v5131 = vpack.c.b16 %v3739, %v3731
    %v5132 = vpack.c.b16 %v3740, %v3732
    %v5133 = vpack.c.b16 %v3741, %v3733
    %v5134 = vpack.c.b16 %v3742, %v3734
    %v5135 = vpack.c.b16 %v3743, %v3735
    %v5136 = vpack.c.b16 %v3744, %v3736
    %v5137 = vpack.c.b16 %v3753, %v3745
    %v5138 = vpack.c.b16 %v3754, %v3746
    %v5139 = vpack.c.b16 %v3755, %v3747
    %v5140 = vpack.c.b16 %v3756, %v3748
    %v5141 = vpack.c.b16 %v3757, %v3749
    %v5142 = vpack.c.b16 %v3758, %v3750
    %v5143 = vpack.c.b16 %v3759, %v3751
    %v5144 = vpack.c.b16 %v3760, %v3752
    %v5145 = vpack.c.b16 %v3769, %v3761
    %v5146 = vpack.c.b16 %v3770, %v3762
    %v5147 = vpack.c.b16 %v3771, %v3763
    %v5148 = vpack.c.b16 %v3772, %v3764
    %v5149 = vpack.c.b16 %v3773, %v3765
    %v5150 = vpack.c.b16 %v3774, %v3766
    %v5151 = vpack.c.b16 %v3775, %v3767
    %v5152 = vpack.c.b16 %v3776, %v3768
    %v5153 = vpack.c.b16 %v3785, %v3777
    %v5154 = vpack.c.b16 %v3786, %v3778
    %v5155 = vpack.c.b16 %v3787, %v3779
    %v5156 = vpack.c.b16 %v3788, %v3780
    %v5157 = vpack.c.b16 %v3789, %v3781
    %v5158 = vpack.c.b16 %v3790, %v3782
    %v5159 = vpack.c.b16 %v3791, %v3783
    %v5160 = vpack.c.b16 %v3792, %v3784
    %v5161 = vpack.c.b16 %v3801, %v3793
    %v5162 = vpack.c.b16 %v3802, %v3794
    %v5163 = vpack.c.b16 %v3803, %v3795
    %v5164 = vpack.c.b16 %v3804, %v3796
    %v5165 = vpack.c.b16 %v3805, %v3797
    %v5166 = vpack.c.b16 %v3806, %v3798
    %v5167 = vpack.c.b16 %v3807, %v3799
    %v5168 = vpack.c.b16 %v3808, %v3800
    %v5169 = vpack.c.b16 %v3817, %v3809
    %v5170 = vpack.c.b16 %v3818, %v3810
    %v5171 = vpack.c.b16 %v3819, %v3811
    %v5172 = vpack.c.b16 %v3820, %v3812
    %v5173 = vpack.c.b16 %v3821, %v3813
    %v5174 = vpack.c.b16 %v3822, %v3814
    %v5175 = vpack.c.b16 %v3823, %v3815
    %v5176 = vpack.c.b16 %v3824, %v3816
    %v5177 = vpack.c.b16 %v3833, %v3825
    %v5178 = vpack.c.b16 %v3834, %v3826
    %v5179 = vpack.c.b16 %v3835, %v3827
    %v5180 = vpack.c.b16 %v3836, %v3828
    %v5181 = vpack.c.b16 %v3837, %v3829
    %v5182 = vpack.c.b16 %v3838, %v3830
    %v5183 = vpack.c.b16 %v3839, %v3831
    %v5184 = vpack.c.b16 %v3840, %v3832
    %v5185 = vpack.c.b16 %v3849, %v3841
    %v5186 = vpack.c.b16 %v3850, %v3842
    %v5187 = vpack.c.b16 %v3851, %v3843
    %v5188 = vpack.c.b16 %v3852, %v3844
    %v5189 = vpack.c.b16 %v3853, %v3845
    %v5190 = vpack.c.b16 %v3854, %v3846
    %v5191 = vpack.c.b16 %v3855, %v3847
    %v5192 = vpack.c.b16 %v3856, %v3848
    %v5193 = vpack.c.b16 %v3865, %v3857
    %v5194 = vpack.c.b16 %v3866, %v3858
    %v5195 = vpack.c.b16 %v3867, %v3859
    %v5196 = vpack.c.b16 %v3868, %v3860
    %v5197 = vpack.c.b16 %v3869, %v3861
    %v5198 = vpack.c.b16 %v3870, %v3862
    %v5199 = vpack.c.b16 %v3871, %v3863
    %v5200 = vpack.c.b16 %v3872, %v3864
    %v5201 = vpack.c.b16 %v3881, %v3873
    %v5202 = vpack.c.b16 %v3882, %v3874
    %v5203 = vpack.c.b16 %v3883, %v3875
    %v5204 = vpack.c.b16 %v3884, %v3876
    %v5205 = vpack.c.b16 %v3885, %v3877
    %v5206 = vpack.c.b16 %v3886, %v3878
    %v5207 = vpack.c.b16 %v3887, %v3879
    %v5208 = vpack.c.b16 %v3888, %v3880
    %v5209 = vpack.c.b16 %v3897, %v3889
    %v5210 = vpack.c.b16 %v3898, %v3890
    %v5211 = vpack.c.b16 %v3899, %v3891
    %v5212 = vpack.c.b16 %v3900, %v3892
    %v5213 = vpack.c.b16 %v3901, %v3893
    %v5214 = vpack.c.b16 %v3902, %v3894
    %v5215 = vpack.c.b16 %v3903, %v3895
    %v5216 = vpack.c.b16 %v3904, %v3896
    %v5217 = vpack.c.b16 %v3913, %v3905
    %v5218 = vpack.c.b16 %v3914, %v3906
    %v5219 = vpack.c.b16 %v3915, %v3907
    %v5220 = vpack.c.b16 %v3916, %v3908
    %v5221 = vpack.c.b16 %v3917, %v3909
    %v5222 = vpack.c.b16 %v3918, %v3910
    %v5223 = vpack.c.b16 %v3919, %v3911
    %v5224 = vpack.c.b16 %v3920, %v3912
    %v5225 = vpack.c.b16 %v3929, %v3921
    %v5226 = vpack.c.b16 %v3930, %v3922
    %v5227 = vpack.c.b16 %v3931, %v3923
    %v5228 = vpack.c.b16 %v3932, %v3924
    %v5229 = vpack.c.b16 %v3933, %v3925
    %v5230 = vpack.c.b16 %v3934, %v3926
    %v5231 = vpack.c.b16 %v3935, %v3927
    %v5232 = vpack.c.b16 %v3936, %v3928
    %v5233 = vpack.c.b16 %v3945, %v3937
    %v5234 = vpack.c.b16 %v3946, %v3938
    %v5235 = vpack.c.b16 %v3947, %v3939
    %v5236 = vpack.c.b16 %v3948, %v3940
    %v5237 = vpack.c.b16 %v3949, %v3941
    %v5238 = vpack.c.b16 %v3950, %v3942
    %v5239 = vpack.c.b16 %v3951, %v3943
    %v5240 = vpack.c.b16 %v3952, %v3944
    %v5241 = vpack.c.b16 %v3961, %v3953
    %v5242 = vpack.c.b16 %v3962, %v3954
    %v5243 = vpack.c.b16 %v3963, %v3955
    %v5244 = vpack.c.b16 %v3964, %v3956
    %v5245 = vpack.c.b16 %v3965, %v3957
    %v5246 = vpack.c.b16 %v3966, %v3958
    %v5247 = vpack.c.b16 %v3967, %v3959
    %v5248 = vpack.c.b16 %v3968, %v3960
    %v5249 = vpack.c.b16 %v3977, %v3969
    %v5250 = vpack.c.b16 %v3978, %v3970
    %v5251 = vpack.c.b16 %v3979, %v3971
    %v5252 = vpack.c.b16 %v3980, %v3972
    %v5253 = vpack.c.b16 %v3981, %v3973
    %v5254 = vpack.c.b16 %v3982, %v3974
    %v5255 = vpack.c.b16 %v3983, %v3975
    %v5256 = vpack.c.b16 %v3984, %v3976
    %v5257 = vpack.c.b16 %v3993, %v3985
    %v5258 = vpack.c.b16 %v3994, %v3986
    %v5259 = vpack.c.b16 %v3995, %v3987
    %v5260 = vpack.c.b16 %v3996, %v3988
    %v5261 = vpack.c.b16 %v3997, %v3989
    %v5262 = vpack.c.b16 %v3998, %v3990
    %v5263 = vpack.c.b16 %v3999, %v3991
    %v5264 = vpack.c.b16 %v4000, %v3992
    %v5265 = vpack.c.b16 %v4009, %v4001
    %v5266 = vpack.c.b16 %v4010, %v4002
    %v5267 = vpack.c.b16 %v4011, %v4003
    %v5268 = vpack.c.b16 %v4012, %v4004
    %v5269 = vpack.c.b16 %v4013, %v4005
    %v5270 = vpack.c.b16 %v4014, %v4006
    %v5271 = vpack.c.b16 %v4015, %v4007
    %v5272 = vpack.c.b16 %v4016, %v4008
    %v5273 = vpack.c.b16 %v4025, %v4017
    %v5274 = vpack.c.b16 %v4026, %v4018
    %v5275 = vpack.c.b16 %v4027, %v4019
    %v5276 = vpack.c.b16 %v4028, %v4020
    %v5277 = vpack.c.b16 %v4029, %v4021
    %v5278 = vpack.c.b16 %v4030, %v4022
    %v5279 = vpack.c.b16 %v4031, %v4023
    %v5280 = vpack.c.b16 %v4032, %v4024
    %v5281 = vpack.c.b16 %v4041, %v4033
    %v5282 = vpack.c.b16 %v4042, %v4034
    %v5283 = vpack.c.b16 %v4043, %v4035
    %v5284 = vpack.c.b16 %v4044, %v4036
    %v5285 = vpack.c.b16 %v4045, %v4037
    %v5286 = vpack.c.b16 %v4046, %v4038
    %v5287 = vpack.c.b16 %v4047, %v4039
    %v5288 = vpack.c.b16 %v4048, %v4040
    %v5289 = vpack.c.b16 %v4057, %v4049
    %v5290 = vpack.c.b16 %v4058, %v4050
    %v5291 = vpack.c.b16 %v4059, %v4051
    %v5292 = vpack.c.b16 %v4060, %v4052
    %v5293 = vpack.c.b16 %v4061, %v4053
    %v5294 = vpack.c.b16 %v4062, %v4054
    %v5295 = vpack.c.b16 %v4063, %v4055
    %v5296 = vpack.c.b16 %v4064, %v4056
    %v5297 = vpack.c.b16 %v4073, %v4065
    %v5298 = vpack.c.b16 %v4074, %v4066
    %v5299 = vpack.c.b16 %v4075, %v4067
    %v5300 = vpack.c.b16 %v4076, %v4068
    %v5301 = vpack.c.b16 %v4077, %v4069
    %v5302 = vpack.c.b16 %v4078, %v4070
    %v5303 = vpack.c.b16 %v4079, %v4071
    %v5304 = vpack.c.b16 %v4080, %v4072
    %v5305 = vpack.c.b16 %v4089, %v4081
    %v5306 = vpack.c.b16 %v4090, %v4082
    %v5307 = vpack.c.b16 %v4091, %v4083
    %v5308 = vpack.c.b16 %v4092, %v4084
    %v5309 = vpack.c.b16 %v4093, %v4085
    %v5310 = vpack.c.b16 %v4094, %v4086
    %v5311 = vpack.c.b16 %v4095, %v4087
    %v5312 = vpack.c.b16 %v4096, %v4088
    %v5313 = vpack.c.b16 %v4105, %v4097
    %v5314 = vpack.c.b16 %v4106, %v4098
    %v5315 = vpack.c.b16 %v4107, %v4099
    %v5316 = vpack.c.b16 %v4108, %v4100
    %v5317 = vpack.c.b16 %v4109, %v4101
    %v5318 = vpack.c.b16 %v4110, %v4102
    %v5319 = vpack.c.b16 %v4111, %v4103
    %v5320 = vpack.c.b16 %v4112, %v4104
    %v5321 = vpack.c.b16 %v4121, %v4113
    %v5322 = vpack.c.b16 %v4122, %v4114
    %v5323 = vpack.c.b16 %v4123, %v4115
    %v5324 = vpack.c.b16 %v4124, %v4116
    %v5325 = vpack.c.b16 %v4125, %v4117
    %v5326 = vpack.c.b16 %v4126, %v4118
    %v5327 = vpack.c.b16 %v4127, %v4119
    %v5328 = vpack.c.b16 %v4128, %v4120
    %v5329 = vpack.c.b16 %v4137, %v4129
    %v5330 = vpack.c.b16 %v4138, %v4130
    %v5331 = vpack.c.b16 %v4139, %v4131
    %v5332 = vpack.c.b16 %v4140, %v4132
    %v5333 = vpack.c.b16 %v4141, %v4133
    %v5334 = vpack.c.b16 %v4142, %v4134
    %v5335 = vpack.c.b16 %v4143, %v4135
    %v5336 = vpack.c.b16 %v4144, %v4136
    %v5337 = vpack.c.b16 %v4153, %v4145
    %v5338 = vpack.c.b16 %v4154, %v4146
    %v5339 = vpack.c.b16 %v4155, %v4147
    %v5340 = vpack.c.b16 %v4156, %v4148
    %v5341 = vpack.c.b16 %v4157, %v4149
    %v5342 = vpack.c.b16 %v4158, %v4150
    %v5343 = vpack.c.b16 %v4159, %v4151
    %v5344 = vpack.c.b16 %v4160, %v4152
    %v5345 = vpack.c.b16 %v4169, %v4161
    %v5346 = vpack.c.b16 %v4170, %v4162
    %v5347 = vpack.c.b16 %v4171, %v4163
    %v5348 = vpack.c.b16 %v4172, %v4164
    %v5349 = vpack.c.b16 %v4173, %v4165
    %v5350 = vpack.c.b16 %v4174, %v4166
    %v5351 = vpack.c.b16 %v4175, %v4167
    %v5352 = vpack.c.b16 %v4176, %v4168
    %v5353 = vpack.c.b16 %v4185, %v4177
    %v5354 = vpack.c.b16 %v4186, %v4178
    %v5355 = vpack.c.b16 %v4187, %v4179
    %v5356 = vpack.c.b16 %v4188, %v4180
    %v5357 = vpack.c.b16 %v4189, %v4181
    %v5358 = vpack.c.b16 %v4190, %v4182
    %v5359 = vpack.c.b16 %v4191, %v4183
    %v5360 = vpack.c.b16 %v4192, %v4184
    %v5361 = vpack.c.b16 %v4201, %v4193
    %v5362 = vpack.c.b16 %v4202, %v4194
    %v5363 = vpack.c.b16 %v4203, %v4195
    %v5364 = vpack.c.b16 %v4204, %v4196
    %v5365 = vpack.c.b16 %v4205, %v4197
    %v5366 = vpack.c.b16 %v4206, %v4198
    %v5367 = vpack.c.b16 %v4207, %v4199
    %v5368 = vpack.c.b16 %v4208, %v4200
    %v5369 = vpack.c.b16 %v4217, %v4209
    %v5370 = vpack.c.b16 %v4218, %v4210
    %v5371 = vpack.c.b16 %v4219, %v4211
    %v5372 = vpack.c.b16 %v4220, %v4212
    %v5373 = vpack.c.b16 %v4221, %v4213
    %v5374 = vpack.c.b16 %v4222, %v4214
    %v5375 = vpack.c.b16 %v4223, %v4215
    %v5376 = vpack.c.b16 %v4224, %v4216
    %v5377 = vpack.c.b16 %v4233, %v4225
    %v5378 = vpack.c.b16 %v4234, %v4226
    %v5379 = vpack.c.b16 %v4235, %v4227
    %v5380 = vpack.c.b16 %v4236, %v4228
    %v5381 = vpack.c.b16 %v4237, %v4229
    %v5382 = vpack.c.b16 %v4238, %v4230
    %v5383 = vpack.c.b16 %v4239, %v4231
    %v5384 = vpack.c.b16 %v4240, %v4232
    %v5385 = vpack.c.b16 %v4249, %v4241
    %v5386 = vpack.c.b16 %v4250, %v4242
    %v5387 = vpack.c.b16 %v4251, %v4243
    %v5388 = vpack.c.b16 %v4252, %v4244
    %v5389 = vpack.c.b16 %v4253, %v4245
    %v5390 = vpack.c.b16 %v4254, %v4246
    %v5391 = vpack.c.b16 %v4255, %v4247
    %v5392 = vpack.c.b16 %v4256, %v4248
    %v5393 = vpack.c.b16 %v4265, %v4257
    %v5394 = vpack.c.b16 %v4266, %v4258
    %v5395 = vpack.c.b16 %v4267, %v4259
    %v5396 = vpack.c.b16 %v4268, %v4260
    %v5397 = vpack.c.b16 %v4269, %v4261
    %v5398 = vpack.c.b16 %v4270, %v4262
    %v5399 = vpack.c.b16 %v4271, %v4263
    %v5400 = vpack.c.b16 %v4272, %v4264
    %v5401 = vpack.c.b16 %v4281, %v4273
    %v5402 = vpack.c.b16 %v4282, %v4274
    %v5403 = vpack.c.b16 %v4283, %v4275
    %v5404 = vpack.c.b16 %v4284, %v4276
    %v5405 = vpack.c.b16 %v4285, %v4277
    %v5406 = vpack.c.b16 %v4286, %v4278
    %v5407 = vpack.c.b16 %v4287, %v4279
    %v5408 = vpack.c.b16 %v4288, %v4280
    %v5409 = vpack.c.b16 %v4297, %v4289
    %v5410 = vpack.c.b16 %v4298, %v4290
    %v5411 = vpack.c.b16 %v4299, %v4291
    %v5412 = vpack.c.b16 %v4300, %v4292
    %v5413 = vpack.c.b16 %v4301, %v4293
    %v5414 = vpack.c.b16 %v4302, %v4294
    %v5415 = vpack.c.b16 %v4303, %v4295
    %v5416 = vpack.c.b16 %v4304, %v4296
    %v5417 = vpack.c.b16 %v4313, %v4305
    %v5418 = vpack.c.b16 %v4314, %v4306
    %v5419 = vpack.c.b16 %v4315, %v4307
    %v5420 = vpack.c.b16 %v4316, %v4308
    %v5421 = vpack.c.b16 %v4317, %v4309
    %v5422 = vpack.c.b16 %v4318, %v4310
    %v5423 = vpack.c.b16 %v4319, %v4311
    %v5424 = vpack.c.b16 %v4320, %v4312
    %v5425 = vpack.c.b16 %v4329, %v4321
    %v5426 = vpack.c.b16 %v4330, %v4322
    %v5427 = vpack.c.b16 %v4331, %v4323
    %v5428 = vpack.c.b16 %v4332, %v4324
    %v5429 = vpack.c.b16 %v4333, %v4325
    %v5430 = vpack.c.b16 %v4334, %v4326
    %v5431 = vpack.c.b16 %v4335, %v4327
    %v5432 = vpack.c.b16 %v4336, %v4328
    %v5433 = vpack.c.b16 %v4345, %v4337
    %v5434 = vpack.c.b16 %v4346, %v4338
    %v5435 = vpack.c.b16 %v4347, %v4339
    %v5436 = vpack.c.b16 %v4348, %v4340
    %v5437 = vpack.c.b16 %v4349, %v4341
    %v5438 = vpack.c.b16 %v4350, %v4342
    %v5439 = vpack.c.b16 %v4351, %v4343
    %v5440 = vpack.c.b16 %v4352, %v4344
    %v5441 = vpack.c.b16 %v4361, %v4353
    %v5442 = vpack.c.b16 %v4362, %v4354
    %v5443 = vpack.c.b16 %v4363, %v4355
    %v5444 = vpack.c.b16 %v4364, %v4356
    %v5445 = vpack.c.b16 %v4365, %v4357
    %v5446 = vpack.c.b16 %v4366, %v4358
    %v5447 = vpack.c.b16 %v4367, %v4359
    %v5448 = vpack.c.b16 %v4368, %v4360
    %v5449 = vpack.c.b16 %v4377, %v4369
    %v5450 = vpack.c.b16 %v4378, %v4370
    %v5451 = vpack.c.b16 %v4379, %v4371
    %v5452 = vpack.c.b16 %v4380, %v4372
    %v5453 = vpack.c.b16 %v4381, %v4373
    %v5454 = vpack.c.b16 %v4382, %v4374
    %v5455 = vpack.c.b16 %v4383, %v4375
    %v5456 = vpack.c.b16 %v4384, %v4376
    %v5457 = vpack.c.b16 %v4393, %v4385
    %v5458 = vpack.c.b16 %v4394, %v4386
    %v5459 = vpack.c.b16 %v4395, %v4387
    %v5460 = vpack.c.b16 %v4396, %v4388
    %v5461 = vpack.c.b16 %v4397, %v4389
    %v5462 = vpack.c.b16 %v4398, %v4390
    %v5463 = vpack.c.b16 %v4399, %v4391
    %v5464 = vpack.c.b16 %v4400, %v4392
    %v5465 = vpack.c.b16 %v4409, %v4401
    %v5466 = vpack.c.b16 %v4410, %v4402
    %v5467 = vpack.c.b16 %v4411, %v4403
    %v5468 = vpack.c.b16 %v4412, %v4404
    %v5469 = vpack.c.b16 %v4413, %v4405
    %v5470 = vpack.c.b16 %v4414, %v4406
    %v5471 = vpack.c.b16 %v4415, %v4407
    %v5472 = vpack.c.b16 %v4416, %v4408
    %v5473 = vpack.c.b16 %v4425, %v4417
    %v5474 = vpack.c.b16 %v4426, %v4418
    %v5475 = vpack.c.b16 %v4427, %v4419
    %v5476 = vpack.c.b16 %v4428, %v4420
    %v5477 = vpack.c.b16 %v4429, %v4421
    %v5478 = vpack.c.b16 %v4430, %v4422
    %v5479 = vpack.c.b16 %v4431, %v4423
    %v5480 = vpack.c.b16 %v4432, %v4424
    %v5481 = vpack.c.b16 %v4441, %v4433
    %v5482 = vpack.c.b16 %v4442, %v4434
    %v5483 = vpack.c.b16 %v4443, %v4435
    %v5484 = vpack.c.b16 %v4444, %v4436
    %v5485 = vpack.c.b16 %v4445, %v4437
    %v5486 = vpack.c.b16 %v4446, %v4438
    %v5487 = vpack.c.b16 %v4447, %v4439
    %v5488 = vpack.c.b16 %v4448, %v4440
    %v5489 = vpack.c.b16 %v4457, %v4449
    %v5490 = vpack.c.b16 %v4458, %v4450
    %v5491 = vpack.c.b16 %v4459, %v4451
    %v5492 = vpack.c.b16 %v4460, %v4452
    %v5493 = vpack.c.b16 %v4461, %v4453
    %v5494 = vpack.c.b16 %v4462, %v4454
    %v5495 = vpack.c.b16 %v4463, %v4455
    %v5496 = vpack.c.b16 %v4464, %v4456
    %v5497 = vpack.c.b16 %v4473, %v4465
    %v5498 = vpack.c.b16 %v4474, %v4466
    %v5499 = vpack.c.b16 %v4475, %v4467
    %v5500 = vpack.c.b16 %v4476, %v4468
    %v5501 = vpack.c.b16 %v4477, %v4469
    %v5502 = vpack.c.b16 %v4478, %v4470
    %v5503 = vpack.c.b16 %v4479, %v4471
    %v5504 = vpack.c.b16 %v4480, %v4472
    %6529 = vmatprep.subr.bf16.mxu0 %v4482
    %6530 = vmatpush1.bf16.msra.mxu0 %v4481
    %6531 = vmatprep.subr.bf16.mxu0 %v4490
    %6532 = vmatpush1.bf16.msra.mxu0 %v4489
    %6533 = vmatprep.subr.bf16.mxu0 %v4498
    %6534 = vmatpush1.bf16.msra.mxu0 %v4497
    %6535 = vmatprep.subr.bf16.mxu0 %v4506
    %6536 = vmatpush1.bf16.msra.mxu0 %v4505
    %6537 = vmatprep.subr.bf16.mxu0 %v4514
    %6538 = vmatpush1.bf16.msra.mxu0 %v4513
    %6539 = vmatprep.subr.bf16.mxu0 %v4522
    %6540 = vmatpush1.bf16.msra.mxu0 %v4521
    %6541 = vmatprep.subr.bf16.mxu0 %v4530
    %6542 = vmatpush1.bf16.msra.mxu0 %v4529
    %6543 = vmatprep.subr.bf16.mxu0 %v4538
    %6544 = vmatpush1.bf16.msra.mxu0 %v4537
    %6545 = vmatprep.subr.bf16.mxu0 %v4546
    %6546 = vmatpush1.bf16.msra.mxu0 %v4545
    %6547 = vmatprep.subr.bf16.mxu0 %v4554
    %6548 = vmatpush1.bf16.msra.mxu0 %v4553
    %6549 = vmatprep.subr.bf16.mxu0 %v4562
    %6550 = vmatpush1.bf16.msra.mxu0 %v4561
    %6551 = vmatprep.subr.bf16.mxu0 %v4570
    %6552 = vmatpush1.bf16.msra.mxu0 %v4569
    %6553 = vmatprep.subr.bf16.mxu0 %v4578
    %6554 = vmatpush1.bf16.msra.mxu0 %v4577
    %6555 = vmatprep.subr.bf16.mxu0 %v4586
    %6556 = vmatpush1.bf16.msra.mxu0 %v4585
    %6557 = vmatprep.subr.bf16.mxu0 %v4594
    %6558 = vmatpush1.bf16.msra.mxu0 %v4593
    %6559 = vmatprep.subr.bf16.mxu0 %v4602
    %6560 = vmatpush1.bf16.msra.mxu0 %v4601
    %6561 = vmatprep.mubr.bf16.mxu0 %v328
    %6562 = vmatmul.mubr.bf16.gmra.mrb[0].mxu0 %v327
    %v6563 = vpop.f32.mrb[0].mxu0
    %v6564 = vadd.f32 %v1372, %v6563
    %v6565 = vpop.f32.mrb[0].mxu0
    %v6566 = vadd.f32 %v1376, %v6565
    %v6567 = vpop.f32.mrb[0].mxu0
    %v6568 = vadd.f32 %v1372, %v6567
    %v6569 = vpop.f32.mrb[0].mxu0
    %v6570 = vadd.f32 %v1376, %v6569
    %6571 = vdwg.mxu0
    %6572 = vmatprep.subr.bf16.mxu0 %v4610
    %6573 = vmatpush1.bf16.msra.mxu0 %v4609
    %6574 = vmatprep.subr.bf16.mxu0 %v4618
    %6575 = vmatpush1.bf16.msra.mxu0 %v4617
    %6576 = vmatprep.subr.bf16.mxu0 %v4626
    %6577 = vmatpush1.bf16.msra.mxu0 %v4625
    %6578 = vmatprep.subr.bf16.mxu0 %v4634
    %6579 = vmatpush1.bf16.msra.mxu0 %v4633
    %6580 = vmatprep.subr.bf16.mxu0 %v4642
    %6581 = vmatpush1.bf16.msra.mxu0 %v4641
    %6582 = vmatprep.subr.bf16.mxu0 %v4650
    %6583 = vmatpush1.bf16.msra.mxu0 %v4649
    %6584 = vmatprep.subr.bf16.mxu0 %v4658
    %6585 = vmatpush1.bf16.msra.mxu0 %v4657
    %6586 = vmatprep.subr.bf16.mxu0 %v4666
    %6587 = vmatpush1.bf16.msra.mxu0 %v4665
    %6588 = vmatprep.subr.bf16.mxu0 %v4674
    %6589 = vmatpush1.bf16.msra.mxu0 %v4673
    %6590 = vmatprep.subr.bf16.mxu0 %v4682
    %6591 = vmatpush1.bf16.msra.mxu0 %v4681
    %6592 = vmatprep.subr.bf16.mxu0 %v4690
    %6593 = vmatpush1.bf16.msra.mxu0 %v4689
    %6594 = vmatprep.subr.bf16.mxu0 %v4698
    %6595 = vmatpush1.bf16.msra.mxu0 %v4697
    %6596 = vmatprep.subr.bf16.mxu0 %v4706
    %6597 = vmatpush1.bf16.msra.mxu0 %v4705
    %6598 = vmatprep.subr.bf16.mxu0 %v4714
    %6599 = vmatpush1.bf16.msra.mxu0 %v4713
    %6600 = vmatprep.subr.bf16.mxu0 %v4722
    %6601 = vmatpush1.bf16.msra.mxu0 %v4721
    %6602 = vmatprep.subr.bf16.mxu0 %v4730
    %6603 = vmatpush1.bf16.msra.mxu0 %v4729
    %6604 = vmatprep.mubr.bf16.mxu0 %v330
    %6605 = vmatmul.mubr.bf16.gmra.mrb[0].mxu0 %v329
    %v6606 = vpop.f32.mrb[0].mxu0
    %v6607 = vadd.f32 %v6564, %v6606
    %v6608 = vpop.f32.mrb[0].mxu0
    %v6609 = vadd.f32 %v6566, %v6608
    %v6610 = vpop.f32.mrb[0].mxu0
    %v6611 = vadd.f32 %v6568, %v6610
    %v6612 = vpop.f32.mrb[0].mxu0
    %v6613 = vadd.f32 %v6570, %v6612
    %6614 = vdwg.mxu0
    %6615 = vmatprep.subr.bf16.mxu0 %v4738
    %6616 = vmatpush1.bf16.msra.mxu0 %v4737
    %6617 = vmatprep.subr.bf16.mxu0 %v4746
    %6618 = vmatpush1.bf16.msra.mxu0 %v4745
    %6619 = vmatprep.subr.bf16.mxu0 %v4754
    %6620 = vmatpush1.bf16.msra.mxu0 %v4753
    %6621 = vmatprep.subr.bf16.mxu0 %v4762
    %6622 = vmatpush1.bf16.msra.mxu0 %v4761
    %6623 = vmatprep.subr.bf16.mxu0 %v4770
    %6624 = vmatpush1.bf16.msra.mxu0 %v4769
    %6625 = vmatprep.subr.bf16.mxu0 %v4778
    %6626 = vmatpush1.bf16.msra.mxu0 %v4777
    %6627 = vmatprep.subr.bf16.mxu0 %v4786
    %6628 = vmatpush1.bf16.msra.mxu0 %v4785
    %6629 = vmatprep.subr.bf16.mxu0 %v4794
    %6630 = vmatpush1.bf16.msra.mxu0 %v4793
    %6631 = vmatprep.subr.bf16.mxu0 %v4802
    %6632 = vmatpush1.bf16.msra.mxu0 %v4801
    %6633 = vmatprep.subr.bf16.mxu0 %v4810
    %6634 = vmatpush1.bf16.msra.mxu0 %v4809
    %6635 = vmatprep.subr.bf16.mxu0 %v4818
    %6636 = vmatpush1.bf16.msra.mxu0 %v4817
    %6637 = vmatprep.subr.bf16.mxu0 %v4826
    %6638 = vmatpush1.bf16.msra.mxu0 %v4825
    %6639 = vmatprep.subr.bf16.mxu0 %v4834
    %6640 = vmatpush1.bf16.msra.mxu0 %v4833
    %6641 = vmatprep.subr.bf16.mxu0 %v4842
    %6642 = vmatpush1.bf16.msra.mxu0 %v4841
    %6643 = vmatprep.subr.bf16.mxu0 %v4850
    %6644 = vmatpush1.bf16.msra.mxu0 %v4849
    %6645 = vmatprep.subr.bf16.mxu0 %v4858
    %6646 = vmatpush1.bf16.msra.mxu0 %v4857
    %6647 = vmatprep.mubr.bf16.mxu0 %v332
    %6648 = vmatmul.mubr.bf16.gmra.mrb[0].mxu0 %v331
    %v6649 = vpop.f32.mrb[0].mxu0
    %v6650 = vadd.f32 %v6607, %v6649
    %v6651 = vpop.f32.mrb[0].mxu0
    %v6652 = vadd.f32 %v6609, %v6651
    %v6653 = vpop.f32.mrb[0].mxu0
    %v6654 = vadd.f32 %v6611, %v6653
    %v6655 = vpop.f32.mrb[0].mxu0
    %v6656 = vadd.f32 %v6613, %v6655
    %6657 = vdwg.mxu0
    %6658 = vmatprep.subr.bf16.mxu0 %v4866
    %6659 = vmatpush1.bf16.msra.mxu0 %v4865
    %6660 = vmatprep.subr.bf16.mxu0 %v4874
    %6661 = vmatpush1.bf16.msra.mxu0 %v4873
    %6662 = vmatprep.subr.bf16.mxu0 %v4882
    %6663 = vmatpush1.bf16.msra.mxu0 %v4881
    %6664 = vmatprep.subr.bf16.mxu0 %v4890
    %6665 = vmatpush1.bf16.msra.mxu0 %v4889
    %6666 = vmatprep.subr.bf16.mxu0 %v4898
    %6667 = vmatpush1.bf16.msra.mxu0 %v4897
    %6668 = vmatprep.subr.bf16.mxu0 %v4906
    %6669 = vmatpush1.bf16.msra.mxu0 %v4905
    %6670 = vmatprep.subr.bf16.mxu0 %v4914
    %6671 = vmatpush1.bf16.msra.mxu0 %v4913
    %6672 = vmatprep.subr.bf16.mxu0 %v4922
    %6673 = vmatpush1.bf16.msra.mxu0 %v4921
    %6674 = vmatprep.subr.bf16.mxu0 %v4930
    %6675 = vmatpush1.bf16.msra.mxu0 %v4929
    %6676 = vmatprep.subr.bf16.mxu0 %v4938
    %6677 = vmatpush1.bf16.msra.mxu0 %v4937
    %6678 = vmatprep.subr.bf16.mxu0 %v4946
    %6679 = vmatpush1.bf16.msra.mxu0 %v4945
    %6680 = vmatprep.subr.bf16.mxu0 %v4954
    %6681 = vmatpush1.bf16.msra.mxu0 %v4953
    %6682 = vmatprep.subr.bf16.mxu0 %v4962
    %6683 = vmatpush1.bf16.msra.mxu0 %v4961
    %6684 = vmatprep.subr.bf16.mxu0 %v4970
    %6685 = vmatpush1.bf16.msra.mxu0 %v4969
    %6686 = vmatprep.subr.bf16.mxu0 %v4978
    %6687 = vmatpush1.bf16.msra.mxu0 %v4977
    %6688 = vmatprep.subr.bf16.mxu0 %v4986
    %6689 = vmatpush1.bf16.msra.mxu0 %v4985
    %6690 = vmatprep.mubr.bf16.mxu0 %v334
    %6691 = vmatmul.mubr.bf16.gmra.mrb[0].mxu0 %v333
    %v6692 = vpop.f32.mrb[0].mxu0
    %v6693 = vadd.f32 %v6650, %v6692
    %v6694 = vpop.f32.mrb[0].mxu0
    %v6695 = vadd.f32 %v6652, %v6694
    %v6696 = vpop.f32.mrb[0].mxu0
    %v6697 = vadd.f32 %v6654, %v6696
    %v6698 = vpop.f32.mrb[0].mxu0
    %v6699 = vadd.f32 %v6656, %v6698
    %6700 = vdwg.mxu0
    %6701 = vmatprep.subr.bf16.mxu0 %v4994
    %6702 = vmatpush1.bf16.msra.mxu0 %v4993
    %6703 = vmatprep.subr.bf16.mxu0 %v5002
    %6704 = vmatpush1.bf16.msra.mxu0 %v5001
    %6705 = vmatprep.subr.bf16.mxu0 %v5010
    %6706 = vmatpush1.bf16.msra.mxu0 %v5009
    %6707 = vmatprep.subr.bf16.mxu0 %v5018
    %6708 = vmatpush1.bf16.msra.mxu0 %v5017
    %6709 = vmatprep.subr.bf16.mxu0 %v5026
    %6710 = vmatpush1.bf16.msra.mxu0 %v5025
    %6711 = vmatprep.subr.bf16.mxu0 %v5034
    %6712 = vmatpush1.bf16.msra.mxu0 %v5033
    %6713 = vmatprep.subr.bf16.mxu0 %v5042
    %6714 = vmatpush1.bf16.msra.mxu0 %v5041
    %6715 = vmatprep.subr.bf16.mxu0 %v5050
    %6716 = vmatpush1.bf16.msra.mxu0 %v5049
    %6717 = vmatprep.subr.bf16.mxu0 %v5058
    %6718 = vmatpush1.bf16.msra.mxu0 %v5057
    %6719 = vmatprep.subr.bf16.mxu0 %v5066
    %6720 = vmatpush1.bf16.msra.mxu0 %v5065
    %6721 = vmatprep.subr.bf16.mxu0 %v5074
    %6722 = vmatpush1.bf16.msra.mxu0 %v5073
    %6723 = vmatprep.subr.bf16.mxu0 %v5082
    %6724 = vmatpush1.bf16.msra.mxu0 %v5081
    %6725 = vmatprep.subr.bf16.mxu0 %v5090
    %6726 = vmatpush1.bf16.msra.mxu0 %v5089
    %6727 = vmatprep.subr.bf16.mxu0 %v5098
    %6728 = vmatpush1.bf16.msra.mxu0 %v5097
    %6729 = vmatprep.subr.bf16.mxu0 %v5106
    %6730 = vmatpush1.bf16.msra.mxu0 %v5105
    %6731 = vmatprep.subr.bf16.mxu0 %v5114
    %6732 = vmatpush1.bf16.msra.mxu0 %v5113
    %6733 = vmatprep.mubr.bf16.mxu0 %v336
    %6734 = vmatmul.mubr.bf16.gmra.mrb[0].mxu0 %v335
    %v6735 = vpop.f32.mrb[0].mxu0
    %v6736 = vadd.f32 %v6693, %v6735
    %v6737 = vpop.f32.mrb[0].mxu0
    %v6738 = vadd.f32 %v6695, %v6737
    %v6739 = vpop.f32.mrb[0].mxu0
    %v6740 = vadd.f32 %v6697, %v6739
    %v6741 = vpop.f32.mrb[0].mxu0
    %v6742 = vadd.f32 %v6699, %v6741
    %6743 = vdwg.mxu0
    %6744 = vmatprep.subr.bf16.mxu0 %v5122
    %6745 = vmatpush1.bf16.msra.mxu0 %v5121
    %6746 = vmatprep.subr.bf16.mxu0 %v5130
    %6747 = vmatpush1.bf16.msra.mxu0 %v5129
    %6748 = vmatprep.subr.bf16.mxu0 %v5138
    %6749 = vmatpush1.bf16.msra.mxu0 %v5137
    %6750 = vmatprep.subr.bf16.mxu0 %v5146
    %6751 = vmatpush1.bf16.msra.mxu0 %v5145
    %6752 = vmatprep.subr.bf16.mxu0 %v5154
    %6753 = vmatpush1.bf16.msra.mxu0 %v5153
    %6754 = vmatprep.subr.bf16.mxu0 %v5162
    %6755 = vmatpush1.bf16.msra.mxu0 %v5161
    %6756 = vmatprep.subr.bf16.mxu0 %v5170
    %6757 = vmatpush1.bf16.msra.mxu0 %v5169
    %6758 = vmatprep.subr.bf16.mxu0 %v5178
    %6759 = vmatpush1.bf16.msra.mxu0 %v5177
    %6760 = vmatprep.subr.bf16.mxu0 %v5186
    %6761 = vmatpush1.bf16.msra.mxu0 %v5185
    %6762 = vmatprep.subr.bf16.mxu0 %v5194
    %6763 = vmatpush1.bf16.msra.mxu0 %v5193
    %6764 = vmatprep.subr.bf16.mxu0 %v5202
    %6765 = vmatpush1.bf16.msra.mxu0 %v5201
    %6766 = vmatprep.subr.bf16.mxu0 %v5210
    %6767 = vmatpush1.bf16.msra.mxu0 %v5209
    %6768 = vmatprep.subr.bf16.mxu0 %v5218
    %6769 = vmatpush1.bf16.msra.mxu0 %v5217
    %6770 = vmatprep.subr.bf16.mxu0 %v5226
    %6771 = vmatpush1.bf16.msra.mxu0 %v5225
    %6772 = vmatprep.subr.bf16.mxu0 %v5234
    %6773 = vmatpush1.bf16.msra.mxu0 %v5233
    %6774 = vmatprep.subr.bf16.mxu0 %v5242
    %6775 = vmatpush1.bf16.msra.mxu0 %v5241
    %6776 = vmatprep.mubr.bf16.mxu0 %v338
    %6777 = vmatmul.mubr.bf16.gmra.mrb[0].mxu0 %v337
    %v6778 = vpop.f32.mrb[0].mxu0
    %v6779 = vadd.f32 %v6736, %v6778
    %v6780 = vpop.f32.mrb[0].mxu0
    %v6781 = vadd.f32 %v6738, %v6780
    %v6782 = vpop.f32.mrb[0].mxu0
    %v6783 = vadd.f32 %v6740, %v6782
    %v6784 = vpop.f32.mrb[0].mxu0
    %v6785 = vadd.f32 %v6742, %v6784
    %6786 = vdwg.mxu0
    %6787 = vmatprep.subr.bf16.mxu0 %v5250
    %6788 = vmatpush1.bf16.msra.mxu0 %v5249
    %6789 = vmatprep.subr.bf16.mxu0 %v5258
    %6790 = vmatpush1.bf16.msra.mxu0 %v5257
    %6791 = vmatprep.subr.bf16.mxu0 %v5266
    %6792 = vmatpush1.bf16.msra.mxu0 %v5265
    %6793 = vmatprep.subr.bf16.mxu0 %v5274
    %6794 = vmatpush1.bf16.msra.mxu0 %v5273
    %6795 = vmatprep.subr.bf16.mxu0 %v5282
    %6796 = vmatpush1.bf16.msra.mxu0 %v5281
    %6797 = vmatprep.subr.bf16.mxu0 %v5290
    %6798 = vmatpush1.bf16.msra.mxu0 %v5289
    %6799 = vmatprep.subr.bf16.mxu0 %v5298
    %6800 = vmatpush1.bf16.msra.mxu0 %v5297
    %6801 = vmatprep.subr.bf16.mxu0 %v5306
    %6802 = vmatpush1.bf16.msra.mxu0 %v5305
    %6803 = vmatprep.subr.bf16.mxu0 %v5314
    %6804 = vmatpush1.bf16.msra.mxu0 %v5313
    %6805 = vmatprep.subr.bf16.mxu0 %v5322
    %6806 = vmatpush1.bf16.msra.mxu0 %v5321
    %6807 = vmatprep.subr.bf16.mxu0 %v5330
    %6808 = vmatpush1.bf16.msra.mxu0 %v5329
    %6809 = vmatprep.subr.bf16.mxu0 %v5338
    %6810 = vmatpush1.bf16.msra.mxu0 %v5337
    %6811 = vmatprep.subr.bf16.mxu0 %v5346
    %6812 = vmatpush1.bf16.msra.mxu0 %v5345
    %6813 = vmatprep.subr.bf16.mxu0 %v5354
    %6814 = vmatpush1.bf16.msra.mxu0 %v5353
    %6815 = vmatprep.subr.bf16.mxu0 %v5362
    %6816 = vmatpush1.bf16.msra.mxu0 %v5361
    %6817 = vmatprep.subr.bf16.mxu0 %v5370
    %6818 = vmatpush1.bf16.msra.mxu0 %v5369
    %6819 = vmatprep.mubr.bf16.mxu0 %v340
    %6820 = vmatmul.mubr.bf16.gmra.mrb[0].mxu0 %v339
    %v6821 = vpop.f32.mrb[0].mxu0
    %v6822 = vadd.f32 %v6779, %v6821
    %v6823 = vpop.f32.mrb[0].mxu0
    %v6824 = vadd.f32 %v6781, %v6823
    %v6825 = vpop.f32.mrb[0].mxu0
    %v6826 = vadd.f32 %v6783, %v6825
    %v6827 = vpop.f32.mrb[0].mxu0
    %v6828 = vadd.f32 %v6785, %v6827
    %6829 = vdwg.mxu0
    %6830 = vmatprep.subr.bf16.mxu0 %v5378
    %6831 = vmatpush1.bf16.msra.mxu0 %v5377
    %6832 = vmatprep.subr.bf16.mxu0 %v5386
    %6833 = vmatpush1.bf16.msra.mxu0 %v5385
    %6834 = vmatprep.subr.bf16.mxu0 %v5394
    %6835 = vmatpush1.bf16.msra.mxu0 %v5393
    %6836 = vmatprep.subr.bf16.mxu0 %v5402
    %6837 = vmatpush1.bf16.msra.mxu0 %v5401
    %6838 = vmatprep.subr.bf16.mxu0 %v5410
    %6839 = vmatpush1.bf16.msra.mxu0 %v5409
    %6840 = vmatprep.subr.bf16.mxu0 %v5418
    %6841 = vmatpush1.bf16.msra.mxu0 %v5417
    %6842 = vmatprep.subr.bf16.mxu0 %v5426
    %6843 = vmatpush1.bf16.msra.mxu0 %v5425
    %6844 = vmatprep.subr.bf16.mxu0 %v5434
    %6845 = vmatpush1.bf16.msra.mxu0 %v5433
    %6846 = vmatprep.subr.bf16.mxu0 %v5442
    %6847 = vmatpush1.bf16.msra.mxu0 %v5441
    %6848 = vmatprep.subr.bf16.mxu0 %v5450
    %6849 = vmatpush1.bf16.msra.mxu0 %v5449
    %6850 = vmatprep.subr.bf16.mxu0 %v5458
    %6851 = vmatpush1.bf16.msra.mxu0 %v5457
    %6852 = vmatprep.subr.bf16.mxu0 %v5466
    %6853 = vmatpush1.bf16.msra.mxu0 %v5465
    %6854 = vmatprep.subr.bf16.mxu0 %v5474
    %6855 = vmatpush1.bf16.msra.mxu0 %v5473
    %6856 = vmatprep.subr.bf16.mxu0 %v5482
    %6857 = vmatpush1.bf16.msra.mxu0 %v5481
    %6858 = vmatprep.subr.bf16.mxu0 %v5490
    %6859 = vmatpush1.bf16.msra.mxu0 %v5489
    %6860 = vmatprep.subr.bf16.mxu0 %v5498
    %6861 = vmatpush1.bf16.msra.mxu0 %v5497
    %6862 = vmatprep.mubr.bf16.mxu0 %v342
    %6863 = vmatmul.mubr.bf16.gmra.mrb[0].mxu0 %v341
    %v6864 = vpop.f32.mrb[0].mxu0
    %v6865 = vadd.f32 %v6822, %v6864
    %v6866 = vpop.f32.mrb[0].mxu0
    %v6867 = vadd.f32 %v6824, %v6866
    %v6868 = vpop.f32.mrb[0].mxu0
    %v6869 = vadd.f32 %v6826, %v6868
    %v6870 = vpop.f32.mrb[0].mxu0
    %v6871 = vadd.f32 %v6828, %v6870
    %6872 = vdwg.mxu0
    %6873 = vmatprep.subr.bf16.mxu0 %v4484
    %6874 = vmatpush1.bf16.msra.mxu0 %v4483
    %6875 = vmatprep.subr.bf16.mxu0 %v4492
    %6876 = vmatpush1.bf16.msra.mxu0 %v4491
    %6877 = vmatprep.subr.bf16.mxu0 %v4500
    %6878 = vmatpush1.bf16.msra.mxu0 %v4499
    %6879 = vmatprep.subr.bf16.mxu0 %v4508
    %6880 = vmatpush1.bf16.msra.mxu0 %v4507
    %6881 = vmatprep.subr.bf16.mxu0 %v4516
    %6882 = vmatpush1.bf16.msra.mxu0 %v4515
    %6883 = vmatprep.subr.bf16.mxu0 %v4524
    %6884 = vmatpush1.bf16.msra.mxu0 %v4523
    %6885 = vmatprep.subr.bf16.mxu0 %v4532
    %6886 = vmatpush1.bf16.msra.mxu0 %v4531
    %6887 = vmatprep.subr.bf16.mxu0 %v4540
    %6888 = vmatpush1.bf16.msra.mxu0 %v4539
    %6889 = vmatprep.subr.bf16.mxu0 %v4548
    %6890 = vmatpush1.bf16.msra.mxu0 %v4547
    %6891 = vmatprep.subr.bf16.mxu0 %v4556
    %6892 = vmatpush1.bf16.msra.mxu0 %v4555
    %6893 = vmatprep.subr.bf16.mxu0 %v4564
    %6894 = vmatpush1.bf16.msra.mxu0 %v4563
    %6895 = vmatprep.subr.bf16.mxu0 %v4572
    %6896 = vmatpush1.bf16.msra.mxu0 %v4571
    %6897 = vmatprep.subr.bf16.mxu0 %v4580
    %6898 = vmatpush1.bf16.msra.mxu0 %v4579
    %6899 = vmatprep.subr.bf16.mxu0 %v4588
    %6900 = vmatpush1.bf16.msra.mxu0 %v4587
    %6901 = vmatprep.subr.bf16.mxu0 %v4596
    %6902 = vmatpush1.bf16.msra.mxu0 %v4595
    %6903 = vmatprep.subr.bf16.mxu0 %v4604
    %6904 = vmatpush1.bf16.msra.mxu0 %v4603
    %6905 = vmatprep.mubr.bf16.mxu0 %v328
    %6906 = vmatmul.mubr.bf16.gmra.mrb[0].mxu0 %v327
    %v6907 = vpop.f32.mrb[0].mxu0
    %v6908 = vadd.f32 %v1380, %v6907
    %v6909 = vpop.f32.mrb[0].mxu0
    %v6910 = vadd.f32 %v1384, %v6909
    %v6911 = vpop.f32.mrb[0].mxu0
    %v6912 = vadd.f32 %v1380, %v6911
    %v6913 = vpop.f32.mrb[0].mxu0
    %v6914 = vadd.f32 %v1384, %v6913
    %6915 = vdwg.mxu0
    %6916 = vmatprep.subr.bf16.mxu0 %v4612
    %6917 = vmatpush1.bf16.msra.mxu0 %v4611
    %6918 = vmatprep.subr.bf16.mxu0 %v4620
    %6919 = vmatpush1.bf16.msra.mxu0 %v4619
    %6920 = vmatprep.subr.bf16.mxu0 %v4628
    %6921 = vmatpush1.bf16.msra.mxu0 %v4627
    %6922 = vmatprep.subr.bf16.mxu0 %v4636
    %6923 = vmatpush1.bf16.msra.mxu0 %v4635
    %6924 = vmatprep.subr.bf16.mxu0 %v4644
    %6925 = vmatpush1.bf16.msra.mxu0 %v4643
    %6926 = vmatprep.subr.bf16.mxu0 %v4652
    %6927 = vmatpush1.bf16.msra.mxu0 %v4651
    %6928 = vmatprep.subr.bf16.mxu0 %v4660
    %6929 = vmatpush1.bf16.msra.mxu0 %v4659
    %6930 = vmatprep.subr.bf16.mxu0 %v4668
    %6931 = vmatpush1.bf16.msra.mxu0 %v4667
    %6932 = vmatprep.subr.bf16.mxu0 %v4676
    %6933 = vmatpush1.bf16.msra.mxu0 %v4675
    %6934 = vmatprep.subr.bf16.mxu0 %v4684
    %6935 = vmatpush1.bf16.msra.mxu0 %v4683
    %6936 = vmatprep.subr.bf16.mxu0 %v4692
    %6937 = vmatpush1.bf16.msra.mxu0 %v4691
    %6938 = vmatprep.subr.bf16.mxu0 %v4700
    %6939 = vmatpush1.bf16.msra.mxu0 %v4699
    %6940 = vmatprep.subr.bf16.mxu0 %v4708
    %6941 = vmatpush1.bf16.msra.mxu0 %v4707
    %6942 = vmatprep.subr.bf16.mxu0 %v4716
    %6943 = vmatpush1.bf16.msra.mxu0 %v4715
    %6944 = vmatprep.subr.bf16.mxu0 %v4724
    %6945 = vmatpush1.bf16.msra.mxu0 %v4723
    %6946 = vmatprep.subr.bf16.mxu0 %v4732
    %6947 = vmatpush1.bf16.msra.mxu0 %v4731
    %6948 = vmatprep.mubr.bf16.mxu0 %v330
    %6949 = vmatmul.mubr.bf16.gmra.mrb[0].mxu0 %v329
    %v6950 = vpop.f32.mrb[0].mxu0
    %v6951 = vadd.f32 %v6908, %v6950
    %v6952 = vpop.f32.mrb[0].mxu0
    %v6953 = vadd.f32 %v6910, %v6952
    %v6954 = vpop.f32.mrb[0].mxu0
    %v6955 = vadd.f32 %v6912, %v6954
    %v6956 = vpop.f32.mrb[0].mxu0
    %v6957 = vadd.f32 %v6914, %v6956
    %6958 = vdwg.mxu0
    %6959 = vmatprep.subr.bf16.mxu0 %v4740
    %6960 = vmatpush1.bf16.msra.mxu0 %v4739
    %6961 = vmatprep.subr.bf16.mxu0 %v4748
    %6962 = vmatpush1.bf16.msra.mxu0 %v4747
    %6963 = vmatprep.subr.bf16.mxu0 %v4756
    %6964 = vmatpush1.bf16.msra.mxu0 %v4755
    %6965 = vmatprep.subr.bf16.mxu0 %v4764
    %6966 = vmatpush1.bf16.msra.mxu0 %v4763
    %6967 = vmatprep.subr.bf16.mxu0 %v4772
    %6968 = vmatpush1.bf16.msra.mxu0 %v4771
    %6969 = vmatprep.subr.bf16.mxu0 %v4780
    %6970 = vmatpush1.bf16.msra.mxu0 %v4779
    %6971 = vmatprep.subr.bf16.mxu0 %v4788
    %6972 = vmatpush1.bf16.msra.mxu0 %v4787
    %6973 = vmatprep.subr.bf16.mxu0 %v4796
    %6974 = vmatpush1.bf16.msra.mxu0 %v4795
    %6975 = vmatprep.subr.bf16.mxu0 %v4804
    %6976 = vmatpush1.bf16.msra.mxu0 %v4803
    %6977 = vmatprep.subr.bf16.mxu0 %v4812
    %6978 = vmatpush1.bf16.msra.mxu0 %v4811
    %6979 = vmatprep.subr.bf16.mxu0 %v4820
    %6980 = vmatpush1.bf16.msra.mxu0 %v4819
    %6981 = vmatprep.subr.bf16.mxu0 %v4828
    %6982 = vmatpush1.bf16.msra.mxu0 %v4827
    %6983 = vmatprep.subr.bf16.mxu0 %v4836
    %6984 = vmatpush1.bf16.msra.mxu0 %v4835
    %6985 = vmatprep.subr.bf16.mxu0 %v4844
    %6986 = vmatpush1.bf16.msra.mxu0 %v4843
    %6987 = vmatprep.subr.bf16.mxu0 %v4852
    %6988 = vmatpush1.bf16.msra.mxu0 %v4851
    %6989 = vmatprep.subr.bf16.mxu0 %v4860
    %6990 = vmatpush1.bf16.msra.mxu0 %v4859
    %6991 = vmatprep.mubr.bf16.mxu0 %v332
    %6992 = vmatmul.mubr.bf16.gmra.mrb[0].mxu0 %v331
    %v6993 = vpop.f32.mrb[0].mxu0
    %v6994 = vadd.f32 %v6951, %v6993
    %v6995 = vpop.f32.mrb[0].mxu0
    %v6996 = vadd.f32 %v6953, %v6995
    %v6997 = vpop.f32.mrb[0].mxu0
    %v6998 = vadd.f32 %v6955, %v6997
    %v6999 = vpop.f32.mrb[0].mxu0
    %v7000 = vadd.f32 %v6957, %v6999
    %7001 = vdwg.mxu0
    %7002 = vmatprep.subr.bf16.mxu0 %v4868
    %7003 = vmatpush1.bf16.msra.mxu0 %v4867
    %7004 = vmatprep.subr.bf16.mxu0 %v4876
    %7005 = vmatpush1.bf16.msra.mxu0 %v4875
    %7006 = vmatprep.subr.bf16.mxu0 %v4884
    %7007 = vmatpush1.bf16.msra.mxu0 %v4883
    %7008 = vmatprep.subr.bf16.mxu0 %v4892
    %7009 = vmatpush1.bf16.msra.mxu0 %v4891
    %7010 = vmatprep.subr.bf16.mxu0 %v4900
    %7011 = vmatpush1.bf16.msra.mxu0 %v4899
    %7012 = vmatprep.subr.bf16.mxu0 %v4908
    %7013 = vmatpush1.bf16.msra.mxu0 %v4907
    %7014 = vmatprep.subr.bf16.mxu0 %v4916
    %7015 = vmatpush1.bf16.msra.mxu0 %v4915
    %7016 = vmatprep.subr.bf16.mxu0 %v4924
    %7017 = vmatpush1.bf16.msra.mxu0 %v4923
    %7018 = vmatprep.subr.bf16.mxu0 %v4932
    %7019 = vmatpush1.bf16.msra.mxu0 %v4931
    %7020 = vmatprep.subr.bf16.mxu0 %v4940
    %7021 = vmatpush1.bf16.msra.mxu0 %v4939
    %7022 = vmatprep.subr.bf16.mxu0 %v4948
    %7023 = vmatpush1.bf16.msra.mxu0 %v4947
    %7024 = vmatprep.subr.bf16.mxu0 %v4956
    %7025 = vmatpush1.bf16.msra.mxu0 %v4955
    %7026 = vmatprep.subr.bf16.mxu0 %v4964
    %7027 = vmatpush1.bf16.msra.mxu0 %v4963
    %7028 = vmatprep.subr.bf16.mxu0 %v4972
    %7029 = vmatpush1.bf16.msra.mxu0 %v4971
    %7030 = vmatprep.subr.bf16.mxu0 %v4980
    %7031 = vmatpush1.bf16.msra.mxu0 %v4979
    %7032 = vmatprep.subr.bf16.mxu0 %v4988
    %7033 = vmatpush1.bf16.msra.mxu0 %v4987
    %7034 = vmatprep.mubr.bf16.mxu0 %v334
    %7035 = vmatmul.mubr.bf16.gmra.mrb[0].mxu0 %v333
    %v7036 = vpop.f32.mrb[0].mxu0
    %v7037 = vadd.f32 %v6994, %v7036
    %v7038 = vpop.f32.mrb[0].mxu0
    %v7039 = vadd.f32 %v6996, %v7038
    %v7040 = vpop.f32.mrb[0].mxu0
    %v7041 = vadd.f32 %v6998, %v7040
    %v7042 = vpop.f32.mrb[0].mxu0
    %v7043 = vadd.f32 %v7000, %v7042
    %7044 = vdwg.mxu0
    %7045 = vmatprep.subr.bf16.mxu0 %v4996
    %7046 = vmatpush1.bf16.msra.mxu0 %v4995
    %7047 = vmatprep.subr.bf16.mxu0 %v5004
    %7048 = vmatpush1.bf16.msra.mxu0 %v5003
    %7049 = vmatprep.subr.bf16.mxu0 %v5012
    %7050 = vmatpush1.bf16.msra.mxu0 %v5011
    %7051 = vmatprep.subr.bf16.mxu0 %v5020
    %7052 = vmatpush1.bf16.msra.mxu0 %v5019
    %7053 = vmatprep.subr.bf16.mxu0 %v5028
    %7054 = vmatpush1.bf16.msra.mxu0 %v5027
    %7055 = vmatprep.subr.bf16.mxu0 %v5036
    %7056 = vmatpush1.bf16.msra.mxu0 %v5035
    %7057 = vmatprep.subr.bf16.mxu0 %v5044
    %7058 = vmatpush1.bf16.msra.mxu0 %v5043
    %7059 = vmatprep.subr.bf16.mxu0 %v5052
    %7060 = vmatpush1.bf16.msra.mxu0 %v5051
    %7061 = vmatprep.subr.bf16.mxu0 %v5060
    %7062 = vmatpush1.bf16.msra.mxu0 %v5059
    %7063 = vmatprep.subr.bf16.mxu0 %v5068
    %7064 = vmatpush1.bf16.msra.mxu0 %v5067
    %7065 = vmatprep.subr.bf16.mxu0 %v5076
    %7066 = vmatpush1.bf16.msra.mxu0 %v5075
    %7067 = vmatprep.subr.bf16.mxu0 %v5084
    %7068 = vmatpush1.bf16.msra.mxu0 %v5083
    %7069 = vmatprep.subr.bf16.mxu0 %v5092
    %7070 = vmatpush1.bf16.msra.mxu0 %v5091
    %7071 = vmatprep.subr.bf16.mxu0 %v5100
    %7072 = vmatpush1.bf16.msra.mxu0 %v5099
    %7073 = vmatprep.subr.bf16.mxu0 %v5108
    %7074 = vmatpush1.bf16.msra.mxu0 %v5107
    %7075 = vmatprep.subr.bf16.mxu0 %v5116
    %7076 = vmatpush1.bf16.msra.mxu0 %v5115
    %7077 = vmatprep.mubr.bf16.mxu0 %v336
    %7078 = vmatmul.mubr.bf16.gmra.mrb[0].mxu0 %v335
    %v7079 = vpop.f32.mrb[0].mxu0
    %v7080 = vadd.f32 %v7037, %v7079
    %v7081 = vpop.f32.mrb[0].mxu0
    %v7082 = vadd.f32 %v7039, %v7081
    %v7083 = vpop.f32.mrb[0].mxu0
    %v7084 = vadd.f32 %v7041, %v7083
    %v7085 = vpop.f32.mrb[0].mxu0
    %v7086 = vadd.f32 %v7043, %v7085
    %7087 = vdwg.mxu0
    %7088 = vmatprep.subr.bf16.mxu0 %v5124
    %7089 = vmatpush1.bf16.msra.mxu0 %v5123
    %7090 = vmatprep.subr.bf16.mxu0 %v5132
    %7091 = vmatpush1.bf16.msra.mxu0 %v5131
    %7092 = vmatprep.subr.bf16.mxu0 %v5140
    %7093 = vmatpush1.bf16.msra.mxu0 %v5139
    %7094 = vmatprep.subr.bf16.mxu0 %v5148
    %7095 = vmatpush1.bf16.msra.mxu0 %v5147
    %7096 = vmatprep.subr.bf16.mxu0 %v5156
    %7097 = vmatpush1.bf16.msra.mxu0 %v5155
    %7098 = vmatprep.subr.bf16.mxu0 %v5164
    %7099 = vmatpush1.bf16.msra.mxu0 %v5163
    %7100 = vmatprep.subr.bf16.mxu0 %v5172
    %7101 = vmatpush1.bf16.msra.mxu0 %v5171
    %7102 = vmatprep.subr.bf16.mxu0 %v5180
    %7103 = vmatpush1.bf16.msra.mxu0 %v5179
    %7104 = vmatprep.subr.bf16.mxu0 %v5188
    %7105 = vmatpush1.bf16.msra.mxu0 %v5187
    %7106 = vmatprep.subr.bf16.mxu0 %v5196
    %7107 = vmatpush1.bf16.msra.mxu0 %v5195
    %7108 = vmatprep.subr.bf16.mxu0 %v5204
    %7109 = vmatpush1.bf16.msra.mxu0 %v5203
    %7110 = vmatprep.subr.bf16.mxu0 %v5212
    %7111 = vmatpush1.bf16.msra.mxu0 %v5211
    %7112 = vmatprep.subr.bf16.mxu0 %v5220
    %7113 = vmatpush1.bf16.msra.mxu0 %v5219
    %7114 = vmatprep.subr.bf16.mxu0 %v5228
    %7115 = vmatpush1.bf16.msra.mxu0 %v5227
    %7116 = vmatprep.subr.bf16.mxu0 %v5236
    %7117 = vmatpush1.bf16.msra.mxu0 %v5235
    %7118 = vmatprep.subr.bf16.mxu0 %v5244
    %7119 = vmatpush1.bf16.msra.mxu0 %v5243
    %7120 = vmatprep.mubr.bf16.mxu0 %v338
    %7121 = vmatmul.mubr.bf16.gmra.mrb[0].mxu0 %v337
    %v7122 = vpop.f32.mrb[0].mxu0
    %v7123 = vadd.f32 %v7080, %v7122
    %v7124 = vpop.f32.mrb[0].mxu0
    %v7125 = vadd.f32 %v7082, %v7124
    %v7126 = vpop.f32.mrb[0].mxu0
    %v7127 = vadd.f32 %v7084, %v7126
    %v7128 = vpop.f32.mrb[0].mxu0
    %v7129 = vadd.f32 %v7086, %v7128
    %7130 = vdwg.mxu0
    %7131 = vmatprep.subr.bf16.mxu0 %v5252
    %7132 = vmatpush1.bf16.msra.mxu0 %v5251
    %7133 = vmatprep.subr.bf16.mxu0 %v5260
    %7134 = vmatpush1.bf16.msra.mxu0 %v5259
    %7135 = vmatprep.subr.bf16.mxu0 %v5268
    %7136 = vmatpush1.bf16.msra.mxu0 %v5267
    %7137 = vmatprep.subr.bf16.mxu0 %v5276
    %7138 = vmatpush1.bf16.msra.mxu0 %v5275
    %7139 = vmatprep.subr.bf16.mxu0 %v5284
    %7140 = vmatpush1.bf16.msra.mxu0 %v5283
    %7141 = vmatprep.subr.bf16.mxu0 %v5292
    %7142 = vmatpush1.bf16.msra.mxu0 %v5291
    %7143 = vmatprep.subr.bf16.mxu0 %v5300
    %7144 = vmatpush1.bf16.msra.mxu0 %v5299
    %7145 = vmatprep.subr.bf16.mxu0 %v5308
    %7146 = vmatpush1.bf16.msra.mxu0 %v5307
    %7147 = vmatprep.subr.bf16.mxu0 %v5316
    %7148 = vmatpush1.bf16.msra.mxu0 %v5315
    %7149 = vmatprep.subr.bf16.mxu0 %v5324
    %7150 = vmatpush1.bf16.msra.mxu0 %v5323
    %7151 = vmatprep.subr.bf16.mxu0 %v5332
    %7152 = vmatpush1.bf16.msra.mxu0 %v5331
    %7153 = vmatprep.subr.bf16.mxu0 %v5340
    %7154 = vmatpush1.bf16.msra.mxu0 %v5339
    %7155 = vmatprep.subr.bf16.mxu0 %v5348
    %7156 = vmatpush1.bf16.msra.mxu0 %v5347
    %7157 = vmatprep.subr.bf16.mxu0 %v5356
    %7158 = vmatpush1.bf16.msra.mxu0 %v5355
    %7159 = vmatprep.subr.bf16.mxu0 %v5364
    %7160 = vmatpush1.bf16.msra.mxu0 %v5363
    %7161 = vmatprep.subr.bf16.mxu0 %v5372
    %7162 = vmatpush1.bf16.msra.mxu0 %v5371
    %7163 = vmatprep.mubr.bf16.mxu0 %v340
    %7164 = vmatmul.mubr.bf16.gmra.mrb[0].mxu0 %v339
    %v7165 = vpop.f32.mrb[0].mxu0
    %v7166 = vadd.f32 %v7123, %v7165
    %v7167 = vpop.f32.mrb[0].mxu0
    %v7168 = vadd.f32 %v7125, %v7167
    %v7169 = vpop.f32.mrb[0].mxu0
    %v7170 = vadd.f32 %v7127, %v7169
    %v7171 = vpop.f32.mrb[0].mxu0
    %v7172 = vadd.f32 %v7129, %v7171
    %7173 = vdwg.mxu0
    %7174 = vmatprep.subr.bf16.mxu0 %v5380
    %7175 = vmatpush1.bf16.msra.mxu0 %v5379
    %7176 = vmatprep.subr.bf16.mxu0 %v5388
    %7177 = vmatpush1.bf16.msra.mxu0 %v5387
    %7178 = vmatprep.subr.bf16.mxu0 %v5396
    %7179 = vmatpush1.bf16.msra.mxu0 %v5395
    %7180 = vmatprep.subr.bf16.mxu0 %v5404
    %7181 = vmatpush1.bf16.msra.mxu0 %v5403
    %7182 = vmatprep.subr.bf16.mxu0 %v5412
    %7183 = vmatpush1.bf16.msra.mxu0 %v5411
    %7184 = vmatprep.subr.bf16.mxu0 %v5420
    %7185 = vmatpush1.bf16.msra.mxu0 %v5419
    %7186 = vmatprep.subr.bf16.mxu0 %v5428
    %7187 = vmatpush1.bf16.msra.mxu0 %v5427
    %7188 = vmatprep.subr.bf16.mxu0 %v5436
    %7189 = vmatpush1.bf16.msra.mxu0 %v5435
    %7190 = vmatprep.subr.bf16.mxu0 %v5444
    %7191 = vmatpush1.bf16.msra.mxu0 %v5443
    %7192 = vmatprep.subr.bf16.mxu0 %v5452
    %7193 = vmatpush1.bf16.msra.mxu0 %v5451
    %7194 = vmatprep.subr.bf16.mxu0 %v5460
    %7195 = vmatpush1.bf16.msra.mxu0 %v5459
    %7196 = vmatprep.subr.bf16.mxu0 %v5468
    %7197 = vmatpush1.bf16.msra.mxu0 %v5467
    %7198 = vmatprep.subr.bf16.mxu0 %v5476
    %7199 = vmatpush1.bf16.msra.mxu0 %v5475
    %7200 = vmatprep.subr.bf16.mxu0 %v5484
    %7201 = vmatpush1.bf16.msra.mxu0 %v5483
    %7202 = vmatprep.subr.bf16.mxu0 %v5492
    %7203 = vmatpush1.bf16.msra.mxu0 %v5491
    %7204 = vmatprep.subr.bf16.mxu0 %v5500
    %7205 = vmatpush1.bf16.msra.mxu0 %v5499
    %7206 = vmatprep.mubr.bf16.mxu0 %v342
    %7207 = vmatmul.mubr.bf16.gmra.mrb[0].mxu0 %v341
    %v7208 = vpop.f32.mrb[0].mxu0
    %v7209 = vadd.f32 %v7166, %v7208
    %v7210 = vpop.f32.mrb[0].mxu0
    %v7211 = vadd.f32 %v7168, %v7210
    %v7212 = vpop.f32.mrb[0].mxu0
    %v7213 = vadd.f32 %v7170, %v7212
    %v7214 = vpop.f32.mrb[0].mxu0
    %v7215 = vadd.f32 %v7172, %v7214
    %7216 = vdwg.mxu0
    %7217 = vmatprep.subr.bf16.mxu0 %v4486
    %7218 = vmatpush1.bf16.msra.mxu0 %v4485
    %7219 = vmatprep.subr.bf16.mxu0 %v4494
    %7220 = vmatpush1.bf16.msra.mxu0 %v4493
    %7221 = vmatprep.subr.bf16.mxu0 %v4502
    %7222 = vmatpush1.bf16.msra.mxu0 %v4501
    %7223 = vmatprep.subr.bf16.mxu0 %v4510
    %7224 = vmatpush1.bf16.msra.mxu0 %v4509
    %7225 = vmatprep.subr.bf16.mxu0 %v4518
    %7226 = vmatpush1.bf16.msra.mxu0 %v4517
    %7227 = vmatprep.subr.bf16.mxu0 %v4526
    %7228 = vmatpush1.bf16.msra.mxu0 %v4525
    %7229 = vmatprep.subr.bf16.mxu0 %v4534
    %7230 = vmatpush1.bf16.msra.mxu0 %v4533
    %7231 = vmatprep.subr.bf16.mxu0 %v4542
    %7232 = vmatpush1.bf16.msra.mxu0 %v4541
    %7233 = vmatprep.subr.bf16.mxu0 %v4550
    %7234 = vmatpush1.bf16.msra.mxu0 %v4549
    %7235 = vmatprep.subr.bf16.mxu0 %v4558
    %7236 = vmatpush1.bf16.msra.mxu0 %v4557
    %7237 = vmatprep.subr.bf16.mxu0 %v4566
    %7238 = vmatpush1.bf16.msra.mxu0 %v4565
    %7239 = vmatprep.subr.bf16.mxu0 %v4574
    %7240 = vmatpush1.bf16.msra.mxu0 %v4573
    %7241 = vmatprep.subr.bf16.mxu0 %v4582
    %7242 = vmatpush1.bf16.msra.mxu0 %v4581
    %7243 = vmatprep.subr.bf16.mxu0 %v4590
    %7244 = vmatpush1.bf16.msra.mxu0 %v4589
    %7245 = vmatprep.subr.bf16.mxu0 %v4598
    %7246 = vmatpush1.bf16.msra.mxu0 %v4597
    %7247 = vmatprep.subr.bf16.mxu0 %v4606
    %7248 = vmatpush1.bf16.msra.mxu0 %v4605
    %7249 = vmatprep.mubr.bf16.mxu0 %v328
    %7250 = vmatmul.mubr.bf16.gmra.mrb[0].mxu0 %v327
    %v7251 = vpop.f32.mrb[0].mxu0
    %v7252 = vadd.f32 %v1388, %v7251
    %v7253 = vpop.f32.mrb[0].mxu0
    %v7254 = vadd.f32 %v1392, %v7253
    %v7255 = vpop.f32.mrb[0].mxu0
    %v7256 = vadd.f32 %v1388, %v7255
    %v7257 = vpop.f32.mrb[0].mxu0
    %v7258 = vadd.f32 %v1392, %v7257
    %7259 = vdwg.mxu0
    %7260 = vmatprep.subr.bf16.mxu0 %v4614
    %7261 = vmatpush1.bf16.msra.mxu0 %v4613
    %7262 = vmatprep.subr.bf16.mxu0 %v4622
    %7263 = vmatpush1.bf16.msra.mxu0 %v4621
    %7264 = vmatprep.subr.bf16.mxu0 %v4630
    %7265 = vmatpush1.bf16.msra.mxu0 %v4629
    %7266 = vmatprep.subr.bf16.mxu0 %v4638
    %7267 = vmatpush1.bf16.msra.mxu0 %v4637
    %7268 = vmatprep.subr.bf16.mxu0 %v4646
    %7269 = vmatpush1.bf16.msra.mxu0 %v4645
    %7270 = vmatprep.subr.bf16.mxu0 %v4654
    %7271 = vmatpush1.bf16.msra.mxu0 %v4653
    %7272 = vmatprep.subr.bf16.mxu0 %v4662
    %7273 = vmatpush1.bf16.msra.mxu0 %v4661
    %7274 = vmatprep.subr.bf16.mxu0 %v4670
    %7275 = vmatpush1.bf16.msra.mxu0 %v4669
    %7276 = vmatprep.subr.bf16.mxu0 %v4678
    %7277 = vmatpush1.bf16.msra.mxu0 %v4677
    %7278 = vmatprep.subr.bf16.mxu0 %v4686
    %7279 = vmatpush1.bf16.msra.mxu0 %v4685
    %7280 = vmatprep.subr.bf16.mxu0 %v4694
    %7281 = vmatpush1.bf16.msra.mxu0 %v4693
    %7282 = vmatprep.subr.bf16.mxu0 %v4702
    %7283 = vmatpush1.bf16.msra.mxu0 %v4701
    %7284 = vmatprep.subr.bf16.mxu0 %v4710
    %7285 = vmatpush1.bf16.msra.mxu0 %v4709
    %7286 = vmatprep.subr.bf16.mxu0 %v4718
    %7287 = vmatpush1.bf16.msra.mxu0 %v4717
    %7288 = vmatprep.subr.bf16.mxu0 %v4726
    %7289 = vmatpush1.bf16.msra.mxu0 %v4725
    %7290 = vmatprep.subr.bf16.mxu0 %v4734
    %7291 = vmatpush1.bf16.msra.mxu0 %v4733
    %7292 = vmatprep.mubr.bf16.mxu0 %v330
    %7293 = vmatmul.mubr.bf16.gmra.mrb[0].mxu0 %v329
    %v7294 = vpop.f32.mrb[0].mxu0
    %v7295 = vadd.f32 %v7252, %v7294
    %v7296 = vpop.f32.mrb[0].mxu0
    %v7297 = vadd.f32 %v7254, %v7296
    %v7298 = vpop.f32.mrb[0].mxu0
    %v7299 = vadd.f32 %v7256, %v7298
    %v7300 = vpop.f32.mrb[0].mxu0
    %v7301 = vadd.f32 %v7258, %v7300
    %7302 = vdwg.mxu0
    %7303 = vmatprep.subr.bf16.mxu0 %v4742
    %7304 = vmatpush1.bf16.msra.mxu0 %v4741
    %7305 = vmatprep.subr.bf16.mxu0 %v4750
    %7306 = vmatpush1.bf16.msra.mxu0 %v4749
    %7307 = vmatprep.subr.bf16.mxu0 %v4758
    %7308 = vmatpush1.bf16.msra.mxu0 %v4757
    %7309 = vmatprep.subr.bf16.mxu0 %v4766
    %7310 = vmatpush1.bf16.msra.mxu0 %v4765
    %7311 = vmatprep.subr.bf16.mxu0 %v4774
    %7312 = vmatpush1.bf16.msra.mxu0 %v4773
    %7313 = vmatprep.subr.bf16.mxu0 %v4782
    %7314 = vmatpush1.bf16.msra.mxu0 %v4781
    %7315 = vmatprep.subr.bf16.mxu0 %v4790
    %7316 = vmatpush1.bf16.msra.mxu0 %v4789
    %7317 = vmatprep.subr.bf16.mxu0 %v4798
    %7318 = vmatpush1.bf16.msra.mxu0 %v4797
    %7319 = vmatprep.subr.bf16.mxu0 %v4806
    %7320 = vmatpush1.bf16.msra.mxu0 %v4805
    %7321 = vmatprep.subr.bf16.mxu0 %v4814
    %7322 = vmatpush1.bf16.msra.mxu0 %v4813
    %7323 = vmatprep.subr.bf16.mxu0 %v4822
    %7324 = vmatpush1.bf16.msra.mxu0 %v4821
    %7325 = vmatprep.subr.bf16.mxu0 %v4830
    %7326 = vmatpush1.bf16.msra.mxu0 %v4829
    %7327 = vmatprep.subr.bf16.mxu0 %v4838
    %7328 = vmatpush1.bf16.msra.mxu0 %v4837
    %7329 = vmatprep.subr.bf16.mxu0 %v4846
    %7330 = vmatpush1.bf16.msra.mxu0 %v4845
    %7331 = vmatprep.subr.bf16.mxu0 %v4854
    %7332 = vmatpush1.bf16.msra.mxu0 %v4853
    %7333 = vmatprep.subr.bf16.mxu0 %v4862
    %7334 = vmatpush1.bf16.msra.mxu0 %v4861
    %7335 = vmatprep.mubr.bf16.mxu0 %v332
    %7336 = vmatmul.mubr.bf16.gmra.mrb[0].mxu0 %v331
    %v7337 = vpop.f32.mrb[0].mxu0
    %v7338 = vadd.f32 %v7295, %v7337
    %v7339 = vpop.f32.mrb[0].mxu0
    %v7340 = vadd.f32 %v7297, %v7339
    %v7341 = vpop.f32.mrb[0].mxu0
    %v7342 = vadd.f32 %v7299, %v7341
    %v7343 = vpop.f32.mrb[0].mxu0
    %v7344 = vadd.f32 %v7301, %v7343
    %7345 = vdwg.mxu0
    %7346 = vmatprep.subr.bf16.mxu0 %v4870
    %7347 = vmatpush1.bf16.msra.mxu0 %v4869
    %7348 = vmatprep.subr.bf16.mxu0 %v4878
    %7349 = vmatpush1.bf16.msra.mxu0 %v4877
    %7350 = vmatprep.subr.bf16.mxu0 %v4886
    %7351 = vmatpush1.bf16.msra.mxu0 %v4885
    %7352 = vmatprep.subr.bf16.mxu0 %v4894
    %7353 = vmatpush1.bf16.msra.mxu0 %v4893
    %7354 = vmatprep.subr.bf16.mxu0 %v4902
    %7355 = vmatpush1.bf16.msra.mxu0 %v4901
    %7356 = vmatprep.subr.bf16.mxu0 %v4910
    %7357 = vmatpush1.bf16.msra.mxu0 %v4909
    %7358 = vmatprep.subr.bf16.mxu0 %v4918
    %7359 = vmatpush1.bf16.msra.mxu0 %v4917
    %7360 = vmatprep.subr.bf16.mxu0 %v4926
    %7361 = vmatpush1.bf16.msra.mxu0 %v4925
    %7362 = vmatprep.subr.bf16.mxu0 %v4934
    %7363 = vmatpush1.bf16.msra.mxu0 %v4933
    %7364 = vmatprep.subr.bf16.mxu0 %v4942
    %7365 = vmatpush1.bf16.msra.mxu0 %v4941
    %7366 = vmatprep.subr.bf16.mxu0 %v4950
    %7367 = vmatpush1.bf16.msra.mxu0 %v4949
    %7368 = vmatprep.subr.bf16.mxu0 %v4958
    %7369 = vmatpush1.bf16.msra.mxu0 %v4957
    %7370 = vmatprep.subr.bf16.mxu0 %v4966
    %7371 = vmatpush1.bf16.msra.mxu0 %v4965
    %7372 = vmatprep.subr.bf16.mxu0 %v4974
    %7373 = vmatpush1.bf16.msra.mxu0 %v4973
    %7374 = vmatprep.subr.bf16.mxu0 %v4982
    %7375 = vmatpush1.bf16.msra.mxu0 %v4981
    %7376 = vmatprep.subr.bf16.mxu0 %v4990
    %7377 = vmatpush1.bf16.msra.mxu0 %v4989
    %7378 = vmatprep.mubr.bf16.mxu0 %v334
    %7379 = vmatmul.mubr.bf16.gmra.mrb[0].mxu0 %v333
    %v7380 = vpop.f32.mrb[0].mxu0
    %v7381 = vadd.f32 %v7338, %v7380
    %v7382 = vpop.f32.mrb[0].mxu0
    %v7383 = vadd.f32 %v7340, %v7382
    %v7384 = vpop.f32.mrb[0].mxu0
    %v7385 = vadd.f32 %v7342, %v7384
    %v7386 = vpop.f32.mrb[0].mxu0
    %v7387 = vadd.f32 %v7344, %v7386
    %7388 = vdwg.mxu0
    %7389 = vmatprep.subr.bf16.mxu0 %v4998
    %7390 = vmatpush1.bf16.msra.mxu0 %v4997
    %7391 = vmatprep.subr.bf16.mxu0 %v5006
    %7392 = vmatpush1.bf16.msra.mxu0 %v5005
    %7393 = vmatprep.subr.bf16.mxu0 %v5014
    %7394 = vmatpush1.bf16.msra.mxu0 %v5013
    %7395 = vmatprep.subr.bf16.mxu0 %v5022
    %7396 = vmatpush1.bf16.msra.mxu0 %v5021
    %7397 = vmatprep.subr.bf16.mxu0 %v5030
    %7398 = vmatpush1.bf16.msra.mxu0 %v5029
    %7399 = vmatprep.subr.bf16.mxu0 %v5038
    %7400 = vmatpush1.bf16.msra.mxu0 %v5037
    %7401 = vmatprep.subr.bf16.mxu0 %v5046
    %7402 = vmatpush1.bf16.msra.mxu0 %v5045
    %7403 = vmatprep.subr.bf16.mxu0 %v5054
    %7404 = vmatpush1.bf16.msra.mxu0 %v5053
    %7405 = vmatprep.subr.bf16.mxu0 %v5062
    %7406 = vmatpush1.bf16.msra.mxu0 %v5061
    %7407 = vmatprep.subr.bf16.mxu0 %v5070
    %7408 = vmatpush1.bf16.msra.mxu0 %v5069
    %7409 = vmatprep.subr.bf16.mxu0 %v5078
    %7410 = vmatpush1.bf16.msra.mxu0 %v5077
    %7411 = vmatprep.subr.bf16.mxu0 %v5086
    %7412 = vmatpush1.bf16.msra.mxu0 %v5085
    %7413 = vmatprep.subr.bf16.mxu0 %v5094
    %7414 = vmatpush1.bf16.msra.mxu0 %v5093
    %7415 = vmatprep.subr.bf16.mxu0 %v5102
    %7416 = vmatpush1.bf16.msra.mxu0 %v5101
    %7417 = vmatprep.subr.bf16.mxu0 %v5110
    %7418 = vmatpush1.bf16.msra.mxu0 %v5109
    %7419 = vmatprep.subr.bf16.mxu0 %v5118
    %7420 = vmatpush1.bf16.msra.mxu0 %v5117
    %7421 = vmatprep.mubr.bf16.mxu0 %v336
    %7422 = vmatmul.mubr.bf16.gmra.mrb[0].mxu0 %v335
    %v7423 = vpop.f32.mrb[0].mxu0
    %v7424 = vadd.f32 %v7381, %v7423
    %v7425 = vpop.f32.mrb[0].mxu0
    %v7426 = vadd.f32 %v7383, %v7425
    %v7427 = vpop.f32.mrb[0].mxu0
    %v7428 = vadd.f32 %v7385, %v7427
    %v7429 = vpop.f32.mrb[0].mxu0
    %v7430 = vadd.f32 %v7387, %v7429
    %7431 = vdwg.mxu0
    %7432 = vmatprep.subr.bf16.mxu0 %v5126
    %7433 = vmatpush1.bf16.msra.mxu0 %v5125
    %7434 = vmatprep.subr.bf16.mxu0 %v5134
    %7435 = vmatpush1.bf16.msra.mxu0 %v5133
    %7436 = vmatprep.subr.bf16.mxu0 %v5142
    %7437 = vmatpush1.bf16.msra.mxu0 %v5141
    %7438 = vmatprep.subr.bf16.mxu0 %v5150
    %7439 = vmatpush1.bf16.msra.mxu0 %v5149
    %7440 = vmatprep.subr.bf16.mxu0 %v5158
    %7441 = vmatpush1.bf16.msra.mxu0 %v5157
    %7442 = vmatprep.subr.bf16.mxu0 %v5166
    %7443 = vmatpush1.bf16.msra.mxu0 %v5165
    %7444 = vmatprep.subr.bf16.mxu0 %v5174
    %7445 = vmatpush1.bf16.msra.mxu0 %v5173
    %7446 = vmatprep.subr.bf16.mxu0 %v5182
    %7447 = vmatpush1.bf16.msra.mxu0 %v5181
    %7448 = vmatprep.subr.bf16.mxu0 %v5190
    %7449 = vmatpush1.bf16.msra.mxu0 %v5189
    %7450 = vmatprep.subr.bf16.mxu0 %v5198
    %7451 = vmatpush1.bf16.msra.mxu0 %v5197
    %7452 = vmatprep.subr.bf16.mxu0 %v5206
    %7453 = vmatpush1.bf16.msra.mxu0 %v5205
    %7454 = vmatprep.subr.bf16.mxu0 %v5214
    %7455 = vmatpush1.bf16.msra.mxu0 %v5213
    %7456 = vmatprep.subr.bf16.mxu0 %v5222
    %7457 = vmatpush1.bf16.msra.mxu0 %v5221
    %7458 = vmatprep.subr.bf16.mxu0 %v5230
    %7459 = vmatpush1.bf16.msra.mxu0 %v5229
    %7460 = vmatprep.subr.bf16.mxu0 %v5238
    %7461 = vmatpush1.bf16.msra.mxu0 %v5237
    %7462 = vmatprep.subr.bf16.mxu0 %v5246
    %7463 = vmatpush1.bf16.msra.mxu0 %v5245
    %7464 = vmatprep.mubr.bf16.mxu0 %v338
    %7465 = vmatmul.mubr.bf16.gmra.mrb[0].mxu0 %v337
    %v7466 = vpop.f32.mrb[0].mxu0
    %v7467 = vadd.f32 %v7424, %v7466
    %v7468 = vpop.f32.mrb[0].mxu0
    %v7469 = vadd.f32 %v7426, %v7468
    %v7470 = vpop.f32.mrb[0].mxu0
    %v7471 = vadd.f32 %v7428, %v7470
    %v7472 = vpop.f32.mrb[0].mxu0
    %v7473 = vadd.f32 %v7430, %v7472
    %7474 = vdwg.mxu0
    %7475 = vmatprep.subr.bf16.mxu0 %v5254
    %7476 = vmatpush1.bf16.msra.mxu0 %v5253
    %7477 = vmatprep.subr.bf16.mxu0 %v5262
    %7478 = vmatpush1.bf16.msra.mxu0 %v5261
    %7479 = vmatprep.subr.bf16.mxu0 %v5270
    %7480 = vmatpush1.bf16.msra.mxu0 %v5269
    %7481 = vmatprep.subr.bf16.mxu0 %v5278
    %7482 = vmatpush1.bf16.msra.mxu0 %v5277
    %7483 = vmatprep.subr.bf16.mxu0 %v5286
    %7484 = vmatpush1.bf16.msra.mxu0 %v5285
    %7485 = vmatprep.subr.bf16.mxu0 %v5294
    %7486 = vmatpush1.bf16.msra.mxu0 %v5293
    %7487 = vmatprep.subr.bf16.mxu0 %v5302
    %7488 = vmatpush1.bf16.msra.mxu0 %v5301
    %7489 = vmatprep.subr.bf16.mxu0 %v5310
    %7490 = vmatpush1.bf16.msra.mxu0 %v5309
    %7491 = vmatprep.subr.bf16.mxu0 %v5318
    %7492 = vmatpush1.bf16.msra.mxu0 %v5317
    %7493 = vmatprep.subr.bf16.mxu0 %v5326
    %7494 = vmatpush1.bf16.msra.mxu0 %v5325
    %7495 = vmatprep.subr.bf16.mxu0 %v5334
    %7496 = vmatpush1.bf16.msra.mxu0 %v5333
    %7497 = vmatprep.subr.bf16.mxu0 %v5342
    %7498 = vmatpush1.bf16.msra.mxu0 %v5341
    %7499 = vmatprep.subr.bf16.mxu0 %v5350
    %7500 = vmatpush1.bf16.msra.mxu0 %v5349
    %7501 = vmatprep.subr.bf16.mxu0 %v5358
    %7502 = vmatpush1.bf16.msra.mxu0 %v5357
    %7503 = vmatprep.subr.bf16.mxu0 %v5366
    %7504 = vmatpush1.bf16.msra.mxu0 %v5365
    %7505 = vmatprep.subr.bf16.mxu0 %v5374
    %7506 = vmatpush1.bf16.msra.mxu0 %v5373
    %7507 = vmatprep.mubr.bf16.mxu0 %v340
    %7508 = vmatmul.mubr.bf16.gmra.mrb[0].mxu0 %v339
    %v7509 = vpop.f32.mrb[0].mxu0
    %v7510 = vadd.f32 %v7467, %v7509
    %v7511 = vpop.f32.mrb[0].mxu0
    %v7512 = vadd.f32 %v7469, %v7511
    %v7513 = vpop.f32.mrb[0].mxu0
    %v7514 = vadd.f32 %v7471, %v7513
    %v7515 = vpop.f32.mrb[0].mxu0
    %v7516 = vadd.f32 %v7473, %v7515
    %7517 = vdwg.mxu0
    %7518 = vmatprep.subr.bf16.mxu0 %v5382
    %7519 = vmatpush1.bf16.msra.mxu0 %v5381
    %7520 = vmatprep.subr.bf16.mxu0 %v5390
    %7521 = vmatpush1.bf16.msra.mxu0 %v5389
    %7522 = vmatprep.subr.bf16.mxu0 %v5398
    %7523 = vmatpush1.bf16.msra.mxu0 %v5397
    %7524 = vmatprep.subr.bf16.mxu0 %v5406
    %7525 = vmatpush1.bf16.msra.mxu0 %v5405
    %7526 = vmatprep.subr.bf16.mxu0 %v5414
    %7527 = vmatpush1.bf16.msra.mxu0 %v5413
    %7528 = vmatprep.subr.bf16.mxu0 %v5422
    %7529 = vmatpush1.bf16.msra.mxu0 %v5421
    %7530 = vmatprep.subr.bf16.mxu0 %v5430
    %7531 = vmatpush1.bf16.msra.mxu0 %v5429
    %7532 = vmatprep.subr.bf16.mxu0 %v5438
    %7533 = vmatpush1.bf16.msra.mxu0 %v5437
    %7534 = vmatprep.subr.bf16.mxu0 %v5446
    %7535 = vmatpush1.bf16.msra.mxu0 %v5445
    %7536 = vmatprep.subr.bf16.mxu0 %v5454
    %7537 = vmatpush1.bf16.msra.mxu0 %v5453
    %7538 = vmatprep.subr.bf16.mxu0 %v5462
    %7539 = vmatpush1.bf16.msra.mxu0 %v5461
    %7540 = vmatprep.subr.bf16.mxu0 %v5470
    %7541 = vmatpush1.bf16.msra.mxu0 %v5469
    %7542 = vmatprep.subr.bf16.mxu0 %v5478
    %7543 = vmatpush1.bf16.msra.mxu0 %v5477
    %7544 = vmatprep.subr.bf16.mxu0 %v5486
    %7545 = vmatpush1.bf16.msra.mxu0 %v5485
    %7546 = vmatprep.subr.bf16.mxu0 %v5494
    %7547 = vmatpush1.bf16.msra.mxu0 %v5493
    %7548 = vmatprep.subr.bf16.mxu0 %v5502
    %7549 = vmatpush1.bf16.msra.mxu0 %v5501
    %7550 = vmatprep.mubr.bf16.mxu0 %v342
    %7551 = vmatmul.mubr.bf16.gmra.mrb[0].mxu0 %v341
    %v7552 = vpop.f32.mrb[0].mxu0
    %v7553 = vadd.f32 %v7510, %v7552
    %v7554 = vpop.f32.mrb[0].mxu0
    %v7555 = vadd.f32 %v7512, %v7554
    %v7556 = vpop.f32.mrb[0].mxu0
    %v7557 = vadd.f32 %v7514, %v7556
    %v7558 = vpop.f32.mrb[0].mxu0
    %v7559 = vadd.f32 %v7516, %v7558
    %7560 = vdwg.mxu0
    %7561 = vmatprep.subr.bf16.mxu0 %v4488
    %7562 = vmatpush1.bf16.msra.mxu0 %v4487
    %7563 = vmatprep.subr.bf16.mxu0 %v4496
    %7564 = vmatpush1.bf16.msra.mxu0 %v4495
    %7565 = vmatprep.subr.bf16.mxu0 %v4504
    %7566 = vmatpush1.bf16.msra.mxu0 %v4503
    %7567 = vmatprep.subr.bf16.mxu0 %v4512
    %7568 = vmatpush1.bf16.msra.mxu0 %v4511
    %7569 = vmatprep.subr.bf16.mxu0 %v4520
    %7570 = vmatpush1.bf16.msra.mxu0 %v4519
    %7571 = vmatprep.subr.bf16.mxu0 %v4528
    %7572 = vmatpush1.bf16.msra.mxu0 %v4527
    %7573 = vmatprep.subr.bf16.mxu0 %v4536
    %7574 = vmatpush1.bf16.msra.mxu0 %v4535
    %7575 = vmatprep.subr.bf16.mxu0 %v4544
    %7576 = vmatpush1.bf16.msra.mxu0 %v4543
    %7577 = vmatprep.subr.bf16.mxu0 %v4552
    %7578 = vmatpush1.bf16.msra.mxu0 %v4551
    %7579 = vmatprep.subr.bf16.mxu0 %v4560
    %7580 = vmatpush1.bf16.msra.mxu0 %v4559
    %7581 = vmatprep.subr.bf16.mxu0 %v4568
    %7582 = vmatpush1.bf16.msra.mxu0 %v4567
    %7583 = vmatprep.subr.bf16.mxu0 %v4576
    %7584 = vmatpush1.bf16.msra.mxu0 %v4575
    %7585 = vmatprep.subr.bf16.mxu0 %v4584
    %7586 = vmatpush1.bf16.msra.mxu0 %v4583
    %7587 = vmatprep.subr.bf16.mxu0 %v4592
    %7588 = vmatpush1.bf16.msra.mxu0 %v4591
    %7589 = vmatprep.subr.bf16.mxu0 %v4600
    %7590 = vmatpush1.bf16.msra.mxu0 %v4599
    %7591 = vmatprep.subr.bf16.mxu0 %v4608
    %7592 = vmatpush1.bf16.msra.mxu0 %v4607
    %7593 = vmatprep.mubr.bf16.mxu0 %v328
    %7594 = vmatmul.mubr.bf16.gmra.mrb[0].mxu0 %v327
    %v7595 = vpop.f32.mrb[0].mxu0
    %v7596 = vadd.f32 %v1396, %v7595
    %v7597 = vpop.f32.mrb[0].mxu0
    %v7598 = vadd.f32 %v1400, %v7597
    %v7599 = vpop.f32.mrb[0].mxu0
    %v7600 = vadd.f32 %v1396, %v7599
    %v7601 = vpop.f32.mrb[0].mxu0
    %v7602 = vadd.f32 %v1400, %v7601
    %7603 = vdwg.mxu0
    %7604 = vmatprep.subr.bf16.mxu0 %v4616
    %7605 = vmatpush1.bf16.msra.mxu0 %v4615
    %7606 = vmatprep.subr.bf16.mxu0 %v4624
    %7607 = vmatpush1.bf16.msra.mxu0 %v4623
    %7608 = vmatprep.subr.bf16.mxu0 %v4632
    %7609 = vmatpush1.bf16.msra.mxu0 %v4631
    %7610 = vmatprep.subr.bf16.mxu0 %v4640
    %7611 = vmatpush1.bf16.msra.mxu0 %v4639
    %7612 = vmatprep.subr.bf16.mxu0 %v4648
    %7613 = vmatpush1.bf16.msra.mxu0 %v4647
    %7614 = vmatprep.subr.bf16.mxu0 %v4656
    %7615 = vmatpush1.bf16.msra.mxu0 %v4655
    %7616 = vmatprep.subr.bf16.mxu0 %v4664
    %7617 = vmatpush1.bf16.msra.mxu0 %v4663
    %7618 = vmatprep.subr.bf16.mxu0 %v4672
    %7619 = vmatpush1.bf16.msra.mxu0 %v4671
    %7620 = vmatprep.subr.bf16.mxu0 %v4680
    %7621 = vmatpush1.bf16.msra.mxu0 %v4679
    %7622 = vmatprep.subr.bf16.mxu0 %v4688
    %7623 = vmatpush1.bf16.msra.mxu0 %v4687
    %7624 = vmatprep.subr.bf16.mxu0 %v4696
    %7625 = vmatpush1.bf16.msra.mxu0 %v4695
    %7626 = vmatprep.subr.bf16.mxu0 %v4704
    %7627 = vmatpush1.bf16.msra.mxu0 %v4703
    %7628 = vmatprep.subr.bf16.mxu0 %v4712
    %7629 = vmatpush1.bf16.msra.mxu0 %v4711
    %7630 = vmatprep.subr.bf16.mxu0 %v4720
    %7631 = vmatpush1.bf16.msra.mxu0 %v4719
    %7632 = vmatprep.subr.bf16.mxu0 %v4728
    %7633 = vmatpush1.bf16.msra.mxu0 %v4727
    %7634 = vmatprep.subr.bf16.mxu0 %v4736
    %7635 = vmatpush1.bf16.msra.mxu0 %v4735
    %7636 = vmatprep.mubr.bf16.mxu0 %v330
    %7637 = vmatmul.mubr.bf16.gmra.mrb[0].mxu0 %v329
    %v7638 = vpop.f32.mrb[0].mxu0
    %v7639 = vadd.f32 %v7596, %v7638
    %v7640 = vpop.f32.mrb[0].mxu0
    %v7641 = vadd.f32 %v7598, %v7640
    %v7642 = vpop.f32.mrb[0].mxu0
    %v7643 = vadd.f32 %v7600, %v7642
    %v7644 = vpop.f32.mrb[0].mxu0
    %v7645 = vadd.f32 %v7602, %v7644
    %7646 = vdwg.mxu0
    %7647 = vmatprep.subr.bf16.mxu0 %v4744
    %7648 = vmatpush1.bf16.msra.mxu0 %v4743
    %7649 = vmatprep.subr.bf16.mxu0 %v4752
    %7650 = vmatpush1.bf16.msra.mxu0 %v4751
    %7651 = vmatprep.subr.bf16.mxu0 %v4760
    %7652 = vmatpush1.bf16.msra.mxu0 %v4759
    %7653 = vmatprep.subr.bf16.mxu0 %v4768
    %7654 = vmatpush1.bf16.msra.mxu0 %v4767
    %7655 = vmatprep.subr.bf16.mxu0 %v4776
    %7656 = vmatpush1.bf16.msra.mxu0 %v4775
    %7657 = vmatprep.subr.bf16.mxu0 %v4784
    %7658 = vmatpush1.bf16.msra.mxu0 %v4783
    %7659 = vmatprep.subr.bf16.mxu0 %v4792
    %7660 = vmatpush1.bf16.msra.mxu0 %v4791
    %7661 = vmatprep.subr.bf16.mxu0 %v4800
    %7662 = vmatpush1.bf16.msra.mxu0 %v4799
    %7663 = vmatprep.subr.bf16.mxu0 %v4808
    %7664 = vmatpush1.bf16.msra.mxu0 %v4807
    %7665 = vmatprep.subr.bf16.mxu0 %v4816
    %7666 = vmatpush1.bf16.msra.mxu0 %v4815
    %7667 = vmatprep.subr.bf16.mxu0 %v4824
    %7668 = vmatpush1.bf16.msra.mxu0 %v4823
    %7669 = vmatprep.subr.bf16.mxu0 %v4832
    %7670 = vmatpush1.bf16.msra.mxu0 %v4831
    %7671 = vmatprep.subr.bf16.mxu0 %v4840
    %7672 = vmatpush1.bf16.msra.mxu0 %v4839
    %7673 = vmatprep.subr.bf16.mxu0 %v4848
    %7674 = vmatpush1.bf16.msra.mxu0 %v4847
    %7675 = vmatprep.subr.bf16.mxu0 %v4856
    %7676 = vmatpush1.bf16.msra.mxu0 %v4855
    %7677 = vmatprep.subr.bf16.mxu0 %v4864
    %7678 = vmatpush1.bf16.msra.mxu0 %v4863
    %7679 = vmatprep.mubr.bf16.mxu0 %v332
    %7680 = vmatmul.mubr.bf16.gmra.mrb[0].mxu0 %v331
    %v7681 = vpop.f32.mrb[0].mxu0
    %v7682 = vadd.f32 %v7639, %v7681
    %v7683 = vpop.f32.mrb[0].mxu0
    %v7684 = vadd.f32 %v7641, %v7683
    %v7685 = vpop.f32.mrb[0].mxu0
    %v7686 = vadd.f32 %v7643, %v7685
    %v7687 = vpop.f32.mrb[0].mxu0
    %v7688 = vadd.f32 %v7645, %v7687
    %7689 = vdwg.mxu0
    %7690 = vmatprep.subr.bf16.mxu0 %v4872
    %7691 = vmatpush1.bf16.msra.mxu0 %v4871
    %7692 = vmatprep.subr.bf16.mxu0 %v4880
    %7693 = vmatpush1.bf16.msra.mxu0 %v4879
    %7694 = vmatprep.subr.bf16.mxu0 %v4888
    %7695 = vmatpush1.bf16.msra.mxu0 %v4887
    %7696 = vmatprep.subr.bf16.mxu0 %v4896
    %7697 = vmatpush1.bf16.msra.mxu0 %v4895
    %7698 = vmatprep.subr.bf16.mxu0 %v4904
    %7699 = vmatpush1.bf16.msra.mxu0 %v4903
    %7700 = vmatprep.subr.bf16.mxu0 %v4912
    %7701 = vmatpush1.bf16.msra.mxu0 %v4911
    %7702 = vmatprep.subr.bf16.mxu0 %v4920
    %7703 = vmatpush1.bf16.msra.mxu0 %v4919
    %7704 = vmatprep.subr.bf16.mxu0 %v4928
    %7705 = vmatpush1.bf16.msra.mxu0 %v4927
    %7706 = vmatprep.subr.bf16.mxu0 %v4936
    %7707 = vmatpush1.bf16.msra.mxu0 %v4935
    %7708 = vmatprep.subr.bf16.mxu0 %v4944
    %7709 = vmatpush1.bf16.msra.mxu0 %v4943
    %7710 = vmatprep.subr.bf16.mxu0 %v4952
    %7711 = vmatpush1.bf16.msra.mxu0 %v4951
    %7712 = vmatprep.subr.bf16.mxu0 %v4960
    %7713 = vmatpush1.bf16.msra.mxu0 %v4959
    %7714 = vmatprep.subr.bf16.mxu0 %v4968
    %7715 = vmatpush1.bf16.msra.mxu0 %v4967
    %7716 = vmatprep.subr.bf16.mxu0 %v4976
    %7717 = vmatpush1.bf16.msra.mxu0 %v4975
    %7718 = vmatprep.subr.bf16.mxu0 %v4984
    %7719 = vmatpush1.bf16.msra.mxu0 %v4983
    %7720 = vmatprep.subr.bf16.mxu0 %v4992
    %7721 = vmatpush1.bf16.msra.mxu0 %v4991
    %7722 = vmatprep.mubr.bf16.mxu0 %v334
    %7723 = vmatmul.mubr.bf16.gmra.mrb[0].mxu0 %v333
    %v7724 = vpop.f32.mrb[0].mxu0
    %v7725 = vadd.f32 %v7682, %v7724
    %v7726 = vpop.f32.mrb[0].mxu0
    %v7727 = vadd.f32 %v7684, %v7726
    %v7728 = vpop.f32.mrb[0].mxu0
    %v7729 = vadd.f32 %v7686, %v7728
    %v7730 = vpop.f32.mrb[0].mxu0
    %v7731 = vadd.f32 %v7688, %v7730
    %7732 = vdwg.mxu0
    %7733 = vmatprep.subr.bf16.mxu0 %v5000
    %7734 = vmatpush1.bf16.msra.mxu0 %v4999
    %7735 = vmatprep.subr.bf16.mxu0 %v5008
    %7736 = vmatpush1.bf16.msra.mxu0 %v5007
    %7737 = vmatprep.subr.bf16.mxu0 %v5016
    %7738 = vmatpush1.bf16.msra.mxu0 %v5015
    %7739 = vmatprep.subr.bf16.mxu0 %v5024
    %7740 = vmatpush1.bf16.msra.mxu0 %v5023
    %7741 = vmatprep.subr.bf16.mxu0 %v5032
    %7742 = vmatpush1.bf16.msra.mxu0 %v5031
    %7743 = vmatprep.subr.bf16.mxu0 %v5040
    %7744 = vmatpush1.bf16.msra.mxu0 %v5039
    %7745 = vmatprep.subr.bf16.mxu0 %v5048
    %7746 = vmatpush1.bf16.msra.mxu0 %v5047
    %7747 = vmatprep.subr.bf16.mxu0 %v5056
    %7748 = vmatpush1.bf16.msra.mxu0 %v5055
    %7749 = vmatprep.subr.bf16.mxu0 %v5064
    %7750 = vmatpush1.bf16.msra.mxu0 %v5063
    %7751 = vmatprep.subr.bf16.mxu0 %v5072
    %7752 = vmatpush1.bf16.msra.mxu0 %v5071
    %7753 = vmatprep.subr.bf16.mxu0 %v5080
    %7754 = vmatpush1.bf16.msra.mxu0 %v5079
    %7755 = vmatprep.subr.bf16.mxu0 %v5088
    %7756 = vmatpush1.bf16.msra.mxu0 %v5087
    %7757 = vmatprep.subr.bf16.mxu0 %v5096
    %7758 = vmatpush1.bf16.msra.mxu0 %v5095
    %7759 = vmatprep.subr.bf16.mxu0 %v5104
    %7760 = vmatpush1.bf16.msra.mxu0 %v5103
    %7761 = vmatprep.subr.bf16.mxu0 %v5112
    %7762 = vmatpush1.bf16.msra.mxu0 %v5111
    %7763 = vmatprep.subr.bf16.mxu0 %v5120
    %7764 = vmatpush1.bf16.msra.mxu0 %v5119
    %7765 = vmatprep.mubr.bf16.mxu0 %v336
    %7766 = vmatmul.mubr.bf16.gmra.mrb[0].mxu0 %v335
    %v7767 = vpop.f32.mrb[0].mxu0
    %v7768 = vadd.f32 %v7725, %v7767
    %v7769 = vpop.f32.mrb[0].mxu0
    %v7770 = vadd.f32 %v7727, %v7769
    %v7771 = vpop.f32.mrb[0].mxu0
    %v7772 = vadd.f32 %v7729, %v7771
    %v7773 = vpop.f32.mrb[0].mxu0
    %v7774 = vadd.f32 %v7731, %v7773
    %7775 = vdwg.mxu0
    %7776 = vmatprep.subr.bf16.mxu0 %v5128
    %7777 = vmatpush1.bf16.msra.mxu0 %v5127
    %7778 = vmatprep.subr.bf16.mxu0 %v5136
    %7779 = vmatpush1.bf16.msra.mxu0 %v5135
    %7780 = vmatprep.subr.bf16.mxu0 %v5144
    %7781 = vmatpush1.bf16.msra.mxu0 %v5143
    %7782 = vmatprep.subr.bf16.mxu0 %v5152
    %7783 = vmatpush1.bf16.msra.mxu0 %v5151
    %7784 = vmatprep.subr.bf16.mxu0 %v5160
    %7785 = vmatpush1.bf16.msra.mxu0 %v5159
    %7786 = vmatprep.subr.bf16.mxu0 %v5168
    %7787 = vmatpush1.bf16.msra.mxu0 %v5167
    %7788 = vmatprep.subr.bf16.mxu0 %v5176
    %7789 = vmatpush1.bf16.msra.mxu0 %v5175
    %7790 = vmatprep.subr.bf16.mxu0 %v5184
    %7791 = vmatpush1.bf16.msra.mxu0 %v5183
    %7792 = vmatprep.subr.bf16.mxu0 %v5192
    %7793 = vmatpush1.bf16.msra.mxu0 %v5191
    %7794 = vmatprep.subr.bf16.mxu0 %v5200
    %7795 = vmatpush1.bf16.msra.mxu0 %v5199
    %7796 = vmatprep.subr.bf16.mxu0 %v5208
    %7797 = vmatpush1.bf16.msra.mxu0 %v5207
    %7798 = vmatprep.subr.bf16.mxu0 %v5216
    %7799 = vmatpush1.bf16.msra.mxu0 %v5215
    %7800 = vmatprep.subr.bf16.mxu0 %v5224
    %7801 = vmatpush1.bf16.msra.mxu0 %v5223
    %7802 = vmatprep.subr.bf16.mxu0 %v5232
    %7803 = vmatpush1.bf16.msra.mxu0 %v5231
    %7804 = vmatprep.subr.bf16.mxu0 %v5240
    %7805 = vmatpush1.bf16.msra.mxu0 %v5239
    %7806 = vmatprep.subr.bf16.mxu0 %v5248
    %7807 = vmatpush1.bf16.msra.mxu0 %v5247
    %7808 = vmatprep.mubr.bf16.mxu0 %v338
    %7809 = vmatmul.mubr.bf16.gmra.mrb[0].mxu0 %v337
    %v7810 = vpop.f32.mrb[0].mxu0
    %v7811 = vadd.f32 %v7768, %v7810
    %v7812 = vpop.f32.mrb[0].mxu0
    %v7813 = vadd.f32 %v7770, %v7812
    %v7814 = vpop.f32.mrb[0].mxu0
    %v7815 = vadd.f32 %v7772, %v7814
    %v7816 = vpop.f32.mrb[0].mxu0
    %v7817 = vadd.f32 %v7774, %v7816
    %7818 = vdwg.mxu0
    %7819 = vmatprep.subr.bf16.mxu0 %v5256
    %7820 = vmatpush1.bf16.msra.mxu0 %v5255
    %7821 = vmatprep.subr.bf16.mxu0 %v5264
    %7822 = vmatpush1.bf16.msra.mxu0 %v5263
    %7823 = vmatprep.subr.bf16.mxu0 %v5272
    %7824 = vmatpush1.bf16.msra.mxu0 %v5271
    %7825 = vmatprep.subr.bf16.mxu0 %v5280
    %7826 = vmatpush1.bf16.msra.mxu0 %v5279
    %7827 = vmatprep.subr.bf16.mxu0 %v5288
    %7828 = vmatpush1.bf16.msra.mxu0 %v5287
    %7829 = vmatprep.subr.bf16.mxu0 %v5296
    %7830 = vmatpush1.bf16.msra.mxu0 %v5295
    %7831 = vmatprep.subr.bf16.mxu0 %v5304
    %7832 = vmatpush1.bf16.msra.mxu0 %v5303
    %7833 = vmatprep.subr.bf16.mxu0 %v5312
    %7834 = vmatpush1.bf16.msra.mxu0 %v5311
    %7835 = vmatprep.subr.bf16.mxu0 %v5320
    %7836 = vmatpush1.bf16.msra.mxu0 %v5319
    %7837 = vmatprep.subr.bf16.mxu0 %v5328
    %7838 = vmatpush1.bf16.msra.mxu0 %v5327
    %7839 = vmatprep.subr.bf16.mxu0 %v5336
    %7840 = vmatpush1.bf16.msra.mxu0 %v5335
    %7841 = vmatprep.subr.bf16.mxu0 %v5344
    %7842 = vmatpush1.bf16.msra.mxu0 %v5343
    %7843 = vmatprep.subr.bf16.mxu0 %v5352
    %7844 = vmatpush1.bf16.msra.mxu0 %v5351
    %7845 = vmatprep.subr.bf16.mxu0 %v5360
    %7846 = vmatpush1.bf16.msra.mxu0 %v5359
    %7847 = vmatprep.subr.bf16.mxu0 %v5368
    %7848 = vmatpush1.bf16.msra.mxu0 %v5367
    %7849 = vmatprep.subr.bf16.mxu0 %v5376
    %7850 = vmatpush1.bf16.msra.mxu0 %v5375
    %7851 = vmatprep.mubr.bf16.mxu0 %v340
    %7852 = vmatmul.mubr.bf16.gmra.mrb[0].mxu0 %v339
    %v7853 = vpop.f32.mrb[0].mxu0
    %v7854 = vadd.f32 %v7811, %v7853
    %v7855 = vpop.f32.mrb[0].mxu0
    %v7856 = vadd.f32 %v7813, %v7855
    %v7857 = vpop.f32.mrb[0].mxu0
    %v7858 = vadd.f32 %v7815, %v7857
    %v7859 = vpop.f32.mrb[0].mxu0
    %v7860 = vadd.f32 %v7817, %v7859
    %7861 = vdwg.mxu0
    %7862 = vmatprep.subr.bf16.mxu0 %v5384
    %7863 = vmatpush1.bf16.msra.mxu0 %v5383
    %7864 = vmatprep.subr.bf16.mxu0 %v5392
    %7865 = vmatpush1.bf16.msra.mxu0 %v5391
    %7866 = vmatprep.subr.bf16.mxu0 %v5400
    %7867 = vmatpush1.bf16.msra.mxu0 %v5399
    %7868 = vmatprep.subr.bf16.mxu0 %v5408
    %7869 = vmatpush1.bf16.msra.mxu0 %v5407
    %7870 = vmatprep.subr.bf16.mxu0 %v5416
    %7871 = vmatpush1.bf16.msra.mxu0 %v5415
    %7872 = vmatprep.subr.bf16.mxu0 %v5424
    %7873 = vmatpush1.bf16.msra.mxu0 %v5423
    %7874 = vmatprep.subr.bf16.mxu0 %v5432
    %7875 = vmatpush1.bf16.msra.mxu0 %v5431
    %7876 = vmatprep.subr.bf16.mxu0 %v5440
    %7877 = vmatpush1.bf16.msra.mxu0 %v5439
    %7878 = vmatprep.subr.bf16.mxu0 %v5448
    %7879 = vmatpush1.bf16.msra.mxu0 %v5447
    %7880 = vmatprep.subr.bf16.mxu0 %v5456
    %7881 = vmatpush1.bf16.msra.mxu0 %v5455
    %7882 = vmatprep.subr.bf16.mxu0 %v5464
    %7883 = vmatpush1.bf16.msra.mxu0 %v5463
    %7884 = vmatprep.subr.bf16.mxu0 %v5472
    %7885 = vmatpush1.bf16.msra.mxu0 %v5471
    %7886 = vmatprep.subr.bf16.mxu0 %v5480
    %7887 = vmatpush1.bf16.msra.mxu0 %v5479
    %7888 = vmatprep.subr.bf16.mxu0 %v5488
    %7889 = vmatpush1.bf16.msra.mxu0 %v5487
    %7890 = vmatprep.subr.bf16.mxu0 %v5496
    %7891 = vmatpush1.bf16.msra.mxu0 %v5495
    %7892 = vmatprep.subr.bf16.mxu0 %v5504
    %7893 = vmatpush1.bf16.msra.mxu0 %v5503
    %7894 = vmatprep.mubr.bf16.mxu0 %v342
    %7895 = vmatmul.mubr.bf16.gmra.mrb[0].mxu0 %v341
    %v7896 = vpop.f32.mrb[0].mxu0
    %v7897 = vadd.f32 %v7854, %v7896
    %v7898 = vpop.f32.mrb[0].mxu0
    %v7899 = vadd.f32 %v7856, %v7898
    %v7900 = vpop.f32.mrb[0].mxu0
    %v7901 = vadd.f32 %v7858, %v7900
    %v7902 = vpop.f32.mrb[0].mxu0
    %v7903 = vadd.f32 %v7860, %v7902
    %7904 = vdwg.mxu0
    %v7905 = vld [vmem:[#allocation8] sm:$0xff]
    %v7906 = vld [vmem:[#allocation10] sm:$0xff]
    %v7907 = vadd.f32 %v6865, %v6869
    %v7908 = vrot.slane %v7907, 4
    %v7909 = vadd.f32 %v7907, %v7908
    %v7910 = vrot.slane %v7909, 2
    %v7911 = vadd.f32 %v7909, %v7910
    %v7912 = vrot.slane %v7911, 1
    %v7913 = vadd.f32 %v7911, %v7912
    %v7914 = vadd.f32 %v6867, %v6871
    %v7915 = vrot.slane %v7914, 4
    %v7916 = vadd.f32 %v7914, %v7915
    %v7917 = vrot.slane %v7916, 2
    %v7918 = vadd.f32 %v7916, %v7917
    %v7919 = vrot.slane %v7918, 1
    %v7920 = vadd.f32 %v7918, %v7919
    %v7921 = vadd.f32 %v7209, %v7213
    %v7922 = vrot.slane %v7921, 4
    %v7923 = vadd.f32 %v7921, %v7922
    %v7924 = vrot.slane %v7923, 2
    %v7925 = vadd.f32 %v7923, %v7924
    %v7926 = vrot.slane %v7925, 1
    %v7927 = vadd.f32 %v7925, %v7926
    %v7928 = vadd.f32 %v7211, %v7215
    %v7929 = vrot.slane %v7928, 4
    %v7930 = vadd.f32 %v7928, %v7929
    %v7931 = vrot.slane %v7930, 2
    %v7932 = vadd.f32 %v7930, %v7931
    %v7933 = vrot.slane %v7932, 1
    %v7934 = vadd.f32 %v7932, %v7933
    %v7935 = vadd.f32 %v7553, %v7557
    %v7936 = vrot.slane %v7935, 4
    %v7937 = vadd.f32 %v7935, %v7936
    %v7938 = vrot.slane %v7937, 2
    %v7939 = vadd.f32 %v7937, %v7938
    %v7940 = vrot.slane %v7939, 1
    %v7941 = vadd.f32 %v7939, %v7940
    %v7942 = vadd.f32 %v7555, %v7559
    %v7943 = vrot.slane %v7942, 4
    %v7944 = vadd.f32 %v7942, %v7943
    %v7945 = vrot.slane %v7944, 2
    %v7946 = vadd.f32 %v7944, %v7945
    %v7947 = vrot.slane %v7946, 1
    %v7948 = vadd.f32 %v7946, %v7947
    %v7949 = vadd.f32 %v7897, %v7901
    %v7950 = vrot.slane %v7949, 4
    %v7951 = vadd.f32 %v7949, %v7950
    %v7952 = vrot.slane %v7951, 2
    %v7953 = vadd.f32 %v7951, %v7952
    %v7954 = vrot.slane %v7953, 1
    %v7955 = vadd.f32 %v7953, %v7954
    %v7956 = vadd.f32 %v7899, %v7903
    %v7957 = vrot.slane %v7956, 4
    %v7958 = vadd.f32 %v7956, %v7957
    %v7959 = vrot.slane %v7958, 2
    %v7960 = vadd.f32 %v7958, %v7959
    %v7961 = vrot.slane %v7960, 1
    %v7962 = vadd.f32 %v7960, %v7961
    %v7963 = vrcp.pop 16.0
    %v7964 = vmul.f32 %v7913, %v7963
    %v7965 = vmul.f32 %v7920, %v7963
    %v7966 = vmul.f32 %v7927, %v7963
    %v7967 = vmul.f32 %v7934, %v7963
    %v7968 = vmul.f32 %v7941, %v7963
    %v7969 = vmul.f32 %v7948, %v7963
    %v7970 = vmul.f32 %v7955, %v7963
    %v7971 = vmul.f32 %v7962, %v7963
    %v7972 = vsub.f32 %v6865, %v7964
    %v7973 = vsub.f32 %v6867, %v7965
    %v7974 = vsub.f32 %v7209, %v7966
    %v7975 = vsub.f32 %v7211, %v7967
    %v7976 = vsub.f32 %v7553, %v7968
    %v7977 = vsub.f32 %v7555, %v7969
    %v7978 = vsub.f32 %v7897, %v7970
    %v7979 = vsub.f32 %v7899, %v7971
    %v7980 = vsub.f32 %v6869, %v7964
    %v7981 = vsub.f32 %v6871, %v7965
    %v7982 = vsub.f32 %v7213, %v7966
    %v7983 = vsub.f32 %v7215, %v7967
    %v7984 = vsub.f32 %v7557, %v7968
    %v7985 = vsub.f32 %v7559, %v7969
    %v7986 = vsub.f32 %v7901, %v7970
    %v7987 = vsub.f32 %v7903, %v7971
    %v7988 = vmul.f32 %v7972, %v7972
    %v7989 = vmul.f32 %v7973, %v7973
    %v7990 = vmul.f32 %v7974, %v7974
    %v7991 = vmul.f32 %v7975, %v7975
    %v7992 = vmul.f32 %v7976, %v7976
    %v7993 = vmul.f32 %v7977, %v7977
    %v7994 = vmul.f32 %v7978, %v7978
    %v7995 = vmul.f32 %v7979, %v7979
    %v7996 = vmul.f32 %v7980, %v7980
    %v7997 = vmul.f32 %v7981, %v7981
    %v7998 = vmul.f32 %v7982, %v7982
    %v7999 = vmul.f32 %v7983, %v7983
    %v8000 = vmul.f32 %v7984, %v7984
    %v8001 = vmul.f32 %v7985, %v7985
    %v8002 = vmul.f32 %v7986, %v7986
    %v8003 = vmul.f32 %v7987, %v7987
    %v8004 = vadd.f32 %v7988, %v7996
    %v8005 = vrot.slane %v8004, 4
    %v8006 = vadd.f32 %v8004, %v8005
    %v8007 = vrot.slane %v8006, 2
    %v8008 = vadd.f32 %v8006, %v8007
    %v8009 = vrot.slane %v8008, 1
    %v8010 = vadd.f32 %v8008, %v8009
    %v8011 = vadd.f32 %v7989, %v7997
    %v8012 = vrot.slane %v8011, 4
    %v8013 = vadd.f32 %v8011, %v8012
    %v8014 = vrot.slane %v8013, 2
    %v8015 = vadd.f32 %v8013, %v8014
    %v8016 = vrot.slane %v8015, 1
    %v8017 = vadd.f32 %v8015, %v8016
    %v8018 = vadd.f32 %v7990, %v7998
    %v8019 = vrot.slane %v8018, 4
    %v8020 = vadd.f32 %v8018, %v8019
    %v8021 = vrot.slane %v8020, 2
    %v8022 = vadd.f32 %v8020, %v8021
    %v8023 = vrot.slane %v8022, 1
    %v8024 = vadd.f32 %v8022, %v8023
    %v8025 = vadd.f32 %v7991, %v7999
    %v8026 = vrot.slane %v8025, 4
    %v8027 = vadd.f32 %v8025, %v8026
    %v8028 = vrot.slane %v8027, 2
    %v8029 = vadd.f32 %v8027, %v8028
    %v8030 = vrot.slane %v8029, 1
    %v8031 = vadd.f32 %v8029, %v8030
    %v8032 = vadd.f32 %v7992, %v8000
    %v8033 = vrot.slane %v8032, 4
    %v8034 = vadd.f32 %v8032, %v8033
    %v8035 = vrot.slane %v8034, 2
    %v8036 = vadd.f32 %v8034, %v8035
    %v8037 = vrot.slane %v8036, 1
    %v8038 = vadd.f32 %v8036, %v8037
    %v8039 = vadd.f32 %v7993, %v8001
    %v8040 = vrot.slane %v8039, 4
    %v8041 = vadd.f32 %v8039, %v8040
    %v8042 = vrot.slane %v8041, 2
    %v8043 = vadd.f32 %v8041, %v8042
    %v8044 = vrot.slane %v8043, 1
    %v8045 = vadd.f32 %v8043, %v8044
    %v8046 = vadd.f32 %v7994, %v8002
    %v8047 = vrot.slane %v8046, 4
    %v8048 = vadd.f32 %v8046, %v8047
    %v8049 = vrot.slane %v8048, 2
    %v8050 = vadd.f32 %v8048, %v8049
    %v8051 = vrot.slane %v8050, 1
    %v8052 = vadd.f32 %v8050, %v8051
    %v8053 = vadd.f32 %v7995, %v8003
    %v8054 = vrot.slane %v8053, 4
    %v8055 = vadd.f32 %v8053, %v8054
    %v8056 = vrot.slane %v8055, 2
    %v8057 = vadd.f32 %v8055, %v8056
    %v8058 = vrot.slane %v8057, 1
    %v8059 = vadd.f32 %v8057, %v8058
    %v8060 = vmul.f32 %v8010, %v7963
    %v8061 = vmul.f32 %v8017, %v7963
    %v8062 = vmul.f32 %v8024, %v7963
    %v8063 = vmul.f32 %v8031, %v7963
    %v8064 = vmul.f32 %v8038, %v7963
    %v8065 = vmul.f32 %v8045, %v7963
    %v8066 = vmul.f32 %v8052, %v7963
    %v8067 = vmul.f32 %v8059, %v7963
    %v8068 = vadd.f32 %v8060, 1e-05
    %v8069 = vadd.f32 %v8061, 1e-05
    %v8070 = vadd.f32 %v8062, 1e-05
    %v8071 = vadd.f32 %v8063, 1e-05
    %v8072 = vadd.f32 %v8064, 1e-05
    %v8073 = vadd.f32 %v8065, 1e-05
    %v8074 = vadd.f32 %v8066, 1e-05
    %v8075 = vadd.f32 %v8067, 1e-05
    %v8076 = vrsqrt.pop %v8068
    %v8077 = vrsqrt.pop %v8069
    %v8078 = vrsqrt.pop %v8070
    %v8079 = vrsqrt.pop %v8071
    %v8080 = vrsqrt.pop %v8072
    %v8081 = vrsqrt.pop %v8073
    %v8082 = vrsqrt.pop %v8074
    %v8083 = vrsqrt.pop %v8075
    %v8084 = vmul.f32 %v7972, %v8076
    %v8085 = vmul.f32 %v7973, %v8077
    %v8086 = vmul.f32 %v7974, %v8078
    %v8087 = vmul.f32 %v7975, %v8079
    %v8088 = vmul.f32 %v7976, %v8080
    %v8089 = vmul.f32 %v7977, %v8081
    %v8090 = vmul.f32 %v7978, %v8082
    %v8091 = vmul.f32 %v7979, %v8083
    %v8092 = vmul.f32 %v7980, %v8076
    %v8093 = vmul.f32 %v7981, %v8077
    %v8094 = vmul.f32 %v7982, %v8078
    %v8095 = vmul.f32 %v7983, %v8079
    %v8096 = vmul.f32 %v7984, %v8080
    %v8097 = vmul.f32 %v7985, %v8081
    %v8098 = vmul.f32 %v7986, %v8082
    %v8099 = vmul.f32 %v7987, %v8083
    %v8101 = vlaneseq
    %v8102 = vshrl.u32 %v8101, 7
    %v8103 = vsub.s32 0, %v8102
    %v8104 = vrot.slane %v7905, %v8103
    %v8105 = vlaneseq
    %v8106 = vshrl.u32 %v8105, 7
    %v8107 = vsub.s32 1, %v8106
    %v8108 = vrot.slane %v7905, %v8107
    %v8109 = vlaneseq
    %v8110 = vshrl.u32 %v8109, 7
    %v8111 = vsub.s32 2, %v8110
    %v8112 = vrot.slane %v7905, %v8111
    %v8113 = vlaneseq
    %v8114 = vshrl.u32 %v8113, 7
    %v8115 = vsub.s32 3, %v8114
    %v8116 = vrot.slane %v7905, %v8115
    %v8117 = vlaneseq
    %v8118 = vshrl.u32 %v8117, 7
    %v8119 = vsub.s32 4, %v8118
    %v8120 = vrot.slane %v7905, %v8119
    %v8121 = vlaneseq
    %v8122 = vshrl.u32 %v8121, 7
    %v8123 = vsub.s32 5, %v8122
    %v8124 = vrot.slane %v7905, %v8123
    %v8125 = vlaneseq
    %v8126 = vshrl.u32 %v8125, 7
    %v8127 = vsub.s32 6, %v8126
    %v8128 = vrot.slane %v7905, %v8127
    %v8129 = vlaneseq
    %v8130 = vshrl.u32 %v8129, 7
    %v8131 = vsub.s32 7, %v8130
    %v8132 = vrot.slane %v7905, %v8131
    %v8141 = vmul.f32 %v8084, %v8104
    %v8142 = vmul.f32 %v8085, %v8108
    %v8143 = vmul.f32 %v8086, %v8112
    %v8144 = vmul.f32 %v8087, %v8116
    %v8145 = vmul.f32 %v8088, %v8120
    %v8146 = vmul.f32 %v8089, %v8124
    %v8147 = vmul.f32 %v8090, %v8128
    %v8148 = vmul.f32 %v8091, %v8132
    %v8149 = vmul.f32 %v8092, %v8104
    %v8150 = vmul.f32 %v8093, %v8108
    %v8151 = vmul.f32 %v8094, %v8112
    %v8152 = vmul.f32 %v8095, %v8116
    %v8153 = vmul.f32 %v8096, %v8120
    %v8154 = vmul.f32 %v8097, %v8124
    %v8155 = vmul.f32 %v8098, %v8128
    %v8156 = vmul.f32 %v8099, %v8132
    %v8158 = vlaneseq
    %v8159 = vshrl.u32 %v8158, 7
    %v8160 = vsub.s32 0, %v8159
    %v8161 = vrot.slane %v7906, %v8160
    %v8162 = vlaneseq
    %v8163 = vshrl.u32 %v8162, 7
    %v8164 = vsub.s32 1, %v8163
    %v8165 = vrot.slane %v7906, %v8164
    %v8166 = vlaneseq
    %v8167 = vshrl.u32 %v8166, 7
    %v8168 = vsub.s32 2, %v8167
    %v8169 = vrot.slane %v7906, %v8168
    %v8170 = vlaneseq
    %v8171 = vshrl.u32 %v8170, 7
    %v8172 = vsub.s32 3, %v8171
    %v8173 = vrot.slane %v7906, %v8172
    %v8174 = vlaneseq
    %v8175 = vshrl.u32 %v8174, 7
    %v8176 = vsub.s32 4, %v8175
    %v8177 = vrot.slane %v7906, %v8176
    %v8178 = vlaneseq
    %v8179 = vshrl.u32 %v8178, 7
    %v8180 = vsub.s32 5, %v8179
    %v8181 = vrot.slane %v7906, %v8180
    %v8182 = vlaneseq
    %v8183 = vshrl.u32 %v8182, 7
    %v8184 = vsub.s32 6, %v8183
    %v8185 = vrot.slane %v7906, %v8184
    %v8186 = vlaneseq
    %v8187 = vshrl.u32 %v8186, 7
    %v8188 = vsub.s32 7, %v8187
    %v8189 = vrot.slane %v7906, %v8188
    %v8198 = vadd.f32 %v8141, %v8161
    %v8199 = vadd.f32 %v8142, %v8165
    %v8200 = vadd.f32 %v8143, %v8169
    %v8201 = vadd.f32 %v8144, %v8173
    %v8202 = vadd.f32 %v8145, %v8177
    %v8203 = vadd.f32 %v8146, %v8181
    %v8204 = vadd.f32 %v8147, %v8185
    %v8205 = vadd.f32 %v8148, %v8189
    %v8206 = vadd.f32 %v8149, %v8161
    %v8207 = vadd.f32 %v8150, %v8165
    %v8208 = vadd.f32 %v8151, %v8169
    %v8209 = vadd.f32 %v8152, %v8173
    %v8210 = vadd.f32 %v8153, %v8177
    %v8211 = vadd.f32 %v8154, %v8181
    %v8212 = vadd.f32 %v8155, %v8185
    %v8213 = vadd.f32 %v8156, %v8189
    %v8214 = vmax.f32 %v8198, 0.0
    %v8215 = vmax.f32 %v8199, 0.0
    %v8216 = vmax.f32 %v8200, 0.0
    %v8217 = vmax.f32 %v8201, 0.0
    %v8218 = vmax.f32 %v8202, 0.0
    %v8219 = vmax.f32 %v8203, 0.0
    %v8220 = vmax.f32 %v8204, 0.0
    %v8221 = vmax.f32 %v8205, 0.0
    %v8222 = vmax.f32 %v8206, 0.0
    %v8223 = vmax.f32 %v8207, 0.0
    %v8224 = vmax.f32 %v8208, 0.0
    %v8225 = vmax.f32 %v8209, 0.0
    %v8226 = vmax.f32 %v8210, 0.0
    %v8227 = vmax.f32 %v8211, 0.0
    %v8228 = vmax.f32 %v8212, 0.0
    %v8229 = vmax.f32 %v8213, 0.0
    %v8230 = vpack.c.bf16 %v8222, %v8214
    %v8231 = vpack.c.bf16 %v8223, %v8215
    %v8232 = vpack.c.bf16 %v8224, %v8216
    %v8233 = vpack.c.bf16 %v8225, %v8217
    %v8234 = vpack.c.bf16 %v8226, %v8218
    %v8235 = vpack.c.bf16 %v8227, %v8219
    %v8236 = vpack.c.bf16 %v8228, %v8220
    %v8237 = vpack.c.bf16 %v8229, %v8221
    %v8238 = vld [vmem:[#allocation11] sm:$0xff]
    %v8239 = vld [vmem:[#allocation11 + $0x8] sm:$0xff]
    %v8240 = vld [vmem:[#allocation11 + $0x10] sm:$0xff]
    %v8241 = vld [vmem:[#allocation11 + $0x18] sm:$0xff]
    %v8242 = vld [vmem:[#allocation11 + $0x20] sm:$0xff]
    %v8243 = vld [vmem:[#allocation11 + $0x28] sm:$0xff]
    %v8244 = vld [vmem:[#allocation11 + $0x30] sm:$0xff]
    %v8245 = vld [vmem:[#allocation11 + $0x38] sm:$0xff]
    %v8246 = vld [vmem:[#allocation11 + $0x40] sm:$0xff]
    %v8247 = vld [vmem:[#allocation11 + $0x48] sm:$0xff]
    %v8248 = vld [vmem:[#allocation11 + $0x50] sm:$0xff]
    %v8249 = vld [vmem:[#allocation11 + $0x58] sm:$0xff]
    %v8250 = vld [vmem:[#allocation11 + $0x60] sm:$0xff]
    %v8251 = vld [vmem:[#allocation11 + $0x68] sm:$0xff]
    %v8252 = vld [vmem:[#allocation11 + $0x70] sm:$0xff]
    %v8253 = vld [vmem:[#allocation11 + $0x78] sm:$0xff]
    %v8254 = vld [vmem:[#allocation11 + $0x80] sm:$0xff]
    %v8255 = vld [vmem:[#allocation11 + $0x88] sm:$0xff]
    %v8256 = vld [vmem:[#allocation11 + $0x90] sm:$0xff]
    %v8257 = vld [vmem:[#allocation11 + $0x98] sm:$0xff]
    %v8258 = vld [vmem:[#allocation11 + $0xa0] sm:$0xff]
    %v8259 = vld [vmem:[#allocation11 + $0xa8] sm:$0xff]
    %v8260 = vld [vmem:[#allocation11 + $0xb0] sm:$0xff]
    %v8261 = vld [vmem:[#allocation11 + $0xb8] sm:$0xff]
    %v8262 = vld [vmem:[#allocation11 + $0xc0] sm:$0xff]
    %v8263 = vld [vmem:[#allocation11 + $0xc8] sm:$0xff]
    %v8264 = vld [vmem:[#allocation11 + $0xd0] sm:$0xff]
    %v8265 = vld [vmem:[#allocation11 + $0xd8] sm:$0xff]
    %v8266 = vld [vmem:[#allocation11 + $0xe0] sm:$0xff]
    %v8267 = vld [vmem:[#allocation11 + $0xe8] sm:$0xff]
    %v8268 = vld [vmem:[#allocation11 + $0xf0] sm:$0xff]
    %v8269 = vld [vmem:[#allocation11 + $0xf8] sm:$0xff]
    %v8270 = vld [vmem:[#allocation11 + $0x100] sm:$0xff]
    %v8271 = vld [vmem:[#allocation11 + $0x108] sm:$0xff]
    %v8272 = vld [vmem:[#allocation11 + $0x110] sm:$0xff]
    %v8273 = vld [vmem:[#allocation11 + $0x118] sm:$0xff]
    %v8274 = vld [vmem:[#allocation11 + $0x120] sm:$0xff]
    %v8275 = vld [vmem:[#allocation11 + $0x128] sm:$0xff]
    %v8276 = vld [vmem:[#allocation11 + $0x130] sm:$0xff]
    %v8277 = vld [vmem:[#allocation11 + $0x138] sm:$0xff]
    %v8278 = vld [vmem:[#allocation11 + $0x140] sm:$0xff]
    %v8279 = vld [vmem:[#allocation11 + $0x148] sm:$0xff]
    %v8280 = vld [vmem:[#allocation11 + $0x150] sm:$0xff]
    %v8281 = vld [vmem:[#allocation11 + $0x158] sm:$0xff]
    %v8282 = vld [vmem:[#allocation11 + $0x160] sm:$0xff]
    %v8283 = vld [vmem:[#allocation11 + $0x168] sm:$0xff]
    %v8284 = vld [vmem:[#allocation11 + $0x170] sm:$0xff]
    %v8285 = vld [vmem:[#allocation11 + $0x178] sm:$0xff]
    %v8286 = vld [vmem:[#allocation11 + $0x180] sm:$0xff]
    %v8287 = vld [vmem:[#allocation11 + $0x188] sm:$0xff]
    %v8288 = vld [vmem:[#allocation11 + $0x190] sm:$0xff]
    %v8289 = vld [vmem:[#allocation11 + $0x198] sm:$0xff]
    %v8290 = vld [vmem:[#allocation11 + $0x1a0] sm:$0xff]
    %v8291 = vld [vmem:[#allocation11 + $0x1a8] sm:$0xff]
    %v8292 = vld [vmem:[#allocation11 + $0x1b0] sm:$0xff]
    %v8293 = vld [vmem:[#allocation11 + $0x1b8] sm:$0xff]
    %v8294 = vld [vmem:[#allocation11 + $0x1c0] sm:$0xff]
    %v8295 = vld [vmem:[#allocation11 + $0x1c8] sm:$0xff]
    %v8296 = vld [vmem:[#allocation11 + $0x1d0] sm:$0xff]
    %v8297 = vld [vmem:[#allocation11 + $0x1d8] sm:$0xff]
    %v8298 = vld [vmem:[#allocation11 + $0x1e0] sm:$0xff]
    %v8299 = vld [vmem:[#allocation11 + $0x1e8] sm:$0xff]
    %v8300 = vld [vmem:[#allocation11 + $0x1f0] sm:$0xff]
    %v8301 = vld [vmem:[#allocation11 + $0x1f8] sm:$0xff]
    %v8302 = vld [vmem:[#allocation11 + $0x200] sm:$0xff]
    %v8303 = vld [vmem:[#allocation11 + $0x208] sm:$0xff]
    %v8304 = vld [vmem:[#allocation11 + $0x210] sm:$0xff]
    %v8305 = vld [vmem:[#allocation11 + $0x218] sm:$0xff]
    %v8306 = vld [vmem:[#allocation11 + $0x220] sm:$0xff]
    %v8307 = vld [vmem:[#allocation11 + $0x228] sm:$0xff]
    %v8308 = vld [vmem:[#allocation11 + $0x230] sm:$0xff]
    %v8309 = vld [vmem:[#allocation11 + $0x238] sm:$0xff]
    %v8310 = vld [vmem:[#allocation11 + $0x240] sm:$0xff]
    %v8311 = vld [vmem:[#allocation11 + $0x248] sm:$0xff]
    %v8312 = vld [vmem:[#allocation11 + $0x250] sm:$0xff]
    %v8313 = vld [vmem:[#allocation11 + $0x258] sm:$0xff]
    %v8314 = vld [vmem:[#allocation11 + $0x260] sm:$0xff]
    %v8315 = vld [vmem:[#allocation11 + $0x268] sm:$0xff]
    %v8316 = vld [vmem:[#allocation11 + $0x270] sm:$0xff]
    %v8317 = vld [vmem:[#allocation11 + $0x278] sm:$0xff]
    %v8318 = vld [vmem:[#allocation11 + $0x280] sm:$0xff]
    %v8319 = vld [vmem:[#allocation11 + $0x288] sm:$0xff]
    %v8320 = vld [vmem:[#allocation11 + $0x290] sm:$0xff]
    %v8321 = vld [vmem:[#allocation11 + $0x298] sm:$0xff]
    %v8322 = vld [vmem:[#allocation11 + $0x2a0] sm:$0xff]
    %v8323 = vld [vmem:[#allocation11 + $0x2a8] sm:$0xff]
    %v8324 = vld [vmem:[#allocation11 + $0x2b0] sm:$0xff]
    %v8325 = vld [vmem:[#allocation11 + $0x2b8] sm:$0xff]
    %v8326 = vld [vmem:[#allocation11 + $0x2c0] sm:$0xff]
    %v8327 = vld [vmem:[#allocation11 + $0x2c8] sm:$0xff]
    %v8328 = vld [vmem:[#allocation11 + $0x2d0] sm:$0xff]
    %v8329 = vld [vmem:[#allocation11 + $0x2d8] sm:$0xff]
    %v8330 = vld [vmem:[#allocation11 + $0x2e0] sm:$0xff]
    %v8331 = vld [vmem:[#allocation11 + $0x2e8] sm:$0xff]
    %v8332 = vld [vmem:[#allocation11 + $0x2f0] sm:$0xff]
    %v8333 = vld [vmem:[#allocation11 + $0x2f8] sm:$0xff]
    %v8334 = vld [vmem:[#allocation11 + $0x300] sm:$0xff]
    %v8335 = vld [vmem:[#allocation11 + $0x308] sm:$0xff]
    %v8336 = vld [vmem:[#allocation11 + $0x310] sm:$0xff]
    %v8337 = vld [vmem:[#allocation11 + $0x318] sm:$0xff]
    %v8338 = vld [vmem:[#allocation11 + $0x320] sm:$0xff]
    %v8339 = vld [vmem:[#allocation11 + $0x328] sm:$0xff]
    %v8340 = vld [vmem:[#allocation11 + $0x330] sm:$0xff]
    %v8341 = vld [vmem:[#allocation11 + $0x338] sm:$0xff]
    %v8342 = vld [vmem:[#allocation11 + $0x340] sm:$0xff]
    %v8343 = vld [vmem:[#allocation11 + $0x348] sm:$0xff]
    %v8344 = vld [vmem:[#allocation11 + $0x350] sm:$0xff]
    %v8345 = vld [vmem:[#allocation11 + $0x358] sm:$0xff]
    %v8346 = vld [vmem:[#allocation11 + $0x360] sm:$0xff]
    %v8347 = vld [vmem:[#allocation11 + $0x368] sm:$0xff]
    %v8348 = vld [vmem:[#allocation11 + $0x370] sm:$0xff]
    %v8349 = vld [vmem:[#allocation11 + $0x378] sm:$0xff]
    %v8350 = vld [vmem:[#allocation11 + $0x380] sm:$0xff]
    %v8351 = vld [vmem:[#allocation11 + $0x388] sm:$0xff]
    %v8352 = vld [vmem:[#allocation11 + $0x390] sm:$0xff]
    %v8353 = vld [vmem:[#allocation11 + $0x398] sm:$0xff]
    %v8354 = vld [vmem:[#allocation11 + $0x3a0] sm:$0xff]
    %v8355 = vld [vmem:[#allocation11 + $0x3a8] sm:$0xff]
    %v8356 = vld [vmem:[#allocation11 + $0x3b0] sm:$0xff]
    %v8357 = vld [vmem:[#allocation11 + $0x3b8] sm:$0xff]
    %v8358 = vld [vmem:[#allocation11 + $0x3c0] sm:$0xff]
    %v8359 = vld [vmem:[#allocation11 + $0x3c8] sm:$0xff]
    %v8360 = vld [vmem:[#allocation11 + $0x3d0] sm:$0xff]
    %v8361 = vld [vmem:[#allocation11 + $0x3d8] sm:$0xff]
    %v8362 = vld [vmem:[#allocation11 + $0x3e0] sm:$0xff]
    %v8363 = vld [vmem:[#allocation11 + $0x3e8] sm:$0xff]
    %v8364 = vld [vmem:[#allocation11 + $0x3f0] sm:$0xff]
    %v8365 = vld [vmem:[#allocation11 + $0x3f8] sm:$0xff]
    %v8366 = vld [vmem:[#allocation11 + $0x400] sm:$0xff]
    %v8367 = vld [vmem:[#allocation11 + $0x408] sm:$0xff]
    %v8368 = vld [vmem:[#allocation11 + $0x410] sm:$0xff]
    %v8369 = vld [vmem:[#allocation11 + $0x418] sm:$0xff]
    %v8370 = vld [vmem:[#allocation11 + $0x420] sm:$0xff]
    %v8371 = vld [vmem:[#allocation11 + $0x428] sm:$0xff]
    %v8372 = vld [vmem:[#allocation11 + $0x430] sm:$0xff]
    %v8373 = vld [vmem:[#allocation11 + $0x438] sm:$0xff]
    %v8374 = vld [vmem:[#allocation11 + $0x440] sm:$0xff]
    %v8375 = vld [vmem:[#allocation11 + $0x448] sm:$0xff]
    %v8376 = vld [vmem:[#allocation11 + $0x450] sm:$0xff]
    %v8377 = vld [vmem:[#allocation11 + $0x458] sm:$0xff]
    %v8378 = vld [vmem:[#allocation11 + $0x460] sm:$0xff]
    %v8379 = vld [vmem:[#allocation11 + $0x468] sm:$0xff]
    %v8380 = vld [vmem:[#allocation11 + $0x470] sm:$0xff]
    %v8381 = vld [vmem:[#allocation11 + $0x478] sm:$0xff]
    %v8382 = vld [vmem:[#allocation11 + $0x480] sm:$0xff]
    %v8383 = vld [vmem:[#allocation11 + $0x488] sm:$0xff]
    %v8384 = vld [vmem:[#allocation11 + $0x490] sm:$0xff]
    %v8385 = vld [vmem:[#allocation11 + $0x498] sm:$0xff]
    %v8386 = vld [vmem:[#allocation11 + $0x4a0] sm:$0xff]
    %v8387 = vld [vmem:[#allocation11 + $0x4a8] sm:$0xff]
    %v8388 = vld [vmem:[#allocation11 + $0x4b0] sm:$0xff]
    %v8389 = vld [vmem:[#allocation11 + $0x4b8] sm:$0xff]
    %v8390 = vld [vmem:[#allocation11 + $0x4c0] sm:$0xff]
    %v8391 = vld [vmem:[#allocation11 + $0x4c8] sm:$0xff]
    %v8392 = vld [vmem:[#allocation11 + $0x4d0] sm:$0xff]
    %v8393 = vld [vmem:[#allocation11 + $0x4d8] sm:$0xff]
    %v8394 = vld [vmem:[#allocation11 + $0x4e0] sm:$0xff]
    %v8395 = vld [vmem:[#allocation11 + $0x4e8] sm:$0xff]
    %v8396 = vld [vmem:[#allocation11 + $0x4f0] sm:$0xff]
    %v8397 = vld [vmem:[#allocation11 + $0x4f8] sm:$0xff]
    %v8398 = vld [vmem:[#allocation11 + $0x500] sm:$0xff]
    %v8399 = vld [vmem:[#allocation11 + $0x508] sm:$0xff]
    %v8400 = vld [vmem:[#allocation11 + $0x510] sm:$0xff]
    %v8401 = vld [vmem:[#allocation11 + $0x518] sm:$0xff]
    %v8402 = vld [vmem:[#allocation11 + $0x520] sm:$0xff]
    %v8403 = vld [vmem:[#allocation11 + $0x528] sm:$0xff]
    %v8404 = vld [vmem:[#allocation11 + $0x530] sm:$0xff]
    %v8405 = vld [vmem:[#allocation11 + $0x538] sm:$0xff]
    %v8406 = vld [vmem:[#allocation11 + $0x540] sm:$0xff]
    %v8407 = vld [vmem:[#allocation11 + $0x548] sm:$0xff]
    %v8408 = vld [vmem:[#allocation11 + $0x550] sm:$0xff]
    %v8409 = vld [vmem:[#allocation11 + $0x558] sm:$0xff]
    %v8410 = vld [vmem:[#allocation11 + $0x560] sm:$0xff]
    %v8411 = vld [vmem:[#allocation11 + $0x568] sm:$0xff]
    %v8412 = vld [vmem:[#allocation11 + $0x570] sm:$0xff]
    %v8413 = vld [vmem:[#allocation11 + $0x578] sm:$0xff]
    %v8414 = vld [vmem:[#allocation11 + $0x580] sm:$0xff]
    %v8415 = vld [vmem:[#allocation11 + $0x588] sm:$0xff]
    %v8416 = vld [vmem:[#allocation11 + $0x590] sm:$0xff]
    %v8417 = vld [vmem:[#allocation11 + $0x598] sm:$0xff]
    %v8418 = vld [vmem:[#allocation11 + $0x5a0] sm:$0xff]
    %v8419 = vld [vmem:[#allocation11 + $0x5a8] sm:$0xff]
    %v8420 = vld [vmem:[#allocation11 + $0x5b0] sm:$0xff]
    %v8421 = vld [vmem:[#allocation11 + $0x5b8] sm:$0xff]
    %v8422 = vld [vmem:[#allocation11 + $0x5c0] sm:$0xff]
    %v8423 = vld [vmem:[#allocation11 + $0x5c8] sm:$0xff]
    %v8424 = vld [vmem:[#allocation11 + $0x5d0] sm:$0xff]
    %v8425 = vld [vmem:[#allocation11 + $0x5d8] sm:$0xff]
    %v8426 = vld [vmem:[#allocation11 + $0x5e0] sm:$0xff]
    %v8427 = vld [vmem:[#allocation11 + $0x5e8] sm:$0xff]
    %v8428 = vld [vmem:[#allocation11 + $0x5f0] sm:$0xff]
    %v8429 = vld [vmem:[#allocation11 + $0x5f8] sm:$0xff]
    %v8430 = vld [vmem:[#allocation11 + $0x600] sm:$0xff]
    %v8431 = vld [vmem:[#allocation11 + $0x608] sm:$0xff]
    %v8432 = vld [vmem:[#allocation11 + $0x610] sm:$0xff]
    %v8433 = vld [vmem:[#allocation11 + $0x618] sm:$0xff]
    %v8434 = vld [vmem:[#allocation11 + $0x620] sm:$0xff]
    %v8435 = vld [vmem:[#allocation11 + $0x628] sm:$0xff]
    %v8436 = vld [vmem:[#allocation11 + $0x630] sm:$0xff]
    %v8437 = vld [vmem:[#allocation11 + $0x638] sm:$0xff]
    %v8438 = vld [vmem:[#allocation11 + $0x640] sm:$0xff]
    %v8439 = vld [vmem:[#allocation11 + $0x648] sm:$0xff]
    %v8440 = vld [vmem:[#allocation11 + $0x650] sm:$0xff]
    %v8441 = vld [vmem:[#allocation11 + $0x658] sm:$0xff]
    %v8442 = vld [vmem:[#allocation11 + $0x660] sm:$0xff]
    %v8443 = vld [vmem:[#allocation11 + $0x668] sm:$0xff]
    %v8444 = vld [vmem:[#allocation11 + $0x670] sm:$0xff]
    %v8445 = vld [vmem:[#allocation11 + $0x678] sm:$0xff]
    %v8446 = vld [vmem:[#allocation11 + $0x680] sm:$0xff]
    %v8447 = vld [vmem:[#allocation11 + $0x688] sm:$0xff]
    %v8448 = vld [vmem:[#allocation11 + $0x690] sm:$0xff]
    %v8449 = vld [vmem:[#allocation11 + $0x698] sm:$0xff]
    %v8450 = vld [vmem:[#allocation11 + $0x6a0] sm:$0xff]
    %v8451 = vld [vmem:[#allocation11 + $0x6a8] sm:$0xff]
    %v8452 = vld [vmem:[#allocation11 + $0x6b0] sm:$0xff]
    %v8453 = vld [vmem:[#allocation11 + $0x6b8] sm:$0xff]
    %v8454 = vld [vmem:[#allocation11 + $0x6c0] sm:$0xff]
    %v8455 = vld [vmem:[#allocation11 + $0x6c8] sm:$0xff]
    %v8456 = vld [vmem:[#allocation11 + $0x6d0] sm:$0xff]
    %v8457 = vld [vmem:[#allocation11 + $0x6d8] sm:$0xff]
    %v8458 = vld [vmem:[#allocation11 + $0x6e0] sm:$0xff]
    %v8459 = vld [vmem:[#allocation11 + $0x6e8] sm:$0xff]
    %v8460 = vld [vmem:[#allocation11 + $0x6f0] sm:$0xff]
    %v8461 = vld [vmem:[#allocation11 + $0x6f8] sm:$0xff]
    %v8462 = vld [vmem:[#allocation11 + $0x700] sm:$0xff]
    %v8463 = vld [vmem:[#allocation11 + $0x708] sm:$0xff]
    %v8464 = vld [vmem:[#allocation11 + $0x710] sm:$0xff]
    %v8465 = vld [vmem:[#allocation11 + $0x718] sm:$0xff]
    %v8466 = vld [vmem:[#allocation11 + $0x720] sm:$0xff]
    %v8467 = vld [vmem:[#allocation11 + $0x728] sm:$0xff]
    %v8468 = vld [vmem:[#allocation11 + $0x730] sm:$0xff]
    %v8469 = vld [vmem:[#allocation11 + $0x738] sm:$0xff]
    %v8470 = vld [vmem:[#allocation11 + $0x740] sm:$0xff]
    %v8471 = vld [vmem:[#allocation11 + $0x748] sm:$0xff]
    %v8472 = vld [vmem:[#allocation11 + $0x750] sm:$0xff]
    %v8473 = vld [vmem:[#allocation11 + $0x758] sm:$0xff]
    %v8474 = vld [vmem:[#allocation11 + $0x760] sm:$0xff]
    %v8475 = vld [vmem:[#allocation11 + $0x768] sm:$0xff]
    %v8476 = vld [vmem:[#allocation11 + $0x770] sm:$0xff]
    %v8477 = vld [vmem:[#allocation11 + $0x778] sm:$0xff]
    %v8478 = vld [vmem:[#allocation11 + $0x780] sm:$0xff]
    %v8479 = vld [vmem:[#allocation11 + $0x788] sm:$0xff]
    %v8480 = vld [vmem:[#allocation11 + $0x790] sm:$0xff]
    %v8481 = vld [vmem:[#allocation11 + $0x798] sm:$0xff]
    %v8482 = vld [vmem:[#allocation11 + $0x7a0] sm:$0xff]
    %v8483 = vld [vmem:[#allocation11 + $0x7a8] sm:$0xff]
    %v8484 = vld [vmem:[#allocation11 + $0x7b0] sm:$0xff]
    %v8485 = vld [vmem:[#allocation11 + $0x7b8] sm:$0xff]
    %v8486 = vld [vmem:[#allocation11 + $0x7c0] sm:$0xff]
    %v8487 = vld [vmem:[#allocation11 + $0x7c8] sm:$0xff]
    %v8488 = vld [vmem:[#allocation11 + $0x7d0] sm:$0xff]
    %v8489 = vld [vmem:[#allocation11 + $0x7d8] sm:$0xff]
    %v8490 = vld [vmem:[#allocation11 + $0x7e0] sm:$0xff]
    %v8491 = vld [vmem:[#allocation11 + $0x7e8] sm:$0xff]
    %v8492 = vld [vmem:[#allocation11 + $0x7f0] sm:$0xff]
    %v8493 = vld [vmem:[#allocation11 + $0x7f8] sm:$0xff]
    %v8494 = vld [vmem:[#allocation13] sm:$0xf]
    %v8496 = vlaneseq
    %v8497 = vshrl.u32 %v8496, 7
    %v8498 = vsub.s32 0, %v8497
    %v8499 = vrot.slane %v8494, %v8498
    %v8500 = vlaneseq
    %v8501 = vshrl.u32 %v8500, 7
    %v8502 = vsub.s32 1, %v8501
    %v8503 = vrot.slane %v8494, %v8502
    %v8504 = vlaneseq
    %v8505 = vshrl.u32 %v8504, 7
    %v8506 = vsub.s32 2, %v8505
    %v8507 = vrot.slane %v8494, %v8506
    %v8508 = vlaneseq
    %v8509 = vshrl.u32 %v8508, 7
    %v8510 = vsub.s32 3, %v8509
    %v8511 = vrot.slane %v8494, %v8510
    %v8772 = vunpack.c.l.b16 %v8238
    %v8773 = vunpack.c.h.b16 %v8238
    %v8774 = vunpack.c.l.b16 %v8239
    %v8775 = vunpack.c.h.b16 %v8239
    %v8776 = vunpack.c.l.b16 %v8240
    %v8777 = vunpack.c.h.b16 %v8240
    %v8778 = vunpack.c.l.b16 %v8241
    %v8779 = vunpack.c.h.b16 %v8241
    %v8780 = vunpack.c.l.b16 %v8242
    %v8781 = vunpack.c.h.b16 %v8242
    %v8782 = vunpack.c.l.b16 %v8243
    %v8783 = vunpack.c.h.b16 %v8243
    %v8784 = vunpack.c.l.b16 %v8244
    %v8785 = vunpack.c.h.b16 %v8244
    %v8786 = vunpack.c.l.b16 %v8245
    %v8787 = vunpack.c.h.b16 %v8245
    %v8788 = vunpack.c.l.b16 %v8246
    %v8789 = vunpack.c.h.b16 %v8246
    %v8790 = vunpack.c.l.b16 %v8247
    %v8791 = vunpack.c.h.b16 %v8247
    %v8792 = vunpack.c.l.b16 %v8248
    %v8793 = vunpack.c.h.b16 %v8248
    %v8794 = vunpack.c.l.b16 %v8249
    %v8795 = vunpack.c.h.b16 %v8249
    %v8796 = vunpack.c.l.b16 %v8250
    %v8797 = vunpack.c.h.b16 %v8250
    %v8798 = vunpack.c.l.b16 %v8251
    %v8799 = vunpack.c.h.b16 %v8251
    %v8800 = vunpack.c.l.b16 %v8252
    %v8801 = vunpack.c.h.b16 %v8252
    %v8802 = vunpack.c.l.b16 %v8253
    %v8803 = vunpack.c.h.b16 %v8253
    %v8804 = vunpack.c.l.b16 %v8254
    %v8805 = vunpack.c.h.b16 %v8254
    %v8806 = vunpack.c.l.b16 %v8255
    %v8807 = vunpack.c.h.b16 %v8255
    %v8808 = vunpack.c.l.b16 %v8256
    %v8809 = vunpack.c.h.b16 %v8256
    %v8810 = vunpack.c.l.b16 %v8257
    %v8811 = vunpack.c.h.b16 %v8257
    %v8812 = vunpack.c.l.b16 %v8258
    %v8813 = vunpack.c.h.b16 %v8258
    %v8814 = vunpack.c.l.b16 %v8259
    %v8815 = vunpack.c.h.b16 %v8259
    %v8816 = vunpack.c.l.b16 %v8260
    %v8817 = vunpack.c.h.b16 %v8260
    %v8818 = vunpack.c.l.b16 %v8261
    %v8819 = vunpack.c.h.b16 %v8261
    %v8820 = vunpack.c.l.b16 %v8262
    %v8821 = vunpack.c.h.b16 %v8262
    %v8822 = vunpack.c.l.b16 %v8263
    %v8823 = vunpack.c.h.b16 %v8263
    %v8824 = vunpack.c.l.b16 %v8264
    %v8825 = vunpack.c.h.b16 %v8264
    %v8826 = vunpack.c.l.b16 %v8265
    %v8827 = vunpack.c.h.b16 %v8265
    %v8828 = vunpack.c.l.b16 %v8266
    %v8829 = vunpack.c.h.b16 %v8266
    %v8830 = vunpack.c.l.b16 %v8267
    %v8831 = vunpack.c.h.b16 %v8267
    %v8832 = vunpack.c.l.b16 %v8268
    %v8833 = vunpack.c.h.b16 %v8268
    %v8834 = vunpack.c.l.b16 %v8269
    %v8835 = vunpack.c.h.b16 %v8269
    %v8836 = vunpack.c.l.b16 %v8270
    %v8837 = vunpack.c.h.b16 %v8270
    %v8838 = vunpack.c.l.b16 %v8271
    %v8839 = vunpack.c.h.b16 %v8271
    %v8840 = vunpack.c.l.b16 %v8272
    %v8841 = vunpack.c.h.b16 %v8272
    %v8842 = vunpack.c.l.b16 %v8273
    %v8843 = vunpack.c.h.b16 %v8273
    %v8844 = vunpack.c.l.b16 %v8274
    %v8845 = vunpack.c.h.b16 %v8274
    %v8846 = vunpack.c.l.b16 %v8275
    %v8847 = vunpack.c.h.b16 %v8275
    %v8848 = vunpack.c.l.b16 %v8276
    %v8849 = vunpack.c.h.b16 %v8276
    %v8850 = vunpack.c.l.b16 %v8277
    %v8851 = vunpack.c.h.b16 %v8277
    %v8852 = vunpack.c.l.b16 %v8278
    %v8853 = vunpack.c.h.b16 %v8278
    %v8854 = vunpack.c.l.b16 %v8279
    %v8855 = vunpack.c.h.b16 %v8279
    %v8856 = vunpack.c.l.b16 %v8280
    %v8857 = vunpack.c.h.b16 %v8280
    %v8858 = vunpack.c.l.b16 %v8281
    %v8859 = vunpack.c.h.b16 %v8281
    %v8860 = vunpack.c.l.b16 %v8282
    %v8861 = vunpack.c.h.b16 %v8282
    %v8862 = vunpack.c.l.b16 %v8283
    %v8863 = vunpack.c.h.b16 %v8283
    %v8864 = vunpack.c.l.b16 %v8284
    %v8865 = vunpack.c.h.b16 %v8284
    %v8866 = vunpack.c.l.b16 %v8285
    %v8867 = vunpack.c.h.b16 %v8285
    %v8868 = vunpack.c.l.b16 %v8286
    %v8869 = vunpack.c.h.b16 %v8286
    %v8870 = vunpack.c.l.b16 %v8287
    %v8871 = vunpack.c.h.b16 %v8287
    %v8872 = vunpack.c.l.b16 %v8288
    %v8873 = vunpack.c.h.b16 %v8288
    %v8874 = vunpack.c.l.b16 %v8289
    %v8875 = vunpack.c.h.b16 %v8289
    %v8876 = vunpack.c.l.b16 %v8290
    %v8877 = vunpack.c.h.b16 %v8290
    %v8878 = vunpack.c.l.b16 %v8291
    %v8879 = vunpack.c.h.b16 %v8291
    %v8880 = vunpack.c.l.b16 %v8292
    %v8881 = vunpack.c.h.b16 %v8292
    %v8882 = vunpack.c.l.b16 %v8293
    %v8883 = vunpack.c.h.b16 %v8293
    %v8884 = vunpack.c.l.b16 %v8294
    %v8885 = vunpack.c.h.b16 %v8294
    %v8886 = vunpack.c.l.b16 %v8295
    %v8887 = vunpack.c.h.b16 %v8295
    %v8888 = vunpack.c.l.b16 %v8296
    %v8889 = vunpack.c.h.b16 %v8296
    %v8890 = vunpack.c.l.b16 %v8297
    %v8891 = vunpack.c.h.b16 %v8297
    %v8892 = vunpack.c.l.b16 %v8298
    %v8893 = vunpack.c.h.b16 %v8298
    %v8894 = vunpack.c.l.b16 %v8299
    %v8895 = vunpack.c.h.b16 %v8299
    %v8896 = vunpack.c.l.b16 %v8300
    %v8897 = vunpack.c.h.b16 %v8300
    %v8898 = vunpack.c.l.b16 %v8301
    %v8899 = vunpack.c.h.b16 %v8301
    %v8900 = vunpack.c.l.b16 %v8302
    %v8901 = vunpack.c.h.b16 %v8302
    %v8902 = vunpack.c.l.b16 %v8303
    %v8903 = vunpack.c.h.b16 %v8303
    %v8904 = vunpack.c.l.b16 %v8304
    %v8905 = vunpack.c.h.b16 %v8304
    %v8906 = vunpack.c.l.b16 %v8305
    %v8907 = vunpack.c.h.b16 %v8305
    %v8908 = vunpack.c.l.b16 %v8306
    %v8909 = vunpack.c.h.b16 %v8306
    %v8910 = vunpack.c.l.b16 %v8307
    %v8911 = vunpack.c.h.b16 %v8307
    %v8912 = vunpack.c.l.b16 %v8308
    %v8913 = vunpack.c.h.b16 %v8308
    %v8914 = vunpack.c.l.b16 %v8309
    %v8915 = vunpack.c.h.b16 %v8309
    %v8916 = vunpack.c.l.b16 %v8310
    %v8917 = vunpack.c.h.b16 %v8310
    %v8918 = vunpack.c.l.b16 %v8311
    %v8919 = vunpack.c.h.b16 %v8311
    %v8920 = vunpack.c.l.b16 %v8312
    %v8921 = vunpack.c.h.b16 %v8312
    %v8922 = vunpack.c.l.b16 %v8313
    %v8923 = vunpack.c.h.b16 %v8313
    %v8924 = vunpack.c.l.b16 %v8314
    %v8925 = vunpack.c.h.b16 %v8314
    %v8926 = vunpack.c.l.b16 %v8315
    %v8927 = vunpack.c.h.b16 %v8315
    %v8928 = vunpack.c.l.b16 %v8316
    %v8929 = vunpack.c.h.b16 %v8316
    %v8930 = vunpack.c.l.b16 %v8317
    %v8931 = vunpack.c.h.b16 %v8317
    %v8932 = vunpack.c.l.b16 %v8318
    %v8933 = vunpack.c.h.b16 %v8318
    %v8934 = vunpack.c.l.b16 %v8319
    %v8935 = vunpack.c.h.b16 %v8319
    %v8936 = vunpack.c.l.b16 %v8320
    %v8937 = vunpack.c.h.b16 %v8320
    %v8938 = vunpack.c.l.b16 %v8321
    %v8939 = vunpack.c.h.b16 %v8321
    %v8940 = vunpack.c.l.b16 %v8322
    %v8941 = vunpack.c.h.b16 %v8322
    %v8942 = vunpack.c.l.b16 %v8323
    %v8943 = vunpack.c.h.b16 %v8323
    %v8944 = vunpack.c.l.b16 %v8324
    %v8945 = vunpack.c.h.b16 %v8324
    %v8946 = vunpack.c.l.b16 %v8325
    %v8947 = vunpack.c.h.b16 %v8325
    %v8948 = vunpack.c.l.b16 %v8326
    %v8949 = vunpack.c.h.b16 %v8326
    %v8950 = vunpack.c.l.b16 %v8327
    %v8951 = vunpack.c.h.b16 %v8327
    %v8952 = vunpack.c.l.b16 %v8328
    %v8953 = vunpack.c.h.b16 %v8328
    %v8954 = vunpack.c.l.b16 %v8329
    %v8955 = vunpack.c.h.b16 %v8329
    %v8956 = vunpack.c.l.b16 %v8330
    %v8957 = vunpack.c.h.b16 %v8330
    %v8958 = vunpack.c.l.b16 %v8331
    %v8959 = vunpack.c.h.b16 %v8331
    %v8960 = vunpack.c.l.b16 %v8332
    %v8961 = vunpack.c.h.b16 %v8332
    %v8962 = vunpack.c.l.b16 %v8333
    %v8963 = vunpack.c.h.b16 %v8333
    %v8964 = vunpack.c.l.b16 %v8334
    %v8965 = vunpack.c.h.b16 %v8334
    %v8966 = vunpack.c.l.b16 %v8335
    %v8967 = vunpack.c.h.b16 %v8335
    %v8968 = vunpack.c.l.b16 %v8336
    %v8969 = vunpack.c.h.b16 %v8336
    %v8970 = vunpack.c.l.b16 %v8337
    %v8971 = vunpack.c.h.b16 %v8337
    %v8972 = vunpack.c.l.b16 %v8338
    %v8973 = vunpack.c.h.b16 %v8338
    %v8974 = vunpack.c.l.b16 %v8339
    %v8975 = vunpack.c.h.b16 %v8339
    %v8976 = vunpack.c.l.b16 %v8340
    %v8977 = vunpack.c.h.b16 %v8340
    %v8978 = vunpack.c.l.b16 %v8341
    %v8979 = vunpack.c.h.b16 %v8341
    %v8980 = vunpack.c.l.b16 %v8342
    %v8981 = vunpack.c.h.b16 %v8342
    %v8982 = vunpack.c.l.b16 %v8343
    %v8983 = vunpack.c.h.b16 %v8343
    %v8984 = vunpack.c.l.b16 %v8344
    %v8985 = vunpack.c.h.b16 %v8344
    %v8986 = vunpack.c.l.b16 %v8345
    %v8987 = vunpack.c.h.b16 %v8345
    %v8988 = vunpack.c.l.b16 %v8346
    %v8989 = vunpack.c.h.b16 %v8346
    %v8990 = vunpack.c.l.b16 %v8347
    %v8991 = vunpack.c.h.b16 %v8347
    %v8992 = vunpack.c.l.b16 %v8348
    %v8993 = vunpack.c.h.b16 %v8348
    %v8994 = vunpack.c.l.b16 %v8349
    %v8995 = vunpack.c.h.b16 %v8349
    %v8996 = vunpack.c.l.b16 %v8350
    %v8997 = vunpack.c.h.b16 %v8350
    %v8998 = vunpack.c.l.b16 %v8351
    %v8999 = vunpack.c.h.b16 %v8351
    %v9000 = vunpack.c.l.b16 %v8352
    %v9001 = vunpack.c.h.b16 %v8352
    %v9002 = vunpack.c.l.b16 %v8353
    %v9003 = vunpack.c.h.b16 %v8353
    %v9004 = vunpack.c.l.b16 %v8354
    %v9005 = vunpack.c.h.b16 %v8354
    %v9006 = vunpack.c.l.b16 %v8355
    %v9007 = vunpack.c.h.b16 %v8355
    %v9008 = vunpack.c.l.b16 %v8356
    %v9009 = vunpack.c.h.b16 %v8356
    %v9010 = vunpack.c.l.b16 %v8357
    %v9011 = vunpack.c.h.b16 %v8357
    %v9012 = vunpack.c.l.b16 %v8358
    %v9013 = vunpack.c.h.b16 %v8358
    %v9014 = vunpack.c.l.b16 %v8359
    %v9015 = vunpack.c.h.b16 %v8359
    %v9016 = vunpack.c.l.b16 %v8360
    %v9017 = vunpack.c.h.b16 %v8360
    %v9018 = vunpack.c.l.b16 %v8361
    %v9019 = vunpack.c.h.b16 %v8361
    %v9020 = vunpack.c.l.b16 %v8362
    %v9021 = vunpack.c.h.b16 %v8362
    %v9022 = vunpack.c.l.b16 %v8363
    %v9023 = vunpack.c.h.b16 %v8363
    %v9024 = vunpack.c.l.b16 %v8364
    %v9025 = vunpack.c.h.b16 %v8364
    %v9026 = vunpack.c.l.b16 %v8365
    %v9027 = vunpack.c.h.b16 %v8365
    %v9028 = vunpack.c.l.b16 %v8366
    %v9029 = vunpack.c.h.b16 %v8366
    %v9030 = vunpack.c.l.b16 %v8367
    %v9031 = vunpack.c.h.b16 %v8367
    %v9032 = vunpack.c.l.b16 %v8368
    %v9033 = vunpack.c.h.b16 %v8368
    %v9034 = vunpack.c.l.b16 %v8369
    %v9035 = vunpack.c.h.b16 %v8369
    %v9036 = vunpack.c.l.b16 %v8370
    %v9037 = vunpack.c.h.b16 %v8370
    %v9038 = vunpack.c.l.b16 %v8371
    %v9039 = vunpack.c.h.b16 %v8371
    %v9040 = vunpack.c.l.b16 %v8372
    %v9041 = vunpack.c.h.b16 %v8372
    %v9042 = vunpack.c.l.b16 %v8373
    %v9043 = vunpack.c.h.b16 %v8373
    %v9044 = vunpack.c.l.b16 %v8374
    %v9045 = vunpack.c.h.b16 %v8374
    %v9046 = vunpack.c.l.b16 %v8375
    %v9047 = vunpack.c.h.b16 %v8375
    %v9048 = vunpack.c.l.b16 %v8376
    %v9049 = vunpack.c.h.b16 %v8376
    %v9050 = vunpack.c.l.b16 %v8377
    %v9051 = vunpack.c.h.b16 %v8377
    %v9052 = vunpack.c.l.b16 %v8378
    %v9053 = vunpack.c.h.b16 %v8378
    %v9054 = vunpack.c.l.b16 %v8379
    %v9055 = vunpack.c.h.b16 %v8379
    %v9056 = vunpack.c.l.b16 %v8380
    %v9057 = vunpack.c.h.b16 %v8380
    %v9058 = vunpack.c.l.b16 %v8381
    %v9059 = vunpack.c.h.b16 %v8381
    %v9060 = vunpack.c.l.b16 %v8382
    %v9061 = vunpack.c.h.b16 %v8382
    %v9062 = vunpack.c.l.b16 %v8383
    %v9063 = vunpack.c.h.b16 %v8383
    %v9064 = vunpack.c.l.b16 %v8384
    %v9065 = vunpack.c.h.b16 %v8384
    %v9066 = vunpack.c.l.b16 %v8385
    %v9067 = vunpack.c.h.b16 %v8385
    %v9068 = vunpack.c.l.b16 %v8386
    %v9069 = vunpack.c.h.b16 %v8386
    %v9070 = vunpack.c.l.b16 %v8387
    %v9071 = vunpack.c.h.b16 %v8387
    %v9072 = vunpack.c.l.b16 %v8388
    %v9073 = vunpack.c.h.b16 %v8388
    %v9074 = vunpack.c.l.b16 %v8389
    %v9075 = vunpack.c.h.b16 %v8389
    %v9076 = vunpack.c.l.b16 %v8390
    %v9077 = vunpack.c.h.b16 %v8390
    %v9078 = vunpack.c.l.b16 %v8391
    %v9079 = vunpack.c.h.b16 %v8391
    %v9080 = vunpack.c.l.b16 %v8392
    %v9081 = vunpack.c.h.b16 %v8392
    %v9082 = vunpack.c.l.b16 %v8393
    %v9083 = vunpack.c.h.b16 %v8393
    %v9084 = vunpack.c.l.b16 %v8394
    %v9085 = vunpack.c.h.b16 %v8394
    %v9086 = vunpack.c.l.b16 %v8395
    %v9087 = vunpack.c.h.b16 %v8395
    %v9088 = vunpack.c.l.b16 %v8396
    %v9089 = vunpack.c.h.b16 %v8396
    %v9090 = vunpack.c.l.b16 %v8397
    %v9091 = vunpack.c.h.b16 %v8397
    %v9092 = vunpack.c.l.b16 %v8398
    %v9093 = vunpack.c.h.b16 %v8398
    %v9094 = vunpack.c.l.b16 %v8399
    %v9095 = vunpack.c.h.b16 %v8399
    %v9096 = vunpack.c.l.b16 %v8400
    %v9097 = vunpack.c.h.b16 %v8400
    %v9098 = vunpack.c.l.b16 %v8401
    %v9099 = vunpack.c.h.b16 %v8401
    %v9100 = vunpack.c.l.b16 %v8402
    %v9101 = vunpack.c.h.b16 %v8402
    %v9102 = vunpack.c.l.b16 %v8403
    %v9103 = vunpack.c.h.b16 %v8403
    %v9104 = vunpack.c.l.b16 %v8404
    %v9105 = vunpack.c.h.b16 %v8404
    %v9106 = vunpack.c.l.b16 %v8405
    %v9107 = vunpack.c.h.b16 %v8405
    %v9108 = vunpack.c.l.b16 %v8406
    %v9109 = vunpack.c.h.b16 %v8406
    %v9110 = vunpack.c.l.b16 %v8407
    %v9111 = vunpack.c.h.b16 %v8407
    %v9112 = vunpack.c.l.b16 %v8408
    %v9113 = vunpack.c.h.b16 %v8408
    %v9114 = vunpack.c.l.b16 %v8409
    %v9115 = vunpack.c.h.b16 %v8409
    %v9116 = vunpack.c.l.b16 %v8410
    %v9117 = vunpack.c.h.b16 %v8410
    %v9118 = vunpack.c.l.b16 %v8411
    %v9119 = vunpack.c.h.b16 %v8411
    %v9120 = vunpack.c.l.b16 %v8412
    %v9121 = vunpack.c.h.b16 %v8412
    %v9122 = vunpack.c.l.b16 %v8413
    %v9123 = vunpack.c.h.b16 %v8413
    %v9124 = vunpack.c.l.b16 %v8414
    %v9125 = vunpack.c.h.b16 %v8414
    %v9126 = vunpack.c.l.b16 %v8415
    %v9127 = vunpack.c.h.b16 %v8415
    %v9128 = vunpack.c.l.b16 %v8416
    %v9129 = vunpack.c.h.b16 %v8416
    %v9130 = vunpack.c.l.b16 %v8417
    %v9131 = vunpack.c.h.b16 %v8417
    %v9132 = vunpack.c.l.b16 %v8418
    %v9133 = vunpack.c.h.b16 %v8418
    %v9134 = vunpack.c.l.b16 %v8419
    %v9135 = vunpack.c.h.b16 %v8419
    %v9136 = vunpack.c.l.b16 %v8420
    %v9137 = vunpack.c.h.b16 %v8420
    %v9138 = vunpack.c.l.b16 %v8421
    %v9139 = vunpack.c.h.b16 %v8421
    %v9140 = vunpack.c.l.b16 %v8422
    %v9141 = vunpack.c.h.b16 %v8422
    %v9142 = vunpack.c.l.b16 %v8423
    %v9143 = vunpack.c.h.b16 %v8423
    %v9144 = vunpack.c.l.b16 %v8424
    %v9145 = vunpack.c.h.b16 %v8424
    %v9146 = vunpack.c.l.b16 %v8425
    %v9147 = vunpack.c.h.b16 %v8425
    %v9148 = vunpack.c.l.b16 %v8426
    %v9149 = vunpack.c.h.b16 %v8426
    %v9150 = vunpack.c.l.b16 %v8427
    %v9151 = vunpack.c.h.b16 %v8427
    %v9152 = vunpack.c.l.b16 %v8428
    %v9153 = vunpack.c.h.b16 %v8428
    %v9154 = vunpack.c.l.b16 %v8429
    %v9155 = vunpack.c.h.b16 %v8429
    %v9156 = vunpack.c.l.b16 %v8430
    %v9157 = vunpack.c.h.b16 %v8430
    %v9158 = vunpack.c.l.b16 %v8431
    %v9159 = vunpack.c.h.b16 %v8431
    %v9160 = vunpack.c.l.b16 %v8432
    %v9161 = vunpack.c.h.b16 %v8432
    %v9162 = vunpack.c.l.b16 %v8433
    %v9163 = vunpack.c.h.b16 %v8433
    %v9164 = vunpack.c.l.b16 %v8434
    %v9165 = vunpack.c.h.b16 %v8434
    %v9166 = vunpack.c.l.b16 %v8435
    %v9167 = vunpack.c.h.b16 %v8435
    %v9168 = vunpack.c.l.b16 %v8436
    %v9169 = vunpack.c.h.b16 %v8436
    %v9170 = vunpack.c.l.b16 %v8437
    %v9171 = vunpack.c.h.b16 %v8437
    %v9172 = vunpack.c.l.b16 %v8438
    %v9173 = vunpack.c.h.b16 %v8438
    %v9174 = vunpack.c.l.b16 %v8439
    %v9175 = vunpack.c.h.b16 %v8439
    %v9176 = vunpack.c.l.b16 %v8440
    %v9177 = vunpack.c.h.b16 %v8440
    %v9178 = vunpack.c.l.b16 %v8441
    %v9179 = vunpack.c.h.b16 %v8441
    %v9180 = vunpack.c.l.b16 %v8442
    %v9181 = vunpack.c.h.b16 %v8442
    %v9182 = vunpack.c.l.b16 %v8443
    %v9183 = vunpack.c.h.b16 %v8443
    %v9184 = vunpack.c.l.b16 %v8444
    %v9185 = vunpack.c.h.b16 %v8444
    %v9186 = vunpack.c.l.b16 %v8445
    %v9187 = vunpack.c.h.b16 %v8445
    %v9188 = vunpack.c.l.b16 %v8446
    %v9189 = vunpack.c.h.b16 %v8446
    %v9190 = vunpack.c.l.b16 %v8447
    %v9191 = vunpack.c.h.b16 %v8447
    %v9192 = vunpack.c.l.b16 %v8448
    %v9193 = vunpack.c.h.b16 %v8448
    %v9194 = vunpack.c.l.b16 %v8449
    %v9195 = vunpack.c.h.b16 %v8449
    %v9196 = vunpack.c.l.b16 %v8450
    %v9197 = vunpack.c.h.b16 %v8450
    %v9198 = vunpack.c.l.b16 %v8451
    %v9199 = vunpack.c.h.b16 %v8451
    %v9200 = vunpack.c.l.b16 %v8452
    %v9201 = vunpack.c.h.b16 %v8452
    %v9202 = vunpack.c.l.b16 %v8453
    %v9203 = vunpack.c.h.b16 %v8453
    %v9204 = vunpack.c.l.b16 %v8454
    %v9205 = vunpack.c.h.b16 %v8454
    %v9206 = vunpack.c.l.b16 %v8455
    %v9207 = vunpack.c.h.b16 %v8455
    %v9208 = vunpack.c.l.b16 %v8456
    %v9209 = vunpack.c.h.b16 %v8456
    %v9210 = vunpack.c.l.b16 %v8457
    %v9211 = vunpack.c.h.b16 %v8457
    %v9212 = vunpack.c.l.b16 %v8458
    %v9213 = vunpack.c.h.b16 %v8458
    %v9214 = vunpack.c.l.b16 %v8459
    %v9215 = vunpack.c.h.b16 %v8459
    %v9216 = vunpack.c.l.b16 %v8460
    %v9217 = vunpack.c.h.b16 %v8460
    %v9218 = vunpack.c.l.b16 %v8461
    %v9219 = vunpack.c.h.b16 %v8461
    %v9220 = vunpack.c.l.b16 %v8462
    %v9221 = vunpack.c.h.b16 %v8462
    %v9222 = vunpack.c.l.b16 %v8463
    %v9223 = vunpack.c.h.b16 %v8463
    %v9224 = vunpack.c.l.b16 %v8464
    %v9225 = vunpack.c.h.b16 %v8464
    %v9226 = vunpack.c.l.b16 %v8465
    %v9227 = vunpack.c.h.b16 %v8465
    %v9228 = vunpack.c.l.b16 %v8466
    %v9229 = vunpack.c.h.b16 %v8466
    %v9230 = vunpack.c.l.b16 %v8467
    %v9231 = vunpack.c.h.b16 %v8467
    %v9232 = vunpack.c.l.b16 %v8468
    %v9233 = vunpack.c.h.b16 %v8468
    %v9234 = vunpack.c.l.b16 %v8469
    %v9235 = vunpack.c.h.b16 %v8469
    %v9236 = vunpack.c.l.b16 %v8470
    %v9237 = vunpack.c.h.b16 %v8470
    %v9238 = vunpack.c.l.b16 %v8471
    %v9239 = vunpack.c.h.b16 %v8471
    %v9240 = vunpack.c.l.b16 %v8472
    %v9241 = vunpack.c.h.b16 %v8472
    %v9242 = vunpack.c.l.b16 %v8473
    %v9243 = vunpack.c.h.b16 %v8473
    %v9244 = vunpack.c.l.b16 %v8474
    %v9245 = vunpack.c.h.b16 %v8474
    %v9246 = vunpack.c.l.b16 %v8475
    %v9247 = vunpack.c.h.b16 %v8475
    %v9248 = vunpack.c.l.b16 %v8476
    %v9249 = vunpack.c.h.b16 %v8476
    %v9250 = vunpack.c.l.b16 %v8477
    %v9251 = vunpack.c.h.b16 %v8477
    %v9252 = vunpack.c.l.b16 %v8478
    %v9253 = vunpack.c.h.b16 %v8478
    %v9254 = vunpack.c.l.b16 %v8479
    %v9255 = vunpack.c.h.b16 %v8479
    %v9256 = vunpack.c.l.b16 %v8480
    %v9257 = vunpack.c.h.b16 %v8480
    %v9258 = vunpack.c.l.b16 %v8481
    %v9259 = vunpack.c.h.b16 %v8481
    %v9260 = vunpack.c.l.b16 %v8482
    %v9261 = vunpack.c.h.b16 %v8482
    %v9262 = vunpack.c.l.b16 %v8483
    %v9263 = vunpack.c.h.b16 %v8483
    %v9264 = vunpack.c.l.b16 %v8484
    %v9265 = vunpack.c.h.b16 %v8484
    %v9266 = vunpack.c.l.b16 %v8485
    %v9267 = vunpack.c.h.b16 %v8485
    %v9268 = vunpack.c.l.b16 %v8486
    %v9269 = vunpack.c.h.b16 %v8486
    %v9270 = vunpack.c.l.b16 %v8487
    %v9271 = vunpack.c.h.b16 %v8487
    %v9272 = vunpack.c.l.b16 %v8488
    %v9273 = vunpack.c.h.b16 %v8488
    %v9274 = vunpack.c.l.b16 %v8489
    %v9275 = vunpack.c.h.b16 %v8489
    %v9276 = vunpack.c.l.b16 %v8490
    %v9277 = vunpack.c.h.b16 %v8490
    %v9278 = vunpack.c.l.b16 %v8491
    %v9279 = vunpack.c.h.b16 %v8491
    %v9280 = vunpack.c.l.b16 %v8492
    %v9281 = vunpack.c.h.b16 %v8492
    %v9282 = vunpack.c.l.b16 %v8493
    %v9283 = vunpack.c.h.b16 %v8493
    %v9284 = vpack.c.b16 %v8776, %v8772
    %v9285 = vpack.c.b16 %v8777, %v8773
    %v9286 = vpack.c.b16 %v8778, %v8774
    %v9287 = vpack.c.b16 %v8779, %v8775
    %v9288 = vpack.c.b16 %v8784, %v8780
    %v9289 = vpack.c.b16 %v8785, %v8781
    %v9290 = vpack.c.b16 %v8786, %v8782
    %v9291 = vpack.c.b16 %v8787, %v8783
    %v9292 = vpack.c.b16 %v8792, %v8788
    %v9293 = vpack.c.b16 %v8793, %v8789
    %v9294 = vpack.c.b16 %v8794, %v8790
    %v9295 = vpack.c.b16 %v8795, %v8791
    %v9296 = vpack.c.b16 %v8800, %v8796
    %v9297 = vpack.c.b16 %v8801, %v8797
    %v9298 = vpack.c.b16 %v8802, %v8798
    %v9299 = vpack.c.b16 %v8803, %v8799
    %v9300 = vpack.c.b16 %v8808, %v8804
    %v9301 = vpack.c.b16 %v8809, %v8805
    %v9302 = vpack.c.b16 %v8810, %v8806
    %v9303 = vpack.c.b16 %v8811, %v8807
    %v9304 = vpack.c.b16 %v8816, %v8812
    %v9305 = vpack.c.b16 %v8817, %v8813
    %v9306 = vpack.c.b16 %v8818, %v8814
    %v9307 = vpack.c.b16 %v8819, %v8815
    %v9308 = vpack.c.b16 %v8824, %v8820
    %v9309 = vpack.c.b16 %v8825, %v8821
    %v9310 = vpack.c.b16 %v8826, %v8822
    %v9311 = vpack.c.b16 %v8827, %v8823
    %v9312 = vpack.c.b16 %v8832, %v8828
    %v9313 = vpack.c.b16 %v8833, %v8829
    %v9314 = vpack.c.b16 %v8834, %v8830
    %v9315 = vpack.c.b16 %v8835, %v8831
    %v9316 = vpack.c.b16 %v8840, %v8836
    %v9317 = vpack.c.b16 %v8841, %v8837
    %v9318 = vpack.c.b16 %v8842, %v8838
    %v9319 = vpack.c.b16 %v8843, %v8839
    %v9320 = vpack.c.b16 %v8848, %v8844
    %v9321 = vpack.c.b16 %v8849, %v8845
    %v9322 = vpack.c.b16 %v8850, %v8846
    %v9323 = vpack.c.b16 %v8851, %v8847
    %v9324 = vpack.c.b16 %v8856, %v8852
    %v9325 = vpack.c.b16 %v8857, %v8853
    %v9326 = vpack.c.b16 %v8858, %v8854
    %v9327 = vpack.c.b16 %v8859, %v8855
    %v9328 = vpack.c.b16 %v8864, %v8860
    %v9329 = vpack.c.b16 %v8865, %v8861
    %v9330 = vpack.c.b16 %v8866, %v8862
    %v9331 = vpack.c.b16 %v8867, %v8863
    %v9332 = vpack.c.b16 %v8872, %v8868
    %v9333 = vpack.c.b16 %v8873, %v8869
    %v9334 = vpack.c.b16 %v8874, %v8870
    %v9335 = vpack.c.b16 %v8875, %v8871
    %v9336 = vpack.c.b16 %v8880, %v8876
    %v9337 = vpack.c.b16 %v8881, %v8877
    %v9338 = vpack.c.b16 %v8882, %v8878
    %v9339 = vpack.c.b16 %v8883, %v8879
    %v9340 = vpack.c.b16 %v8888, %v8884
    %v9341 = vpack.c.b16 %v8889, %v8885
    %v9342 = vpack.c.b16 %v8890, %v8886
    %v9343 = vpack.c.b16 %v8891, %v8887
    %v9344 = vpack.c.b16 %v8896, %v8892
    %v9345 = vpack.c.b16 %v8897, %v8893
    %v9346 = vpack.c.b16 %v8898, %v8894
    %v9347 = vpack.c.b16 %v8899, %v8895
    %v9348 = vpack.c.b16 %v8904, %v8900
    %v9349 = vpack.c.b16 %v8905, %v8901
    %v9350 = vpack.c.b16 %v8906, %v8902
    %v9351 = vpack.c.b16 %v8907, %v8903
    %v9352 = vpack.c.b16 %v8912, %v8908
    %v9353 = vpack.c.b16 %v8913, %v8909
    %v9354 = vpack.c.b16 %v8914, %v8910
    %v9355 = vpack.c.b16 %v8915, %v8911
    %v9356 = vpack.c.b16 %v8920, %v8916
    %v9357 = vpack.c.b16 %v8921, %v8917
    %v9358 = vpack.c.b16 %v8922, %v8918
    %v9359 = vpack.c.b16 %v8923, %v8919
    %v9360 = vpack.c.b16 %v8928, %v8924
    %v9361 = vpack.c.b16 %v8929, %v8925
    %v9362 = vpack.c.b16 %v8930, %v8926
    %v9363 = vpack.c.b16 %v8931, %v8927
    %v9364 = vpack.c.b16 %v8936, %v8932
    %v9365 = vpack.c.b16 %v8937, %v8933
    %v9366 = vpack.c.b16 %v8938, %v8934
    %v9367 = vpack.c.b16 %v8939, %v8935
    %v9368 = vpack.c.b16 %v8944, %v8940
    %v9369 = vpack.c.b16 %v8945, %v8941
    %v9370 = vpack.c.b16 %v8946, %v8942
    %v9371 = vpack.c.b16 %v8947, %v8943
    %v9372 = vpack.c.b16 %v8952, %v8948
    %v9373 = vpack.c.b16 %v8953, %v8949
    %v9374 = vpack.c.b16 %v8954, %v8950
    %v9375 = vpack.c.b16 %v8955, %v8951
    %v9376 = vpack.c.b16 %v8960, %v8956
    %v9377 = vpack.c.b16 %v8961, %v8957
    %v9378 = vpack.c.b16 %v8962, %v8958
    %v9379 = vpack.c.b16 %v8963, %v8959
    %v9380 = vpack.c.b16 %v8968, %v8964
    %v9381 = vpack.c.b16 %v8969, %v8965
    %v9382 = vpack.c.b16 %v8970, %v8966
    %v9383 = vpack.c.b16 %v8971, %v8967
    %v9384 = vpack.c.b16 %v8976, %v8972
    %v9385 = vpack.c.b16 %v8977, %v8973
    %v9386 = vpack.c.b16 %v8978, %v8974
    %v9387 = vpack.c.b16 %v8979, %v8975
    %v9388 = vpack.c.b16 %v8984, %v8980
    %v9389 = vpack.c.b16 %v8985, %v8981
    %v9390 = vpack.c.b16 %v8986, %v8982
    %v9391 = vpack.c.b16 %v8987, %v8983
    %v9392 = vpack.c.b16 %v8992, %v8988
    %v9393 = vpack.c.b16 %v8993, %v8989
    %v9394 = vpack.c.b16 %v8994, %v8990
    %v9395 = vpack.c.b16 %v8995, %v8991
    %v9396 = vpack.c.b16 %v9000, %v8996
    %v9397 = vpack.c.b16 %v9001, %v8997
    %v9398 = vpack.c.b16 %v9002, %v8998
    %v9399 = vpack.c.b16 %v9003, %v8999
    %v9400 = vpack.c.b16 %v9008, %v9004
    %v9401 = vpack.c.b16 %v9009, %v9005
    %v9402 = vpack.c.b16 %v9010, %v9006
    %v9403 = vpack.c.b16 %v9011, %v9007
    %v9404 = vpack.c.b16 %v9016, %v9012
    %v9405 = vpack.c.b16 %v9017, %v9013
    %v9406 = vpack.c.b16 %v9018, %v9014
    %v9407 = vpack.c.b16 %v9019, %v9015
    %v9408 = vpack.c.b16 %v9024, %v9020
    %v9409 = vpack.c.b16 %v9025, %v9021
    %v9410 = vpack.c.b16 %v9026, %v9022
    %v9411 = vpack.c.b16 %v9027, %v9023
    %v9412 = vpack.c.b16 %v9032, %v9028
    %v9413 = vpack.c.b16 %v9033, %v9029
    %v9414 = vpack.c.b16 %v9034, %v9030
    %v9415 = vpack.c.b16 %v9035, %v9031
    %v9416 = vpack.c.b16 %v9040, %v9036
    %v9417 = vpack.c.b16 %v9041, %v9037
    %v9418 = vpack.c.b16 %v9042, %v9038
    %v9419 = vpack.c.b16 %v9043, %v9039
    %v9420 = vpack.c.b16 %v9048, %v9044
    %v9421 = vpack.c.b16 %v9049, %v9045
    %v9422 = vpack.c.b16 %v9050, %v9046
    %v9423 = vpack.c.b16 %v9051, %v9047
    %v9424 = vpack.c.b16 %v9056, %v9052
    %v9425 = vpack.c.b16 %v9057, %v9053
    %v9426 = vpack.c.b16 %v9058, %v9054
    %v9427 = vpack.c.b16 %v9059, %v9055
    %v9428 = vpack.c.b16 %v9064, %v9060
    %v9429 = vpack.c.b16 %v9065, %v9061
    %v9430 = vpack.c.b16 %v9066, %v9062
    %v9431 = vpack.c.b16 %v9067, %v9063
    %v9432 = vpack.c.b16 %v9072, %v9068
    %v9433 = vpack.c.b16 %v9073, %v9069
    %v9434 = vpack.c.b16 %v9074, %v9070
    %v9435 = vpack.c.b16 %v9075, %v9071
    %v9436 = vpack.c.b16 %v9080, %v9076
    %v9437 = vpack.c.b16 %v9081, %v9077
    %v9438 = vpack.c.b16 %v9082, %v9078
    %v9439 = vpack.c.b16 %v9083, %v9079
    %v9440 = vpack.c.b16 %v9088, %v9084
    %v9441 = vpack.c.b16 %v9089, %v9085
    %v9442 = vpack.c.b16 %v9090, %v9086
    %v9443 = vpack.c.b16 %v9091, %v9087
    %v9444 = vpack.c.b16 %v9096, %v9092
    %v9445 = vpack.c.b16 %v9097, %v9093
    %v9446 = vpack.c.b16 %v9098, %v9094
    %v9447 = vpack.c.b16 %v9099, %v9095
    %v9448 = vpack.c.b16 %v9104, %v9100
    %v9449 = vpack.c.b16 %v9105, %v9101
    %v9450 = vpack.c.b16 %v9106, %v9102
    %v9451 = vpack.c.b16 %v9107, %v9103
    %v9452 = vpack.c.b16 %v9112, %v9108
    %v9453 = vpack.c.b16 %v9113, %v9109
    %v9454 = vpack.c.b16 %v9114, %v9110
    %v9455 = vpack.c.b16 %v9115, %v9111
    %v9456 = vpack.c.b16 %v9120, %v9116
    %v9457 = vpack.c.b16 %v9121, %v9117
    %v9458 = vpack.c.b16 %v9122, %v9118
    %v9459 = vpack.c.b16 %v9123, %v9119
    %v9460 = vpack.c.b16 %v9128, %v9124
    %v9461 = vpack.c.b16 %v9129, %v9125
    %v9462 = vpack.c.b16 %v9130, %v9126
    %v9463 = vpack.c.b16 %v9131, %v9127
    %v9464 = vpack.c.b16 %v9136, %v9132
    %v9465 = vpack.c.b16 %v9137, %v9133
    %v9466 = vpack.c.b16 %v9138, %v9134
    %v9467 = vpack.c.b16 %v9139, %v9135
    %v9468 = vpack.c.b16 %v9144, %v9140
    %v9469 = vpack.c.b16 %v9145, %v9141
    %v9470 = vpack.c.b16 %v9146, %v9142
    %v9471 = vpack.c.b16 %v9147, %v9143
    %v9472 = vpack.c.b16 %v9152, %v9148
    %v9473 = vpack.c.b16 %v9153, %v9149
    %v9474 = vpack.c.b16 %v9154, %v9150
    %v9475 = vpack.c.b16 %v9155, %v9151
    %v9476 = vpack.c.b16 %v9160, %v9156
    %v9477 = vpack.c.b16 %v9161, %v9157
    %v9478 = vpack.c.b16 %v9162, %v9158
    %v9479 = vpack.c.b16 %v9163, %v9159
    %v9480 = vpack.c.b16 %v9168, %v9164
    %v9481 = vpack.c.b16 %v9169, %v9165
    %v9482 = vpack.c.b16 %v9170, %v9166
    %v9483 = vpack.c.b16 %v9171, %v9167
    %v9484 = vpack.c.b16 %v9176, %v9172
    %v9485 = vpack.c.b16 %v9177, %v9173
    %v9486 = vpack.c.b16 %v9178, %v9174
    %v9487 = vpack.c.b16 %v9179, %v9175
    %v9488 = vpack.c.b16 %v9184, %v9180
    %v9489 = vpack.c.b16 %v9185, %v9181
    %v9490 = vpack.c.b16 %v9186, %v9182
    %v9491 = vpack.c.b16 %v9187, %v9183
    %v9492 = vpack.c.b16 %v9192, %v9188
    %v9493 = vpack.c.b16 %v9193, %v9189
    %v9494 = vpack.c.b16 %v9194, %v9190
    %v9495 = vpack.c.b16 %v9195, %v9191
    %v9496 = vpack.c.b16 %v9200, %v9196
    %v9497 = vpack.c.b16 %v9201, %v9197
    %v9498 = vpack.c.b16 %v9202, %v9198
    %v9499 = vpack.c.b16 %v9203, %v9199
    %v9500 = vpack.c.b16 %v9208, %v9204
    %v9501 = vpack.c.b16 %v9209, %v9205
    %v9502 = vpack.c.b16 %v9210, %v9206
    %v9503 = vpack.c.b16 %v9211, %v9207
    %v9504 = vpack.c.b16 %v9216, %v9212
    %v9505 = vpack.c.b16 %v9217, %v9213
    %v9506 = vpack.c.b16 %v9218, %v9214
    %v9507 = vpack.c.b16 %v9219, %v9215
    %v9508 = vpack.c.b16 %v9224, %v9220
    %v9509 = vpack.c.b16 %v9225, %v9221
    %v9510 = vpack.c.b16 %v9226, %v9222
    %v9511 = vpack.c.b16 %v9227, %v9223
    %v9512 = vpack.c.b16 %v9232, %v9228
    %v9513 = vpack.c.b16 %v9233, %v9229
    %v9514 = vpack.c.b16 %v9234, %v9230
    %v9515 = vpack.c.b16 %v9235, %v9231
    %v9516 = vpack.c.b16 %v9240, %v9236
    %v9517 = vpack.c.b16 %v9241, %v9237
    %v9518 = vpack.c.b16 %v9242, %v9238
    %v9519 = vpack.c.b16 %v9243, %v9239
    %v9520 = vpack.c.b16 %v9248, %v9244
    %v9521 = vpack.c.b16 %v9249, %v9245
    %v9522 = vpack.c.b16 %v9250, %v9246
    %v9523 = vpack.c.b16 %v9251, %v9247
    %v9524 = vpack.c.b16 %v9256, %v9252
    %v9525 = vpack.c.b16 %v9257, %v9253
    %v9526 = vpack.c.b16 %v9258, %v9254
    %v9527 = vpack.c.b16 %v9259, %v9255
    %v9528 = vpack.c.b16 %v9264, %v9260
    %v9529 = vpack.c.b16 %v9265, %v9261
    %v9530 = vpack.c.b16 %v9266, %v9262
    %v9531 = vpack.c.b16 %v9267, %v9263
    %v9532 = vpack.c.b16 %v9272, %v9268
    %v9533 = vpack.c.b16 %v9273, %v9269
    %v9534 = vpack.c.b16 %v9274, %v9270
    %v9535 = vpack.c.b16 %v9275, %v9271
    %v9536 = vpack.c.b16 %v9280, %v9276
    %v9537 = vpack.c.b16 %v9281, %v9277
    %v9538 = vpack.c.b16 %v9282, %v9278
    %v9539 = vpack.c.b16 %v9283, %v9279
    %9796 = vmatprep.subr.bf16.mxu0 %v9285
    %9797 = vmatpush1.bf16.msra.mxu0 %v9284
    %9798 = vmatprep.subr.bf16.mxu0 %v9289
    %9799 = vmatpush1.bf16.msra.mxu0 %v9288
    %9800 = vmatprep.subr.bf16.mxu0 %v9293
    %9801 = vmatpush1.bf16.msra.mxu0 %v9292
    %9802 = vmatprep.subr.bf16.mxu0 %v9297
    %9803 = vmatpush1.bf16.msra.mxu0 %v9296
    %9804 = vmatprep.subr.bf16.mxu0 %v9301
    %9805 = vmatpush1.bf16.msra.mxu0 %v9300
    %9806 = vmatprep.subr.bf16.mxu0 %v9305
    %9807 = vmatpush1.bf16.msra.mxu0 %v9304
    %9808 = vmatprep.subr.bf16.mxu0 %v9309
    %9809 = vmatpush1.bf16.msra.mxu0 %v9308
    %9810 = vmatprep.subr.bf16.mxu0 %v9313
    %9811 = vmatpush1.bf16.msra.mxu0 %v9312
    %9812 = vmatprep.subr.bf16.mxu0 %v9317
    %9813 = vmatpush1.bf16.msra.mxu0 %v9316
    %9814 = vmatprep.subr.bf16.mxu0 %v9321
    %9815 = vmatpush1.bf16.msra.mxu0 %v9320
    %9816 = vmatprep.subr.bf16.mxu0 %v9325
    %9817 = vmatpush1.bf16.msra.mxu0 %v9324
    %9818 = vmatprep.subr.bf16.mxu0 %v9329
    %9819 = vmatpush1.bf16.msra.mxu0 %v9328
    %9820 = vmatprep.subr.bf16.mxu0 %v9333
    %9821 = vmatpush1.bf16.msra.mxu0 %v9332
    %9822 = vmatprep.subr.bf16.mxu0 %v9337
    %9823 = vmatpush1.bf16.msra.mxu0 %v9336
    %9824 = vmatprep.subr.bf16.mxu0 %v9341
    %9825 = vmatpush1.bf16.msra.mxu0 %v9340
    %9826 = vmatprep.subr.bf16.mxu0 %v9345
    %9827 = vmatpush1.bf16.msra.mxu0 %v9344
    %9828 = vmatprep.mubr.bf16.mxu0 %v8231
    %9829 = vmatmul.mubr.bf16.gmra.mrb[0].mxu0 %v8230
    %v9830 = vpop.f32.mrb[0].mxu0
    %v9831 = vadd.f32 %v8499, %v9830
    %v9832 = vpop.f32.mrb[0].mxu0
    %v9833 = vadd.f32 %v8503, %v9832
    %v9834 = vpop.f32.mrb[0].mxu0
    %v9835 = vadd.f32 %v8499, %v9834
    %v9836 = vpop.f32.mrb[0].mxu0
    %v9837 = vadd.f32 %v8503, %v9836
    %9838 = vdwg.mxu0
    %9839 = vmatprep.subr.bf16.mxu0 %v9349
    %9840 = vmatpush1.bf16.msra.mxu0 %v9348
    %9841 = vmatprep.subr.bf16.mxu0 %v9353
    %9842 = vmatpush1.bf16.msra.mxu0 %v9352
    %9843 = vmatprep.subr.bf16.mxu0 %v9357
    %9844 = vmatpush1.bf16.msra.mxu0 %v9356
    %9845 = vmatprep.subr.bf16.mxu0 %v9361
    %9846 = vmatpush1.bf16.msra.mxu0 %v9360
    %9847 = vmatprep.subr.bf16.mxu0 %v9365
    %9848 = vmatpush1.bf16.msra.mxu0 %v9364
    %9849 = vmatprep.subr.bf16.mxu0 %v9369
    %9850 = vmatpush1.bf16.msra.mxu0 %v9368
    %9851 = vmatprep.subr.bf16.mxu0 %v9373
    %9852 = vmatpush1.bf16.msra.mxu0 %v9372
    %9853 = vmatprep.subr.bf16.mxu0 %v9377
    %9854 = vmatpush1.bf16.msra.mxu0 %v9376
    %9855 = vmatprep.subr.bf16.mxu0 %v9381
    %9856 = vmatpush1.bf16.msra.mxu0 %v9380
    %9857 = vmatprep.subr.bf16.mxu0 %v9385
    %9858 = vmatpush1.bf16.msra.mxu0 %v9384
    %9859 = vmatprep.subr.bf16.mxu0 %v9389
    %9860 = vmatpush1.bf16.msra.mxu0 %v9388
    %9861 = vmatprep.subr.bf16.mxu0 %v9393
    %9862 = vmatpush1.bf16.msra.mxu0 %v9392
    %9863 = vmatprep.subr.bf16.mxu0 %v9397
    %9864 = vmatpush1.bf16.msra.mxu0 %v9396
    %9865 = vmatprep.subr.bf16.mxu0 %v9401
    %9866 = vmatpush1.bf16.msra.mxu0 %v9400
    %9867 = vmatprep.subr.bf16.mxu0 %v9405
    %9868 = vmatpush1.bf16.msra.mxu0 %v9404
    %9869 = vmatprep.subr.bf16.mxu0 %v9409
    %9870 = vmatpush1.bf16.msra.mxu0 %v9408
    %9871 = vmatprep.mubr.bf16.mxu0 %v8233
    %9872 = vmatmul.mubr.bf16.gmra.mrb[0].mxu0 %v8232
    %v9873 = vpop.f32.mrb[0].mxu0
    %v9874 = vadd.f32 %v9831, %v9873
    %v9875 = vpop.f32.mrb[0].mxu0
    %v9876 = vadd.f32 %v9833, %v9875
    %v9877 = vpop.f32.mrb[0].mxu0
    %v9878 = vadd.f32 %v9835, %v9877
    %v9879 = vpop.f32.mrb[0].mxu0
    %v9880 = vadd.f32 %v9837, %v9879
    %9881 = vdwg.mxu0
    %9882 = vmatprep.subr.bf16.mxu0 %v9413
    %9883 = vmatpush1.bf16.msra.mxu0 %v9412
    %9884 = vmatprep.subr.bf16.mxu0 %v9417
    %9885 = vmatpush1.bf16.msra.mxu0 %v9416
    %9886 = vmatprep.subr.bf16.mxu0 %v9421
    %9887 = vmatpush1.bf16.msra.mxu0 %v9420
    %9888 = vmatprep.subr.bf16.mxu0 %v9425
    %9889 = vmatpush1.bf16.msra.mxu0 %v9424
    %9890 = vmatprep.subr.bf16.mxu0 %v9429
    %9891 = vmatpush1.bf16.msra.mxu0 %v9428
    %9892 = vmatprep.subr.bf16.mxu0 %v9433
    %9893 = vmatpush1.bf16.msra.mxu0 %v9432
    %9894 = vmatprep.subr.bf16.mxu0 %v9437
    %9895 = vmatpush1.bf16.msra.mxu0 %v9436
    %9896 = vmatprep.subr.bf16.mxu0 %v9441
    %9897 = vmatpush1.bf16.msra.mxu0 %v9440
    %9898 = vmatprep.subr.bf16.mxu0 %v9445
    %9899 = vmatpush1.bf16.msra.mxu0 %v9444
    %9900 = vmatprep.subr.bf16.mxu0 %v9449
    %9901 = vmatpush1.bf16.msra.mxu0 %v9448
    %9902 = vmatprep.subr.bf16.mxu0 %v9453
    %9903 = vmatpush1.bf16.msra.mxu0 %v9452
    %9904 = vmatprep.subr.bf16.mxu0 %v9457
    %9905 = vmatpush1.bf16.msra.mxu0 %v9456
    %9906 = vmatprep.subr.bf16.mxu0 %v9461
    %9907 = vmatpush1.bf16.msra.mxu0 %v9460
    %9908 = vmatprep.subr.bf16.mxu0 %v9465
    %9909 = vmatpush1.bf16.msra.mxu0 %v9464
    %9910 = vmatprep.subr.bf16.mxu0 %v9469
    %9911 = vmatpush1.bf16.msra.mxu0 %v9468
    %9912 = vmatprep.subr.bf16.mxu0 %v9473
    %9913 = vmatpush1.bf16.msra.mxu0 %v9472
    %9914 = vmatprep.mubr.bf16.mxu0 %v8235
    %9915 = vmatmul.mubr.bf16.gmra.mrb[0].mxu0 %v8234
    %v9916 = vpop.f32.mrb[0].mxu0
    %v9917 = vadd.f32 %v9874, %v9916
    %v9918 = vpop.f32.mrb[0].mxu0
    %v9919 = vadd.f32 %v9876, %v9918
    %v9920 = vpop.f32.mrb[0].mxu0
    %v9921 = vadd.f32 %v9878, %v9920
    %v9922 = vpop.f32.mrb[0].mxu0
    %v9923 = vadd.f32 %v9880, %v9922
    %9924 = vdwg.mxu0
    %9925 = vmatprep.subr.bf16.mxu0 %v9477
    %9926 = vmatpush1.bf16.msra.mxu0 %v9476
    %9927 = vmatprep.subr.bf16.mxu0 %v9481
    %9928 = vmatpush1.bf16.msra.mxu0 %v9480
    %9929 = vmatprep.subr.bf16.mxu0 %v9485
    %9930 = vmatpush1.bf16.msra.mxu0 %v9484
    %9931 = vmatprep.subr.bf16.mxu0 %v9489
    %9932 = vmatpush1.bf16.msra.mxu0 %v9488
    %9933 = vmatprep.subr.bf16.mxu0 %v9493
    %9934 = vmatpush1.bf16.msra.mxu0 %v9492
    %9935 = vmatprep.subr.bf16.mxu0 %v9497
    %9936 = vmatpush1.bf16.msra.mxu0 %v9496
    %9937 = vmatprep.subr.bf16.mxu0 %v9501
    %9938 = vmatpush1.bf16.msra.mxu0 %v9500
    %9939 = vmatprep.subr.bf16.mxu0 %v9505
    %9940 = vmatpush1.bf16.msra.mxu0 %v9504
    %9941 = vmatprep.subr.bf16.mxu0 %v9509
    %9942 = vmatpush1.bf16.msra.mxu0 %v9508
    %9943 = vmatprep.subr.bf16.mxu0 %v9513
    %9944 = vmatpush1.bf16.msra.mxu0 %v9512
    %9945 = vmatprep.subr.bf16.mxu0 %v9517
    %9946 = vmatpush1.bf16.msra.mxu0 %v9516
    %9947 = vmatprep.subr.bf16.mxu0 %v9521
    %9948 = vmatpush1.bf16.msra.mxu0 %v9520
    %9949 = vmatprep.subr.bf16.mxu0 %v9525
    %9950 = vmatpush1.bf16.msra.mxu0 %v9524
    %9951 = vmatprep.subr.bf16.mxu0 %v9529
    %9952 = vmatpush1.bf16.msra.mxu0 %v9528
    %9953 = vmatprep.subr.bf16.mxu0 %v9533
    %9954 = vmatpush1.bf16.msra.mxu0 %v9532
    %9955 = vmatprep.subr.bf16.mxu0 %v9537
    %9956 = vmatpush1.bf16.msra.mxu0 %v9536
    %9957 = vmatprep.mubr.bf16.mxu0 %v8237
    %9958 = vmatmul.mubr.bf16.gmra.mrb[0].mxu0 %v8236
    %v9959 = vpop.f32.mrb[0].mxu0
    %v9960 = vadd.f32 %v9917, %v9959
    %v9961 = vpop.f32.mrb[0].mxu0
    %v9962 = vadd.f32 %v9919, %v9961
    %v9963 = vpop.f32.mrb[0].mxu0
    %v9964 = vadd.f32 %v9921, %v9963
    %v9965 = vpop.f32.mrb[0].mxu0
    %v9966 = vadd.f32 %v9923, %v9965
    %9967 = vdwg.mxu0
    %9968 = vmatprep.subr.bf16.mxu0 %v9287
    %9969 = vmatpush1.bf16.msra.mxu0 %v9286
    %9970 = vmatprep.subr.bf16.mxu0 %v9291
    %9971 = vmatpush1.bf16.msra.mxu0 %v9290
    %9972 = vmatprep.subr.bf16.mxu0 %v9295
    %9973 = vmatpush1.bf16.msra.mxu0 %v9294
    %9974 = vmatprep.subr.bf16.mxu0 %v9299
    %9975 = vmatpush1.bf16.msra.mxu0 %v9298
    %9976 = vmatprep.subr.bf16.mxu0 %v9303
    %9977 = vmatpush1.bf16.msra.mxu0 %v9302
    %9978 = vmatprep.subr.bf16.mxu0 %v9307
    %9979 = vmatpush1.bf16.msra.mxu0 %v9306
    %9980 = vmatprep.subr.bf16.mxu0 %v9311
    %9981 = vmatpush1.bf16.msra.mxu0 %v9310
    %9982 = vmatprep.subr.bf16.mxu0 %v9315
    %9983 = vmatpush1.bf16.msra.mxu0 %v9314
    %9984 = vmatprep.subr.bf16.mxu0 %v9319
    %9985 = vmatpush1.bf16.msra.mxu0 %v9318
    %9986 = vmatprep.subr.bf16.mxu0 %v9323
    %9987 = vmatpush1.bf16.msra.mxu0 %v9322
    %9988 = vmatprep.subr.bf16.mxu0 %v9327
    %9989 = vmatpush1.bf16.msra.mxu0 %v9326
    %9990 = vmatprep.subr.bf16.mxu0 %v9331
    %9991 = vmatpush1.bf16.msra.mxu0 %v9330
    %9992 = vmatprep.subr.bf16.mxu0 %v9335
    %9993 = vmatpush1.bf16.msra.mxu0 %v9334
    %9994 = vmatprep.subr.bf16.mxu0 %v9339
    %9995 = vmatpush1.bf16.msra.mxu0 %v9338
    %9996 = vmatprep.subr.bf16.mxu0 %v9343
    %9997 = vmatpush1.bf16.msra.mxu0 %v9342
    %9998 = vmatprep.subr.bf16.mxu0 %v9347
    %9999 = vmatpush1.bf16.msra.mxu0 %v9346
    %10000 = vmatprep.mubr.bf16.mxu0 %v8231
    %10001 = vmatmul.mubr.bf16.gmra.mrb[0].mxu0 %v8230
    %v10002 = vpop.f32.mrb[0].mxu0
    %v10003 = vadd.f32 %v8507, %v10002
    %v10004 = vpop.f32.mrb[0].mxu0
    %v10005 = vadd.f32 %v8511, %v10004
    %v10006 = vpop.f32.mrb[0].mxu0
    %v10007 = vadd.f32 %v8507, %v10006
    %v10008 = vpop.f32.mrb[0].mxu0
    %v10009 = vadd.f32 %v8511, %v10008
    %10010 = vdwg.mxu0
    %10011 = vmatprep.subr.bf16.mxu0 %v9351
    %10012 = vmatpush1.bf16.msra.mxu0 %v9350
    %10013 = vmatprep.subr.bf16.mxu0 %v9355
    %10014 = vmatpush1.bf16.msra.mxu0 %v9354
    %10015 = vmatprep.subr.bf16.mxu0 %v9359
    %10016 = vmatpush1.bf16.msra.mxu0 %v9358
    %10017 = vmatprep.subr.bf16.mxu0 %v9363
    %10018 = vmatpush1.bf16.msra.mxu0 %v9362
    %10019 = vmatprep.subr.bf16.mxu0 %v9367
    %10020 = vmatpush1.bf16.msra.mxu0 %v9366
    %10021 = vmatprep.subr.bf16.mxu0 %v9371
    %10022 = vmatpush1.bf16.msra.mxu0 %v9370
    %10023 = vmatprep.subr.bf16.mxu0 %v9375
    %10024 = vmatpush1.bf16.msra.mxu0 %v9374
    %10025 = vmatprep.subr.bf16.mxu0 %v9379
    %10026 = vmatpush1.bf16.msra.mxu0 %v9378
    %10027 = vmatprep.subr.bf16.mxu0 %v9383
    %10028 = vmatpush1.bf16.msra.mxu0 %v9382
    %10029 = vmatprep.subr.bf16.mxu0 %v9387
    %10030 = vmatpush1.bf16.msra.mxu0 %v9386
    %10031 = vmatprep.subr.bf16.mxu0 %v9391
    %10032 = vmatpush1.bf16.msra.mxu0 %v9390
    %10033 = vmatprep.subr.bf16.mxu0 %v9395
    %10034 = vmatpush1.bf16.msra.mxu0 %v9394
    %10035 = vmatprep.subr.bf16.mxu0 %v9399
    %10036 = vmatpush1.bf16.msra.mxu0 %v9398
    %10037 = vmatprep.subr.bf16.mxu0 %v9403
    %10038 = vmatpush1.bf16.msra.mxu0 %v9402
    %10039 = vmatprep.subr.bf16.mxu0 %v9407
    %10040 = vmatpush1.bf16.msra.mxu0 %v9406
    %10041 = vmatprep.subr.bf16.mxu0 %v9411
    %10042 = vmatpush1.bf16.msra.mxu0 %v9410
    %10043 = vmatprep.mubr.bf16.mxu0 %v8233
    %10044 = vmatmul.mubr.bf16.gmra.mrb[0].mxu0 %v8232
    %v10045 = vpop.f32.mrb[0].mxu0
    %v10046 = vadd.f32 %v10003, %v10045
    %v10047 = vpop.f32.mrb[0].mxu0
    %v10048 = vadd.f32 %v10005, %v10047
    %v10049 = vpop.f32.mrb[0].mxu0
    %v10050 = vadd.f32 %v10007, %v10049
    %v10051 = vpop.f32.mrb[0].mxu0
    %v10052 = vadd.f32 %v10009, %v10051
    %10053 = vdwg.mxu0
    %10054 = vmatprep.subr.bf16.mxu0 %v9415
    %10055 = vmatpush1.bf16.msra.mxu0 %v9414
    %10056 = vmatprep.subr.bf16.mxu0 %v9419
    %10057 = vmatpush1.bf16.msra.mxu0 %v9418
    %10058 = vmatprep.subr.bf16.mxu0 %v9423
    %10059 = vmatpush1.bf16.msra.mxu0 %v9422
    %10060 = vmatprep.subr.bf16.mxu0 %v9427
    %10061 = vmatpush1.bf16.msra.mxu0 %v9426
    %10062 = vmatprep.subr.bf16.mxu0 %v9431
    %10063 = vmatpush1.bf16.msra.mxu0 %v9430
    %10064 = vmatprep.subr.bf16.mxu0 %v9435
    %10065 = vmatpush1.bf16.msra.mxu0 %v9434
    %10066 = vmatprep.subr.bf16.mxu0 %v9439
    %10067 = vmatpush1.bf16.msra.mxu0 %v9438
    %10068 = vmatprep.subr.bf16.mxu0 %v9443
    %10069 = vmatpush1.bf16.msra.mxu0 %v9442
    %10070 = vmatprep.subr.bf16.mxu0 %v9447
    %10071 = vmatpush1.bf16.msra.mxu0 %v9446
    %10072 = vmatprep.subr.bf16.mxu0 %v9451
    %10073 = vmatpush1.bf16.msra.mxu0 %v9450
    %10074 = vmatprep.subr.bf16.mxu0 %v9455
    %10075 = vmatpush1.bf16.msra.mxu0 %v9454
    %10076 = vmatprep.subr.bf16.mxu0 %v9459
    %10077 = vmatpush1.bf16.msra.mxu0 %v9458
    %10078 = vmatprep.subr.bf16.mxu0 %v9463
    %10079 = vmatpush1.bf16.msra.mxu0 %v9462
    %10080 = vmatprep.subr.bf16.mxu0 %v9467
    %10081 = vmatpush1.bf16.msra.mxu0 %v9466
    %10082 = vmatprep.subr.bf16.mxu0 %v9471
    %10083 = vmatpush1.bf16.msra.mxu0 %v9470
    %10084 = vmatprep.subr.bf16.mxu0 %v9475
    %10085 = vmatpush1.bf16.msra.mxu0 %v9474
    %10086 = vmatprep.mubr.bf16.mxu0 %v8235
    %10087 = vmatmul.mubr.bf16.gmra.mrb[0].mxu0 %v8234
    %v10088 = vpop.f32.mrb[0].mxu0
    %v10089 = vadd.f32 %v10046, %v10088
    %v10090 = vpop.f32.mrb[0].mxu0
    %v10091 = vadd.f32 %v10048, %v10090
    %v10092 = vpop.f32.mrb[0].mxu0
    %v10093 = vadd.f32 %v10050, %v10092
    %v10094 = vpop.f32.mrb[0].mxu0
    %v10095 = vadd.f32 %v10052, %v10094
    %10096 = vdwg.mxu0
    %10097 = vmatprep.subr.bf16.mxu0 %v9479
    %10098 = vmatpush1.bf16.msra.mxu0 %v9478
    %10099 = vmatprep.subr.bf16.mxu0 %v9483
    %10100 = vmatpush1.bf16.msra.mxu0 %v9482
    %10101 = vmatprep.subr.bf16.mxu0 %v9487
    %10102 = vmatpush1.bf16.msra.mxu0 %v9486
    %10103 = vmatprep.subr.bf16.mxu0 %v9491
    %10104 = vmatpush1.bf16.msra.mxu0 %v9490
    %10105 = vmatprep.subr.bf16.mxu0 %v9495
    %10106 = vmatpush1.bf16.msra.mxu0 %v9494
    %10107 = vmatprep.subr.bf16.mxu0 %v9499
    %10108 = vmatpush1.bf16.msra.mxu0 %v9498
    %10109 = vmatprep.subr.bf16.mxu0 %v9503
    %10110 = vmatpush1.bf16.msra.mxu0 %v9502
    %10111 = vmatprep.subr.bf16.mxu0 %v9507
    %10112 = vmatpush1.bf16.msra.mxu0 %v9506
    %10113 = vmatprep.subr.bf16.mxu0 %v9511
    %10114 = vmatpush1.bf16.msra.mxu0 %v9510
    %10115 = vmatprep.subr.bf16.mxu0 %v9515
    %10116 = vmatpush1.bf16.msra.mxu0 %v9514
    %10117 = vmatprep.subr.bf16.mxu0 %v9519
    %10118 = vmatpush1.bf16.msra.mxu0 %v9518
    %10119 = vmatprep.subr.bf16.mxu0 %v9523
    %10120 = vmatpush1.bf16.msra.mxu0 %v9522
    %10121 = vmatprep.subr.bf16.mxu0 %v9527
    %10122 = vmatpush1.bf16.msra.mxu0 %v9526
    %10123 = vmatprep.subr.bf16.mxu0 %v9531
    %10124 = vmatpush1.bf16.msra.mxu0 %v9530
    %10125 = vmatprep.subr.bf16.mxu0 %v9535
    %10126 = vmatpush1.bf16.msra.mxu0 %v9534
    %10127 = vmatprep.subr.bf16.mxu0 %v9539
    %10128 = vmatpush1.bf16.msra.mxu0 %v9538
    %10129 = vmatprep.mubr.bf16.mxu0 %v8237
    %10130 = vmatmul.mubr.bf16.gmra.mrb[0].mxu0 %v8236
    %v10131 = vpop.f32.mrb[0].mxu0
    %v10132 = vadd.f32 %v10089, %v10131
    %v10133 = vpop.f32.mrb[0].mxu0
    %v10134 = vadd.f32 %v10091, %v10133
    %v10135 = vpop.f32.mrb[0].mxu0
    %v10136 = vadd.f32 %v10093, %v10135
    %v10137 = vpop.f32.mrb[0].mxu0
    %v10138 = vadd.f32 %v10095, %v10137
    %10139 = vdwg.mxu0
    %v10140 = vld [vmem:[#allocation14] sm:$0xf]
    %v10141 = vld [vmem:[#allocation16] sm:$0xf]
    %v10142 = vadd.f32 %v9960, %v9964
    %v10143 = vrot.slane %v10142, 4
    %v10144 = vadd.f32 %v10142, %v10143
    %v10145 = vrot.slane %v10144, 2
    %v10146 = vadd.f32 %v10144, %v10145
    %v10147 = vrot.slane %v10146, 1
    %v10148 = vadd.f32 %v10146, %v10147
    %v10149 = vadd.f32 %v9962, %v9966
    %v10150 = vrot.slane %v10149, 4
    %v10151 = vadd.f32 %v10149, %v10150
    %v10152 = vrot.slane %v10151, 2
    %v10153 = vadd.f32 %v10151, %v10152
    %v10154 = vrot.slane %v10153, 1
    %v10155 = vadd.f32 %v10153, %v10154
    %v10156 = vadd.f32 %v10132, %v10136
    %v10157 = vrot.slane %v10156, 4
    %v10158 = vadd.f32 %v10156, %v10157
    %v10159 = vrot.slane %v10158, 2
    %v10160 = vadd.f32 %v10158, %v10159
    %v10161 = vrot.slane %v10160, 1
    %v10162 = vadd.f32 %v10160, %v10161
    %v10163 = vadd.f32 %v10134, %v10138
    %v10164 = vrot.slane %v10163, 4
    %v10165 = vadd.f32 %v10163, %v10164
    %v10166 = vrot.slane %v10165, 2
    %v10167 = vadd.f32 %v10165, %v10166
    %v10168 = vrot.slane %v10167, 1
    %v10169 = vadd.f32 %v10167, %v10168
    %v10170 = vmul.f32 %v10148, %v7963
    %v10171 = vmul.f32 %v10155, %v7963
    %v10172 = vmul.f32 %v10162, %v7963
    %v10173 = vmul.f32 %v10169, %v7963
    %v10174 = vsub.f32 %v9960, %v10170
    %v10175 = vsub.f32 %v9962, %v10171
    %v10176 = vsub.f32 %v10132, %v10172
    %v10177 = vsub.f32 %v10134, %v10173
    %v10178 = vsub.f32 %v9964, %v10170
    %v10179 = vsub.f32 %v9966, %v10171
    %v10180 = vsub.f32 %v10136, %v10172
    %v10181 = vsub.f32 %v10138, %v10173
    %v10182 = vmul.f32 %v10174, %v10174
    %v10183 = vmul.f32 %v10175, %v10175
    %v10184 = vmul.f32 %v10176, %v10176
    %v10185 = vmul.f32 %v10177, %v10177
    %v10186 = vmul.f32 %v10178, %v10178
    %v10187 = vmul.f32 %v10179, %v10179
    %v10188 = vmul.f32 %v10180, %v10180
    %v10189 = vmul.f32 %v10181, %v10181
    %v10190 = vadd.f32 %v10182, %v10186
    %v10191 = vrot.slane %v10190, 4
    %v10192 = vadd.f32 %v10190, %v10191
    %v10193 = vrot.slane %v10192, 2
    %v10194 = vadd.f32 %v10192, %v10193
    %v10195 = vrot.slane %v10194, 1
    %v10196 = vadd.f32 %v10194, %v10195
    %v10197 = vadd.f32 %v10183, %v10187
    %v10198 = vrot.slane %v10197, 4
    %v10199 = vadd.f32 %v10197, %v10198
    %v10200 = vrot.slane %v10199, 2
    %v10201 = vadd.f32 %v10199, %v10200
    %v10202 = vrot.slane %v10201, 1
    %v10203 = vadd.f32 %v10201, %v10202
    %v10204 = vadd.f32 %v10184, %v10188
    %v10205 = vrot.slane %v10204, 4
    %v10206 = vadd.f32 %v10204, %v10205
    %v10207 = vrot.slane %v10206, 2
    %v10208 = vadd.f32 %v10206, %v10207
    %v10209 = vrot.slane %v10208, 1
    %v10210 = vadd.f32 %v10208, %v10209
    %v10211 = vadd.f32 %v10185, %v10189
    %v10212 = vrot.slane %v10211, 4
    %v10213 = vadd.f32 %v10211, %v10212
    %v10214 = vrot.slane %v10213, 2
    %v10215 = vadd.f32 %v10213, %v10214
    %v10216 = vrot.slane %v10215, 1
    %v10217 = vadd.f32 %v10215, %v10216
    %v10218 = vmul.f32 %v10196, %v7963
    %v10219 = vmul.f32 %v10203, %v7963
    %v10220 = vmul.f32 %v10210, %v7963
    %v10221 = vmul.f32 %v10217, %v7963
    %v10222 = vadd.f32 %v10218, 1e-05
    %v10223 = vadd.f32 %v10219, 1e-05
    %v10224 = vadd.f32 %v10220, 1e-05
    %v10225 = vadd.f32 %v10221, 1e-05
    %v10226 = vrsqrt.pop %v10222
    %v10227 = vrsqrt.pop %v10223
    %v10228 = vrsqrt.pop %v10224
    %v10229 = vrsqrt.pop %v10225
    %v10230 = vmul.f32 %v10174, %v10226
    %v10231 = vmul.f32 %v10175, %v10227
    %v10232 = vmul.f32 %v10176, %v10228
    %v10233 = vmul.f32 %v10177, %v10229
    %v10234 = vmul.f32 %v10178, %v10226
    %v10235 = vmul.f32 %v10179, %v10227
    %v10236 = vmul.f32 %v10180, %v10228
    %v10237 = vmul.f32 %v10181, %v10229
    %v10239 = vlaneseq
    %v10240 = vshrl.u32 %v10239, 7
    %v10241 = vsub.s32 0, %v10240
    %v10242 = vrot.slane %v10140, %v10241
    %v10243 = vlaneseq
    %v10244 = vshrl.u32 %v10243, 7
    %v10245 = vsub.s32 1, %v10244
    %v10246 = vrot.slane %v10140, %v10245
    %v10247 = vlaneseq
    %v10248 = vshrl.u32 %v10247, 7
    %v10249 = vsub.s32 2, %v10248
    %v10250 = vrot.slane %v10140, %v10249
    %v10251 = vlaneseq
    %v10252 = vshrl.u32 %v10251, 7
    %v10253 = vsub.s32 3, %v10252
    %v10254 = vrot.slane %v10140, %v10253
    %v10259 = vmul.f32 %v10230, %v10242
    %v10260 = vmul.f32 %v10231, %v10246
    %v10261 = vmul.f32 %v10232, %v10250
    %v10262 = vmul.f32 %v10233, %v10254
    %v10263 = vmul.f32 %v10234, %v10242
    %v10264 = vmul.f32 %v10235, %v10246
    %v10265 = vmul.f32 %v10236, %v10250
    %v10266 = vmul.f32 %v10237, %v10254
    %v10268 = vlaneseq
    %v10269 = vshrl.u32 %v10268, 7
    %v10270 = vsub.s32 0, %v10269
    %v10271 = vrot.slane %v10141, %v10270
    %v10272 = vlaneseq
    %v10273 = vshrl.u32 %v10272, 7
    %v10274 = vsub.s32 1, %v10273
    %v10275 = vrot.slane %v10141, %v10274
    %v10276 = vlaneseq
    %v10277 = vshrl.u32 %v10276, 7
    %v10278 = vsub.s32 2, %v10277
    %v10279 = vrot.slane %v10141, %v10278
    %v10280 = vlaneseq
    %v10281 = vshrl.u32 %v10280, 7
    %v10282 = vsub.s32 3, %v10281
    %v10283 = vrot.slane %v10141, %v10282
    %v10288 = vadd.f32 %v10259, %v10271
    %v10289 = vadd.f32 %v10260, %v10275
    %v10290 = vadd.f32 %v10261, %v10279
    %v10291 = vadd.f32 %v10262, %v10283
    %v10292 = vadd.f32 %v10263, %v10271
    %v10293 = vadd.f32 %v10264, %v10275
    %v10294 = vadd.f32 %v10265, %v10279
    %v10295 = vadd.f32 %v10266, %v10283
    %v10296 = vmax.f32 %v10288, 0.0
    %v10297 = vmax.f32 %v10289, 0.0
    %v10298 = vmax.f32 %v10290, 0.0
    %v10299 = vmax.f32 %v10291, 0.0
    %v10300 = vmax.f32 %v10292, 0.0
    %v10301 = vmax.f32 %v10293, 0.0
    %v10302 = vmax.f32 %v10294, 0.0
    %v10303 = vmax.f32 %v10295, 0.0
    %v10304 = vpack.c.bf16 %v10300, %v10296
    %v10305 = vpack.c.bf16 %v10301, %v10297
    %v10306 = vpack.c.bf16 %v10302, %v10298
    %v10307 = vpack.c.bf16 %v10303, %v10299
    %v10308 = vld [vmem:[#allocation17] sm:$0xff]
    %v10309 = vld [vmem:[#allocation17 + $0x8] sm:$0xff]
    %v10310 = vld [vmem:[#allocation17 + $0x10] sm:$0xff]
    %v10311 = vld [vmem:[#allocation17 + $0x18] sm:$0xff]
    %v10312 = vld [vmem:[#allocation17 + $0x20] sm:$0xff]
    %v10313 = vld [vmem:[#allocation17 + $0x28] sm:$0xff]
    %v10314 = vld [vmem:[#allocation17 + $0x30] sm:$0xff]
    %v10315 = vld [vmem:[#allocation17 + $0x38] sm:$0xff]
    %v10316 = vld [vmem:[#allocation17 + $0x40] sm:$0xff]
    %v10317 = vld [vmem:[#allocation17 + $0x48] sm:$0xff]
    %v10318 = vld [vmem:[#allocation17 + $0x50] sm:$0xff]
    %v10319 = vld [vmem:[#allocation17 + $0x58] sm:$0xff]
    %v10320 = vld [vmem:[#allocation17 + $0x60] sm:$0xff]
    %v10321 = vld [vmem:[#allocation17 + $0x68] sm:$0xff]
    %v10322 = vld [vmem:[#allocation17 + $0x70] sm:$0xff]
    %v10323 = vld [vmem:[#allocation17 + $0x78] sm:$0xff]
    %v10324 = vld [vmem:[#allocation17 + $0x80] sm:$0xff]
    %v10325 = vld [vmem:[#allocation17 + $0x88] sm:$0xff]
    %v10326 = vld [vmem:[#allocation17 + $0x90] sm:$0xff]
    %v10327 = vld [vmem:[#allocation17 + $0x98] sm:$0xff]
    %v10328 = vld [vmem:[#allocation17 + $0xa0] sm:$0xff]
    %v10329 = vld [vmem:[#allocation17 + $0xa8] sm:$0xff]
    %v10330 = vld [vmem:[#allocation17 + $0xb0] sm:$0xff]
    %v10331 = vld [vmem:[#allocation17 + $0xb8] sm:$0xff]
    %v10332 = vld [vmem:[#allocation17 + $0xc0] sm:$0xff]
    %v10333 = vld [vmem:[#allocation17 + $0xc8] sm:$0xff]
    %v10334 = vld [vmem:[#allocation17 + $0xd0] sm:$0xff]
    %v10335 = vld [vmem:[#allocation17 + $0xd8] sm:$0xff]
    %v10336 = vld [vmem:[#allocation17 + $0xe0] sm:$0xff]
    %v10337 = vld [vmem:[#allocation17 + $0xe8] sm:$0xff]
    %v10338 = vld [vmem:[#allocation17 + $0xf0] sm:$0xff]
    %v10339 = vld [vmem:[#allocation17 + $0xf8] sm:$0xff]
    %v10340 = vld [vmem:[#allocation17 + $0x100] sm:$0xff]
    %v10341 = vld [vmem:[#allocation17 + $0x108] sm:$0xff]
    %v10342 = vld [vmem:[#allocation17 + $0x110] sm:$0xff]
    %v10343 = vld [vmem:[#allocation17 + $0x118] sm:$0xff]
    %v10344 = vld [vmem:[#allocation17 + $0x120] sm:$0xff]
    %v10345 = vld [vmem:[#allocation17 + $0x128] sm:$0xff]
    %v10346 = vld [vmem:[#allocation17 + $0x130] sm:$0xff]
    %v10347 = vld [vmem:[#allocation17 + $0x138] sm:$0xff]
    %v10348 = vld [vmem:[#allocation17 + $0x140] sm:$0xff]
    %v10349 = vld [vmem:[#allocation17 + $0x148] sm:$0xff]
    %v10350 = vld [vmem:[#allocation17 + $0x150] sm:$0xff]
    %v10351 = vld [vmem:[#allocation17 + $0x158] sm:$0xff]
    %v10352 = vld [vmem:[#allocation17 + $0x160] sm:$0xff]
    %v10353 = vld [vmem:[#allocation17 + $0x168] sm:$0xff]
    %v10354 = vld [vmem:[#allocation17 + $0x170] sm:$0xff]
    %v10355 = vld [vmem:[#allocation17 + $0x178] sm:$0xff]
    %v10356 = vld [vmem:[#allocation17 + $0x180] sm:$0xff]
    %v10357 = vld [vmem:[#allocation17 + $0x188] sm:$0xff]
    %v10358 = vld [vmem:[#allocation17 + $0x190] sm:$0xff]
    %v10359 = vld [vmem:[#allocation17 + $0x198] sm:$0xff]
    %v10360 = vld [vmem:[#allocation17 + $0x1a0] sm:$0xff]
    %v10361 = vld [vmem:[#allocation17 + $0x1a8] sm:$0xff]
    %v10362 = vld [vmem:[#allocation17 + $0x1b0] sm:$0xff]
    %v10363 = vld [vmem:[#allocation17 + $0x1b8] sm:$0xff]
    %v10364 = vld [vmem:[#allocation17 + $0x1c0] sm:$0xff]
    %v10365 = vld [vmem:[#allocation17 + $0x1c8] sm:$0xff]
    %v10366 = vld [vmem:[#allocation17 + $0x1d0] sm:$0xff]
    %v10367 = vld [vmem:[#allocation17 + $0x1d8] sm:$0xff]
    %v10368 = vld [vmem:[#allocation17 + $0x1e0] sm:$0xff]
    %v10369 = vld [vmem:[#allocation17 + $0x1e8] sm:$0xff]
    %v10370 = vld [vmem:[#allocation17 + $0x1f0] sm:$0xff]
    %v10371 = vld [vmem:[#allocation17 + $0x1f8] sm:$0xff]
    %v10372 = vld [vmem:[#allocation19] sm:$0x3]
    %v10374 = vlaneseq
    %v10375 = vshrl.u32 %v10374, 7
    %v10376 = vsub.s32 0, %v10375
    %v10377 = vrot.slane %v10372, %v10376
    %v10378 = vlaneseq
    %v10379 = vshrl.u32 %v10378, 7
    %v10380 = vsub.s32 1, %v10379
    %v10381 = vrot.slane %v10372, %v10380
    %v10448 = vunpack.c.l.b16 %v10308
    %v10449 = vunpack.c.h.b16 %v10308
    %v10450 = vunpack.c.l.b16 %v10309
    %v10451 = vunpack.c.h.b16 %v10309
    %v10452 = vunpack.c.l.b16 %v10310
    %v10453 = vunpack.c.h.b16 %v10310
    %v10454 = vunpack.c.l.b16 %v10311
    %v10455 = vunpack.c.h.b16 %v10311
    %v10456 = vunpack.c.l.b16 %v10312
    %v10457 = vunpack.c.h.b16 %v10312
    %v10458 = vunpack.c.l.b16 %v10313
    %v10459 = vunpack.c.h.b16 %v10313
    %v10460 = vunpack.c.l.b16 %v10314
    %v10461 = vunpack.c.h.b16 %v10314
    %v10462 = vunpack.c.l.b16 %v10315
    %v10463 = vunpack.c.h.b16 %v10315
    %v10464 = vunpack.c.l.b16 %v10316
    %v10465 = vunpack.c.h.b16 %v10316
    %v10466 = vunpack.c.l.b16 %v10317
    %v10467 = vunpack.c.h.b16 %v10317
    %v10468 = vunpack.c.l.b16 %v10318
    %v10469 = vunpack.c.h.b16 %v10318
    %v10470 = vunpack.c.l.b16 %v10319
    %v10471 = vunpack.c.h.b16 %v10319
    %v10472 = vunpack.c.l.b16 %v10320
    %v10473 = vunpack.c.h.b16 %v10320
    %v10474 = vunpack.c.l.b16 %v10321
    %v10475 = vunpack.c.h.b16 %v10321
    %v10476 = vunpack.c.l.b16 %v10322
    %v10477 = vunpack.c.h.b16 %v10322
    %v10478 = vunpack.c.l.b16 %v10323
    %v10479 = vunpack.c.h.b16 %v10323
    %v10480 = vunpack.c.l.b16 %v10324
    %v10481 = vunpack.c.h.b16 %v10324
    %v10482 = vunpack.c.l.b16 %v10325
    %v10483 = vunpack.c.h.b16 %v10325
    %v10484 = vunpack.c.l.b16 %v10326
    %v10485 = vunpack.c.h.b16 %v10326
    %v10486 = vunpack.c.l.b16 %v10327
    %v10487 = vunpack.c.h.b16 %v10327
    %v10488 = vunpack.c.l.b16 %v10328
    %v10489 = vunpack.c.h.b16 %v10328
    %v10490 = vunpack.c.l.b16 %v10329
    %v10491 = vunpack.c.h.b16 %v10329
    %v10492 = vunpack.c.l.b16 %v10330
    %v10493 = vunpack.c.h.b16 %v10330
    %v10494 = vunpack.c.l.b16 %v10331
    %v10495 = vunpack.c.h.b16 %v10331
    %v10496 = vunpack.c.l.b16 %v10332
    %v10497 = vunpack.c.h.b16 %v10332
    %v10498 = vunpack.c.l.b16 %v10333
    %v10499 = vunpack.c.h.b16 %v10333
    %v10500 = vunpack.c.l.b16 %v10334
    %v10501 = vunpack.c.h.b16 %v10334
    %v10502 = vunpack.c.l.b16 %v10335
    %v10503 = vunpack.c.h.b16 %v10335
    %v10504 = vunpack.c.l.b16 %v10336
    %v10505 = vunpack.c.h.b16 %v10336
    %v10506 = vunpack.c.l.b16 %v10337
    %v10507 = vunpack.c.h.b16 %v10337
    %v10508 = vunpack.c.l.b16 %v10338
    %v10509 = vunpack.c.h.b16 %v10338
    %v10510 = vunpack.c.l.b16 %v10339
    %v10511 = vunpack.c.h.b16 %v10339
    %v10512 = vunpack.c.l.b16 %v10340
    %v10513 = vunpack.c.h.b16 %v10340
    %v10514 = vunpack.c.l.b16 %v10341
    %v10515 = vunpack.c.h.b16 %v10341
    %v10516 = vunpack.c.l.b16 %v10342
    %v10517 = vunpack.c.h.b16 %v10342
    %v10518 = vunpack.c.l.b16 %v10343
    %v10519 = vunpack.c.h.b16 %v10343
    %v10520 = vunpack.c.l.b16 %v10344
    %v10521 = vunpack.c.h.b16 %v10344
    %v10522 = vunpack.c.l.b16 %v10345
    %v10523 = vunpack.c.h.b16 %v10345
    %v10524 = vunpack.c.l.b16 %v10346
    %v10525 = vunpack.c.h.b16 %v10346
    %v10526 = vunpack.c.l.b16 %v10347
    %v10527 = vunpack.c.h.b16 %v10347
    %v10528 = vunpack.c.l.b16 %v10348
    %v10529 = vunpack.c.h.b16 %v10348
    %v10530 = vunpack.c.l.b16 %v10349
    %v10531 = vunpack.c.h.b16 %v10349
    %v10532 = vunpack.c.l.b16 %v10350
    %v10533 = vunpack.c.h.b16 %v10350
    %v10534 = vunpack.c.l.b16 %v10351
    %v10535 = vunpack.c.h.b16 %v10351
    %v10536 = vunpack.c.l.b16 %v10352
    %v10537 = vunpack.c.h.b16 %v10352
    %v10538 = vunpack.c.l.b16 %v10353
    %v10539 = vunpack.c.h.b16 %v10353
    %v10540 = vunpack.c.l.b16 %v10354
    %v10541 = vunpack.c.h.b16 %v10354
    %v10542 = vunpack.c.l.b16 %v10355
    %v10543 = vunpack.c.h.b16 %v10355
    %v10544 = vunpack.c.l.b16 %v10356
    %v10545 = vunpack.c.h.b16 %v10356
    %v10546 = vunpack.c.l.b16 %v10357
    %v10547 = vunpack.c.h.b16 %v10357
    %v10548 = vunpack.c.l.b16 %v10358
    %v10549 = vunpack.c.h.b16 %v10358
    %v10550 = vunpack.c.l.b16 %v10359
    %v10551 = vunpack.c.h.b16 %v10359
    %v10552 = vunpack.c.l.b16 %v10360
    %v10553 = vunpack.c.h.b16 %v10360
    %v10554 = vunpack.c.l.b16 %v10361
    %v10555 = vunpack.c.h.b16 %v10361
    %v10556 = vunpack.c.l.b16 %v10362
    %v10557 = vunpack.c.h.b16 %v10362
    %v10558 = vunpack.c.l.b16 %v10363
    %v10559 = vunpack.c.h.b16 %v10363
    %v10560 = vunpack.c.l.b16 %v10364
    %v10561 = vunpack.c.h.b16 %v10364
    %v10562 = vunpack.c.l.b16 %v10365
    %v10563 = vunpack.c.h.b16 %v10365
    %v10564 = vunpack.c.l.b16 %v10366
    %v10565 = vunpack.c.h.b16 %v10366
    %v10566 = vunpack.c.l.b16 %v10367
    %v10567 = vunpack.c.h.b16 %v10367
    %v10568 = vunpack.c.l.b16 %v10368
    %v10569 = vunpack.c.h.b16 %v10368
    %v10570 = vunpack.c.l.b16 %v10369
    %v10571 = vunpack.c.h.b16 %v10369
    %v10572 = vunpack.c.l.b16 %v10370
    %v10573 = vunpack.c.h.b16 %v10370
    %v10574 = vunpack.c.l.b16 %v10371
    %v10575 = vunpack.c.h.b16 %v10371
    %v10576 = vpack.c.b16 %v10450, %v10448
    %v10577 = vpack.c.b16 %v10451, %v10449
    %v10578 = vpack.c.b16 %v10454, %v10452
    %v10579 = vpack.c.b16 %v10455, %v10453
    %v10580 = vpack.c.b16 %v10458, %v10456
    %v10581 = vpack.c.b16 %v10459, %v10457
    %v10582 = vpack.c.b16 %v10462, %v10460
    %v10583 = vpack.c.b16 %v10463, %v10461
    %v10584 = vpack.c.b16 %v10466, %v10464
    %v10585 = vpack.c.b16 %v10467, %v10465
    %v10586 = vpack.c.b16 %v10470, %v10468
    %v10587 = vpack.c.b16 %v10471, %v10469
    %v10588 = vpack.c.b16 %v10474, %v10472
    %v10589 = vpack.c.b16 %v10475, %v10473
    %v10590 = vpack.c.b16 %v10478, %v10476
    %v10591 = vpack.c.b16 %v10479, %v10477
    %v10592 = vpack.c.b16 %v10482, %v10480
    %v10593 = vpack.c.b16 %v10483, %v10481
    %v10594 = vpack.c.b16 %v10486, %v10484
    %v10595 = vpack.c.b16 %v10487, %v10485
    %v10596 = vpack.c.b16 %v10490, %v10488
    %v10597 = vpack.c.b16 %v10491, %v10489
    %v10598 = vpack.c.b16 %v10494, %v10492
    %v10599 = vpack.c.b16 %v10495, %v10493
    %v10600 = vpack.c.b16 %v10498, %v10496
    %v10601 = vpack.c.b16 %v10499, %v10497
    %v10602 = vpack.c.b16 %v10502, %v10500
    %v10603 = vpack.c.b16 %v10503, %v10501
    %v10604 = vpack.c.b16 %v10506, %v10504
    %v10605 = vpack.c.b16 %v10507, %v10505
    %v10606 = vpack.c.b16 %v10510, %v10508
    %v10607 = vpack.c.b16 %v10511, %v10509
    %v10608 = vpack.c.b16 %v10514, %v10512
    %v10609 = vpack.c.b16 %v10515, %v10513
    %v10610 = vpack.c.b16 %v10518, %v10516
    %v10611 = vpack.c.b16 %v10519, %v10517
    %v10612 = vpack.c.b16 %v10522, %v10520
    %v10613 = vpack.c.b16 %v10523, %v10521
    %v10614 = vpack.c.b16 %v10526, %v10524
    %v10615 = vpack.c.b16 %v10527, %v10525
    %v10616 = vpack.c.b16 %v10530, %v10528
    %v10617 = vpack.c.b16 %v10531, %v10529
    %v10618 = vpack.c.b16 %v10534, %v10532
    %v10619 = vpack.c.b16 %v10535, %v10533
    %v10620 = vpack.c.b16 %v10538, %v10536
    %v10621 = vpack.c.b16 %v10539, %v10537
    %v10622 = vpack.c.b16 %v10542, %v10540
    %v10623 = vpack.c.b16 %v10543, %v10541
    %v10624 = vpack.c.b16 %v10546, %v10544
    %v10625 = vpack.c.b16 %v10547, %v10545
    %v10626 = vpack.c.b16 %v10550, %v10548
    %v10627 = vpack.c.b16 %v10551, %v10549
    %v10628 = vpack.c.b16 %v10554, %v10552
    %v10629 = vpack.c.b16 %v10555, %v10553
    %v10630 = vpack.c.b16 %v10558, %v10556
    %v10631 = vpack.c.b16 %v10559, %v10557
    %v10632 = vpack.c.b16 %v10562, %v10560
    %v10633 = vpack.c.b16 %v10563, %v10561
    %v10634 = vpack.c.b16 %v10566, %v10564
    %v10635 = vpack.c.b16 %v10567, %v10565
    %v10636 = vpack.c.b16 %v10570, %v10568
    %v10637 = vpack.c.b16 %v10571, %v10569
    %v10638 = vpack.c.b16 %v10574, %v10572
    %v10639 = vpack.c.b16 %v10575, %v10573
    %10704 = vmatprep.subr.bf16.mxu0 %v10577
    %10705 = vmatpush1.bf16.msra.mxu0 %v10576
    %10706 = vmatprep.subr.bf16.mxu0 %v10579
    %10707 = vmatpush1.bf16.msra.mxu0 %v10578
    %10708 = vmatprep.subr.bf16.mxu0 %v10581
    %10709 = vmatpush1.bf16.msra.mxu0 %v10580
    %10710 = vmatprep.subr.bf16.mxu0 %v10583
    %10711 = vmatpush1.bf16.msra.mxu0 %v10582
    %10712 = vmatprep.subr.bf16.mxu0 %v10585
    %10713 = vmatpush1.bf16.msra.mxu0 %v10584
    %10714 = vmatprep.subr.bf16.mxu0 %v10587
    %10715 = vmatpush1.bf16.msra.mxu0 %v10586
    %10716 = vmatprep.subr.bf16.mxu0 %v10589
    %10717 = vmatpush1.bf16.msra.mxu0 %v10588
    %10718 = vmatprep.subr.bf16.mxu0 %v10591
    %10719 = vmatpush1.bf16.msra.mxu0 %v10590
    %10720 = vmatprep.subr.bf16.mxu0 %v10593
    %10721 = vmatpush1.bf16.msra.mxu0 %v10592
    %10722 = vmatprep.subr.bf16.mxu0 %v10595
    %10723 = vmatpush1.bf16.msra.mxu0 %v10594
    %10724 = vmatprep.subr.bf16.mxu0 %v10597
    %10725 = vmatpush1.bf16.msra.mxu0 %v10596
    %10726 = vmatprep.subr.bf16.mxu0 %v10599
    %10727 = vmatpush1.bf16.msra.mxu0 %v10598
    %10728 = vmatprep.subr.bf16.mxu0 %v10601
    %10729 = vmatpush1.bf16.msra.mxu0 %v10600
    %10730 = vmatprep.subr.bf16.mxu0 %v10603
    %10731 = vmatpush1.bf16.msra.mxu0 %v10602
    %10732 = vmatprep.subr.bf16.mxu0 %v10605
    %10733 = vmatpush1.bf16.msra.mxu0 %v10604
    %10734 = vmatprep.subr.bf16.mxu0 %v10607
    %10735 = vmatpush1.bf16.msra.mxu0 %v10606
    %10736 = vmatprep.mubr.bf16.mxu0 %v10305
    %10737 = vmatmul.mubr.bf16.gmra.mrb[0].mxu0 %v10304
    %v10738 = vpop.f32.mrb[0].mxu0
    %v10739 = vadd.f32 %v10377, %v10738
    %v10740 = vpop.f32.mrb[0].mxu0
    %v10741 = vadd.f32 %v10381, %v10740
    %v10742 = vpop.f32.mrb[0].mxu0
    %v10743 = vadd.f32 %v10377, %v10742
    %v10744 = vpop.f32.mrb[0].mxu0
    %v10745 = vadd.f32 %v10381, %v10744
    %10746 = vdwg.mxu0
    %10747 = vmatprep.subr.bf16.mxu0 %v10609
    %10748 = vmatpush1.bf16.msra.mxu0 %v10608
    %10749 = vmatprep.subr.bf16.mxu0 %v10611
    %10750 = vmatpush1.bf16.msra.mxu0 %v10610
    %10751 = vmatprep.subr.bf16.mxu0 %v10613
    %10752 = vmatpush1.bf16.msra.mxu0 %v10612
    %10753 = vmatprep.subr.bf16.mxu0 %v10615
    %10754 = vmatpush1.bf16.msra.mxu0 %v10614
    %10755 = vmatprep.subr.bf16.mxu0 %v10617
    %10756 = vmatpush1.bf16.msra.mxu0 %v10616
    %10757 = vmatprep.subr.bf16.mxu0 %v10619
    %10758 = vmatpush1.bf16.msra.mxu0 %v10618
    %10759 = vmatprep.subr.bf16.mxu0 %v10621
    %10760 = vmatpush1.bf16.msra.mxu0 %v10620
    %10761 = vmatprep.subr.bf16.mxu0 %v10623
    %10762 = vmatpush1.bf16.msra.mxu0 %v10622
    %10763 = vmatprep.subr.bf16.mxu0 %v10625
    %10764 = vmatpush1.bf16.msra.mxu0 %v10624
    %10765 = vmatprep.subr.bf16.mxu0 %v10627
    %10766 = vmatpush1.bf16.msra.mxu0 %v10626
    %10767 = vmatprep.subr.bf16.mxu0 %v10629
    %10768 = vmatpush1.bf16.msra.mxu0 %v10628
    %10769 = vmatprep.subr.bf16.mxu0 %v10631
    %10770 = vmatpush1.bf16.msra.mxu0 %v10630
    %10771 = vmatprep.subr.bf16.mxu0 %v10633
    %10772 = vmatpush1.bf16.msra.mxu0 %v10632
    %10773 = vmatprep.subr.bf16.mxu0 %v10635
    %10774 = vmatpush1.bf16.msra.mxu0 %v10634
    %10775 = vmatprep.subr.bf16.mxu0 %v10637
    %10776 = vmatpush1.bf16.msra.mxu0 %v10636
    %10777 = vmatprep.subr.bf16.mxu0 %v10639
    %10778 = vmatpush1.bf16.msra.mxu0 %v10638
    %10779 = vmatprep.mubr.bf16.mxu0 %v10307
    %10780 = vmatmul.mubr.bf16.gmra.mrb[0].mxu0 %v10306
    %v10781 = vpop.f32.mrb[0].mxu0
    %v10782 = vadd.f32 %v10739, %v10781
    %v10783 = vpop.f32.mrb[0].mxu0
    %v10784 = vadd.f32 %v10741, %v10783
    %v10785 = vpop.f32.mrb[0].mxu0
    %v10786 = vadd.f32 %v10743, %v10785
    %v10787 = vpop.f32.mrb[0].mxu0
    %v10788 = vadd.f32 %v10745, %v10787
    %10789 = vdwg.mxu0
    %v10790 = vld [vmem:[#allocation20] sm:$0x3]
    %v10791 = vld [vmem:[#allocation22] sm:$0x3]
    %v10792 = vadd.f32 %v10782, %v10786
    %v10793 = vrot.slane %v10792, 4
    %v10794 = vadd.f32 %v10792, %v10793
    %v10795 = vrot.slane %v10794, 2
    %v10796 = vadd.f32 %v10794, %v10795
    %v10797 = vrot.slane %v10796, 1
    %v10798 = vadd.f32 %v10796, %v10797
    %v10799 = vadd.f32 %v10784, %v10788
    %v10800 = vrot.slane %v10799, 4
    %v10801 = vadd.f32 %v10799, %v10800
    %v10802 = vrot.slane %v10801, 2
    %v10803 = vadd.f32 %v10801, %v10802
    %v10804 = vrot.slane %v10803, 1
    %v10805 = vadd.f32 %v10803, %v10804
    %v10806 = vmul.f32 %v10798, %v7963
    %v10807 = vmul.f32 %v10805, %v7963
    %v10808 = vsub.f32 %v10782, %v10806
    %v10809 = vsub.f32 %v10784, %v10807
    %v10810 = vsub.f32 %v10786, %v10806
    %v10811 = vsub.f32 %v10788, %v10807
    %v10812 = vmul.f32 %v10808, %v10808
    %v10813 = vmul.f32 %v10809, %v10809
    %v10814 = vmul.f32 %v10810, %v10810
    %v10815 = vmul.f32 %v10811, %v10811
    %v10816 = vadd.f32 %v10812, %v10814
    %v10817 = vrot.slane %v10816, 4
    %v10818 = vadd.f32 %v10816, %v10817
    %v10819 = vrot.slane %v10818, 2
    %v10820 = vadd.f32 %v10818, %v10819
    %v10821 = vrot.slane %v10820, 1
    %v10822 = vadd.f32 %v10820, %v10821
    %v10823 = vadd.f32 %v10813, %v10815
    %v10824 = vrot.slane %v10823, 4
    %v10825 = vadd.f32 %v10823, %v10824
    %v10826 = vrot.slane %v10825, 2
    %v10827 = vadd.f32 %v10825, %v10826
    %v10828 = vrot.slane %v10827, 1
    %v10829 = vadd.f32 %v10827, %v10828
    %v10830 = vmul.f32 %v10822, %v7963
    %v10831 = vmul.f32 %v10829, %v7963
    %v10832 = vadd.f32 %v10830, 1e-05
    %v10833 = vadd.f32 %v10831, 1e-05
    %v10834 = vrsqrt.pop %v10832
    %v10835 = vrsqrt.pop %v10833
    %v10836 = vmul.f32 %v10808, %v10834
    %v10837 = vmul.f32 %v10809, %v10835
    %v10838 = vmul.f32 %v10810, %v10834
    %v10839 = vmul.f32 %v10811, %v10835
    %v10841 = vlaneseq
    %v10842 = vshrl.u32 %v10841, 7
    %v10843 = vsub.s32 0, %v10842
    %v10844 = vrot.slane %v10790, %v10843
    %v10845 = vlaneseq
    %v10846 = vshrl.u32 %v10845, 7
    %v10847 = vsub.s32 1, %v10846
    %v10848 = vrot.slane %v10790, %v10847
    %v10851 = vmul.f32 %v10836, %v10844
    %v10852 = vmul.f32 %v10837, %v10848
    %v10853 = vmul.f32 %v10838, %v10844
    %v10854 = vmul.f32 %v10839, %v10848
    %v10856 = vlaneseq
    %v10857 = vshrl.u32 %v10856, 7
    %v10858 = vsub.s32 0, %v10857
    %v10859 = vrot.slane %v10791, %v10858
    %v10860 = vlaneseq
    %v10861 = vshrl.u32 %v10860, 7
    %v10862 = vsub.s32 1, %v10861
    %v10863 = vrot.slane %v10791, %v10862
    %v10866 = vadd.f32 %v10851, %v10859
    %v10867 = vadd.f32 %v10852, %v10863
    %v10868 = vadd.f32 %v10853, %v10859
    %v10869 = vadd.f32 %v10854, %v10863
    %v10870 = vmax.f32 %v10866, 0.0
    %v10871 = vmax.f32 %v10867, 0.0
    %v10872 = vmax.f32 %v10868, 0.0
    %v10873 = vmax.f32 %v10869, 0.0
    %v10874 = vpack.c.bf16 %v10872, %v10870
    %v10875 = vpack.c.bf16 %v10873, %v10871
    %v10876 = vld [vmem:[#allocation23] sm:$0xf]
    %v10877 = vld [vmem:[#allocation23 + $0x4] sm:$0xf]
    %v10878 = vld [vmem:[#allocation23 + $0x8] sm:$0xf]
    %v10879 = vld [vmem:[#allocation23 + $0xc] sm:$0xf]
    %v10880 = vld [vmem:[#allocation23 + $0x10] sm:$0xf]
    %v10881 = vld [vmem:[#allocation23 + $0x14] sm:$0xf]
    %v10882 = vld [vmem:[#allocation23 + $0x18] sm:$0xf]
    %v10883 = vld [vmem:[#allocation23 + $0x1c] sm:$0xf]
    %v10884 = vld [vmem:[#allocation23 + $0x20] sm:$0xf]
    %v10885 = vld [vmem:[#allocation23 + $0x24] sm:$0xf]
    %v10886 = vld [vmem:[#allocation23 + $0x28] sm:$0xf]
    %v10887 = vld [vmem:[#allocation23 + $0x2c] sm:$0xf]
    %v10888 = vld [vmem:[#allocation23 + $0x30] sm:$0xf]
    %v10889 = vld [vmem:[#allocation23 + $0x34] sm:$0xf]
    %v10890 = vld [vmem:[#allocation23 + $0x38] sm:$0xf]
    %v10891 = vld [vmem:[#allocation23 + $0x3c] sm:$0xf]
    %v10892 = vld [vmem:[#allocation23 + $0x40] sm:$0xf]
    %v10893 = vld [vmem:[#allocation23 + $0x44] sm:$0xf]
    %v10894 = vld [vmem:[#allocation23 + $0x48] sm:$0xf]
    %v10895 = vld [vmem:[#allocation23 + $0x4c] sm:$0xf]
    %v10896 = vld [vmem:[#allocation23 + $0x50] sm:$0xf]
    %v10897 = vld [vmem:[#allocation23 + $0x54] sm:$0xf]
    %v10898 = vld [vmem:[#allocation23 + $0x58] sm:$0xf]
    %v10899 = vld [vmem:[#allocation23 + $0x5c] sm:$0xf]
    %v10900 = vld [vmem:[#allocation23 + $0x60] sm:$0xf]
    %v10901 = vld [vmem:[#allocation23 + $0x64] sm:$0xf]
    %v10902 = vld [vmem:[#allocation23 + $0x68] sm:$0xf]
    %v10903 = vld [vmem:[#allocation23 + $0x6c] sm:$0xf]
    %v10904 = vld [vmem:[#allocation23 + $0x70] sm:$0xf]
    %v10905 = vld [vmem:[#allocation23 + $0x74] sm:$0xf]
    %v10906 = vld [vmem:[#allocation23 + $0x78] sm:$0xf]
    %v10907 = vld [vmem:[#allocation23 + $0x7c] sm:$0xf]
    %v10908 = vld [vmem:[#allocation25] sm:$0x1]
    %v10910 = vlaneseq
    %v10911 = vshrl.u32 %v10910, 7
    %v10912 = vsub.s32 0, %v10911
    %v10913 = vrot.slane %v10908, %v10912
    %v10947 = vunpack.c.l.b16 %v10876
    %v10948 = vunpack.c.l.b16 %v10877
    %v10949 = vunpack.c.l.b16 %v10878
    %v10950 = vunpack.c.l.b16 %v10879
    %v10951 = vunpack.c.l.b16 %v10880
    %v10952 = vunpack.c.l.b16 %v10881
    %v10953 = vunpack.c.l.b16 %v10882
    %v10954 = vunpack.c.l.b16 %v10883
    %v10955 = vunpack.c.l.b16 %v10884
    %v10956 = vunpack.c.l.b16 %v10885
    %v10957 = vunpack.c.l.b16 %v10886
    %v10958 = vunpack.c.l.b16 %v10887
    %v10959 = vunpack.c.l.b16 %v10888
    %v10960 = vunpack.c.l.b16 %v10889
    %v10961 = vunpack.c.l.b16 %v10890
    %v10962 = vunpack.c.l.b16 %v10891
    %v10963 = vunpack.c.l.b16 %v10892
    %v10964 = vunpack.c.l.b16 %v10893
    %v10965 = vunpack.c.l.b16 %v10894
    %v10966 = vunpack.c.l.b16 %v10895
    %v10967 = vunpack.c.l.b16 %v10896
    %v10968 = vunpack.c.l.b16 %v10897
    %v10969 = vunpack.c.l.b16 %v10898
    %v10970 = vunpack.c.l.b16 %v10899
    %v10971 = vunpack.c.l.b16 %v10900
    %v10972 = vunpack.c.l.b16 %v10901
    %v10973 = vunpack.c.l.b16 %v10902
    %v10974 = vunpack.c.l.b16 %v10903
    %v10975 = vunpack.c.l.b16 %v10904
    %v10976 = vunpack.c.l.b16 %v10905
    %v10977 = vunpack.c.l.b16 %v10906
    %v10978 = vunpack.c.l.b16 %v10907
    %v10979 = vpack.c.b16 %v10948, %v10947
    %v10980 = vpack.c.b16 %v10950, %v10949
    %v10981 = vpack.c.b16 %v10952, %v10951
    %v10982 = vpack.c.b16 %v10954, %v10953
    %v10983 = vpack.c.b16 %v10956, %v10955
    %v10984 = vpack.c.b16 %v10958, %v10957
    %v10985 = vpack.c.b16 %v10960, %v10959
    %v10986 = vpack.c.b16 %v10962, %v10961
    %v10987 = vpack.c.b16 %v10964, %v10963
    %v10988 = vpack.c.b16 %v10966, %v10965
    %v10989 = vpack.c.b16 %v10968, %v10967
    %v10990 = vpack.c.b16 %v10970, %v10969
    %v10991 = vpack.c.b16 %v10972, %v10971
    %v10992 = vpack.c.b16 %v10974, %v10973
    %v10993 = vpack.c.b16 %v10976, %v10975
    %v10994 = vpack.c.b16 %v10978, %v10977
    %11011 = vmatprep.subr.bf16.mxu0 0
    %11012 = vmatpush1.bf16.msra.mxu0 %v10979
    %11013 = vmatprep.subr.bf16.mxu0 0
    %11014 = vmatpush1.bf16.msra.mxu0 %v10980
    %11015 = vmatprep.subr.bf16.mxu0 0
    %11016 = vmatpush1.bf16.msra.mxu0 %v10981
    %11017 = vmatprep.subr.bf16.mxu0 0
    %11018 = vmatpush1.bf16.msra.mxu0 %v10982
    %11019 = vmatprep.subr.bf16.mxu0 0
    %11020 = vmatpush1.bf16.msra.mxu0 %v10983
    %11021 = vmatprep.subr.bf16.mxu0 0
    %11022 = vmatpush1.bf16.msra.mxu0 %v10984
    %11023 = vmatprep.subr.bf16.mxu0 0
    %11024 = vmatpush1.bf16.msra.mxu0 %v10985
    %11025 = vmatprep.subr.bf16.mxu0 0
    %11026 = vmatpush1.bf16.msra.mxu0 %v10986
    %11027 = vmatprep.subr.bf16.mxu0 0
    %11028 = vmatpush1.bf16.msra.mxu0 %v10987
    %11029 = vmatprep.subr.bf16.mxu0 0
    %11030 = vmatpush1.bf16.msra.mxu0 %v10988
    %11031 = vmatprep.subr.bf16.mxu0 0
    %11032 = vmatpush1.bf16.msra.mxu0 %v10989
    %11033 = vmatprep.subr.bf16.mxu0 0
    %11034 = vmatpush1.bf16.msra.mxu0 %v10990
    %11035 = vmatprep.subr.bf16.mxu0 0
    %11036 = vmatpush1.bf16.msra.mxu0 %v10991
    %11037 = vmatprep.subr.bf16.mxu0 0
    %11038 = vmatpush1.bf16.msra.mxu0 %v10992
    %11039 = vmatprep.subr.bf16.mxu0 0
    %11040 = vmatpush1.bf16.msra.mxu0 %v10993
    %11041 = vmatprep.subr.bf16.mxu0 0
    %11042 = vmatpush1.bf16.msra.mxu0 %v10994
    %11043 = vmatprep.mubr.bf16.mxu0 %v10875
    %11044 = vmatmul.mubr.bf16.gmra.mrb[0].mxu0 %v10874
    %v11045 = vpop.f32.mrb[0].mxu0
    %v11046 = vadd.f32 %v10913, %v11045
    %v11047 = vpop.f32.mrb[0].mxu0
    %v11048 = vpop.f32.mrb[0].mxu0
    %v11049 = vadd.f32 %v10913, %v11048
    %v11050 = vpop.f32.mrb[0].mxu0
    %11051 = vdwg.mxu0
    %v11052 = vld [vmem:[#allocation26] sm:$0x1]
    %v11053 = vld [vmem:[#allocation28] sm:$0x1]
    %v11054 = vadd.f32 %v11046, %v11049
    %v11055 = vrot.slane %v11054, 4
    %v11056 = vadd.f32 %v11054, %v11055
    %v11057 = vrot.slane %v11056, 2
    %v11058 = vadd.f32 %v11056, %v11057
    %v11059 = vrot.slane %v11058, 1
    %v11060 = vadd.f32 %v11058, %v11059
    %v11061 = vmul.f32 %v11060, %v7963
    %v11062 = vsub.f32 %v11046, %v11061
    %v11063 = vsub.f32 %v11049, %v11061
    %v11064 = vmul.f32 %v11062, %v11062
    %v11065 = vmul.f32 %v11063, %v11063
    %v11066 = vadd.f32 %v11064, %v11065
    %v11067 = vrot.slane %v11066, 4
    %v11068 = vadd.f32 %v11066, %v11067
    %v11069 = vrot.slane %v11068, 2
    %v11070 = vadd.f32 %v11068, %v11069
    %v11071 = vrot.slane %v11070, 1
    %v11072 = vadd.f32 %v11070, %v11071
    %v11073 = vmul.f32 %v11072, %v7963
    %v11074 = vadd.f32 %v11073, 1e-05
    %v11075 = vrsqrt.pop %v11074
    %v11076 = vmul.f32 %v11062, %v11075
    %v11077 = vmul.f32 %v11063, %v11075
    %v11079 = vlaneseq
    %v11080 = vshrl.u32 %v11079, 7
    %v11081 = vsub.s32 0, %v11080
    %v11082 = vrot.slane %v11052, %v11081
    %v11084 = vmul.f32 %v11076, %v11082
    %v11085 = vmul.f32 %v11077, %v11082
    %v11087 = vlaneseq
    %v11088 = vshrl.u32 %v11087, 7
    %v11089 = vsub.s32 0, %v11088
    %v11090 = vrot.slane %v11053, %v11089
    %v11092 = vadd.f32 %v11084, %v11090
    %v11093 = vadd.f32 %v11085, %v11090
    %v11094 = vmax.f32 %v11092, 0.0
    %v11095 = vmax.f32 %v11093, 0.0
    %v11096 = vpack.c.bf16 %v11095, %v11094
    %v11097 = vld [vmem:[#allocation29] sm:$0xf]
    %v11098 = vld [vmem:[#allocation29 + $0x4] sm:$0xf]
    %v11099 = vld [vmem:[#allocation29 + $0x8] sm:$0xf]
    %v11100 = vld [vmem:[#allocation29 + $0xc] sm:$0xf]
    %v11101 = vld [vmem:[#allocation29 + $0x10] sm:$0xf]
    %v11102 = vld [vmem:[#allocation29 + $0x14] sm:$0xf]
    %v11103 = vld [vmem:[#allocation29 + $0x18] sm:$0xf]
    %v11104 = vld [vmem:[#allocation29 + $0x1c] sm:$0xf]
    %v11105 = vld [vmem:[#allocation29 + $0x20] sm:$0xf]
    %v11106 = vld [vmem:[#allocation29 + $0x24] sm:$0xf]
    %v11107 = vld [vmem:[#allocation29 + $0x28] sm:$0xf]
    %v11108 = vld [vmem:[#allocation29 + $0x2c] sm:$0xf]
    %v11109 = vld [vmem:[#allocation29 + $0x30] sm:$0xf]
    %v11110 = vld [vmem:[#allocation29 + $0x34] sm:$0xf]
    %v11111 = vld [vmem:[#allocation29 + $0x38] sm:$0xf]
    %v11112 = vld [vmem:[#allocation29 + $0x3c] sm:$0xf]
    %v11113 = vld [vmem:[#allocation31] sm:$0x1]
    %v11115 = vlaneseq
    %v11116 = vshrl.u32 %v11115, 7
    %v11117 = vsub.s32 0, %v11116
    %v11118 = vrot.slane %v11113, %v11117
    %v11136 = vunpack.c.l.b16 %v11097
    %v11137 = vunpack.c.l.b16 %v11098
    %v11138 = vunpack.c.l.b16 %v11099
    %v11139 = vunpack.c.l.b16 %v11100
    %v11140 = vunpack.c.l.b16 %v11101
    %v11141 = vunpack.c.l.b16 %v11102
    %v11142 = vunpack.c.l.b16 %v11103
    %v11143 = vunpack.c.l.b16 %v11104
    %v11144 = vunpack.c.l.b16 %v11105
    %v11145 = vunpack.c.l.b16 %v11106
    %v11146 = vunpack.c.l.b16 %v11107
    %v11147 = vunpack.c.l.b16 %v11108
    %v11148 = vunpack.c.l.b16 %v11109
    %v11149 = vunpack.c.l.b16 %v11110
    %v11150 = vunpack.c.l.b16 %v11111
    %v11151 = vunpack.c.l.b16 %v11112
    %v11152 = vpack.c.b16 %v11137, %v11136
    %v11153 = vpack.c.b16 %v11139, %v11138
    %v11154 = vpack.c.b16 %v11141, %v11140
    %v11155 = vpack.c.b16 %v11143, %v11142
    %v11156 = vpack.c.b16 %v11145, %v11144
    %v11157 = vpack.c.b16 %v11147, %v11146
    %v11158 = vpack.c.b16 %v11149, %v11148
    %v11159 = vpack.c.b16 %v11151, %v11150
    %11168 = vmatprep.subr.bf16.mxu0 0
    %11169 = vmatpush1.bf16.msra.mxu0 %v11152
    %11170 = vmatprep.subr.bf16.mxu0 0
    %11171 = vmatpush1.bf16.msra.mxu0 %v11153
    %11172 = vmatprep.subr.bf16.mxu0 0
    %11173 = vmatpush1.bf16.msra.mxu0 %v11154
    %11174 = vmatprep.subr.bf16.mxu0 0
    %11175 = vmatpush1.bf16.msra.mxu0 %v11155
    %11176 = vmatprep.subr.bf16.mxu0 0
    %11177 = vmatpush1.bf16.msra.mxu0 %v11156
    %11178 = vmatprep.subr.bf16.mxu0 0
    %11179 = vmatpush1.bf16.msra.mxu0 %v11157
    %11180 = vmatprep.subr.bf16.mxu0 0
    %11181 = vmatpush1.bf16.msra.mxu0 %v11158
    %11182 = vmatprep.subr.bf16.mxu0 0
    %11183 = vmatpush1.bf16.msra.mxu0 %v11159
    %11184 = vmatprep.subr.bf16.mxu0 0
    %11185 = vmatpush1.bf16.msra.mxu0 0
    %11186 = vmatprep.subr.bf16.mxu0 0
    %11187 = vmatpush1.bf16.msra.mxu0 0
    %11188 = vmatprep.subr.bf16.mxu0 0
    %11189 = vmatpush1.bf16.msra.mxu0 0
    %11190 = vmatprep.subr.bf16.mxu0 0
    %11191 = vmatpush1.bf16.msra.mxu0 0
    %11192 = vmatprep.subr.bf16.mxu0 0
    %11193 = vmatpush1.bf16.msra.mxu0 0
    %11194 = vmatprep.subr.bf16.mxu0 0
    %11195 = vmatpush1.bf16.msra.mxu0 0
    %11196 = vmatprep.subr.bf16.mxu0 0
    %11197 = vmatpush1.bf16.msra.mxu0 0
    %11198 = vmatprep.subr.bf16.mxu0 0
    %11199 = vmatpush1.bf16.msra.mxu0 0
    %11200 = vmatprep.mubr.bf16.mxu0 0
    %11201 = vmatmul.mubr.bf16.gmra.mrb[0].mxu0 %v11096
    %v11202 = vpop.f32.mrb[0].mxu0
    %v11203 = vadd.f32 %v11118, %v11202
    %v11204 = vpop.f32.mrb[0].mxu0
    %v11205 = vpop.f32.mrb[0].mxu0
    %v11206 = vadd.f32 %v11118, %v11205
    %v11207 = vpop.f32.mrb[0].mxu0
    %11208 = vdwg.mxu0
    %11209 = vst [vmem:[#allocation32] sm:$0xff] %v11203
    %11210 = vst [vmem:[#allocation32 + $0x8] sm:$0xff] %v11206
    // Predicated region
    $region154: #{tpu_custom_call.1} parent=1 // pred_check
      _
    $region155: #{tpu_custom_call.1} parent=1 // pred_check_branch
      %11212 = sbr.rel (0) target = $region157
    $region156: #{tpu_custom_call.1} parent=1 // pred_region
      %s11214 = ssub.s32 256, 256
      %11215 = vsyncadd [#allocation4], %s11214
      %s11216 = sshll.u32 [#allocation32], 4
      %s11217 = int_to_ptr.vmem [resolvable:$true] %s11216
      %11222 = dma.vmem_to_hbm [thread:$0]  %s11217, 256, %s19, [#allocation4], 128, 128, 8
    $region157: #{tpu_custom_call.1} parent=1 // pred_fallthru
      _
    // Predicated region
    $region158: #{tpu_custom_call.1} parent=1 // pred_check
      _
    $region159: #{tpu_custom_call.1} parent=1 // pred_check_branch
      %11224 = sbr.rel (0) target = $region161
    $region160: #{tpu_custom_call.1} parent=1 // pred_region
      %11225 = dma.done [#allocation4], 256
    $region161: #{tpu_custom_call.1} parent=1 // pred_fallthru
      _
    %11226 = vsyncpa [#allocation3], 1
    %11227 = vsyncpa [#allocation6], 1
    %11228 = vsyncpa [#allocation9], 1
    %11229 = vsyncpa [#allocation12], 1
    %11230 = vsyncpa [#allocation15], 1
    %11231 = vsyncpa [#allocation18], 1
    %11232 = vsyncpa [#allocation21], 1
    %11233 = vsyncpa [#allocation24], 1
    %11234 = vsyncpa [#allocation27], 1
    %11235 = vsyncpa [#allocation30], 1
    %11236 = vsyncpa [#allocation4], 1

</llo_original>
